<compile_context>
chip_gen: v7x
topology: tpu7x:2x2x1
jax: 0.10.0
libtpu: 0.0.40
codegen_flags: <defaults>
</compile_context>

<pallas_src>
import jax
import jax.numpy as jnp
from jax.experimental import pallas as pl
from jax.experimental.pallas import tpu as pltpu

H = W = 16          # spatial size of the decoder feature map
C_IN = 16           # decoder output channels (input to positional attention)
C_MID = 16          # channel_reduction output channels
C_OUT = 5           # segmentation classes
K7, P7 = 7, 3       # SpatialAttention conv
K3, P3 = 3, 1       # segmentation head conv

WC_IN = W * C_IN            # 256 fused (w, c) lanes
WC_MID = W * C_MID          # 256
WC_OUT = W * C_OUT          # 80
WP7 = (W + 2 * P7) * C_IN   # 352 fused lanes of the 7x7-padded buffer
WP3 = (W + 2 * P3) * C_MID  # 288 fused lanes of the 3x3-padded buffer


def _seg_head_kernel(x_ref, pos_ref, w7t_ref, g_ref, w1b_ref, b1t_ref,
                     a3_ref, b3t_ref, o_ref, sp_ref, y2p_ref):
    Bt = x_ref.shape[0]
    R = Bt * H

    # Zero the padded scratch borders once; grid steps run sequentially ("arbitrary")
    # and every step fully overwrites the interiors, so borders stay zero afterwards.
    @pl.when(pl.program_id(0) == 0)
    def _init():
        sp_ref[...] = jnp.zeros_like(sp_ref)
        y2p_ref[...] = jnp.zeros_like(y2p_ref)

    x = x_ref[...]                                                  # (Bt, H, 256)

    # Fused add + zero-pad for the 7x7 conv: s = x + spacing written into the interior
    # of the padded VMEM scratch (borders already zero).
    sp_ref[:, P7:P7 + H, P7 * C_IN:P7 * C_IN + WC_IN] = x + pos_ref[...]

    # 1x1 conv on x, kept fused via the block-diagonal kron(I_W, W1) weights.  It is
    # independent of the attention path, so the MXU overlaps the VPU tap loop below.
    xw1 = jnp.dot(x.reshape(R, WC_IN), w1b_ref[...],
                  preferred_element_type=jnp.float32)               # (R, 256)

    # SpatialAttention 7x7 conv: 49 lane-dense VPU FMAs, two interleaved chains,
    # windows streamed from the padded VMEM scratch (bounded live ranges).
    w7t = w7t_ref[...]                                              # (49, 256)
    acc0 = sp_ref[:, 0:H, 0:WC_IN] * w7t[0]
    acc1 = sp_ref[:, 0:H, C_IN:C_IN + WC_IN] * w7t[1]
    for t in range(2, K7 * K7):
        ky, kx = divmod(t, K7)
        win = sp_ref[:, ky:ky + H, kx * C_IN:kx * C_IN + WC_IN]     # (Bt, H, 256)
        if t % 2 == 0:
            acc0 = acc0 + win * w7t[t]
        else:
            acc1 = acc1 + win * w7t[t]
    acc = acc0 + acc1                                               # (Bt, H, 256)

    # Channel sum + broadcast back across each 16-lane (w, c) group in ONE dense MXU
    # matmul against the constant group-sum matrix G, then the sigmoid gate (EUP).
    logits = jnp.dot(acc.reshape(R, WC_IN), g_ref[...],
                     preferred_element_type=jnp.float32)            # (R, 256)
    attn = jax.nn.sigmoid(logits)

    # channel_reduction output, still fused: y2 = attn * (x @ W1) + b1.
    y2 = attn * xw1 + b1t_ref[...]                                  # (R, 256)

    # segmentation_head 3x3 conv: write y2 into the interior of the 1-padded scratch,
    # then 3 accumulating MXU matmuls (one per ky) against banded weight matrices.
    y2p_ref[:, P3:P3 + H, P3 * C_MID:P3 * C_MID + WC_MID] = y2.reshape(Bt, H, WC_MID)

    out = jnp.dot(y2p_ref[:, 0:H, :].reshape(R, WP3), a3_ref[0],
                  preferred_element_type=jnp.float32)               # (R, 80)
    for ky in range(1, K3):
        out = out + jnp.dot(y2p_ref[:, ky:ky + H, :].reshape(R, WP3), a3_ref[ky],
                            preferred_element_type=jnp.float32)
    out = out + b3t_ref[...]

    o_ref[...] = out.reshape(Bt, H, WC_OUT)


def prepare_params(params):
    """One-time preprocessing of the module weights into the constant matrices the
    kernel consumes (lane-tiled / block-diagonal / banded).  Call once, off the hot path.
    params = (w7 (7,7,16) HWI, w1 (16,16) in->out, b1 (1,16), w3 (3,3,16,5) HWIO, b3 (1,5))."""
    w7, w1, b1, w3, b3 = [p.astype(jnp.float32) for p in params]
    f32 = jnp.float32

    # (49, 256): w7t[ky*7+kx, w*16+c] = w7[ky, kx, c]
    w7t = jnp.tile(w7.reshape(K7 * K7, C_IN), (1, W))
    # (256, 256) group-sum-and-broadcast: G[w*16+c, w'*16+c'] = (w == w')
    gmat = jnp.kron(jnp.eye(W, dtype=f32), jnp.ones((C_IN, C_IN), f32))
    # (256, 256) block-diagonal 1x1 weights: kron(I_W, W1)
    w1blk = jnp.kron(jnp.eye(W, dtype=f32), w1)
    # (1, 256) lane-tiled bias
    b1t = jnp.tile(b1.reshape(1, C_MID), (1, W))
    # (3, 288, 80) banded 3x3 weights: A3[ky][wp*16+c, w*5+o] = w3[ky, wp-w, c, o]
    a3 = jnp.stack([
        sum(jnp.kron(jnp.eye(W + 2 * P3, W, k=-kx, dtype=f32), w3[ky, kx])
            for kx in range(K3))
        for ky in range(K3)])
    # (1, 80) lane-tiled bias
    b3t = jnp.tile(b3.reshape(1, C_OUT), (1, W))
    return w7t, gmat, w1blk, b1t, a3, b3t


def _pick_batch_block(B, max_block=32):
    # Per-grid-step overhead (~0.35 us) dominates at this problem size, so run as few,
    # fat steps as possible.  max_block=32 keeps per-step VMEM (double-buffered inputs,
    # padded scratches, constants) around ~10 MiB — under the 32 MiB scoped limit we request.
    bt = min(B, max_block)
    while B % bt:
        bt -= 1
    return bt


def seg_model_head(decoder_output, spacing_position, prepped, *, block_b=None):
    """decoder_output / spacing_position: (B, H, W, C_IN) float32 NHWC (contiguous).
    prepped: output of prepare_params().  Returns (B, H, W, C_OUT) NHWC."""
    B = decoder_output.shape[0]
    w7t, gmat, w1blk, b1t, a3, b3t = prepped

    # Free reshapes to the lane-dense fused (w, c) layout -> row-contiguous DMAs.
    x = decoder_output.reshape(B, H, WC_IN)
    pos = spacing_position.reshape(B, H, WC_IN)

    Bt = _pick_batch_block(B) if block_b is None else block_b
    assert B % Bt == 0
    grid = (B // Bt,)

    def const_spec(shape):
        zeros = (0,) * len(shape)
        return pl.BlockSpec(shape, lambda g, zeros=zeros: zeros)

    flops = 2 * B * H * W * (K7 * K7 * C_IN + C_IN + C_IN * C_MID
                             + K3 * K3 * C_MID * C_OUT)
    bytes_accessed = (2 * B * H * WC_IN + B * H * WC_OUT
                      + K7 * K7 * WC_IN + 2 * WC_IN * WC_IN + WC_MID
                      + K3 * WP3 * WC_OUT + WC_OUT) * 4

    out = pl.pallas_call(
        _seg_head_kernel,
        out_shape=jax.ShapeDtypeStruct((B, H, WC_OUT), jnp.float32),
        grid=grid,
        in_specs=[
            pl.BlockSpec((Bt, H, WC_IN), lambda g: (g, 0, 0)),
            pl.BlockSpec((Bt, H, WC_IN), lambda g: (g, 0, 0)),
            const_spec((K7 * K7, WC_IN)),
            const_spec((WC_IN, WC_IN)),
            const_spec((WC_IN, WC_MID)),
            const_spec((1, WC_MID)),
            const_spec((K3, WP3, WC_OUT)),
            const_spec((1, WC_OUT)),
        ],
        out_specs=pl.BlockSpec((Bt, H, WC_OUT), lambda g: (g, 0, 0)),
        scratch_shapes=[
            pltpu.VMEM((Bt, H + 2 * P7, WP7), jnp.float32),   # padded (x + spacing)
            pltpu.VMEM((Bt, H + 2 * P3, WP3), jnp.float32),   # padded y2 for the 3x3 head
        ],
        compiler_params=pltpu.CompilerParams(
            # Scratch borders are zeroed on step 0 only, so grid steps run sequentially;
            # measured parallel-vs-arbitrary delta is ~0 at this size anyway.
            dimension_semantics=("arbitrary",),
            vmem_limit_bytes=32 * 1024 * 1024,
        ),
        cost_estimate=pl.CostEstimate(flops=flops,
                                      transcendentals=B * H * W * C_IN,
                                      bytes_accessed=bytes_accessed),
    )(x, pos, w7t, gmat, w1blk, b1t, a3, b3t)

    # Free reshape back to NHWC (no transpose launch).  NCHW consumers can use
    # out.transpose(0, 3, 1, 2).
    return out.reshape(B, H, W, C_OUT)


def ref_forward(decoder_output, spacing_position, params):
    """Pure-JAX reference (NHWC convolutions)."""
    w7, w1, b1, w3, b3 = params
    dn = ("NHWC", "HWIO", "NHWC")
    hi = jax.lax.Precision.HIGHEST
    s = decoder_output + spacing_position
    attn = jax.nn.sigmoid(jax.lax.conv_general_dilated(
        s, w7[..., None], (1, 1), "SAME", dimension_numbers=dn, precision=hi))
    y = decoder_output * attn
    y2 = jax.lax.conv_general_dilated(
        y, w1[None, None], (1, 1), "SAME", dimension_numbers=dn, precision=hi
    ) + b1.reshape(1, 1, 1, C_MID)
    out = jax.lax.conv_general_dilated(
        y2, w3, (1, 1), "SAME", dimension_numbers=dn, precision=hi
    ) + b3.reshape(1, 1, 1, C_OUT)
    return out


if __name__ == "__main__":
    key = jax.random.PRNGKey(0)
    kd, kp, k7, k1, kb1, k3, kb3 = jax.random.split(key, 7)
    B = 2

    decoder_output = jax.random.normal(kd, (B, H, W, C_IN), jnp.float32)
    spacing_position = jax.random.normal(kp, (B, H, W, C_IN), jnp.float32)

    # Synthetic parameters with the module's shapes:
    #   SpatialAttention.conv : Conv2d(16, 1, 7, padding=3, bias=False) -> (7,7,16) HWI
    #   channel_reduction     : Conv2d(16, 16, 1)                       -> (16,16)+(1,16)
    #   segmentation_head     : Conv2d(16, 5, 3, padding=1)             -> (3,3,16,5)+(1,5)
    params = (
        jax.random.normal(k7, (K7, K7, C_IN), jnp.float32) * 0.05,
        jax.random.normal(k1, (C_IN, C_MID), jnp.float32) * 0.10,
        jax.random.normal(kb1, (1, C_MID), jnp.float32) * 0.10,
        jax.random.normal(k3, (K3, K3, C_MID, C_OUT), jnp.float32) * 0.10,
        jax.random.normal(kb3, (1, C_OUT), jnp.float32) * 0.10,
    )

    prepped = prepare_params(params)
    out = jax.block_until_ready(seg_model_head(decoder_output, spacing_position, prepped))
    ref = ref_forward(decoder_output, spacing_position, params)

    assert out.shape == (B, H, W, C_OUT)
    if not bool(jnp.allclose(out, ref, atol=2e-3, rtol=2e-3)):
        err = float(jnp.max(jnp.abs(out - ref)))
        raise SystemExit(f"Pallas output does not match JAX reference (max abs err {err})")
    print("KERNEL_OK")
</pallas_src>

<mosaic_0001>
module attributes {stable_mosaic.version = 11 : i64} {
  func.func @_seg_head_kernel(%arg0: i32, %arg1: memref<2x16x256xf32, #tpu.memory_space<vmem>>, %arg2: memref<2x16x256xf32, #tpu.memory_space<vmem>>, %arg3: memref<49x256xf32, #tpu.memory_space<vmem>>, %arg4: memref<256x256xf32, #tpu.memory_space<vmem>>, %arg5: memref<256x256xf32, #tpu.memory_space<vmem>>, %arg6: memref<1x256xf32, #tpu.memory_space<vmem>>, %arg7: memref<3x288x80xf32, #tpu.memory_space<vmem>>, %arg8: memref<1x80xf32, #tpu.memory_space<vmem>>, %arg9: memref<2x16x80xf32, #tpu.memory_space<vmem>>, %arg10: memref<2x22x352xf32, #tpu.memory_space<vmem>>, %arg11: memref<2x18x288xf32, #tpu.memory_space<vmem>>) attributes {dimension_semantics = [#tpu.dimension_semantics<arbitrary>], iteration_bounds = array<i64: 1>, scalar_prefetch = 0 : i64, scratch_operands = 2 : i64, tpu.core_type = #tpu.core_type<tc>, window_params = [{transform_indices = @transform_0, window_bounds = array<i64: 2, 16, 256>}, {transform_indices = @transform_1, window_bounds = array<i64: 2, 16, 256>}, {pipeline_mode = #tpu.pipeline_mode<synchronous>, transform_indices = @transform_2, window_bounds = array<i64: 49, 256>}, {pipeline_mode = #tpu.pipeline_mode<synchronous>, transform_indices = @transform_3, window_bounds = array<i64: 256, 256>}, {pipeline_mode = #tpu.pipeline_mode<synchronous>, transform_indices = @transform_4, window_bounds = array<i64: 256, 256>}, {pipeline_mode = #tpu.pipeline_mode<synchronous>, transform_indices = @transform_5, window_bounds = array<i64: 1, 256>}, {pipeline_mode = #tpu.pipeline_mode<synchronous>, transform_indices = @transform_6, window_bounds = array<i64: 3, 288, 80>}, {pipeline_mode = #tpu.pipeline_mode<synchronous>, transform_indices = @transform_7, window_bounds = array<i64: 1, 80>}, {transform_indices = @transform_8, window_bounds = array<i64: 2, 16, 80>}]} {
    %c0_i32 = arith.constant 0 : i32
    %0 = arith.cmpi eq, %arg0, %c0_i32 : i32
    %1 = arith.extui %0 : i1 to i32
    %c0_i32_0 = arith.constant 0 : i32
    %2 = arith.cmpi ne, %1, %c0_i32_0 : i32
    scf.if %2 {
      %cst_183 = arith.constant 0.000000e+00 : f32
      %389 = vector.broadcast %cst_183 : f32 to vector<2x22x352xf32>
      %c0_184 = arith.constant 0 : index
      %c0_185 = arith.constant 0 : index
      %c0_186 = arith.constant 0 : index
      %390 = vector.load %arg10[%c0_184, %c0_185, %c0_186] : memref<2x22x352xf32, #tpu.memory_space<vmem>>, vector<2x22x352xf32>
      tpu.vector_store %arg10[%c0_184, %c0_185, %c0_186], %389 {strides = array<i32>} : memref<2x22x352xf32, #tpu.memory_space<vmem>>, vector<2x22x352xf32>,
      %cst_187 = arith.constant 0.000000e+00 : f32
      %391 = vector.broadcast %cst_187 : f32 to vector<2x18x288xf32>
      %c0_188 = arith.constant 0 : index
      %c0_189 = arith.constant 0 : index
      %c0_190 = arith.constant 0 : index
      %392 = vector.load %arg11[%c0_188, %c0_189, %c0_190] : memref<2x18x288xf32, #tpu.memory_space<vmem>>, vector<2x18x288xf32>
      tpu.vector_store %arg11[%c0_188, %c0_189, %c0_190], %391 {strides = array<i32>} : memref<2x18x288xf32, #tpu.memory_space<vmem>>, vector<2x18x288xf32>,
    } else {
    }
    %c0 = arith.constant 0 : index
    %c0_1 = arith.constant 0 : index
    %c0_2 = arith.constant 0 : index
    %3 = vector.load %arg1[%c0, %c0_1, %c0_2] : memref<2x16x256xf32, #tpu.memory_space<vmem>>, vector<2x16x256xf32>
    %c0_3 = arith.constant 0 : index
    %c0_4 = arith.constant 0 : index
    %c0_5 = arith.constant 0 : index
    %4 = vector.load %arg2[%c0_3, %c0_4, %c0_5] : memref<2x16x256xf32, #tpu.memory_space<vmem>>, vector<2x16x256xf32>
    %5 = arith.addf %3, %4 : vector<2x16x256xf32>
    %c0_6 = arith.constant 0 : index
    %c3 = arith.constant 3 : index
    %c48 = arith.constant 48 : index
    %6 = vector.load %arg10[%c0_6, %c3, %c48] : memref<2x22x352xf32, #tpu.memory_space<vmem>>, vector<2x16x256xf32>
    tpu.vector_store %arg10[%c0_6, %c3, %c48], %5 {strides = array<i32>} : memref<2x22x352xf32, #tpu.memory_space<vmem>>, vector<2x16x256xf32>,
    %7 = vector.shape_cast %3 : vector<2x16x256xf32> to vector<32x256xf32>
    %c0_7 = arith.constant 0 : index
    %c0_8 = arith.constant 0 : index
    %8 = vector.load %arg5[%c0_7, %c0_8] : memref<256x256xf32, #tpu.memory_space<vmem>>, vector<256x256xf32>
    %cst = arith.constant dense<0.000000e+00> : vector<32x256xf32>
    %9 = tpu.matmul %7, %8, %cst {dimension_numbers = #tpu.dot_dimension_numbers<[1], [0], [0], [1], [0, 0, 1, 1], [], []>} : vector<32x256xf32>, vector<256x256xf32>, vector<32x256xf32> -> vector<32x256xf32>
    %c0_9 = arith.constant 0 : index
    %c0_10 = arith.constant 0 : index
    %10 = vector.load %arg3[%c0_9, %c0_10] : memref<49x256xf32, #tpu.memory_space<vmem>>, vector<49x256xf32>
    %c0_11 = arith.constant 0 : index
    %c0_12 = arith.constant 0 : index
    %c0_13 = arith.constant 0 : index
    %11 = vector.load %arg10[%c0_11, %c0_12, %c0_13] : memref<2x22x352xf32, #tpu.memory_space<vmem>>, vector<2x16x256xf32>
    %12 = vector.extract_strided_slice %10 {offsets = [0, 0], sizes = [1, 256], strides = [1, 1]} : vector<49x256xf32> to vector<1x256xf32>
    %13 = vector.shape_cast %12 : vector<1x256xf32> to vector<256xf32>
    %14 = vector.shape_cast %13 : vector<256xf32> to vector<1x1x256xf32>
    %15 = vector.broadcast %14 : vector<1x1x256xf32> to vector<2x16x256xf32>
    %16 = arith.mulf %11, %15 : vector<2x16x256xf32>
    %c0_14 = arith.constant 0 : index
    %c0_15 = arith.constant 0 : index
    %c16 = arith.constant 16 : index
    %17 = vector.load %arg10[%c0_14, %c0_15, %c16] : memref<2x22x352xf32, #tpu.memory_space<vmem>>, vector<2x16x256xf32>
    %18 = vector.extract_strided_slice %10 {offsets = [1, 0], sizes = [1, 256], strides = [1, 1]} : vector<49x256xf32> to vector<1x256xf32>
    %19 = vector.shape_cast %18 : vector<1x256xf32> to vector<256xf32>
    %20 = vector.shape_cast %19 : vector<256xf32> to vector<1x1x256xf32>
    %21 = vector.broadcast %20 : vector<1x1x256xf32> to vector<2x16x256xf32>
    %22 = arith.mulf %17, %21 : vector<2x16x256xf32>
    %c0_16 = arith.constant 0 : index
    %c0_17 = arith.constant 0 : index
    %c32 = arith.constant 32 : index
    %23 = vector.load %arg10[%c0_16, %c0_17, %c32] : memref<2x22x352xf32, #tpu.memory_space<vmem>>, vector<2x16x256xf32>
    %24 = vector.extract_strided_slice %10 {offsets = [2, 0], sizes = [1, 256], strides = [1, 1]} : vector<49x256xf32> to vector<1x256xf32>
    %25 = vector.shape_cast %24 : vector<1x256xf32> to vector<256xf32>
    %26 = vector.shape_cast %25 : vector<256xf32> to vector<1x1x256xf32>
    %27 = vector.broadcast %26 : vector<1x1x256xf32> to vector<2x16x256xf32>
    %28 = arith.mulf %23, %27 : vector<2x16x256xf32>
    %29 = arith.addf %16, %28 : vector<2x16x256xf32>
    %c0_18 = arith.constant 0 : index
    %c0_19 = arith.constant 0 : index
    %c48_20 = arith.constant 48 : index
    %30 = vector.load %arg10[%c0_18, %c0_19, %c48_20] : memref<2x22x352xf32, #tpu.memory_space<vmem>>, vector<2x16x256xf32>
    %31 = vector.extract_strided_slice %10 {offsets = [3, 0], sizes = [1, 256], strides = [1, 1]} : vector<49x256xf32> to vector<1x256xf32>
    %32 = vector.shape_cast %31 : vector<1x256xf32> to vector<256xf32>
    %33 = vector.shape_cast %32 : vector<256xf32> to vector<1x1x256xf32>
    %34 = vector.broadcast %33 : vector<1x1x256xf32> to vector<2x16x256xf32>
    %35 = arith.mulf %30, %34 : vector<2x16x256xf32>
    %36 = arith.addf %22, %35 : vector<2x16x256xf32>
    %c0_21 = arith.constant 0 : index
    %c0_22 = arith.constant 0 : index
    %c64 = arith.constant 64 : index
    %37 = vector.load %arg10[%c0_21, %c0_22, %c64] : memref<2x22x352xf32, #tpu.memory_space<vmem>>, vector<2x16x256xf32>
    %38 = vector.extract_strided_slice %10 {offsets = [4, 0], sizes = [1, 256], strides = [1, 1]} : vector<49x256xf32> to vector<1x256xf32>
    %39 = vector.shape_cast %38 : vector<1x256xf32> to vector<256xf32>
    %40 = vector.shape_cast %39 : vector<256xf32> to vector<1x1x256xf32>
    %41 = vector.broadcast %40 : vector<1x1x256xf32> to vector<2x16x256xf32>
    %42 = arith.mulf %37, %41 : vector<2x16x256xf32>
    %43 = arith.addf %29, %42 : vector<2x16x256xf32>
    %c0_23 = arith.constant 0 : index
    %c0_24 = arith.constant 0 : index
    %c80 = arith.constant 80 : index
    %44 = vector.load %arg10[%c0_23, %c0_24, %c80] : memref<2x22x352xf32, #tpu.memory_space<vmem>>, vector<2x16x256xf32>
    %45 = vector.extract_strided_slice %10 {offsets = [5, 0], sizes = [1, 256], strides = [1, 1]} : vector<49x256xf32> to vector<1x256xf32>
    %46 = vector.shape_cast %45 : vector<1x256xf32> to vector<256xf32>
    %47 = vector.shape_cast %46 : vector<256xf32> to vector<1x1x256xf32>
    %48 = vector.broadcast %47 : vector<1x1x256xf32> to vector<2x16x256xf32>
    %49 = arith.mulf %44, %48 : vector<2x16x256xf32>
    %50 = arith.addf %36, %49 : vector<2x16x256xf32>
    %c0_25 = arith.constant 0 : index
    %c0_26 = arith.constant 0 : index
    %c96 = arith.constant 96 : index
    %51 = vector.load %arg10[%c0_25, %c0_26, %c96] : memref<2x22x352xf32, #tpu.memory_space<vmem>>, vector<2x16x256xf32>
    %52 = vector.extract_strided_slice %10 {offsets = [6, 0], sizes = [1, 256], strides = [1, 1]} : vector<49x256xf32> to vector<1x256xf32>
    %53 = vector.shape_cast %52 : vector<1x256xf32> to vector<256xf32>
    %54 = vector.shape_cast %53 : vector<256xf32> to vector<1x1x256xf32>
    %55 = vector.broadcast %54 : vector<1x1x256xf32> to vector<2x16x256xf32>
    %56 = arith.mulf %51, %55 : vector<2x16x256xf32>
    %57 = arith.addf %43, %56 : vector<2x16x256xf32>
    %c0_27 = arith.constant 0 : index
    %c1 = arith.constant 1 : index
    %c0_28 = arith.constant 0 : index
    %58 = vector.load %arg10[%c0_27, %c1, %c0_28] : memref<2x22x352xf32, #tpu.memory_space<vmem>>, vector<2x16x256xf32>
    %59 = vector.extract_strided_slice %10 {offsets = [7, 0], sizes = [1, 256], strides = [1, 1]} : vector<49x256xf32> to vector<1x256xf32>
    %60 = vector.shape_cast %59 : vector<1x256xf32> to vector<256xf32>
    %61 = vector.shape_cast %60 : vector<256xf32> to vector<1x1x256xf32>
    %62 = vector.broadcast %61 : vector<1x1x256xf32> to vector<2x16x256xf32>
    %63 = arith.mulf %58, %62 : vector<2x16x256xf32>
    %64 = arith.addf %50, %63 : vector<2x16x256xf32>
    %c0_29 = arith.constant 0 : index
    %c1_30 = arith.constant 1 : index
    %c16_31 = arith.constant 16 : index
    %65 = vector.load %arg10[%c0_29, %c1_30, %c16_31] : memref<2x22x352xf32, #tpu.memory_space<vmem>>, vector<2x16x256xf32>
    %66 = vector.extract_strided_slice %10 {offsets = [8, 0], sizes = [1, 256], strides = [1, 1]} : vector<49x256xf32> to vector<1x256xf32>
    %67 = vector.shape_cast %66 : vector<1x256xf32> to vector<256xf32>
    %68 = vector.shape_cast %67 : vector<256xf32> to vector<1x1x256xf32>
    %69 = vector.broadcast %68 : vector<1x1x256xf32> to vector<2x16x256xf32>
    %70 = arith.mulf %65, %69 : vector<2x16x256xf32>
    %71 = arith.addf %57, %70 : vector<2x16x256xf32>
    %c0_32 = arith.constant 0 : index
    %c1_33 = arith.constant 1 : index
    %c32_34 = arith.constant 32 : index
    %72 = vector.load %arg10[%c0_32, %c1_33, %c32_34] : memref<2x22x352xf32, #tpu.memory_space<vmem>>, vector<2x16x256xf32>
    %73 = vector.extract_strided_slice %10 {offsets = [9, 0], sizes = [1, 256], strides = [1, 1]} : vector<49x256xf32> to vector<1x256xf32>
    %74 = vector.shape_cast %73 : vector<1x256xf32> to vector<256xf32>
    %75 = vector.shape_cast %74 : vector<256xf32> to vector<1x1x256xf32>
    %76 = vector.broadcast %75 : vector<1x1x256xf32> to vector<2x16x256xf32>
    %77 = arith.mulf %72, %76 : vector<2x16x256xf32>
    %78 = arith.addf %64, %77 : vector<2x16x256xf32>
    %c0_35 = arith.constant 0 : index
    %c1_36 = arith.constant 1 : index
    %c48_37 = arith.constant 48 : index
    %79 = vector.load %arg10[%c0_35, %c1_36, %c48_37] : memref<2x22x352xf32, #tpu.memory_space<vmem>>, vector<2x16x256xf32>
    %80 = vector.extract_strided_slice %10 {offsets = [10, 0], sizes = [1, 256], strides = [1, 1]} : vector<49x256xf32> to vector<1x256xf32>
    %81 = vector.shape_cast %80 : vector<1x256xf32> to vector<256xf32>
    %82 = vector.shape_cast %81 : vector<256xf32> to vector<1x1x256xf32>
    %83 = vector.broadcast %82 : vector<1x1x256xf32> to vector<2x16x256xf32>
    %84 = arith.mulf %79, %83 : vector<2x16x256xf32>
    %85 = arith.addf %71, %84 : vector<2x16x256xf32>
    %c0_38 = arith.constant 0 : index
    %c1_39 = arith.constant 1 : index
    %c64_40 = arith.constant 64 : index
    %86 = vector.load %arg10[%c0_38, %c1_39, %c64_40] : memref<2x22x352xf32, #tpu.memory_space<vmem>>, vector<2x16x256xf32>
    %87 = vector.extract_strided_slice %10 {offsets = [11, 0], sizes = [1, 256], strides = [1, 1]} : vector<49x256xf32> to vector<1x256xf32>
    %88 = vector.shape_cast %87 : vector<1x256xf32> to vector<256xf32>
    %89 = vector.shape_cast %88 : vector<256xf32> to vector<1x1x256xf32>
    %90 = vector.broadcast %89 : vector<1x1x256xf32> to vector<2x16x256xf32>
    %91 = arith.mulf %86, %90 : vector<2x16x256xf32>
    %92 = arith.addf %78, %91 : vector<2x16x256xf32>
    %c0_41 = arith.constant 0 : index
    %c1_42 = arith.constant 1 : index
    %c80_43 = arith.constant 80 : index
    %93 = vector.load %arg10[%c0_41, %c1_42, %c80_43] : memref<2x22x352xf32, #tpu.memory_space<vmem>>, vector<2x16x256xf32>
    %94 = vector.extract_strided_slice %10 {offsets = [12, 0], sizes = [1, 256], strides = [1, 1]} : vector<49x256xf32> to vector<1x256xf32>
    %95 = vector.shape_cast %94 : vector<1x256xf32> to vector<256xf32>
    %96 = vector.shape_cast %95 : vector<256xf32> to vector<1x1x256xf32>
    %97 = vector.broadcast %96 : vector<1x1x256xf32> to vector<2x16x256xf32>
    %98 = arith.mulf %93, %97 : vector<2x16x256xf32>
    %99 = arith.addf %85, %98 : vector<2x16x256xf32>
    %c0_44 = arith.constant 0 : index
    %c1_45 = arith.constant 1 : index
    %c96_46 = arith.constant 96 : index
    %100 = vector.load %arg10[%c0_44, %c1_45, %c96_46] : memref<2x22x352xf32, #tpu.memory_space<vmem>>, vector<2x16x256xf32>
    %101 = vector.extract_strided_slice %10 {offsets = [13, 0], sizes = [1, 256], strides = [1, 1]} : vector<49x256xf32> to vector<1x256xf32>
    %102 = vector.shape_cast %101 : vector<1x256xf32> to vector<256xf32>
    %103 = vector.shape_cast %102 : vector<256xf32> to vector<1x1x256xf32>
    %104 = vector.broadcast %103 : vector<1x1x256xf32> to vector<2x16x256xf32>
    %105 = arith.mulf %100, %104 : vector<2x16x256xf32>
    %106 = arith.addf %92, %105 : vector<2x16x256xf32>
    %c0_47 = arith.constant 0 : index
    %c2 = arith.constant 2 : index
    %c0_48 = arith.constant 0 : index
    %107 = vector.load %arg10[%c0_47, %c2, %c0_48] : memref<2x22x352xf32, #tpu.memory_space<vmem>>, vector<2x16x256xf32>
    %108 = vector.extract_strided_slice %10 {offsets = [14, 0], sizes = [1, 256], strides = [1, 1]} : vector<49x256xf32> to vector<1x256xf32>
    %109 = vector.shape_cast %108 : vector<1x256xf32> to vector<256xf32>
    %110 = vector.shape_cast %109 : vector<256xf32> to vector<1x1x256xf32>
    %111 = vector.broadcast %110 : vector<1x1x256xf32> to vector<2x16x256xf32>
    %112 = arith.mulf %107, %111 : vector<2x16x256xf32>
    %113 = arith.addf %99, %112 : vector<2x16x256xf32>
    %c0_49 = arith.constant 0 : index
    %c2_50 = arith.constant 2 : index
    %c16_51 = arith.constant 16 : index
    %114 = vector.load %arg10[%c0_49, %c2_50, %c16_51] : memref<2x22x352xf32, #tpu.memory_space<vmem>>, vector<2x16x256xf32>
    %115 = vector.extract_strided_slice %10 {offsets = [15, 0], sizes = [1, 256], strides = [1, 1]} : vector<49x256xf32> to vector<1x256xf32>
    %116 = vector.shape_cast %115 : vector<1x256xf32> to vector<256xf32>
    %117 = vector.shape_cast %116 : vector<256xf32> to vector<1x1x256xf32>
    %118 = vector.broadcast %117 : vector<1x1x256xf32> to vector<2x16x256xf32>
    %119 = arith.mulf %114, %118 : vector<2x16x256xf32>
    %120 = arith.addf %106, %119 : vector<2x16x256xf32>
    %c0_52 = arith.constant 0 : index
    %c2_53 = arith.constant 2 : index
    %c32_54 = arith.constant 32 : index
    %121 = vector.load %arg10[%c0_52, %c2_53, %c32_54] : memref<2x22x352xf32, #tpu.memory_space<vmem>>, vector<2x16x256xf32>
    %122 = vector.extract_strided_slice %10 {offsets = [16, 0], sizes = [1, 256], strides = [1, 1]} : vector<49x256xf32> to vector<1x256xf32>
    %123 = vector.shape_cast %122 : vector<1x256xf32> to vector<256xf32>
    %124 = vector.shape_cast %123 : vector<256xf32> to vector<1x1x256xf32>
    %125 = vector.broadcast %124 : vector<1x1x256xf32> to vector<2x16x256xf32>
    %126 = arith.mulf %121, %125 : vector<2x16x256xf32>
    %127 = arith.addf %113, %126 : vector<2x16x256xf32>
    %c0_55 = arith.constant 0 : index
    %c2_56 = arith.constant 2 : index
    %c48_57 = arith.constant 48 : index
    %128 = vector.load %arg10[%c0_55, %c2_56, %c48_57] : memref<2x22x352xf32, #tpu.memory_space<vmem>>, vector<2x16x256xf32>
    %129 = vector.extract_strided_slice %10 {offsets = [17, 0], sizes = [1, 256], strides = [1, 1]} : vector<49x256xf32> to vector<1x256xf32>
    %130 = vector.shape_cast %129 : vector<1x256xf32> to vector<256xf32>
    %131 = vector.shape_cast %130 : vector<256xf32> to vector<1x1x256xf32>
    %132 = vector.broadcast %131 : vector<1x1x256xf32> to vector<2x16x256xf32>
    %133 = arith.mulf %128, %132 : vector<2x16x256xf32>
    %134 = arith.addf %120, %133 : vector<2x16x256xf32>
    %c0_58 = arith.constant 0 : index
    %c2_59 = arith.constant 2 : index
    %c64_60 = arith.constant 64 : index
    %135 = vector.load %arg10[%c0_58, %c2_59, %c64_60] : memref<2x22x352xf32, #tpu.memory_space<vmem>>, vector<2x16x256xf32>
    %136 = vector.extract_strided_slice %10 {offsets = [18, 0], sizes = [1, 256], strides = [1, 1]} : vector<49x256xf32> to vector<1x256xf32>
    %137 = vector.shape_cast %136 : vector<1x256xf32> to vector<256xf32>
    %138 = vector.shape_cast %137 : vector<256xf32> to vector<1x1x256xf32>
    %139 = vector.broadcast %138 : vector<1x1x256xf32> to vector<2x16x256xf32>
    %140 = arith.mulf %135, %139 : vector<2x16x256xf32>
    %141 = arith.addf %127, %140 : vector<2x16x256xf32>
    %c0_61 = arith.constant 0 : index
    %c2_62 = arith.constant 2 : index
    %c80_63 = arith.constant 80 : index
    %142 = vector.load %arg10[%c0_61, %c2_62, %c80_63] : memref<2x22x352xf32, #tpu.memory_space<vmem>>, vector<2x16x256xf32>
    %143 = vector.extract_strided_slice %10 {offsets = [19, 0], sizes = [1, 256], strides = [1, 1]} : vector<49x256xf32> to vector<1x256xf32>
    %144 = vector.shape_cast %143 : vector<1x256xf32> to vector<256xf32>
    %145 = vector.shape_cast %144 : vector<256xf32> to vector<1x1x256xf32>
    %146 = vector.broadcast %145 : vector<1x1x256xf32> to vector<2x16x256xf32>
    %147 = arith.mulf %142, %146 : vector<2x16x256xf32>
    %148 = arith.addf %134, %147 : vector<2x16x256xf32>
    %c0_64 = arith.constant 0 : index
    %c2_65 = arith.constant 2 : index
    %c96_66 = arith.constant 96 : index
    %149 = vector.load %arg10[%c0_64, %c2_65, %c96_66] : memref<2x22x352xf32, #tpu.memory_space<vmem>>, vector<2x16x256xf32>
    %150 = vector.extract_strided_slice %10 {offsets = [20, 0], sizes = [1, 256], strides = [1, 1]} : vector<49x256xf32> to vector<1x256xf32>
    %151 = vector.shape_cast %150 : vector<1x256xf32> to vector<256xf32>
    %152 = vector.shape_cast %151 : vector<256xf32> to vector<1x1x256xf32>
    %153 = vector.broadcast %152 : vector<1x1x256xf32> to vector<2x16x256xf32>
    %154 = arith.mulf %149, %153 : vector<2x16x256xf32>
    %155 = arith.addf %141, %154 : vector<2x16x256xf32>
    %c0_67 = arith.constant 0 : index
    %c3_68 = arith.constant 3 : index
    %c0_69 = arith.constant 0 : index
    %156 = vector.load %arg10[%c0_67, %c3_68, %c0_69] : memref<2x22x352xf32, #tpu.memory_space<vmem>>, vector<2x16x256xf32>
    %157 = vector.extract_strided_slice %10 {offsets = [21, 0], sizes = [1, 256], strides = [1, 1]} : vector<49x256xf32> to vector<1x256xf32>
    %158 = vector.shape_cast %157 : vector<1x256xf32> to vector<256xf32>
    %159 = vector.shape_cast %158 : vector<256xf32> to vector<1x1x256xf32>
    %160 = vector.broadcast %159 : vector<1x1x256xf32> to vector<2x16x256xf32>
    %161 = arith.mulf %156, %160 : vector<2x16x256xf32>
    %162 = arith.addf %148, %161 : vector<2x16x256xf32>
    %c0_70 = arith.constant 0 : index
    %c3_71 = arith.constant 3 : index
    %c16_72 = arith.constant 16 : index
    %163 = vector.load %arg10[%c0_70, %c3_71, %c16_72] : memref<2x22x352xf32, #tpu.memory_space<vmem>>, vector<2x16x256xf32>
    %164 = vector.extract_strided_slice %10 {offsets = [22, 0], sizes = [1, 256], strides = [1, 1]} : vector<49x256xf32> to vector<1x256xf32>
    %165 = vector.shape_cast %164 : vector<1x256xf32> to vector<256xf32>
    %166 = vector.shape_cast %165 : vector<256xf32> to vector<1x1x256xf32>
    %167 = vector.broadcast %166 : vector<1x1x256xf32> to vector<2x16x256xf32>
    %168 = arith.mulf %163, %167 : vector<2x16x256xf32>
    %169 = arith.addf %155, %168 : vector<2x16x256xf32>
    %c0_73 = arith.constant 0 : index
    %c3_74 = arith.constant 3 : index
    %c32_75 = arith.constant 32 : index
    %170 = vector.load %arg10[%c0_73, %c3_74, %c32_75] : memref<2x22x352xf32, #tpu.memory_space<vmem>>, vector<2x16x256xf32>
    %171 = vector.extract_strided_slice %10 {offsets = [23, 0], sizes = [1, 256], strides = [1, 1]} : vector<49x256xf32> to vector<1x256xf32>
    %172 = vector.shape_cast %171 : vector<1x256xf32> to vector<256xf32>
    %173 = vector.shape_cast %172 : vector<256xf32> to vector<1x1x256xf32>
    %174 = vector.broadcast %173 : vector<1x1x256xf32> to vector<2x16x256xf32>
    %175 = arith.mulf %170, %174 : vector<2x16x256xf32>
    %176 = arith.addf %162, %175 : vector<2x16x256xf32>
    %c0_76 = arith.constant 0 : index
    %c3_77 = arith.constant 3 : index
    %c48_78 = arith.constant 48 : index
    %177 = vector.load %arg10[%c0_76, %c3_77, %c48_78] : memref<2x22x352xf32, #tpu.memory_space<vmem>>, vector<2x16x256xf32>
    %178 = vector.extract_strided_slice %10 {offsets = [24, 0], sizes = [1, 256], strides = [1, 1]} : vector<49x256xf32> to vector<1x256xf32>
    %179 = vector.shape_cast %178 : vector<1x256xf32> to vector<256xf32>
    %180 = vector.shape_cast %179 : vector<256xf32> to vector<1x1x256xf32>
    %181 = vector.broadcast %180 : vector<1x1x256xf32> to vector<2x16x256xf32>
    %182 = arith.mulf %177, %181 : vector<2x16x256xf32>
    %183 = arith.addf %169, %182 : vector<2x16x256xf32>
    %c0_79 = arith.constant 0 : index
    %c3_80 = arith.constant 3 : index
    %c64_81 = arith.constant 64 : index
    %184 = vector.load %arg10[%c0_79, %c3_80, %c64_81] : memref<2x22x352xf32, #tpu.memory_space<vmem>>, vector<2x16x256xf32>
    %185 = vector.extract_strided_slice %10 {offsets = [25, 0], sizes = [1, 256], strides = [1, 1]} : vector<49x256xf32> to vector<1x256xf32>
    %186 = vector.shape_cast %185 : vector<1x256xf32> to vector<256xf32>
    %187 = vector.shape_cast %186 : vector<256xf32> to vector<1x1x256xf32>
    %188 = vector.broadcast %187 : vector<1x1x256xf32> to vector<2x16x256xf32>
    %189 = arith.mulf %184, %188 : vector<2x16x256xf32>
    %190 = arith.addf %176, %189 : vector<2x16x256xf32>
    %c0_82 = arith.constant 0 : index
    %c3_83 = arith.constant 3 : index
    %c80_84 = arith.constant 80 : index
    %191 = vector.load %arg10[%c0_82, %c3_83, %c80_84] : memref<2x22x352xf32, #tpu.memory_space<vmem>>, vector<2x16x256xf32>
    %192 = vector.extract_strided_slice %10 {offsets = [26, 0], sizes = [1, 256], strides = [1, 1]} : vector<49x256xf32> to vector<1x256xf32>
    %193 = vector.shape_cast %192 : vector<1x256xf32> to vector<256xf32>
    %194 = vector.shape_cast %193 : vector<256xf32> to vector<1x1x256xf32>
    %195 = vector.broadcast %194 : vector<1x1x256xf32> to vector<2x16x256xf32>
    %196 = arith.mulf %191, %195 : vector<2x16x256xf32>
    %197 = arith.addf %183, %196 : vector<2x16x256xf32>
    %c0_85 = arith.constant 0 : index
    %c3_86 = arith.constant 3 : index
    %c96_87 = arith.constant 96 : index
    %198 = vector.load %arg10[%c0_85, %c3_86, %c96_87] : memref<2x22x352xf32, #tpu.memory_space<vmem>>, vector<2x16x256xf32>
    %199 = vector.extract_strided_slice %10 {offsets = [27, 0], sizes = [1, 256], strides = [1, 1]} : vector<49x256xf32> to vector<1x256xf32>
    %200 = vector.shape_cast %199 : vector<1x256xf32> to vector<256xf32>
    %201 = vector.shape_cast %200 : vector<256xf32> to vector<1x1x256xf32>
    %202 = vector.broadcast %201 : vector<1x1x256xf32> to vector<2x16x256xf32>
    %203 = arith.mulf %198, %202 : vector<2x16x256xf32>
    %204 = arith.addf %190, %203 : vector<2x16x256xf32>
    %c0_88 = arith.constant 0 : index
    %c4 = arith.constant 4 : index
    %c0_89 = arith.constant 0 : index
    %205 = vector.load %arg10[%c0_88, %c4, %c0_89] : memref<2x22x352xf32, #tpu.memory_space<vmem>>, vector<2x16x256xf32>
    %206 = vector.extract_strided_slice %10 {offsets = [28, 0], sizes = [1, 256], strides = [1, 1]} : vector<49x256xf32> to vector<1x256xf32>
    %207 = vector.shape_cast %206 : vector<1x256xf32> to vector<256xf32>
    %208 = vector.shape_cast %207 : vector<256xf32> to vector<1x1x256xf32>
    %209 = vector.broadcast %208 : vector<1x1x256xf32> to vector<2x16x256xf32>
    %210 = arith.mulf %205, %209 : vector<2x16x256xf32>
    %211 = arith.addf %197, %210 : vector<2x16x256xf32>
    %c0_90 = arith.constant 0 : index
    %c4_91 = arith.constant 4 : index
    %c16_92 = arith.constant 16 : index
    %212 = vector.load %arg10[%c0_90, %c4_91, %c16_92] : memref<2x22x352xf32, #tpu.memory_space<vmem>>, vector<2x16x256xf32>
    %213 = vector.extract_strided_slice %10 {offsets = [29, 0], sizes = [1, 256], strides = [1, 1]} : vector<49x256xf32> to vector<1x256xf32>
    %214 = vector.shape_cast %213 : vector<1x256xf32> to vector<256xf32>
    %215 = vector.shape_cast %214 : vector<256xf32> to vector<1x1x256xf32>
    %216 = vector.broadcast %215 : vector<1x1x256xf32> to vector<2x16x256xf32>
    %217 = arith.mulf %212, %216 : vector<2x16x256xf32>
    %218 = arith.addf %204, %217 : vector<2x16x256xf32>
    %c0_93 = arith.constant 0 : index
    %c4_94 = arith.constant 4 : index
    %c32_95 = arith.constant 32 : index
    %219 = vector.load %arg10[%c0_93, %c4_94, %c32_95] : memref<2x22x352xf32, #tpu.memory_space<vmem>>, vector<2x16x256xf32>
    %220 = vector.extract_strided_slice %10 {offsets = [30, 0], sizes = [1, 256], strides = [1, 1]} : vector<49x256xf32> to vector<1x256xf32>
    %221 = vector.shape_cast %220 : vector<1x256xf32> to vector<256xf32>
    %222 = vector.shape_cast %221 : vector<256xf32> to vector<1x1x256xf32>
    %223 = vector.broadcast %222 : vector<1x1x256xf32> to vector<2x16x256xf32>
    %224 = arith.mulf %219, %223 : vector<2x16x256xf32>
    %225 = arith.addf %211, %224 : vector<2x16x256xf32>
    %c0_96 = arith.constant 0 : index
    %c4_97 = arith.constant 4 : index
    %c48_98 = arith.constant 48 : index
    %226 = vector.load %arg10[%c0_96, %c4_97, %c48_98] : memref<2x22x352xf32, #tpu.memory_space<vmem>>, vector<2x16x256xf32>
    %227 = vector.extract_strided_slice %10 {offsets = [31, 0], sizes = [1, 256], strides = [1, 1]} : vector<49x256xf32> to vector<1x256xf32>
    %228 = vector.shape_cast %227 : vector<1x256xf32> to vector<256xf32>
    %229 = vector.shape_cast %228 : vector<256xf32> to vector<1x1x256xf32>
    %230 = vector.broadcast %229 : vector<1x1x256xf32> to vector<2x16x256xf32>
    %231 = arith.mulf %226, %230 : vector<2x16x256xf32>
    %232 = arith.addf %218, %231 : vector<2x16x256xf32>
    %c0_99 = arith.constant 0 : index
    %c4_100 = arith.constant 4 : index
    %c64_101 = arith.constant 64 : index
    %233 = vector.load %arg10[%c0_99, %c4_100, %c64_101] : memref<2x22x352xf32, #tpu.memory_space<vmem>>, vector<2x16x256xf32>
    %234 = vector.extract_strided_slice %10 {offsets = [32, 0], sizes = [1, 256], strides = [1, 1]} : vector<49x256xf32> to vector<1x256xf32>
    %235 = vector.shape_cast %234 : vector<1x256xf32> to vector<256xf32>
    %236 = vector.shape_cast %235 : vector<256xf32> to vector<1x1x256xf32>
    %237 = vector.broadcast %236 : vector<1x1x256xf32> to vector<2x16x256xf32>
    %238 = arith.mulf %233, %237 : vector<2x16x256xf32>
    %239 = arith.addf %225, %238 : vector<2x16x256xf32>
    %c0_102 = arith.constant 0 : index
    %c4_103 = arith.constant 4 : index
    %c80_104 = arith.constant 80 : index
    %240 = vector.load %arg10[%c0_102, %c4_103, %c80_104] : memref<2x22x352xf32, #tpu.memory_space<vmem>>, vector<2x16x256xf32>
    %241 = vector.extract_strided_slice %10 {offsets = [33, 0], sizes = [1, 256], strides = [1, 1]} : vector<49x256xf32> to vector<1x256xf32>
    %242 = vector.shape_cast %241 : vector<1x256xf32> to vector<256xf32>
    %243 = vector.shape_cast %242 : vector<256xf32> to vector<1x1x256xf32>
    %244 = vector.broadcast %243 : vector<1x1x256xf32> to vector<2x16x256xf32>
    %245 = arith.mulf %240, %244 : vector<2x16x256xf32>
    %246 = arith.addf %232, %245 : vector<2x16x256xf32>
    %c0_105 = arith.constant 0 : index
    %c4_106 = arith.constant 4 : index
    %c96_107 = arith.constant 96 : index
    %247 = vector.load %arg10[%c0_105, %c4_106, %c96_107] : memref<2x22x352xf32, #tpu.memory_space<vmem>>, vector<2x16x256xf32>
    %248 = vector.extract_strided_slice %10 {offsets = [34, 0], sizes = [1, 256], strides = [1, 1]} : vector<49x256xf32> to vector<1x256xf32>
    %249 = vector.shape_cast %248 : vector<1x256xf32> to vector<256xf32>
    %250 = vector.shape_cast %249 : vector<256xf32> to vector<1x1x256xf32>
    %251 = vector.broadcast %250 : vector<1x1x256xf32> to vector<2x16x256xf32>
    %252 = arith.mulf %247, %251 : vector<2x16x256xf32>
    %253 = arith.addf %239, %252 : vector<2x16x256xf32>
    %c0_108 = arith.constant 0 : index
    %c5 = arith.constant 5 : index
    %c0_109 = arith.constant 0 : index
    %254 = vector.load %arg10[%c0_108, %c5, %c0_109] : memref<2x22x352xf32, #tpu.memory_space<vmem>>, vector<2x16x256xf32>
    %255 = vector.extract_strided_slice %10 {offsets = [35, 0], sizes = [1, 256], strides = [1, 1]} : vector<49x256xf32> to vector<1x256xf32>
    %256 = vector.shape_cast %255 : vector<1x256xf32> to vector<256xf32>
    %257 = vector.shape_cast %256 : vector<256xf32> to vector<1x1x256xf32>
    %258 = vector.broadcast %257 : vector<1x1x256xf32> to vector<2x16x256xf32>
    %259 = arith.mulf %254, %258 : vector<2x16x256xf32>
    %260 = arith.addf %246, %259 : vector<2x16x256xf32>
    %c0_110 = arith.constant 0 : index
    %c5_111 = arith.constant 5 : index
    %c16_112 = arith.constant 16 : index
    %261 = vector.load %arg10[%c0_110, %c5_111, %c16_112] : memref<2x22x352xf32, #tpu.memory_space<vmem>>, vector<2x16x256xf32>
    %262 = vector.extract_strided_slice %10 {offsets = [36, 0], sizes = [1, 256], strides = [1, 1]} : vector<49x256xf32> to vector<1x256xf32>
    %263 = vector.shape_cast %262 : vector<1x256xf32> to vector<256xf32>
    %264 = vector.shape_cast %263 : vector<256xf32> to vector<1x1x256xf32>
    %265 = vector.broadcast %264 : vector<1x1x256xf32> to vector<2x16x256xf32>
    %266 = arith.mulf %261, %265 : vector<2x16x256xf32>
    %267 = arith.addf %253, %266 : vector<2x16x256xf32>
    %c0_113 = arith.constant 0 : index
    %c5_114 = arith.constant 5 : index
    %c32_115 = arith.constant 32 : index
    %268 = vector.load %arg10[%c0_113, %c5_114, %c32_115] : memref<2x22x352xf32, #tpu.memory_space<vmem>>, vector<2x16x256xf32>
    %269 = vector.extract_strided_slice %10 {offsets = [37, 0], sizes = [1, 256], strides = [1, 1]} : vector<49x256xf32> to vector<1x256xf32>
    %270 = vector.shape_cast %269 : vector<1x256xf32> to vector<256xf32>
    %271 = vector.shape_cast %270 : vector<256xf32> to vector<1x1x256xf32>
    %272 = vector.broadcast %271 : vector<1x1x256xf32> to vector<2x16x256xf32>
    %273 = arith.mulf %268, %272 : vector<2x16x256xf32>
    %274 = arith.addf %260, %273 : vector<2x16x256xf32>
    %c0_116 = arith.constant 0 : index
    %c5_117 = arith.constant 5 : index
    %c48_118 = arith.constant 48 : index
    %275 = vector.load %arg10[%c0_116, %c5_117, %c48_118] : memref<2x22x352xf32, #tpu.memory_space<vmem>>, vector<2x16x256xf32>
    %276 = vector.extract_strided_slice %10 {offsets = [38, 0], sizes = [1, 256], strides = [1, 1]} : vector<49x256xf32> to vector<1x256xf32>
    %277 = vector.shape_cast %276 : vector<1x256xf32> to vector<256xf32>
    %278 = vector.shape_cast %277 : vector<256xf32> to vector<1x1x256xf32>
    %279 = vector.broadcast %278 : vector<1x1x256xf32> to vector<2x16x256xf32>
    %280 = arith.mulf %275, %279 : vector<2x16x256xf32>
    %281 = arith.addf %267, %280 : vector<2x16x256xf32>
    %c0_119 = arith.constant 0 : index
    %c5_120 = arith.constant 5 : index
    %c64_121 = arith.constant 64 : index
    %282 = vector.load %arg10[%c0_119, %c5_120, %c64_121] : memref<2x22x352xf32, #tpu.memory_space<vmem>>, vector<2x16x256xf32>
    %283 = vector.extract_strided_slice %10 {offsets = [39, 0], sizes = [1, 256], strides = [1, 1]} : vector<49x256xf32> to vector<1x256xf32>
    %284 = vector.shape_cast %283 : vector<1x256xf32> to vector<256xf32>
    %285 = vector.shape_cast %284 : vector<256xf32> to vector<1x1x256xf32>
    %286 = vector.broadcast %285 : vector<1x1x256xf32> to vector<2x16x256xf32>
    %287 = arith.mulf %282, %286 : vector<2x16x256xf32>
    %288 = arith.addf %274, %287 : vector<2x16x256xf32>
    %c0_122 = arith.constant 0 : index
    %c5_123 = arith.constant 5 : index
    %c80_124 = arith.constant 80 : index
    %289 = vector.load %arg10[%c0_122, %c5_123, %c80_124] : memref<2x22x352xf32, #tpu.memory_space<vmem>>, vector<2x16x256xf32>
    %290 = vector.extract_strided_slice %10 {offsets = [40, 0], sizes = [1, 256], strides = [1, 1]} : vector<49x256xf32> to vector<1x256xf32>
    %291 = vector.shape_cast %290 : vector<1x256xf32> to vector<256xf32>
    %292 = vector.shape_cast %291 : vector<256xf32> to vector<1x1x256xf32>
    %293 = vector.broadcast %292 : vector<1x1x256xf32> to vector<2x16x256xf32>
    %294 = arith.mulf %289, %293 : vector<2x16x256xf32>
    %295 = arith.addf %281, %294 : vector<2x16x256xf32>
    %c0_125 = arith.constant 0 : index
    %c5_126 = arith.constant 5 : index
    %c96_127 = arith.constant 96 : index
    %296 = vector.load %arg10[%c0_125, %c5_126, %c96_127] : memref<2x22x352xf32, #tpu.memory_space<vmem>>, vector<2x16x256xf32>
    %297 = vector.extract_strided_slice %10 {offsets = [41, 0], sizes = [1, 256], strides = [1, 1]} : vector<49x256xf32> to vector<1x256xf32>
    %298 = vector.shape_cast %297 : vector<1x256xf32> to vector<256xf32>
    %299 = vector.shape_cast %298 : vector<256xf32> to vector<1x1x256xf32>
    %300 = vector.broadcast %299 : vector<1x1x256xf32> to vector<2x16x256xf32>
    %301 = arith.mulf %296, %300 : vector<2x16x256xf32>
    %302 = arith.addf %288, %301 : vector<2x16x256xf32>
    %c0_128 = arith.constant 0 : index
    %c6 = arith.constant 6 : index
    %c0_129 = arith.constant 0 : index
    %303 = vector.load %arg10[%c0_128, %c6, %c0_129] : memref<2x22x352xf32, #tpu.memory_space<vmem>>, vector<2x16x256xf32>
    %304 = vector.extract_strided_slice %10 {offsets = [42, 0], sizes = [1, 256], strides = [1, 1]} : vector<49x256xf32> to vector<1x256xf32>
    %305 = vector.shape_cast %304 : vector<1x256xf32> to vector<256xf32>
    %306 = vector.shape_cast %305 : vector<256xf32> to vector<1x1x256xf32>
    %307 = vector.broadcast %306 : vector<1x1x256xf32> to vector<2x16x256xf32>
    %308 = arith.mulf %303, %307 : vector<2x16x256xf32>
    %309 = arith.addf %295, %308 : vector<2x16x256xf32>
    %c0_130 = arith.constant 0 : index
    %c6_131 = arith.constant 6 : index
    %c16_132 = arith.constant 16 : index
    %310 = vector.load %arg10[%c0_130, %c6_131, %c16_132] : memref<2x22x352xf32, #tpu.memory_space<vmem>>, vector<2x16x256xf32>
    %311 = vector.extract_strided_slice %10 {offsets = [43, 0], sizes = [1, 256], strides = [1, 1]} : vector<49x256xf32> to vector<1x256xf32>
    %312 = vector.shape_cast %311 : vector<1x256xf32> to vector<256xf32>
    %313 = vector.shape_cast %312 : vector<256xf32> to vector<1x1x256xf32>
    %314 = vector.broadcast %313 : vector<1x1x256xf32> to vector<2x16x256xf32>
    %315 = arith.mulf %310, %314 : vector<2x16x256xf32>
    %316 = arith.addf %302, %315 : vector<2x16x256xf32>
    %c0_133 = arith.constant 0 : index
    %c6_134 = arith.constant 6 : index
    %c32_135 = arith.constant 32 : index
    %317 = vector.load %arg10[%c0_133, %c6_134, %c32_135] : memref<2x22x352xf32, #tpu.memory_space<vmem>>, vector<2x16x256xf32>
    %318 = vector.extract_strided_slice %10 {offsets = [44, 0], sizes = [1, 256], strides = [1, 1]} : vector<49x256xf32> to vector<1x256xf32>
    %319 = vector.shape_cast %318 : vector<1x256xf32> to vector<256xf32>
    %320 = vector.shape_cast %319 : vector<256xf32> to vector<1x1x256xf32>
    %321 = vector.broadcast %320 : vector<1x1x256xf32> to vector<2x16x256xf32>
    %322 = arith.mulf %317, %321 : vector<2x16x256xf32>
    %323 = arith.addf %309, %322 : vector<2x16x256xf32>
    %c0_136 = arith.constant 0 : index
    %c6_137 = arith.constant 6 : index
    %c48_138 = arith.constant 48 : index
    %324 = vector.load %arg10[%c0_136, %c6_137, %c48_138] : memref<2x22x352xf32, #tpu.memory_space<vmem>>, vector<2x16x256xf32>
    %325 = vector.extract_strided_slice %10 {offsets = [45, 0], sizes = [1, 256], strides = [1, 1]} : vector<49x256xf32> to vector<1x256xf32>
    %326 = vector.shape_cast %325 : vector<1x256xf32> to vector<256xf32>
    %327 = vector.shape_cast %326 : vector<256xf32> to vector<1x1x256xf32>
    %328 = vector.broadcast %327 : vector<1x1x256xf32> to vector<2x16x256xf32>
    %329 = arith.mulf %324, %328 : vector<2x16x256xf32>
    %330 = arith.addf %316, %329 : vector<2x16x256xf32>
    %c0_139 = arith.constant 0 : index
    %c6_140 = arith.constant 6 : index
    %c64_141 = arith.constant 64 : index
    %331 = vector.load %arg10[%c0_139, %c6_140, %c64_141] : memref<2x22x352xf32, #tpu.memory_space<vmem>>, vector<2x16x256xf32>
    %332 = vector.extract_strided_slice %10 {offsets = [46, 0], sizes = [1, 256], strides = [1, 1]} : vector<49x256xf32> to vector<1x256xf32>
    %333 = vector.shape_cast %332 : vector<1x256xf32> to vector<256xf32>
    %334 = vector.shape_cast %333 : vector<256xf32> to vector<1x1x256xf32>
    %335 = vector.broadcast %334 : vector<1x1x256xf32> to vector<2x16x256xf32>
    %336 = arith.mulf %331, %335 : vector<2x16x256xf32>
    %337 = arith.addf %323, %336 : vector<2x16x256xf32>
    %c0_142 = arith.constant 0 : index
    %c6_143 = arith.constant 6 : index
    %c80_144 = arith.constant 80 : index
    %338 = vector.load %arg10[%c0_142, %c6_143, %c80_144] : memref<2x22x352xf32, #tpu.memory_space<vmem>>, vector<2x16x256xf32>
    %339 = vector.extract_strided_slice %10 {offsets = [47, 0], sizes = [1, 256], strides = [1, 1]} : vector<49x256xf32> to vector<1x256xf32>
    %340 = vector.shape_cast %339 : vector<1x256xf32> to vector<256xf32>
    %341 = vector.shape_cast %340 : vector<256xf32> to vector<1x1x256xf32>
    %342 = vector.broadcast %341 : vector<1x1x256xf32> to vector<2x16x256xf32>
    %343 = arith.mulf %338, %342 : vector<2x16x256xf32>
    %344 = arith.addf %330, %343 : vector<2x16x256xf32>
    %c0_145 = arith.constant 0 : index
    %c6_146 = arith.constant 6 : index
    %c96_147 = arith.constant 96 : index
    %345 = vector.load %arg10[%c0_145, %c6_146, %c96_147] : memref<2x22x352xf32, #tpu.memory_space<vmem>>, vector<2x16x256xf32>
    %346 = vector.extract_strided_slice %10 {offsets = [48, 0], sizes = [1, 256], strides = [1, 1]} : vector<49x256xf32> to vector<1x256xf32>
    %347 = vector.shape_cast %346 : vector<1x256xf32> to vector<256xf32>
    %348 = vector.shape_cast %347 : vector<256xf32> to vector<1x1x256xf32>
    %349 = vector.broadcast %348 : vector<1x1x256xf32> to vector<2x16x256xf32>
    %350 = arith.mulf %345, %349 : vector<2x16x256xf32>
    %351 = arith.addf %337, %350 : vector<2x16x256xf32>
    %352 = arith.addf %351, %344 : vector<2x16x256xf32>
    %353 = vector.shape_cast %352 : vector<2x16x256xf32> to vector<32x256xf32>
    %c0_148 = arith.constant 0 : index
    %c0_149 = arith.constant 0 : index
    %354 = vector.load %arg4[%c0_148, %c0_149] : memref<256x256xf32, #tpu.memory_space<vmem>>, vector<256x256xf32>
    %cst_150 = arith.constant dense<0.000000e+00> : vector<32x256xf32>
    %355 = tpu.matmul %353, %354, %cst_150 {dimension_numbers = #tpu.dot_dimension_numbers<[1], [0], [0], [1], [0, 0, 1, 1], [], []>} : vector<32x256xf32>, vector<256x256xf32>, vector<32x256xf32> -> vector<32x256xf32>
    %356 = arith.negf %355 : vector<32x256xf32>
    %357 = math.exp %356 : vector<32x256xf32>
    %cst_151 = arith.constant 1.000000e+00 : f32
    %358 = vector.broadcast %cst_151 : f32 to vector<32x256xf32>
    %359 = arith.addf %358, %357 : vector<32x256xf32>
    %360 = arith.divf %358, %359 : vector<32x256xf32>
    %361 = arith.mulf %360, %9 : vector<32x256xf32>
    %c0_152 = arith.constant 0 : index
    %c0_153 = arith.constant 0 : index
    %362 = vector.load %arg6[%c0_152, %c0_153] : memref<1x256xf32, #tpu.memory_space<vmem>>, vector<1x256xf32>
    %363 = vector.broadcast %362 : vector<1x256xf32> to vector<32x256xf32>
    %364 = arith.addf %361, %363 : vector<32x256xf32>
    %365 = vector.shape_cast %364 : vector<32x256xf32> to vector<2x16x256xf32>
    %c0_154 = arith.constant 0 : index
    %c1_155 = arith.constant 1 : index
    %c16_156 = arith.constant 16 : index
    %366 = vector.load %arg11[%c0_154, %c1_155, %c16_156] : memref<2x18x288xf32, #tpu.memory_space<vmem>>, vector<2x16x256xf32>
    tpu.vector_store %arg11[%c0_154, %c1_155, %c16_156], %365 {strides = array<i32>} : memref<2x18x288xf32, #tpu.memory_space<vmem>>, vector<2x16x256xf32>,
    %c0_157 = arith.constant 0 : index
    %c0_158 = arith.constant 0 : index
    %c0_159 = arith.constant 0 : index
    %367 = vector.load %arg11[%c0_157, %c0_158, %c0_159] : memref<2x18x288xf32, #tpu.memory_space<vmem>>, vector<2x16x288xf32>
    %368 = vector.shape_cast %367 : vector<2x16x288xf32> to vector<32x288xf32>
    %c0_160 = arith.constant 0 : index
    %c0_161 = arith.constant 0 : index
    %c0_162 = arith.constant 0 : index
    %369 = vector.load %arg7[%c0_160, %c0_161, %c0_162] : memref<3x288x80xf32, #tpu.memory_space<vmem>>, vector<1x288x80xf32>
    %370 = vector.shape_cast %369 : vector<1x288x80xf32> to vector<288x80xf32>
    %cst_163 = arith.constant dense<0.000000e+00> : vector<32x80xf32>
    %371 = tpu.matmul %368, %370, %cst_163 {dimension_numbers = #tpu.dot_dimension_numbers<[1], [0], [0], [1], [0, 0, 1, 1], [], []>} : vector<32x288xf32>, vector<288x80xf32>, vector<32x80xf32> -> vector<32x80xf32>
    %c0_164 = arith.constant 0 : index
    %c1_165 = arith.constant 1 : index
    %c0_166 = arith.constant 0 : index
    %372 = vector.load %arg11[%c0_164, %c1_165, %c0_166] : memref<2x18x288xf32, #tpu.memory_space<vmem>>, vector<2x16x288xf32>
    %373 = vector.shape_cast %372 : vector<2x16x288xf32> to vector<32x288xf32>
    %c1_167 = arith.constant 1 : index
    %c0_168 = arith.constant 0 : index
    %c0_169 = arith.constant 0 : index
    %374 = vector.load %arg7[%c1_167, %c0_168, %c0_169] : memref<3x288x80xf32, #tpu.memory_space<vmem>>, vector<1x288x80xf32>
    %375 = vector.shape_cast %374 : vector<1x288x80xf32> to vector<288x80xf32>
    %cst_170 = arith.constant dense<0.000000e+00> : vector<32x80xf32>
    %376 = tpu.matmul %373, %375, %cst_170 {dimension_numbers = #tpu.dot_dimension_numbers<[1], [0], [0], [1], [0, 0, 1, 1], [], []>} : vector<32x288xf32>, vector<288x80xf32>, vector<32x80xf32> -> vector<32x80xf32>
    %377 = arith.addf %371, %376 : vector<32x80xf32>
    %c0_171 = arith.constant 0 : index
    %c2_172 = arith.constant 2 : index
    %c0_173 = arith.constant 0 : index
    %378 = vector.load %arg11[%c0_171, %c2_172, %c0_173] : memref<2x18x288xf32, #tpu.memory_space<vmem>>, vector<2x16x288xf32>
    %379 = vector.shape_cast %378 : vector<2x16x288xf32> to vector<32x288xf32>
    %c2_174 = arith.constant 2 : index
    %c0_175 = arith.constant 0 : index
    %c0_176 = arith.constant 0 : index
    %380 = vector.load %arg7[%c2_174, %c0_175, %c0_176] : memref<3x288x80xf32, #tpu.memory_space<vmem>>, vector<1x288x80xf32>
    %381 = vector.shape_cast %380 : vector<1x288x80xf32> to vector<288x80xf32>
    %cst_177 = arith.constant dense<0.000000e+00> : vector<32x80xf32>
    %382 = tpu.matmul %379, %381, %cst_177 {dimension_numbers = #tpu.dot_dimension_numbers<[1], [0], [0], [1], [0, 0, 1, 1], [], []>} : vector<32x288xf32>, vector<288x80xf32>, vector<32x80xf32> -> vector<32x80xf32>
    %383 = arith.addf %377, %382 : vector<32x80xf32>
    %c0_178 = arith.constant 0 : index
    %c0_179 = arith.constant 0 : index
    %384 = vector.load %arg8[%c0_178, %c0_179] : memref<1x80xf32, #tpu.memory_space<vmem>>, vector<1x80xf32>
    %385 = vector.broadcast %384 : vector<1x80xf32> to vector<32x80xf32>
    %386 = arith.addf %383, %385 : vector<32x80xf32>
    %387 = vector.shape_cast %386 : vector<32x80xf32> to vector<2x16x80xf32>
    %c0_180 = arith.constant 0 : index
    %c0_181 = arith.constant 0 : index
    %c0_182 = arith.constant 0 : index
    %388 = vector.load %arg9[%c0_180, %c0_181, %c0_182] : memref<2x16x80xf32, #tpu.memory_space<vmem>>, vector<2x16x80xf32>
    tpu.vector_store %arg9[%c0_180, %c0_181, %c0_182], %387 {strides = array<i32>} : memref<2x16x80xf32, #tpu.memory_space<vmem>>, vector<2x16x80xf32>,
    return
  }
  func.func @transform_0(%arg0: i32) -> (i32, i32, i32) {
    %c0_i32 = arith.constant 0 : i32
    %c0_i32_0 = arith.constant 0 : i32
    %c0_i32_1 = arith.constant 0 : i32
    return %arg0, %c0_i32, %c0_i32_0 : i32, i32, i32
  }
  func.func @transform_1(%arg0: i32) -> (i32, i32, i32) {
    %c0_i32 = arith.constant 0 : i32
    %c0_i32_0 = arith.constant 0 : i32
    %c0_i32_1 = arith.constant 0 : i32
    return %arg0, %c0_i32, %c0_i32_0 : i32, i32, i32
  }
  func.func @transform_2(%arg0: i32) -> (i32, i32) {
    %c0_i32 = arith.constant 0 : i32
    %c0_i32_0 = arith.constant 0 : i32
    %c0_i32_1 = arith.constant 0 : i32
    return %c0_i32, %c0_i32_0 : i32, i32
  }
  func.func @transform_3(%arg0: i32) -> (i32, i32) {
    %c0_i32 = arith.constant 0 : i32
    %c0_i32_0 = arith.constant 0 : i32
    %c0_i32_1 = arith.constant 0 : i32
    return %c0_i32, %c0_i32_0 : i32, i32
  }
  func.func @transform_4(%arg0: i32) -> (i32, i32) {
    %c0_i32 = arith.constant 0 : i32
    %c0_i32_0 = arith.constant 0 : i32
    %c0_i32_1 = arith.constant 0 : i32
    return %c0_i32, %c0_i32_0 : i32, i32
  }
  func.func @transform_5(%arg0: i32) -> (i32, i32) {
    %c0_i32 = arith.constant 0 : i32
    %c0_i32_0 = arith.constant 0 : i32
    %c0_i32_1 = arith.constant 0 : i32
    return %c0_i32, %c0_i32_0 : i32, i32
  }
  func.func @transform_6(%arg0: i32) -> (i32, i32, i32) {
    %c0_i32 = arith.constant 0 : i32
    %c0_i32_0 = arith.constant 0 : i32
    %c0_i32_1 = arith.constant 0 : i32
    %c0_i32_2 = arith.constant 0 : i32
    return %c0_i32, %c0_i32_0, %c0_i32_1 : i32, i32, i32
  }
  func.func @transform_7(%arg0: i32) -> (i32, i32) {
    %c0_i32 = arith.constant 0 : i32
    %c0_i32_0 = arith.constant 0 : i32
    %c0_i32_1 = arith.constant 0 : i32
    return %c0_i32, %c0_i32_0 : i32, i32
  }
  func.func @transform_8(%arg0: i32) -> (i32, i32, i32) {
    %c0_i32 = arith.constant 0 : i32
    %c0_i32_0 = arith.constant 0 : i32
    %c0_i32_1 = arith.constant 0 : i32
    return %arg0, %c0_i32, %c0_i32_0 : i32, i32, i32
  }
}

</mosaic_0001>

<llo_original>
// kernel: tpu_custom_call.1
$region0: #{tpu_custom_call.1}
  #allocation0 [shape = 'u32[]', space=smem, size = 0x4, offset = 0x4, fixed_abs, tag = 'smem constant byte address 0x4 - core index']
  #allocation1 [shape = 'u32[144,128]{1,0:T(1,128)}', space=vmem, size = 0x12000, scoped, tag = 'internal scratch']
  #allocation2 [shape = 'f32[2,22,352]{2,1,0:T(8,128)}', space=vmem, size = 0x12000, scoped, tag = 'scratch operand']
  #allocation3 [shape = 'f32[2,18,288]{2,1,0:T(8,128)}', space=vmem, size = 0x12000, scoped, tag = 'scratch operand']
  %s0 = inlined_call_operand.vmem [shape: f32[2,16,256], index: 0, kind: input, shape index: {}]
  %s1 = inlined_call_operand.vmem [shape: f32[2,16,256], index: 1, kind: input, shape index: {}]
  %s2 = inlined_call_operand.vmem [shape: f32[49,256], index: 2, kind: input, shape index: {}]
  %s3 = inlined_call_operand.vmem [shape: f32[256,256], index: 3, kind: input, shape index: {}]
  %s4 = inlined_call_operand.vmem [shape: f32[256,256], index: 4, kind: input, shape index: {}]
  %s5 = inlined_call_operand.vmem [shape: f32[1,256], index: 5, kind: input, shape index: {}]
  %s6 = inlined_call_operand.vmem [shape: f32[3,288,80], index: 6, kind: input, shape index: {}]
  %s7 = inlined_call_operand.vmem [shape: f32[1,80], index: 7, kind: input, shape index: {}]
  %s8 = inlined_call_operand.hbm [shape: f32[2,16,80], index: 8, kind: output, shape index: {}]
  %s9 = sld [smem:[#allocation0]]
  $region46: #{tpu_custom_call.1} parent=0
    _
  %s11 = ssub.s32 1, %s9
  %s12 = scalar_select 0, %s11, %s9
  $region1: #{tpu_custom_call.1} parent=0
    #allocation4 [shape = 'u8[16384]{0}', space=vmem, size = 0x4000, scoped, tag = 'output window, operand 0, single buffered']
    #allocation5 [shape = 's32[1]{0}', space=sflag, size = 0x4, scoped, tag = 'scoped memory for tpu_custom_call.1']
    %13 = vsyncpa [#allocation5], 0
    // Predicated region
    $region2: #{tpu_custom_call.1} parent=1 // pred_check
      _
    $region3: #{tpu_custom_call.1} parent=1 // pred_check_branch
      %15 = sbr.rel (0) target = $region5
    $region4: #{tpu_custom_call.1} parent=1 // pred_region
      _
    $region5: #{tpu_custom_call.1} parent=1 // pred_fallthru
      _
    // Predicated region
    $region6: #{tpu_custom_call.1} parent=1 // pred_check
      _
    $region7: #{tpu_custom_call.1} parent=1 // pred_check_branch
      %17 = sbr.rel (0) target = $region9
    $region8: #{tpu_custom_call.1} parent=1 // pred_region
      _
    $region9: #{tpu_custom_call.1} parent=1 // pred_fallthru
      _
    // Predicated region
    $region10: #{tpu_custom_call.1} parent=1 // pred_check
      _
    $region11: #{tpu_custom_call.1} parent=1 // pred_check_branch
      %19 = sbr.rel (0) target = $region13
    $region12: #{tpu_custom_call.1} parent=1 // pred_region
      _
    $region13: #{tpu_custom_call.1} parent=1 // pred_fallthru
      _
    // Predicated region
    $region14: #{tpu_custom_call.1} parent=1 // pred_check
      _
    $region15: #{tpu_custom_call.1} parent=1 // pred_check_branch
      %21 = sbr.rel (0) target = $region17
    $region16: #{tpu_custom_call.1} parent=1 // pred_region
      _
    $region17: #{tpu_custom_call.1} parent=1 // pred_fallthru
      _
    // Predicated region
    $region18: #{tpu_custom_call.1} parent=1 // pred_check
      _
    $region19: #{tpu_custom_call.1} parent=1 // pred_check_branch
      %23 = sbr.rel (0) target = $region21
    $region20: #{tpu_custom_call.1} parent=1 // pred_region
      _
    $region21: #{tpu_custom_call.1} parent=1 // pred_fallthru
      _
    // Predicated region
    $region22: #{tpu_custom_call.1} parent=1 // pred_check
      _
    $region23: #{tpu_custom_call.1} parent=1 // pred_check_branch
      %25 = sbr.rel (0) target = $region25
    $region24: #{tpu_custom_call.1} parent=1 // pred_region
      _
    $region25: #{tpu_custom_call.1} parent=1 // pred_fallthru
      _
    // Predicated region
    $region26: #{tpu_custom_call.1} parent=1 // pred_check
      _
    $region27: #{tpu_custom_call.1} parent=1 // pred_check_branch
      %27 = sbr.rel (0) target = $region29
    $region28: #{tpu_custom_call.1} parent=1 // pred_region
      _
    $region29: #{tpu_custom_call.1} parent=1 // pred_fallthru
      _
    // Predicated region
    $region30: #{tpu_custom_call.1} parent=1 // pred_check
      _
    $region31: #{tpu_custom_call.1} parent=1 // pred_check_branch
      %29 = sbr.rel (0) target = $region33
    $region32: #{tpu_custom_call.1} parent=1 // pred_region
      _
    $region33: #{tpu_custom_call.1} parent=1 // pred_fallthru
      _
    %p30 = scmp.eq.s32.totalorder 0, 0
    // Predicated region
    $region34: #{tpu_custom_call.1} parent=1 // pred_check
      %p31 = pneg %p30
    $region35: #{tpu_custom_call.1} parent=1 // pred_check_branch
      %33 = sbr.rel (%p31) target = $region37
    $region36: #{tpu_custom_call.1} parent=1 // pred_region
      %34 = vst [vmem:[#allocation2] sm:$0xff] 0.0
      %35 = vst [vmem:[#allocation2 + $0x8] sm:$0xff] 0.0
      %vm36 = vcmask 785408
      %37 = vst.msk [vmem:[#allocation2 + $0x10] sm:$0xff] %vm36, 0.0
      %38 = vst [vmem:[#allocation2 + $0x18] sm:$0xff] 0.0
      %39 = vst [vmem:[#allocation2 + $0x20] sm:$0xff] 0.0
      %40 = vst.msk [vmem:[#allocation2 + $0x28] sm:$0xff] %vm36, 0.0
      %41 = vst [vmem:[#allocation2 + $0x30] sm:$0x3f] 0.0
      %42 = vst [vmem:[#allocation2 + $0x38] sm:$0x3f] 0.0
      %vm43 = vcmask 783360
      %44 = vst.msk [vmem:[#allocation2 + $0x40] sm:$0x3f] %vm43, 0.0
      %45 = vst [vmem:[#allocation2 + $0x48] sm:$0xff] 0.0
      %46 = vst [vmem:[#allocation2 + $0x50] sm:$0xff] 0.0
      %47 = vst.msk [vmem:[#allocation2 + $0x58] sm:$0xff] %vm36, 0.0
      %48 = vst [vmem:[#allocation2 + $0x60] sm:$0xff] 0.0
      %49 = vst [vmem:[#allocation2 + $0x68] sm:$0xff] 0.0
      %50 = vst.msk [vmem:[#allocation2 + $0x70] sm:$0xff] %vm36, 0.0
      %51 = vst [vmem:[#allocation2 + $0x78] sm:$0x3f] 0.0
      %52 = vst [vmem:[#allocation2 + $0x80] sm:$0x3f] 0.0
      %53 = vst.msk [vmem:[#allocation2 + $0x88] sm:$0x3f] %vm43, 0.0
      %54 = vst [vmem:[#allocation3] sm:$0xff] 0.0
      %55 = vst [vmem:[#allocation3 + $0x8] sm:$0xff] 0.0
      %vm56 = vcmask 261120
      %57 = vst.msk [vmem:[#allocation3 + $0x10] sm:$0xff] %vm56, 0.0
      %58 = vst [vmem:[#allocation3 + $0x18] sm:$0xff] 0.0
      %59 = vst [vmem:[#allocation3 + $0x20] sm:$0xff] 0.0
      %60 = vst.msk [vmem:[#allocation3 + $0x28] sm:$0xff] %vm56, 0.0
      %61 = vst [vmem:[#allocation3 + $0x30] sm:$0x3] 0.0
      %62 = vst [vmem:[#allocation3 + $0x38] sm:$0x3] 0.0
      %vm63 = vcmask 254976
      %64 = vst.msk [vmem:[#allocation3 + $0x40] sm:$0x3] %vm63, 0.0
      %65 = vst [vmem:[#allocation3 + $0x48] sm:$0xff] 0.0
      %66 = vst [vmem:[#allocation3 + $0x50] sm:$0xff] 0.0
      %67 = vst.msk [vmem:[#allocation3 + $0x58] sm:$0xff] %vm56, 0.0
      %68 = vst [vmem:[#allocation3 + $0x60] sm:$0xff] 0.0
      %69 = vst [vmem:[#allocation3 + $0x68] sm:$0xff] 0.0
      %70 = vst.msk [vmem:[#allocation3 + $0x70] sm:$0xff] %vm56, 0.0
      %71 = vst [vmem:[#allocation3 + $0x78] sm:$0x3] 0.0
      %72 = vst [vmem:[#allocation3 + $0x80] sm:$0x3] 0.0
      %73 = vst.msk [vmem:[#allocation3 + $0x88] sm:$0x3] %vm63, 0.0
    $region37: #{tpu_custom_call.1} parent=1 // pred_fallthru
      _
    %v74 = vld [vmem:[%s0] sm:$0xff]
    %v75 = vld [vmem:[%s0 + $0x8] sm:$0xff]
    %v76 = vld [vmem:[%s0 + $0x10] sm:$0xff]
    %v77 = vld [vmem:[%s0 + $0x18] sm:$0xff]
    %v78 = vld [vmem:[%s0 + $0x20] sm:$0xff]
    %v79 = vld [vmem:[%s0 + $0x28] sm:$0xff]
    %v80 = vld [vmem:[%s0 + $0x30] sm:$0xff]
    %v81 = vld [vmem:[%s0 + $0x38] sm:$0xff]
    %v82 = vld [vmem:[%s1] sm:$0xff]
    %v83 = vld [vmem:[%s1 + $0x8] sm:$0xff]
    %v84 = vld [vmem:[%s1 + $0x10] sm:$0xff]
    %v85 = vld [vmem:[%s1 + $0x18] sm:$0xff]
    %v86 = vld [vmem:[%s1 + $0x20] sm:$0xff]
    %v87 = vld [vmem:[%s1 + $0x28] sm:$0xff]
    %v88 = vld [vmem:[%s1 + $0x30] sm:$0xff]
    %v89 = vld [vmem:[%s1 + $0x38] sm:$0xff]
    %v90 = vadd.f32 %v74, %v82
    %v91 = vadd.f32 %v75, %v83
    %v92 = vadd.f32 %v76, %v84
    %v93 = vadd.f32 %v77, %v85
    %v94 = vadd.f32 %v78, %v86
    %v95 = vadd.f32 %v79, %v87
    %v96 = vadd.f32 %v80, %v88
    %v97 = vadd.f32 %v81, %v89
    %vm106 = vcmask 1042432
    %v107 = vrot.slane %v90, 5
    %v108 = vrot.slane %v91, 5
    %v109 = vrot.slane %v92, 5
    %v110 = vsel %vm106, %v107, %v109
    %v111 = vrot.slane %v93, 5
    %v112 = vsel %vm106, %v108, %v111
    %v113 = vrot.slane %v94, 5
    %v114 = vrot.slane %v95, 5
    %v115 = vrot.slane %v96, 5
    %v116 = vsel %vm106, %v113, %v115
    %v117 = vrot.slane %v97, 5
    %v118 = vsel %vm106, %v114, %v117
    %119 = vrot.lane.b32.xlu0 %v107, 48
    %v120 = vpop.permute.xlu0 %119
    %121 = vrot.lane.b32.xlu0 %v108, 48
    %v122 = vpop.permute.xlu0 %121
    %123 = vrot.lane.b32.xlu0 %v110, 48
    %v124 = vpop.permute.xlu0 %123
    %125 = vrot.lane.b32.xlu0 %v112, 48
    %v126 = vpop.permute.xlu0 %125
    %127 = vrot.lane.b32.xlu0 %v109, 48
    %v128 = vpop.permute.xlu0 %127
    %129 = vrot.lane.b32.xlu0 %v111, 48
    %v130 = vpop.permute.xlu0 %129
    %131 = vrot.lane.b32.xlu0 %v113, 48
    %v132 = vpop.permute.xlu0 %131
    %133 = vrot.lane.b32.xlu0 %v114, 48
    %v134 = vpop.permute.xlu0 %133
    %135 = vrot.lane.b32.xlu0 %v116, 48
    %v136 = vpop.permute.xlu0 %135
    %137 = vrot.lane.b32.xlu0 %v118, 48
    %v138 = vpop.permute.xlu0 %137
    %139 = vrot.lane.b32.xlu0 %v115, 48
    %v140 = vpop.permute.xlu0 %139
    %141 = vrot.lane.b32.xlu0 %v117, 48
    %v142 = vpop.permute.xlu0 %141
    %vm143 = vcmask 392192
    %v144 = vsel %vm143, %v120, %v122
    %v145 = vsel %vm143, %v124, %v126
    %v146 = vsel %vm143, %v128, %v130
    %v147 = vsel %vm143, %v132, %v134
    %v148 = vsel %vm143, %v136, %v138
    %v149 = vsel %vm143, %v140, %v142
    %vm168 = vcmask 1047939
    %169 = vst.msk [vmem:[#allocation2] sm:$0xf8] %vm168, %v120
    %170 = vst [vmem:[#allocation2 + $0x8] sm:$0xf8] %v144
    %vm171 = vcmask 392195
    %172 = vst.msk [vmem:[#allocation2 + $0x10] sm:$0xf8] %vm171, %v122
    %vm173 = vcmask 1047936
    %174 = vst.msk [vmem:[#allocation2 + $0x18] sm:$0xff] %vm173, %v124
    %175 = vst [vmem:[#allocation2 + $0x20] sm:$0xff] %v145
    %176 = vst.msk [vmem:[#allocation2 + $0x28] sm:$0xff] %vm143, %v126
    %vm177 = vcmask 1042816
    %178 = vst.msk [vmem:[#allocation2 + $0x30] sm:$0x7] %vm177, %v128
    %179 = vst [vmem:[#allocation2 + $0x38] sm:$0x7] %v146
    %vm180 = vcmask 387072
    %181 = vst.msk [vmem:[#allocation2 + $0x40] sm:$0x7] %vm180, %v130
    %182 = vst.msk [vmem:[#allocation2 + $0x48] sm:$0xf8] %vm168, %v132
    %183 = vst [vmem:[#allocation2 + $0x50] sm:$0xf8] %v147
    %184 = vst.msk [vmem:[#allocation2 + $0x58] sm:$0xf8] %vm171, %v134
    %185 = vst.msk [vmem:[#allocation2 + $0x60] sm:$0xff] %vm173, %v136
    %186 = vst [vmem:[#allocation2 + $0x68] sm:$0xff] %v148
    %187 = vst.msk [vmem:[#allocation2 + $0x70] sm:$0xff] %vm143, %v138
    %188 = vst.msk [vmem:[#allocation2 + $0x78] sm:$0x7] %vm177, %v140
    %189 = vst [vmem:[#allocation2 + $0x80] sm:$0x7] %v149
    %190 = vst.msk [vmem:[#allocation2 + $0x88] sm:$0x7] %vm180, %v142
    %v191 = vld [vmem:[%s4] sm:$0xff]
    %v192 = vld [vmem:[%s4 + $0x8] sm:$0xff]
    %v193 = vld [vmem:[%s4 + $0x10] sm:$0xff]
    %v194 = vld [vmem:[%s4 + $0x18] sm:$0xff]
    %v195 = vld [vmem:[%s4 + $0x20] sm:$0xff]
    %v196 = vld [vmem:[%s4 + $0x28] sm:$0xff]
    %v197 = vld [vmem:[%s4 + $0x30] sm:$0xff]
    %v198 = vld [vmem:[%s4 + $0x38] sm:$0xff]
    %v199 = vld [vmem:[%s4 + $0x40] sm:$0xff]
    %v200 = vld [vmem:[%s4 + $0x48] sm:$0xff]
    %v201 = vld [vmem:[%s4 + $0x50] sm:$0xff]
    %v202 = vld [vmem:[%s4 + $0x58] sm:$0xff]
    %v203 = vld [vmem:[%s4 + $0x60] sm:$0xff]
    %v204 = vld [vmem:[%s4 + $0x68] sm:$0xff]
    %v205 = vld [vmem:[%s4 + $0x70] sm:$0xff]
    %v206 = vld [vmem:[%s4 + $0x78] sm:$0xff]
    %v207 = vld [vmem:[%s4 + $0x80] sm:$0xff]
    %v208 = vld [vmem:[%s4 + $0x88] sm:$0xff]
    %v209 = vld [vmem:[%s4 + $0x90] sm:$0xff]
    %v210 = vld [vmem:[%s4 + $0x98] sm:$0xff]
    %v211 = vld [vmem:[%s4 + $0xa0] sm:$0xff]
    %v212 = vld [vmem:[%s4 + $0xa8] sm:$0xff]
    %v213 = vld [vmem:[%s4 + $0xb0] sm:$0xff]
    %v214 = vld [vmem:[%s4 + $0xb8] sm:$0xff]
    %v215 = vld [vmem:[%s4 + $0xc0] sm:$0xff]
    %v216 = vld [vmem:[%s4 + $0xc8] sm:$0xff]
    %v217 = vld [vmem:[%s4 + $0xd0] sm:$0xff]
    %v218 = vld [vmem:[%s4 + $0xd8] sm:$0xff]
    %v219 = vld [vmem:[%s4 + $0xe0] sm:$0xff]
    %v220 = vld [vmem:[%s4 + $0xe8] sm:$0xff]
    %v221 = vld [vmem:[%s4 + $0xf0] sm:$0xff]
    %v222 = vld [vmem:[%s4 + $0xf8] sm:$0xff]
    %v223 = vld [vmem:[%s4 + $0x100] sm:$0xff]
    %v224 = vld [vmem:[%s4 + $0x108] sm:$0xff]
    %v225 = vld [vmem:[%s4 + $0x110] sm:$0xff]
    %v226 = vld [vmem:[%s4 + $0x118] sm:$0xff]
    %v227 = vld [vmem:[%s4 + $0x120] sm:$0xff]
    %v228 = vld [vmem:[%s4 + $0x128] sm:$0xff]
    %v229 = vld [vmem:[%s4 + $0x130] sm:$0xff]
    %v230 = vld [vmem:[%s4 + $0x138] sm:$0xff]
    %v231 = vld [vmem:[%s4 + $0x140] sm:$0xff]
    %v232 = vld [vmem:[%s4 + $0x148] sm:$0xff]
    %v233 = vld [vmem:[%s4 + $0x150] sm:$0xff]
    %v234 = vld [vmem:[%s4 + $0x158] sm:$0xff]
    %v235 = vld [vmem:[%s4 + $0x160] sm:$0xff]
    %v236 = vld [vmem:[%s4 + $0x168] sm:$0xff]
    %v237 = vld [vmem:[%s4 + $0x170] sm:$0xff]
    %v238 = vld [vmem:[%s4 + $0x178] sm:$0xff]
    %v239 = vld [vmem:[%s4 + $0x180] sm:$0xff]
    %v240 = vld [vmem:[%s4 + $0x188] sm:$0xff]
    %v241 = vld [vmem:[%s4 + $0x190] sm:$0xff]
    %v242 = vld [vmem:[%s4 + $0x198] sm:$0xff]
    %v243 = vld [vmem:[%s4 + $0x1a0] sm:$0xff]
    %v244 = vld [vmem:[%s4 + $0x1a8] sm:$0xff]
    %v245 = vld [vmem:[%s4 + $0x1b0] sm:$0xff]
    %v246 = vld [vmem:[%s4 + $0x1b8] sm:$0xff]
    %v247 = vld [vmem:[%s4 + $0x1c0] sm:$0xff]
    %v248 = vld [vmem:[%s4 + $0x1c8] sm:$0xff]
    %v249 = vld [vmem:[%s4 + $0x1d0] sm:$0xff]
    %v250 = vld [vmem:[%s4 + $0x1d8] sm:$0xff]
    %v251 = vld [vmem:[%s4 + $0x1e0] sm:$0xff]
    %v252 = vld [vmem:[%s4 + $0x1e8] sm:$0xff]
    %v253 = vld [vmem:[%s4 + $0x1f0] sm:$0xff]
    %v254 = vld [vmem:[%s4 + $0x1f8] sm:$0xff]
    %255 = vmatprep.subr.mxu0 %v192
    %256 = vmatpush1.msra.mxu0 %v191
    %257 = vmatprep.subr.mxu0 %v194
    %258 = vmatpush1.msra.mxu0 %v193
    %259 = vmatprep.subr.mxu0 %v196
    %260 = vmatpush1.msra.mxu0 %v195
    %261 = vmatprep.subr.mxu0 %v198
    %262 = vmatpush1.msra.mxu0 %v197
    %263 = vmatprep.subr.mxu0 %v200
    %264 = vmatpush1.msra.mxu0 %v199
    %265 = vmatprep.subr.mxu0 %v202
    %266 = vmatpush1.msra.mxu0 %v201
    %267 = vmatprep.subr.mxu0 %v204
    %268 = vmatpush1.msra.mxu0 %v203
    %269 = vmatprep.subr.mxu0 %v206
    %270 = vmatpush1.msra.mxu0 %v205
    %271 = vmatprep.subr.mxu0 %v208
    %272 = vmatpush1.msra.mxu0 %v207
    %273 = vmatprep.subr.mxu0 %v210
    %274 = vmatpush1.msra.mxu0 %v209
    %275 = vmatprep.subr.mxu0 %v212
    %276 = vmatpush1.msra.mxu0 %v211
    %277 = vmatprep.subr.mxu0 %v214
    %278 = vmatpush1.msra.mxu0 %v213
    %279 = vmatprep.subr.mxu0 %v216
    %280 = vmatpush1.msra.mxu0 %v215
    %281 = vmatprep.subr.mxu0 %v218
    %282 = vmatpush1.msra.mxu0 %v217
    %283 = vmatprep.subr.mxu0 %v220
    %284 = vmatpush1.msra.mxu0 %v219
    %285 = vmatprep.subr.mxu0 %v222
    %286 = vmatpush1.msra.mxu0 %v221
    %287 = vmatprep.subr.mxu0 %v224
    %288 = vmatpush1.msra.mxu0 %v223
    %289 = vmatprep.subr.mxu0 %v226
    %290 = vmatpush1.msra.mxu0 %v225
    %291 = vmatprep.subr.mxu0 %v228
    %292 = vmatpush1.msra.mxu0 %v227
    %293 = vmatprep.subr.mxu0 %v230
    %294 = vmatpush1.msra.mxu0 %v229
    %295 = vmatprep.subr.mxu0 %v232
    %296 = vmatpush1.msra.mxu0 %v231
    %297 = vmatprep.subr.mxu0 %v234
    %298 = vmatpush1.msra.mxu0 %v233
    %299 = vmatprep.subr.mxu0 %v236
    %300 = vmatpush1.msra.mxu0 %v235
    %301 = vmatprep.subr.mxu0 %v238
    %302 = vmatpush1.msra.mxu0 %v237
    %303 = vmatprep.subr.mxu0 %v240
    %304 = vmatpush1.msra.mxu0 %v239
    %305 = vmatprep.subr.mxu0 %v242
    %306 = vmatpush1.msra.mxu0 %v241
    %307 = vmatprep.subr.mxu0 %v244
    %308 = vmatpush1.msra.mxu0 %v243
    %309 = vmatprep.subr.mxu0 %v246
    %310 = vmatpush1.msra.mxu0 %v245
    %311 = vmatprep.subr.mxu0 %v248
    %312 = vmatpush1.msra.mxu0 %v247
    %313 = vmatprep.subr.mxu0 %v250
    %314 = vmatpush1.msra.mxu0 %v249
    %315 = vmatprep.subr.mxu0 %v252
    %316 = vmatpush1.msra.mxu0 %v251
    %317 = vmatprep.subr.mxu0 %v254
    %318 = vmatpush1.msra.mxu0 %v253
    %319 = vmatprep.mubr.f32.mxu0 %v75
    %320 = vmatmul.mubr.f32.gmra.mrb[0].mxu0 %v74
    %v321 = vpop.f32.mrb[0].mxu0
    %v322 = vadd.f32 0.0, %v321
    %v323 = vpop.f32.mrb[0].mxu0
    %v324 = vadd.f32 0.0, %v323
    %325 = vmatprep.mubr.f32.mxu0 %v77
    %326 = vmatmul.mubr.f32.gmra.mrb[0].mxu0 %v76
    %v327 = vpop.f32.mrb[0].mxu0
    %v328 = vadd.f32 0.0, %v327
    %v329 = vpop.f32.mrb[0].mxu0
    %v330 = vadd.f32 0.0, %v329
    %331 = vmatprep.mubr.f32.mxu0 %v79
    %332 = vmatmul.mubr.f32.gmra.mrb[0].mxu0 %v78
    %v333 = vpop.f32.mrb[0].mxu0
    %v334 = vadd.f32 0.0, %v333
    %v335 = vpop.f32.mrb[0].mxu0
    %v336 = vadd.f32 0.0, %v335
    %337 = vmatprep.mubr.f32.mxu0 %v81
    %338 = vmatmul.mubr.f32.gmra.mrb[0].mxu0 %v80
    %v339 = vpop.f32.mrb[0].mxu0
    %v340 = vadd.f32 0.0, %v339
    %v341 = vpop.f32.mrb[0].mxu0
    %v342 = vadd.f32 0.0, %v341
    %343 = vdwg.mxu0
    %v344 = vld [vmem:[%s2] sm:$0xff]
    %v345 = vld [vmem:[%s2 + $0x8] sm:$0xff]
    %v346 = vld [vmem:[%s2 + $0x10] sm:$0xff]
    %v347 = vld [vmem:[%s2 + $0x18] sm:$0xff]
    %v348 = vld [vmem:[%s2 + $0x20] sm:$0xff]
    %v349 = vld [vmem:[%s2 + $0x28] sm:$0xff]
    %v350 = vld [vmem:[%s2 + $0x30] sm:$0xff]
    %v351 = vld [vmem:[%s2 + $0x38] sm:$0xff]
    %v352 = vld [vmem:[%s2 + $0x40] sm:$0xff]
    %v353 = vld [vmem:[%s2 + $0x48] sm:$0xff]
    %v354 = vld [vmem:[%s2 + $0x50] sm:$0xff]
    %v355 = vld [vmem:[%s2 + $0x58] sm:$0xff]
    %v356 = vld [vmem:[%s2 + $0x60] sm:$0x1]
    %v357 = vld [vmem:[%s2 + $0x68] sm:$0x1]
    %v358 = vld [vmem:[#allocation2] sm:$0xff]
    %v359 = vld [vmem:[#allocation2 + $0x8] sm:$0xff]
    %v360 = vld [vmem:[#allocation2 + $0x18] sm:$0xff]
    %v361 = vld [vmem:[#allocation2 + $0x20] sm:$0xff]
    %v362 = vld [vmem:[#allocation2 + $0x48] sm:$0xff]
    %v363 = vld [vmem:[#allocation2 + $0x50] sm:$0xff]
    %v364 = vld [vmem:[#allocation2 + $0x60] sm:$0xff]
    %v365 = vld [vmem:[#allocation2 + $0x68] sm:$0xff]
    %v366 = vlaneseq
    %v367 = vshrl.u32 %v366, 7
    %v368 = vsub.s32 0, %v367
    %v369 = vrot.slane %v344, %v368
    %v370 = vlaneseq
    %v371 = vshrl.u32 %v370, 7
    %v372 = vsub.s32 0, %v371
    %v373 = vrot.slane %v345, %v372
    %v374 = vmul.f32 %v358, %v369
    %v375 = vmul.f32 %v359, %v373
    %v376 = vmul.f32 %v360, %v369
    %v377 = vmul.f32 %v361, %v373
    %v378 = vmul.f32 %v362, %v369
    %v379 = vmul.f32 %v363, %v373
    %v380 = vmul.f32 %v364, %v369
    %v381 = vmul.f32 %v365, %v373
    %v382 = vld [vmem:[#allocation2 + $0x10] sm:$0xff]
    %v383 = vld [vmem:[#allocation2 + $0x28] sm:$0xff]
    %v384 = vld [vmem:[#allocation2 + $0x58] sm:$0xff]
    %v385 = vld [vmem:[#allocation2 + $0x70] sm:$0xff]
    %v386 = vlaneseq
    %v387 = vshrl.u32 %v386, 7
    %v388 = vsub.s32 1, %v387
    %v389 = vrot.slane %v344, %v388
    %v390 = vlaneseq
    %v391 = vshrl.u32 %v390, 7
    %v392 = vsub.s32 1, %v391
    %v393 = vrot.slane %v345, %v392
    %396 = vrot.lane.b32.xlu0 %v389, 16
    %v397 = vpop.permute.xlu0 %396
    %398 = vrot.lane.b32.xlu0 %v393, 16
    %v399 = vpop.permute.xlu0 %398
    %vm400 = vcmask 130048
    %v401 = vsel %vm400, %v397, %v399
    %v405 = vmul.f32 %v358, %v397
    %v406 = vmul.f32 %v359, %v401
    %v407 = vmul.f32 %v382, %v399
    %v408 = vmul.f32 %v360, %v397
    %v409 = vmul.f32 %v361, %v401
    %v410 = vmul.f32 %v383, %v399
    %v411 = vmul.f32 %v362, %v397
    %v412 = vmul.f32 %v363, %v401
    %v413 = vmul.f32 %v384, %v399
    %v414 = vmul.f32 %v364, %v397
    %v415 = vmul.f32 %v365, %v401
    %v416 = vmul.f32 %v385, %v399
    %v417 = vlaneseq
    %v418 = vshrl.u32 %v417, 7
    %v419 = vsub.s32 2, %v418
    %v420 = vrot.slane %v344, %v419
    %v421 = vlaneseq
    %v422 = vshrl.u32 %v421, 7
    %v423 = vsub.s32 2, %v422
    %v424 = vrot.slane %v345, %v423
    %427 = vrot.lane.b32.xlu0 %v420, 32
    %v428 = vpop.permute.xlu0 %427
    %429 = vrot.lane.b32.xlu0 %v424, 32
    %v430 = vpop.permute.xlu0 %429
    %vm431 = vcmask 261120
    %v432 = vsel %vm431, %v428, %v430
    %v436 = vmul.f32 %v358, %v428
    %v437 = vmul.f32 %v359, %v432
    %v438 = vmul.f32 %v382, %v430
    %v439 = vmul.f32 %v360, %v428
    %v440 = vmul.f32 %v361, %v432
    %v441 = vmul.f32 %v383, %v430
    %v442 = vmul.f32 %v362, %v428
    %v443 = vmul.f32 %v363, %v432
    %v444 = vmul.f32 %v384, %v430
    %v445 = vmul.f32 %v364, %v428
    %v446 = vmul.f32 %v365, %v432
    %v447 = vmul.f32 %v385, %v430
    %460 = vrot.lane.b32.xlu0 %v436, 96
    %v461 = vpop.permute.xlu0 %460
    %462 = vrot.lane.b32.xlu0 %v437, 96
    %v463 = vpop.permute.xlu0 %462
    %464 = vrot.lane.b32.xlu0 %v438, 96
    %v465 = vpop.permute.xlu0 %464
    %466 = vrot.lane.b32.xlu0 %v439, 96
    %v467 = vpop.permute.xlu0 %466
    %468 = vrot.lane.b32.xlu0 %v440, 96
    %v469 = vpop.permute.xlu0 %468
    %470 = vrot.lane.b32.xlu0 %v441, 96
    %v471 = vpop.permute.xlu0 %470
    %472 = vrot.lane.b32.xlu0 %v442, 96
    %v473 = vpop.permute.xlu0 %472
    %474 = vrot.lane.b32.xlu0 %v443, 96
    %v475 = vpop.permute.xlu0 %474
    %476 = vrot.lane.b32.xlu0 %v444, 96
    %v477 = vpop.permute.xlu0 %476
    %478 = vrot.lane.b32.xlu0 %v445, 96
    %v479 = vpop.permute.xlu0 %478
    %480 = vrot.lane.b32.xlu0 %v446, 96
    %v481 = vpop.permute.xlu0 %480
    %482 = vrot.lane.b32.xlu0 %v447, 96
    %v483 = vpop.permute.xlu0 %482
    %vm484 = vcmask 785408
    %v485 = vsel %vm484, %v461, %v463
    %v486 = vsel %vm484, %v463, %v465
    %v487 = vsel %vm484, %v467, %v469
    %v488 = vsel %vm484, %v469, %v471
    %v489 = vsel %vm484, %v473, %v475
    %v490 = vsel %vm484, %v475, %v477
    %v491 = vsel %vm484, %v479, %v481
    %v492 = vsel %vm484, %v481, %v483
    %v501 = vadd.f32 %v374, %v485
    %v502 = vadd.f32 %v375, %v486
    %v503 = vadd.f32 %v376, %v487
    %v504 = vadd.f32 %v377, %v488
    %v505 = vadd.f32 %v378, %v489
    %v506 = vadd.f32 %v379, %v490
    %v507 = vadd.f32 %v380, %v491
    %v508 = vadd.f32 %v381, %v492
    %v509 = vlaneseq
    %v510 = vshrl.u32 %v509, 7
    %v511 = vsub.s32 3, %v510
    %v512 = vrot.slane %v344, %v511
    %v513 = vlaneseq
    %v514 = vshrl.u32 %v513, 7
    %v515 = vsub.s32 3, %v514
    %v516 = vrot.slane %v345, %v515
    %519 = vrot.lane.b32.xlu0 %v512, 48
    %v520 = vpop.permute.xlu0 %519
    %521 = vrot.lane.b32.xlu0 %v516, 48
    %v522 = vpop.permute.xlu0 %521
    %v523 = vsel %vm143, %v520, %v522
    %v527 = vmul.f32 %v358, %v520
    %v528 = vmul.f32 %v359, %v523
    %v529 = vmul.f32 %v382, %v522
    %v530 = vmul.f32 %v360, %v520
    %v531 = vmul.f32 %v361, %v523
    %v532 = vmul.f32 %v383, %v522
    %v533 = vmul.f32 %v362, %v520
    %v534 = vmul.f32 %v363, %v523
    %v535 = vmul.f32 %v384, %v522
    %v536 = vmul.f32 %v364, %v520
    %v537 = vmul.f32 %v365, %v523
    %v538 = vmul.f32 %v385, %v522
    %551 = vrot.lane.b32.xlu0 %v527, 96
    %v552 = vpop.permute.xlu0 %551
    %553 = vrot.lane.b32.xlu0 %v528, 96
    %v554 = vpop.permute.xlu0 %553
    %555 = vrot.lane.b32.xlu0 %v529, 96
    %v556 = vpop.permute.xlu0 %555
    %557 = vrot.lane.b32.xlu0 %v530, 96
    %v558 = vpop.permute.xlu0 %557
    %559 = vrot.lane.b32.xlu0 %v531, 96
    %v560 = vpop.permute.xlu0 %559
    %561 = vrot.lane.b32.xlu0 %v532, 96
    %v562 = vpop.permute.xlu0 %561
    %563 = vrot.lane.b32.xlu0 %v533, 96
    %v564 = vpop.permute.xlu0 %563
    %565 = vrot.lane.b32.xlu0 %v534, 96
    %v566 = vpop.permute.xlu0 %565
    %567 = vrot.lane.b32.xlu0 %v535, 96
    %v568 = vpop.permute.xlu0 %567
    %569 = vrot.lane.b32.xlu0 %v536, 96
    %v570 = vpop.permute.xlu0 %569
    %571 = vrot.lane.b32.xlu0 %v537, 96
    %v572 = vpop.permute.xlu0 %571
    %573 = vrot.lane.b32.xlu0 %v538, 96
    %v574 = vpop.permute.xlu0 %573
    %v575 = vsel %vm484, %v552, %v554
    %v576 = vsel %vm484, %v554, %v556
    %v577 = vsel %vm484, %v558, %v560
    %v578 = vsel %vm484, %v560, %v562
    %v579 = vsel %vm484, %v564, %v566
    %v580 = vsel %vm484, %v566, %v568
    %v581 = vsel %vm484, %v570, %v572
    %v582 = vsel %vm484, %v572, %v574
    %v595 = vadd.f32 %v405, %v575
    %v596 = vadd.f32 %v406, %v576
    %v597 = vadd.f32 %v407, %v556
    %v598 = vadd.f32 %v408, %v577
    %v599 = vadd.f32 %v409, %v578
    %v600 = vadd.f32 %v410, %v562
    %v601 = vadd.f32 %v411, %v579
    %v602 = vadd.f32 %v412, %v580
    %v603 = vadd.f32 %v413, %v568
    %v604 = vadd.f32 %v414, %v581
    %v605 = vadd.f32 %v415, %v582
    %v606 = vadd.f32 %v416, %v574
    %v607 = vlaneseq
    %v608 = vshrl.u32 %v607, 7
    %v609 = vsub.s32 4, %v608
    %v610 = vrot.slane %v344, %v609
    %v611 = vlaneseq
    %v612 = vshrl.u32 %v611, 7
    %v613 = vsub.s32 4, %v612
    %v614 = vrot.slane %v345, %v613
    %617 = vrot.lane.b32.xlu0 %v610, 64
    %v618 = vpop.permute.xlu0 %617
    %619 = vrot.lane.b32.xlu0 %v614, 64
    %v620 = vpop.permute.xlu0 %619
    %vm621 = vcmask 523264
    %v622 = vsel %vm621, %v618, %v620
    %v626 = vmul.f32 %v358, %v618
    %v627 = vmul.f32 %v359, %v622
    %v628 = vmul.f32 %v382, %v620
    %v629 = vmul.f32 %v360, %v618
    %v630 = vmul.f32 %v361, %v622
    %v631 = vmul.f32 %v383, %v620
    %v632 = vmul.f32 %v362, %v618
    %v633 = vmul.f32 %v363, %v622
    %v634 = vmul.f32 %v384, %v620
    %v635 = vmul.f32 %v364, %v618
    %v636 = vmul.f32 %v365, %v622
    %v637 = vmul.f32 %v385, %v620
    %650 = vrot.lane.b32.xlu0 %v626, 64
    %v651 = vpop.permute.xlu0 %650
    %652 = vrot.lane.b32.xlu0 %v627, 64
    %v653 = vpop.permute.xlu0 %652
    %654 = vrot.lane.b32.xlu0 %v628, 64
    %v655 = vpop.permute.xlu0 %654
    %656 = vrot.lane.b32.xlu0 %v629, 64
    %v657 = vpop.permute.xlu0 %656
    %658 = vrot.lane.b32.xlu0 %v630, 64
    %v659 = vpop.permute.xlu0 %658
    %660 = vrot.lane.b32.xlu0 %v631, 64
    %v661 = vpop.permute.xlu0 %660
    %662 = vrot.lane.b32.xlu0 %v632, 64
    %v663 = vpop.permute.xlu0 %662
    %664 = vrot.lane.b32.xlu0 %v633, 64
    %v665 = vpop.permute.xlu0 %664
    %666 = vrot.lane.b32.xlu0 %v634, 64
    %v667 = vpop.permute.xlu0 %666
    %668 = vrot.lane.b32.xlu0 %v635, 64
    %v669 = vpop.permute.xlu0 %668
    %670 = vrot.lane.b32.xlu0 %v636, 64
    %v671 = vpop.permute.xlu0 %670
    %672 = vrot.lane.b32.xlu0 %v637, 64
    %v673 = vpop.permute.xlu0 %672
    %v674 = vsel %vm621, %v651, %v653
    %v675 = vsel %vm621, %v653, %v655
    %v676 = vsel %vm621, %v657, %v659
    %v677 = vsel %vm621, %v659, %v661
    %v678 = vsel %vm621, %v663, %v665
    %v679 = vsel %vm621, %v665, %v667
    %v680 = vsel %vm621, %v669, %v671
    %v681 = vsel %vm621, %v671, %v673
    %v690 = vadd.f32 %v501, %v674
    %v691 = vadd.f32 %v502, %v675
    %v692 = vadd.f32 %v503, %v676
    %v693 = vadd.f32 %v504, %v677
    %v694 = vadd.f32 %v505, %v678
    %v695 = vadd.f32 %v506, %v679
    %v696 = vadd.f32 %v507, %v680
    %v697 = vadd.f32 %v508, %v681
    %v698 = vlaneseq
    %v699 = vshrl.u32 %v698, 7
    %v700 = vsub.s32 5, %v699
    %v701 = vrot.slane %v344, %v700
    %v702 = vlaneseq
    %v703 = vshrl.u32 %v702, 7
    %v704 = vsub.s32 5, %v703
    %v705 = vrot.slane %v345, %v704
    %708 = vrot.lane.b32.xlu0 %v701, 80
    %v709 = vpop.permute.xlu0 %708
    %710 = vrot.lane.b32.xlu0 %v705, 80
    %v711 = vpop.permute.xlu0 %710
    %vm712 = vcmask 654336
    %v713 = vsel %vm712, %v709, %v711
    %v717 = vmul.f32 %v358, %v709
    %v718 = vmul.f32 %v359, %v713
    %v719 = vmul.f32 %v382, %v711
    %v720 = vmul.f32 %v360, %v709
    %v721 = vmul.f32 %v361, %v713
    %v722 = vmul.f32 %v383, %v711
    %v723 = vmul.f32 %v362, %v709
    %v724 = vmul.f32 %v363, %v713
    %v725 = vmul.f32 %v384, %v711
    %v726 = vmul.f32 %v364, %v709
    %v727 = vmul.f32 %v365, %v713
    %v728 = vmul.f32 %v385, %v711
    %741 = vrot.lane.b32.xlu0 %v717, 64
    %v742 = vpop.permute.xlu0 %741
    %743 = vrot.lane.b32.xlu0 %v718, 64
    %v744 = vpop.permute.xlu0 %743
    %745 = vrot.lane.b32.xlu0 %v719, 64
    %v746 = vpop.permute.xlu0 %745
    %747 = vrot.lane.b32.xlu0 %v720, 64
    %v748 = vpop.permute.xlu0 %747
    %749 = vrot.lane.b32.xlu0 %v721, 64
    %v750 = vpop.permute.xlu0 %749
    %751 = vrot.lane.b32.xlu0 %v722, 64
    %v752 = vpop.permute.xlu0 %751
    %753 = vrot.lane.b32.xlu0 %v723, 64
    %v754 = vpop.permute.xlu0 %753
    %755 = vrot.lane.b32.xlu0 %v724, 64
    %v756 = vpop.permute.xlu0 %755
    %757 = vrot.lane.b32.xlu0 %v725, 64
    %v758 = vpop.permute.xlu0 %757
    %759 = vrot.lane.b32.xlu0 %v726, 64
    %v760 = vpop.permute.xlu0 %759
    %761 = vrot.lane.b32.xlu0 %v727, 64
    %v762 = vpop.permute.xlu0 %761
    %763 = vrot.lane.b32.xlu0 %v728, 64
    %v764 = vpop.permute.xlu0 %763
    %v765 = vsel %vm621, %v742, %v744
    %v766 = vsel %vm621, %v744, %v746
    %v767 = vsel %vm621, %v748, %v750
    %v768 = vsel %vm621, %v750, %v752
    %v769 = vsel %vm621, %v754, %v756
    %v770 = vsel %vm621, %v756, %v758
    %v771 = vsel %vm621, %v760, %v762
    %v772 = vsel %vm621, %v762, %v764
    %v785 = vadd.f32 %v595, %v765
    %v786 = vadd.f32 %v596, %v766
    %v787 = vadd.f32 %v597, %v746
    %v788 = vadd.f32 %v598, %v767
    %v789 = vadd.f32 %v599, %v768
    %v790 = vadd.f32 %v600, %v752
    %v791 = vadd.f32 %v601, %v769
    %v792 = vadd.f32 %v602, %v770
    %v793 = vadd.f32 %v603, %v758
    %v794 = vadd.f32 %v604, %v771
    %v795 = vadd.f32 %v605, %v772
    %v796 = vadd.f32 %v606, %v764
    %v797 = vlaneseq
    %v798 = vshrl.u32 %v797, 7
    %v799 = vsub.s32 6, %v798
    %v800 = vrot.slane %v344, %v799
    %v801 = vlaneseq
    %v802 = vshrl.u32 %v801, 7
    %v803 = vsub.s32 6, %v802
    %v804 = vrot.slane %v345, %v803
    %807 = vrot.lane.b32.xlu0 %v800, 96
    %v808 = vpop.permute.xlu0 %807
    %809 = vrot.lane.b32.xlu0 %v804, 96
    %v810 = vpop.permute.xlu0 %809
    %v811 = vsel %vm484, %v808, %v810
    %v815 = vmul.f32 %v358, %v808
    %v816 = vmul.f32 %v359, %v811
    %v817 = vmul.f32 %v382, %v810
    %v818 = vmul.f32 %v360, %v808
    %v819 = vmul.f32 %v361, %v811
    %v820 = vmul.f32 %v383, %v810
    %v821 = vmul.f32 %v362, %v808
    %v822 = vmul.f32 %v363, %v811
    %v823 = vmul.f32 %v384, %v810
    %v824 = vmul.f32 %v364, %v808
    %v825 = vmul.f32 %v365, %v811
    %v826 = vmul.f32 %v385, %v810
    %839 = vrot.lane.b32.xlu0 %v815, 32
    %v840 = vpop.permute.xlu0 %839
    %841 = vrot.lane.b32.xlu0 %v816, 32
    %v842 = vpop.permute.xlu0 %841
    %843 = vrot.lane.b32.xlu0 %v817, 32
    %v844 = vpop.permute.xlu0 %843
    %845 = vrot.lane.b32.xlu0 %v818, 32
    %v846 = vpop.permute.xlu0 %845
    %847 = vrot.lane.b32.xlu0 %v819, 32
    %v848 = vpop.permute.xlu0 %847
    %849 = vrot.lane.b32.xlu0 %v820, 32
    %v850 = vpop.permute.xlu0 %849
    %851 = vrot.lane.b32.xlu0 %v821, 32
    %v852 = vpop.permute.xlu0 %851
    %853 = vrot.lane.b32.xlu0 %v822, 32
    %v854 = vpop.permute.xlu0 %853
    %855 = vrot.lane.b32.xlu0 %v823, 32
    %v856 = vpop.permute.xlu0 %855
    %857 = vrot.lane.b32.xlu0 %v824, 32
    %v858 = vpop.permute.xlu0 %857
    %859 = vrot.lane.b32.xlu0 %v825, 32
    %v860 = vpop.permute.xlu0 %859
    %861 = vrot.lane.b32.xlu0 %v826, 32
    %v862 = vpop.permute.xlu0 %861
    %v863 = vsel %vm431, %v840, %v842
    %v864 = vsel %vm431, %v842, %v844
    %v865 = vsel %vm431, %v846, %v848
    %v866 = vsel %vm431, %v848, %v850
    %v867 = vsel %vm431, %v852, %v854
    %v868 = vsel %vm431, %v854, %v856
    %v869 = vsel %vm431, %v858, %v860
    %v870 = vsel %vm431, %v860, %v862
    %v879 = vadd.f32 %v690, %v863
    %v880 = vadd.f32 %v691, %v864
    %v881 = vadd.f32 %v692, %v865
    %v882 = vadd.f32 %v693, %v866
    %v883 = vadd.f32 %v694, %v867
    %v884 = vadd.f32 %v695, %v868
    %v885 = vadd.f32 %v696, %v869
    %v886 = vadd.f32 %v697, %v870
    %v887 = vld [vmem:[#allocation2] sm:$0xfe]
    %v888 = vld [vmem:[#allocation2 + $0x8] sm:$0xfe]
    %v889 = vld [vmem:[#allocation2 + $0x30] sm:$0x1]
    %v890 = vld [vmem:[#allocation2 + $0x38] sm:$0x1]
    %v891 = vld [vmem:[#allocation2 + $0x48] sm:$0xfe]
    %v892 = vld [vmem:[#allocation2 + $0x50] sm:$0xfe]
    %v893 = vld [vmem:[#allocation2 + $0x78] sm:$0x1]
    %v894 = vld [vmem:[#allocation2 + $0x80] sm:$0x1]
    %v895 = vlaneseq
    %v896 = vshrl.u32 %v895, 7
    %v897 = vsub.s32 7, %v896
    %v898 = vrot.slane %v344, %v897
    %v899 = vlaneseq
    %v900 = vshrl.u32 %v899, 7
    %v901 = vsub.s32 7, %v900
    %v902 = vrot.slane %v345, %v901
    %v903 = vmul.f32 %v887, %v898
    %v904 = vmul.f32 %v888, %v902
    %v905 = vmul.f32 %v360, %v898
    %v906 = vmul.f32 %v361, %v902
    %v907 = vmul.f32 %v889, %v898
    %v908 = vmul.f32 %v890, %v902
    %v909 = vmul.f32 %v891, %v898
    %v910 = vmul.f32 %v892, %v902
    %v911 = vmul.f32 %v364, %v898
    %v912 = vmul.f32 %v365, %v902
    %v913 = vmul.f32 %v893, %v898
    %v914 = vmul.f32 %v894, %v902
    %vm927 = vcmask 1046528
    %v928 = vrot.slane %v903, 1
    %v929 = vrot.slane %v905, 1
    %v930 = vsel %vm927, %v928, %v929
    %v931 = vrot.slane %v904, 1
    %v932 = vrot.slane %v906, 1
    %v933 = vsel %vm927, %v931, %v932
    %v934 = vrot.slane %v907, 1
    %v935 = vsel %vm927, %v929, %v934
    %v936 = vrot.slane %v908, 1
    %v937 = vsel %vm927, %v932, %v936
    %v938 = vrot.slane %v909, 1
    %v939 = vrot.slane %v911, 1
    %v940 = vsel %vm927, %v938, %v939
    %v941 = vrot.slane %v910, 1
    %v942 = vrot.slane %v912, 1
    %v943 = vsel %vm927, %v941, %v942
    %v944 = vrot.slane %v913, 1
    %v945 = vsel %vm927, %v939, %v944
    %v946 = vrot.slane %v914, 1
    %v947 = vsel %vm927, %v942, %v946
    %948 = vrot.lane.b32.xlu0 %v930, 16
    %v949 = vpop.permute.xlu0 %948
    %950 = vrot.lane.b32.xlu0 %v933, 16
    %v951 = vpop.permute.xlu0 %950
    %952 = vrot.lane.b32.xlu0 %v935, 16
    %v953 = vpop.permute.xlu0 %952
    %954 = vrot.lane.b32.xlu0 %v937, 16
    %v955 = vpop.permute.xlu0 %954
    %956 = vrot.lane.b32.xlu0 %v940, 16
    %v957 = vpop.permute.xlu0 %956
    %958 = vrot.lane.b32.xlu0 %v943, 16
    %v959 = vpop.permute.xlu0 %958
    %960 = vrot.lane.b32.xlu0 %v945, 16
    %v961 = vpop.permute.xlu0 %960
    %962 = vrot.lane.b32.xlu0 %v947, 16
    %v963 = vpop.permute.xlu0 %962
    %v964 = vsel %vm400, %v949, %v951
    %v965 = vsel %vm400, %v953, %v955
    %v966 = vsel %vm400, %v957, %v959
    %v967 = vsel %vm400, %v961, %v963
    %v980 = vadd.f32 %v785, %v949
    %v981 = vadd.f32 %v786, %v964
    %v982 = vadd.f32 %v787, %v951
    %v983 = vadd.f32 %v788, %v953
    %v984 = vadd.f32 %v789, %v965
    %v985 = vadd.f32 %v790, %v955
    %v986 = vadd.f32 %v791, %v957
    %v987 = vadd.f32 %v792, %v966
    %v988 = vadd.f32 %v793, %v959
    %v989 = vadd.f32 %v794, %v961
    %v990 = vadd.f32 %v795, %v967
    %v991 = vadd.f32 %v796, %v963
    %v992 = vld [vmem:[#allocation2 + $0x10] sm:$0xfe]
    %v993 = vld [vmem:[#allocation2 + $0x40] sm:$0x1]
    %v994 = vld [vmem:[#allocation2 + $0x58] sm:$0xfe]
    %v995 = vld [vmem:[#allocation2 + $0x88] sm:$0x1]
    %v996 = vlaneseq
    %v997 = vshrl.u32 %v996, 7
    %v998 = vsub.s32 0, %v997
    %v999 = vrot.slane %v346, %v998
    %v1000 = vlaneseq
    %v1001 = vshrl.u32 %v1000, 7
    %v1002 = vsub.s32 0, %v1001
    %v1003 = vrot.slane %v347, %v1002
    %1006 = vrot.lane.b32.xlu0 %v999, 16
    %v1007 = vpop.permute.xlu0 %1006
    %1008 = vrot.lane.b32.xlu0 %v1003, 16
    %v1009 = vpop.permute.xlu0 %1008
    %v1010 = vsel %vm400, %v1007, %v1009
    %v1014 = vmul.f32 %v887, %v1007
    %v1015 = vmul.f32 %v888, %v1010
    %v1016 = vmul.f32 %v992, %v1009
    %v1017 = vmul.f32 %v360, %v1007
    %v1018 = vmul.f32 %v361, %v1010
    %v1019 = vmul.f32 %v383, %v1009
    %v1020 = vmul.f32 %v889, %v1007
    %v1021 = vmul.f32 %v890, %v1010
    %v1022 = vmul.f32 %v993, %v1009
    %v1023 = vmul.f32 %v891, %v1007
    %v1024 = vmul.f32 %v892, %v1010
    %v1025 = vmul.f32 %v994, %v1009
    %v1026 = vmul.f32 %v364, %v1007
    %v1027 = vmul.f32 %v365, %v1010
    %v1028 = vmul.f32 %v385, %v1009
    %v1029 = vmul.f32 %v893, %v1007
    %v1030 = vmul.f32 %v894, %v1010
    %v1031 = vmul.f32 %v995, %v1009
    %v1050 = vrot.slane %v1014, 1
    %v1051 = vrot.slane %v1017, 1
    %v1052 = vsel %vm927, %v1050, %v1051
    %v1053 = vrot.slane %v1015, 1
    %v1054 = vrot.slane %v1018, 1
    %v1055 = vsel %vm927, %v1053, %v1054
    %v1056 = vrot.slane %v1016, 1
    %v1057 = vrot.slane %v1019, 1
    %v1058 = vsel %vm927, %v1056, %v1057
    %v1059 = vrot.slane %v1020, 1
    %v1060 = vsel %vm927, %v1051, %v1059
    %v1061 = vrot.slane %v1021, 1
    %v1062 = vsel %vm927, %v1054, %v1061
    %v1063 = vrot.slane %v1022, 1
    %v1064 = vsel %vm927, %v1057, %v1063
    %v1065 = vrot.slane %v1023, 1
    %v1066 = vrot.slane %v1026, 1
    %v1067 = vsel %vm927, %v1065, %v1066
    %v1068 = vrot.slane %v1024, 1
    %v1069 = vrot.slane %v1027, 1
    %v1070 = vsel %vm927, %v1068, %v1069
    %v1071 = vrot.slane %v1025, 1
    %v1072 = vrot.slane %v1028, 1
    %v1073 = vsel %vm927, %v1071, %v1072
    %v1074 = vrot.slane %v1029, 1
    %v1075 = vsel %vm927, %v1066, %v1074
    %v1076 = vrot.slane %v1030, 1
    %v1077 = vsel %vm927, %v1069, %v1076
    %v1078 = vrot.slane %v1031, 1
    %v1079 = vsel %vm927, %v1072, %v1078
    %1080 = vrot.lane.b32.xlu0 %v1052, 112
    %v1081 = vpop.permute.xlu0 %1080
    %1082 = vrot.lane.b32.xlu0 %v1055, 112
    %v1083 = vpop.permute.xlu0 %1082
    %1084 = vrot.lane.b32.xlu0 %v1058, 112
    %v1085 = vpop.permute.xlu0 %1084
    %1086 = vrot.lane.b32.xlu0 %v1060, 112
    %v1087 = vpop.permute.xlu0 %1086
    %1088 = vrot.lane.b32.xlu0 %v1062, 112
    %v1089 = vpop.permute.xlu0 %1088
    %1090 = vrot.lane.b32.xlu0 %v1064, 112
    %v1091 = vpop.permute.xlu0 %1090
    %1092 = vrot.lane.b32.xlu0 %v1067, 112
    %v1093 = vpop.permute.xlu0 %1092
    %1094 = vrot.lane.b32.xlu0 %v1070, 112
    %v1095 = vpop.permute.xlu0 %1094
    %1096 = vrot.lane.b32.xlu0 %v1073, 112
    %v1097 = vpop.permute.xlu0 %1096
    %1098 = vrot.lane.b32.xlu0 %v1075, 112
    %v1099 = vpop.permute.xlu0 %1098
    %1100 = vrot.lane.b32.xlu0 %v1077, 112
    %v1101 = vpop.permute.xlu0 %1100
    %1102 = vrot.lane.b32.xlu0 %v1079, 112
    %v1103 = vpop.permute.xlu0 %1102
    %vm1104 = vcmask 916480
    %v1105 = vsel %vm1104, %v1081, %v1083
    %v1106 = vsel %vm1104, %v1083, %v1085
    %v1107 = vsel %vm1104, %v1087, %v1089
    %v1108 = vsel %vm1104, %v1089, %v1091
    %v1109 = vsel %vm1104, %v1093, %v1095
    %v1110 = vsel %vm1104, %v1095, %v1097
    %v1111 = vsel %vm1104, %v1099, %v1101
    %v1112 = vsel %vm1104, %v1101, %v1103
    %v1121 = vadd.f32 %v879, %v1105
    %v1122 = vadd.f32 %v880, %v1106
    %v1123 = vadd.f32 %v881, %v1107
    %v1124 = vadd.f32 %v882, %v1108
    %v1125 = vadd.f32 %v883, %v1109
    %v1126 = vadd.f32 %v884, %v1110
    %v1127 = vadd.f32 %v885, %v1111
    %v1128 = vadd.f32 %v886, %v1112
    %v1129 = vlaneseq
    %v1130 = vshrl.u32 %v1129, 7
    %v1131 = vsub.s32 1, %v1130
    %v1132 = vrot.slane %v346, %v1131
    %v1133 = vlaneseq
    %v1134 = vshrl.u32 %v1133, 7
    %v1135 = vsub.s32 1, %v1134
    %v1136 = vrot.slane %v347, %v1135
    %1139 = vrot.lane.b32.xlu0 %v1132, 32
    %v1140 = vpop.permute.xlu0 %1139
    %1141 = vrot.lane.b32.xlu0 %v1136, 32
    %v1142 = vpop.permute.xlu0 %1141
    %v1143 = vsel %vm431, %v1140, %v1142
    %v1147 = vmul.f32 %v887, %v1140
    %v1148 = vmul.f32 %v888, %v1143
    %v1149 = vmul.f32 %v992, %v1142
    %v1150 = vmul.f32 %v360, %v1140
    %v1151 = vmul.f32 %v361, %v1143
    %v1152 = vmul.f32 %v383, %v1142
    %v1153 = vmul.f32 %v889, %v1140
    %v1154 = vmul.f32 %v890, %v1143
    %v1155 = vmul.f32 %v993, %v1142
    %v1156 = vmul.f32 %v891, %v1140
    %v1157 = vmul.f32 %v892, %v1143
    %v1158 = vmul.f32 %v994, %v1142
    %v1159 = vmul.f32 %v364, %v1140
    %v1160 = vmul.f32 %v365, %v1143
    %v1161 = vmul.f32 %v385, %v1142
    %v1162 = vmul.f32 %v893, %v1140
    %v1163 = vmul.f32 %v894, %v1143
    %v1164 = vmul.f32 %v995, %v1142
    %v1183 = vrot.slane %v1147, 1
    %v1184 = vrot.slane %v1150, 1
    %v1185 = vsel %vm927, %v1183, %v1184
    %v1186 = vrot.slane %v1148, 1
    %v1187 = vrot.slane %v1151, 1
    %v1188 = vsel %vm927, %v1186, %v1187
    %v1189 = vrot.slane %v1149, 1
    %v1190 = vrot.slane %v1152, 1
    %v1191 = vsel %vm927, %v1189, %v1190
    %v1192 = vrot.slane %v1153, 1
    %v1193 = vsel %vm927, %v1184, %v1192
    %v1194 = vrot.slane %v1154, 1
    %v1195 = vsel %vm927, %v1187, %v1194
    %v1196 = vrot.slane %v1155, 1
    %v1197 = vsel %vm927, %v1190, %v1196
    %v1198 = vrot.slane %v1156, 1
    %v1199 = vrot.slane %v1159, 1
    %v1200 = vsel %vm927, %v1198, %v1199
    %v1201 = vrot.slane %v1157, 1
    %v1202 = vrot.slane %v1160, 1
    %v1203 = vsel %vm927, %v1201, %v1202
    %v1204 = vrot.slane %v1158, 1
    %v1205 = vrot.slane %v1161, 1
    %v1206 = vsel %vm927, %v1204, %v1205
    %v1207 = vrot.slane %v1162, 1
    %v1208 = vsel %vm927, %v1199, %v1207
    %v1209 = vrot.slane %v1163, 1
    %v1210 = vsel %vm927, %v1202, %v1209
    %v1211 = vrot.slane %v1164, 1
    %v1212 = vsel %vm927, %v1205, %v1211
    %1213 = vrot.lane.b32.xlu0 %v1185, 112
    %v1214 = vpop.permute.xlu0 %1213
    %1215 = vrot.lane.b32.xlu0 %v1188, 112
    %v1216 = vpop.permute.xlu0 %1215
    %1217 = vrot.lane.b32.xlu0 %v1191, 112
    %v1218 = vpop.permute.xlu0 %1217
    %1219 = vrot.lane.b32.xlu0 %v1193, 112
    %v1220 = vpop.permute.xlu0 %1219
    %1221 = vrot.lane.b32.xlu0 %v1195, 112
    %v1222 = vpop.permute.xlu0 %1221
    %1223 = vrot.lane.b32.xlu0 %v1197, 112
    %v1224 = vpop.permute.xlu0 %1223
    %1225 = vrot.lane.b32.xlu0 %v1200, 112
    %v1226 = vpop.permute.xlu0 %1225
    %1227 = vrot.lane.b32.xlu0 %v1203, 112
    %v1228 = vpop.permute.xlu0 %1227
    %1229 = vrot.lane.b32.xlu0 %v1206, 112
    %v1230 = vpop.permute.xlu0 %1229
    %1231 = vrot.lane.b32.xlu0 %v1208, 112
    %v1232 = vpop.permute.xlu0 %1231
    %1233 = vrot.lane.b32.xlu0 %v1210, 112
    %v1234 = vpop.permute.xlu0 %1233
    %1235 = vrot.lane.b32.xlu0 %v1212, 112
    %v1236 = vpop.permute.xlu0 %1235
    %v1237 = vsel %vm1104, %v1214, %v1216
    %v1238 = vsel %vm1104, %v1216, %v1218
    %v1239 = vsel %vm1104, %v1220, %v1222
    %v1240 = vsel %vm1104, %v1222, %v1224
    %v1241 = vsel %vm1104, %v1226, %v1228
    %v1242 = vsel %vm1104, %v1228, %v1230
    %v1243 = vsel %vm1104, %v1232, %v1234
    %v1244 = vsel %vm1104, %v1234, %v1236
    %v1257 = vadd.f32 %v980, %v1237
    %v1258 = vadd.f32 %v981, %v1238
    %v1259 = vadd.f32 %v982, %v1218
    %v1260 = vadd.f32 %v983, %v1239
    %v1261 = vadd.f32 %v984, %v1240
    %v1262 = vadd.f32 %v985, %v1224
    %v1263 = vadd.f32 %v986, %v1241
    %v1264 = vadd.f32 %v987, %v1242
    %v1265 = vadd.f32 %v988, %v1230
    %v1266 = vadd.f32 %v989, %v1243
    %v1267 = vadd.f32 %v990, %v1244
    %v1268 = vadd.f32 %v991, %v1236
    %v1269 = vlaneseq
    %v1270 = vshrl.u32 %v1269, 7
    %v1271 = vsub.s32 2, %v1270
    %v1272 = vrot.slane %v346, %v1271
    %v1273 = vlaneseq
    %v1274 = vshrl.u32 %v1273, 7
    %v1275 = vsub.s32 2, %v1274
    %v1276 = vrot.slane %v347, %v1275
    %1279 = vrot.lane.b32.xlu0 %v1272, 48
    %v1280 = vpop.permute.xlu0 %1279
    %1281 = vrot.lane.b32.xlu0 %v1276, 48
    %v1282 = vpop.permute.xlu0 %1281
    %v1283 = vsel %vm143, %v1280, %v1282
    %v1287 = vmul.f32 %v887, %v1280
    %v1288 = vmul.f32 %v888, %v1283
    %v1289 = vmul.f32 %v992, %v1282
    %v1290 = vmul.f32 %v360, %v1280
    %v1291 = vmul.f32 %v361, %v1283
    %v1292 = vmul.f32 %v383, %v1282
    %v1293 = vmul.f32 %v889, %v1280
    %v1294 = vmul.f32 %v890, %v1283
    %v1295 = vmul.f32 %v993, %v1282
    %v1296 = vmul.f32 %v891, %v1280
    %v1297 = vmul.f32 %v892, %v1283
    %v1298 = vmul.f32 %v994, %v1282
    %v1299 = vmul.f32 %v364, %v1280
    %v1300 = vmul.f32 %v365, %v1283
    %v1301 = vmul.f32 %v385, %v1282
    %v1302 = vmul.f32 %v893, %v1280
    %v1303 = vmul.f32 %v894, %v1283
    %v1304 = vmul.f32 %v995, %v1282
    %v1323 = vrot.slane %v1287, 1
    %v1324 = vrot.slane %v1290, 1
    %v1325 = vsel %vm927, %v1323, %v1324
    %v1326 = vrot.slane %v1288, 1
    %v1327 = vrot.slane %v1291, 1
    %v1328 = vsel %vm927, %v1326, %v1327
    %v1329 = vrot.slane %v1289, 1
    %v1330 = vrot.slane %v1292, 1
    %v1331 = vsel %vm927, %v1329, %v1330
    %v1332 = vrot.slane %v1293, 1
    %v1333 = vsel %vm927, %v1324, %v1332
    %v1334 = vrot.slane %v1294, 1
    %v1335 = vsel %vm927, %v1327, %v1334
    %v1336 = vrot.slane %v1295, 1
    %v1337 = vsel %vm927, %v1330, %v1336
    %v1338 = vrot.slane %v1296, 1
    %v1339 = vrot.slane %v1299, 1
    %v1340 = vsel %vm927, %v1338, %v1339
    %v1341 = vrot.slane %v1297, 1
    %v1342 = vrot.slane %v1300, 1
    %v1343 = vsel %vm927, %v1341, %v1342
    %v1344 = vrot.slane %v1298, 1
    %v1345 = vrot.slane %v1301, 1
    %v1346 = vsel %vm927, %v1344, %v1345
    %v1347 = vrot.slane %v1302, 1
    %v1348 = vsel %vm927, %v1339, %v1347
    %v1349 = vrot.slane %v1303, 1
    %v1350 = vsel %vm927, %v1342, %v1349
    %v1351 = vrot.slane %v1304, 1
    %v1352 = vsel %vm927, %v1345, %v1351
    %1353 = vrot.lane.b32.xlu0 %v1325, 80
    %v1354 = vpop.permute.xlu0 %1353
    %1355 = vrot.lane.b32.xlu0 %v1328, 80
    %v1356 = vpop.permute.xlu0 %1355
    %1357 = vrot.lane.b32.xlu0 %v1331, 80
    %v1358 = vpop.permute.xlu0 %1357
    %1359 = vrot.lane.b32.xlu0 %v1333, 80
    %v1360 = vpop.permute.xlu0 %1359
    %1361 = vrot.lane.b32.xlu0 %v1335, 80
    %v1362 = vpop.permute.xlu0 %1361
    %1363 = vrot.lane.b32.xlu0 %v1337, 80
    %v1364 = vpop.permute.xlu0 %1363
    %1365 = vrot.lane.b32.xlu0 %v1340, 80
    %v1366 = vpop.permute.xlu0 %1365
    %1367 = vrot.lane.b32.xlu0 %v1343, 80
    %v1368 = vpop.permute.xlu0 %1367
    %1369 = vrot.lane.b32.xlu0 %v1346, 80
    %v1370 = vpop.permute.xlu0 %1369
    %1371 = vrot.lane.b32.xlu0 %v1348, 80
    %v1372 = vpop.permute.xlu0 %1371
    %1373 = vrot.lane.b32.xlu0 %v1350, 80
    %v1374 = vpop.permute.xlu0 %1373
    %1375 = vrot.lane.b32.xlu0 %v1352, 80
    %v1376 = vpop.permute.xlu0 %1375
    %v1377 = vsel %vm712, %v1354, %v1356
    %v1378 = vsel %vm712, %v1356, %v1358
    %v1379 = vsel %vm712, %v1360, %v1362
    %v1380 = vsel %vm712, %v1362, %v1364
    %v1381 = vsel %vm712, %v1366, %v1368
    %v1382 = vsel %vm712, %v1368, %v1370
    %v1383 = vsel %vm712, %v1372, %v1374
    %v1384 = vsel %vm712, %v1374, %v1376
    %v1393 = vadd.f32 %v1121, %v1377
    %v1394 = vadd.f32 %v1122, %v1378
    %v1395 = vadd.f32 %v1123, %v1379
    %v1396 = vadd.f32 %v1124, %v1380
    %v1397 = vadd.f32 %v1125, %v1381
    %v1398 = vadd.f32 %v1126, %v1382
    %v1399 = vadd.f32 %v1127, %v1383
    %v1400 = vadd.f32 %v1128, %v1384
    %v1401 = vlaneseq
    %v1402 = vshrl.u32 %v1401, 7
    %v1403 = vsub.s32 3, %v1402
    %v1404 = vrot.slane %v346, %v1403
    %v1405 = vlaneseq
    %v1406 = vshrl.u32 %v1405, 7
    %v1407 = vsub.s32 3, %v1406
    %v1408 = vrot.slane %v347, %v1407
    %1411 = vrot.lane.b32.xlu0 %v1404, 64
    %v1412 = vpop.permute.xlu0 %1411
    %1413 = vrot.lane.b32.xlu0 %v1408, 64
    %v1414 = vpop.permute.xlu0 %1413
    %v1415 = vsel %vm621, %v1412, %v1414
    %v1419 = vmul.f32 %v887, %v1412
    %v1420 = vmul.f32 %v888, %v1415
    %v1421 = vmul.f32 %v992, %v1414
    %v1422 = vmul.f32 %v360, %v1412
    %v1423 = vmul.f32 %v361, %v1415
    %v1424 = vmul.f32 %v383, %v1414
    %v1425 = vmul.f32 %v889, %v1412
    %v1426 = vmul.f32 %v890, %v1415
    %v1427 = vmul.f32 %v993, %v1414
    %v1428 = vmul.f32 %v891, %v1412
    %v1429 = vmul.f32 %v892, %v1415
    %v1430 = vmul.f32 %v994, %v1414
    %v1431 = vmul.f32 %v364, %v1412
    %v1432 = vmul.f32 %v365, %v1415
    %v1433 = vmul.f32 %v385, %v1414
    %v1434 = vmul.f32 %v893, %v1412
    %v1435 = vmul.f32 %v894, %v1415
    %v1436 = vmul.f32 %v995, %v1414
    %v1455 = vrot.slane %v1419, 1
    %v1456 = vrot.slane %v1422, 1
    %v1457 = vsel %vm927, %v1455, %v1456
    %v1458 = vrot.slane %v1420, 1
    %v1459 = vrot.slane %v1423, 1
    %v1460 = vsel %vm927, %v1458, %v1459
    %v1461 = vrot.slane %v1421, 1
    %v1462 = vrot.slane %v1424, 1
    %v1463 = vsel %vm927, %v1461, %v1462
    %v1464 = vrot.slane %v1425, 1
    %v1465 = vsel %vm927, %v1456, %v1464
    %v1466 = vrot.slane %v1426, 1
    %v1467 = vsel %vm927, %v1459, %v1466
    %v1468 = vrot.slane %v1427, 1
    %v1469 = vsel %vm927, %v1462, %v1468
    %v1470 = vrot.slane %v1428, 1
    %v1471 = vrot.slane %v1431, 1
    %v1472 = vsel %vm927, %v1470, %v1471
    %v1473 = vrot.slane %v1429, 1
    %v1474 = vrot.slane %v1432, 1
    %v1475 = vsel %vm927, %v1473, %v1474
    %v1476 = vrot.slane %v1430, 1
    %v1477 = vrot.slane %v1433, 1
    %v1478 = vsel %vm927, %v1476, %v1477
    %v1479 = vrot.slane %v1434, 1
    %v1480 = vsel %vm927, %v1471, %v1479
    %v1481 = vrot.slane %v1435, 1
    %v1482 = vsel %vm927, %v1474, %v1481
    %v1483 = vrot.slane %v1436, 1
    %v1484 = vsel %vm927, %v1477, %v1483
    %1485 = vrot.lane.b32.xlu0 %v1457, 80
    %v1486 = vpop.permute.xlu0 %1485
    %1487 = vrot.lane.b32.xlu0 %v1460, 80
    %v1488 = vpop.permute.xlu0 %1487
    %1489 = vrot.lane.b32.xlu0 %v1463, 80
    %v1490 = vpop.permute.xlu0 %1489
    %1491 = vrot.lane.b32.xlu0 %v1465, 80
    %v1492 = vpop.permute.xlu0 %1491
    %1493 = vrot.lane.b32.xlu0 %v1467, 80
    %v1494 = vpop.permute.xlu0 %1493
    %1495 = vrot.lane.b32.xlu0 %v1469, 80
    %v1496 = vpop.permute.xlu0 %1495
    %1497 = vrot.lane.b32.xlu0 %v1472, 80
    %v1498 = vpop.permute.xlu0 %1497
    %1499 = vrot.lane.b32.xlu0 %v1475, 80
    %v1500 = vpop.permute.xlu0 %1499
    %1501 = vrot.lane.b32.xlu0 %v1478, 80
    %v1502 = vpop.permute.xlu0 %1501
    %1503 = vrot.lane.b32.xlu0 %v1480, 80
    %v1504 = vpop.permute.xlu0 %1503
    %1505 = vrot.lane.b32.xlu0 %v1482, 80
    %v1506 = vpop.permute.xlu0 %1505
    %1507 = vrot.lane.b32.xlu0 %v1484, 80
    %v1508 = vpop.permute.xlu0 %1507
    %v1509 = vsel %vm712, %v1486, %v1488
    %v1510 = vsel %vm712, %v1488, %v1490
    %v1511 = vsel %vm712, %v1492, %v1494
    %v1512 = vsel %vm712, %v1494, %v1496
    %v1513 = vsel %vm712, %v1498, %v1500
    %v1514 = vsel %vm712, %v1500, %v1502
    %v1515 = vsel %vm712, %v1504, %v1506
    %v1516 = vsel %vm712, %v1506, %v1508
    %v1529 = vadd.f32 %v1257, %v1509
    %v1530 = vadd.f32 %v1258, %v1510
    %v1531 = vadd.f32 %v1259, %v1490
    %v1532 = vadd.f32 %v1260, %v1511
    %v1533 = vadd.f32 %v1261, %v1512
    %v1534 = vadd.f32 %v1262, %v1496
    %v1535 = vadd.f32 %v1263, %v1513
    %v1536 = vadd.f32 %v1264, %v1514
    %v1537 = vadd.f32 %v1265, %v1502
    %v1538 = vadd.f32 %v1266, %v1515
    %v1539 = vadd.f32 %v1267, %v1516
    %v1540 = vadd.f32 %v1268, %v1508
    %v1541 = vlaneseq
    %v1542 = vshrl.u32 %v1541, 7
    %v1543 = vsub.s32 4, %v1542
    %v1544 = vrot.slane %v346, %v1543
    %v1545 = vlaneseq
    %v1546 = vshrl.u32 %v1545, 7
    %v1547 = vsub.s32 4, %v1546
    %v1548 = vrot.slane %v347, %v1547
    %1551 = vrot.lane.b32.xlu0 %v1544, 80
    %v1552 = vpop.permute.xlu0 %1551
    %1553 = vrot.lane.b32.xlu0 %v1548, 80
    %v1554 = vpop.permute.xlu0 %1553
    %v1555 = vsel %vm712, %v1552, %v1554
    %v1559 = vmul.f32 %v887, %v1552
    %v1560 = vmul.f32 %v888, %v1555
    %v1561 = vmul.f32 %v992, %v1554
    %v1562 = vmul.f32 %v360, %v1552
    %v1563 = vmul.f32 %v361, %v1555
    %v1564 = vmul.f32 %v383, %v1554
    %v1565 = vmul.f32 %v889, %v1552
    %v1566 = vmul.f32 %v890, %v1555
    %v1567 = vmul.f32 %v993, %v1554
    %v1568 = vmul.f32 %v891, %v1552
    %v1569 = vmul.f32 %v892, %v1555
    %v1570 = vmul.f32 %v994, %v1554
    %v1571 = vmul.f32 %v364, %v1552
    %v1572 = vmul.f32 %v365, %v1555
    %v1573 = vmul.f32 %v385, %v1554
    %v1574 = vmul.f32 %v893, %v1552
    %v1575 = vmul.f32 %v894, %v1555
    %v1576 = vmul.f32 %v995, %v1554
    %v1595 = vrot.slane %v1559, 1
    %v1596 = vrot.slane %v1562, 1
    %v1597 = vsel %vm927, %v1595, %v1596
    %v1598 = vrot.slane %v1560, 1
    %v1599 = vrot.slane %v1563, 1
    %v1600 = vsel %vm927, %v1598, %v1599
    %v1601 = vrot.slane %v1561, 1
    %v1602 = vrot.slane %v1564, 1
    %v1603 = vsel %vm927, %v1601, %v1602
    %v1604 = vrot.slane %v1565, 1
    %v1605 = vsel %vm927, %v1596, %v1604
    %v1606 = vrot.slane %v1566, 1
    %v1607 = vsel %vm927, %v1599, %v1606
    %v1608 = vrot.slane %v1567, 1
    %v1609 = vsel %vm927, %v1602, %v1608
    %v1610 = vrot.slane %v1568, 1
    %v1611 = vrot.slane %v1571, 1
    %v1612 = vsel %vm927, %v1610, %v1611
    %v1613 = vrot.slane %v1569, 1
    %v1614 = vrot.slane %v1572, 1
    %v1615 = vsel %vm927, %v1613, %v1614
    %v1616 = vrot.slane %v1570, 1
    %v1617 = vrot.slane %v1573, 1
    %v1618 = vsel %vm927, %v1616, %v1617
    %v1619 = vrot.slane %v1574, 1
    %v1620 = vsel %vm927, %v1611, %v1619
    %v1621 = vrot.slane %v1575, 1
    %v1622 = vsel %vm927, %v1614, %v1621
    %v1623 = vrot.slane %v1576, 1
    %v1624 = vsel %vm927, %v1617, %v1623
    %1625 = vrot.lane.b32.xlu0 %v1597, 48
    %v1626 = vpop.permute.xlu0 %1625
    %1627 = vrot.lane.b32.xlu0 %v1600, 48
    %v1628 = vpop.permute.xlu0 %1627
    %1629 = vrot.lane.b32.xlu0 %v1603, 48
    %v1630 = vpop.permute.xlu0 %1629
    %1631 = vrot.lane.b32.xlu0 %v1605, 48
    %v1632 = vpop.permute.xlu0 %1631
    %1633 = vrot.lane.b32.xlu0 %v1607, 48
    %v1634 = vpop.permute.xlu0 %1633
    %1635 = vrot.lane.b32.xlu0 %v1609, 48
    %v1636 = vpop.permute.xlu0 %1635
    %1637 = vrot.lane.b32.xlu0 %v1612, 48
    %v1638 = vpop.permute.xlu0 %1637
    %1639 = vrot.lane.b32.xlu0 %v1615, 48
    %v1640 = vpop.permute.xlu0 %1639
    %1641 = vrot.lane.b32.xlu0 %v1618, 48
    %v1642 = vpop.permute.xlu0 %1641
    %1643 = vrot.lane.b32.xlu0 %v1620, 48
    %v1644 = vpop.permute.xlu0 %1643
    %1645 = vrot.lane.b32.xlu0 %v1622, 48
    %v1646 = vpop.permute.xlu0 %1645
    %1647 = vrot.lane.b32.xlu0 %v1624, 48
    %v1648 = vpop.permute.xlu0 %1647
    %v1649 = vsel %vm143, %v1626, %v1628
    %v1650 = vsel %vm143, %v1628, %v1630
    %v1651 = vsel %vm143, %v1632, %v1634
    %v1652 = vsel %vm143, %v1634, %v1636
    %v1653 = vsel %vm143, %v1638, %v1640
    %v1654 = vsel %vm143, %v1640, %v1642
    %v1655 = vsel %vm143, %v1644, %v1646
    %v1656 = vsel %vm143, %v1646, %v1648
    %v1665 = vadd.f32 %v1393, %v1649
    %v1666 = vadd.f32 %v1394, %v1650
    %v1667 = vadd.f32 %v1395, %v1651
    %v1668 = vadd.f32 %v1396, %v1652
    %v1669 = vadd.f32 %v1397, %v1653
    %v1670 = vadd.f32 %v1398, %v1654
    %v1671 = vadd.f32 %v1399, %v1655
    %v1672 = vadd.f32 %v1400, %v1656
    %v1673 = vlaneseq
    %v1674 = vshrl.u32 %v1673, 7
    %v1675 = vsub.s32 5, %v1674
    %v1676 = vrot.slane %v346, %v1675
    %v1677 = vlaneseq
    %v1678 = vshrl.u32 %v1677, 7
    %v1679 = vsub.s32 5, %v1678
    %v1680 = vrot.slane %v347, %v1679
    %1683 = vrot.lane.b32.xlu0 %v1676, 96
    %v1684 = vpop.permute.xlu0 %1683
    %1685 = vrot.lane.b32.xlu0 %v1680, 96
    %v1686 = vpop.permute.xlu0 %1685
    %v1687 = vsel %vm484, %v1684, %v1686
    %v1691 = vmul.f32 %v887, %v1684
    %v1692 = vmul.f32 %v888, %v1687
    %v1693 = vmul.f32 %v992, %v1686
    %v1694 = vmul.f32 %v360, %v1684
    %v1695 = vmul.f32 %v361, %v1687
    %v1696 = vmul.f32 %v383, %v1686
    %v1697 = vmul.f32 %v889, %v1684
    %v1698 = vmul.f32 %v890, %v1687
    %v1699 = vmul.f32 %v993, %v1686
    %v1700 = vmul.f32 %v891, %v1684
    %v1701 = vmul.f32 %v892, %v1687
    %v1702 = vmul.f32 %v994, %v1686
    %v1703 = vmul.f32 %v364, %v1684
    %v1704 = vmul.f32 %v365, %v1687
    %v1705 = vmul.f32 %v385, %v1686
    %v1706 = vmul.f32 %v893, %v1684
    %v1707 = vmul.f32 %v894, %v1687
    %v1708 = vmul.f32 %v995, %v1686
    %v1727 = vrot.slane %v1691, 1
    %v1728 = vrot.slane %v1694, 1
    %v1729 = vsel %vm927, %v1727, %v1728
    %v1730 = vrot.slane %v1692, 1
    %v1731 = vrot.slane %v1695, 1
    %v1732 = vsel %vm927, %v1730, %v1731
    %v1733 = vrot.slane %v1693, 1
    %v1734 = vrot.slane %v1696, 1
    %v1735 = vsel %vm927, %v1733, %v1734
    %v1736 = vrot.slane %v1697, 1
    %v1737 = vsel %vm927, %v1728, %v1736
    %v1738 = vrot.slane %v1698, 1
    %v1739 = vsel %vm927, %v1731, %v1738
    %v1740 = vrot.slane %v1699, 1
    %v1741 = vsel %vm927, %v1734, %v1740
    %v1742 = vrot.slane %v1700, 1
    %v1743 = vrot.slane %v1703, 1
    %v1744 = vsel %vm927, %v1742, %v1743
    %v1745 = vrot.slane %v1701, 1
    %v1746 = vrot.slane %v1704, 1
    %v1747 = vsel %vm927, %v1745, %v1746
    %v1748 = vrot.slane %v1702, 1
    %v1749 = vrot.slane %v1705, 1
    %v1750 = vsel %vm927, %v1748, %v1749
    %v1751 = vrot.slane %v1706, 1
    %v1752 = vsel %vm927, %v1743, %v1751
    %v1753 = vrot.slane %v1707, 1
    %v1754 = vsel %vm927, %v1746, %v1753
    %v1755 = vrot.slane %v1708, 1
    %v1756 = vsel %vm927, %v1749, %v1755
    %1757 = vrot.lane.b32.xlu0 %v1729, 48
    %v1758 = vpop.permute.xlu0 %1757
    %1759 = vrot.lane.b32.xlu0 %v1732, 48
    %v1760 = vpop.permute.xlu0 %1759
    %1761 = vrot.lane.b32.xlu0 %v1735, 48
    %v1762 = vpop.permute.xlu0 %1761
    %1763 = vrot.lane.b32.xlu0 %v1737, 48
    %v1764 = vpop.permute.xlu0 %1763
    %1765 = vrot.lane.b32.xlu0 %v1739, 48
    %v1766 = vpop.permute.xlu0 %1765
    %1767 = vrot.lane.b32.xlu0 %v1741, 48
    %v1768 = vpop.permute.xlu0 %1767
    %1769 = vrot.lane.b32.xlu0 %v1744, 48
    %v1770 = vpop.permute.xlu0 %1769
    %1771 = vrot.lane.b32.xlu0 %v1747, 48
    %v1772 = vpop.permute.xlu0 %1771
    %1773 = vrot.lane.b32.xlu0 %v1750, 48
    %v1774 = vpop.permute.xlu0 %1773
    %1775 = vrot.lane.b32.xlu0 %v1752, 48
    %v1776 = vpop.permute.xlu0 %1775
    %1777 = vrot.lane.b32.xlu0 %v1754, 48
    %v1778 = vpop.permute.xlu0 %1777
    %1779 = vrot.lane.b32.xlu0 %v1756, 48
    %v1780 = vpop.permute.xlu0 %1779
    %v1781 = vsel %vm143, %v1758, %v1760
    %v1782 = vsel %vm143, %v1760, %v1762
    %v1783 = vsel %vm143, %v1764, %v1766
    %v1784 = vsel %vm143, %v1766, %v1768
    %v1785 = vsel %vm143, %v1770, %v1772
    %v1786 = vsel %vm143, %v1772, %v1774
    %v1787 = vsel %vm143, %v1776, %v1778
    %v1788 = vsel %vm143, %v1778, %v1780
    %v1801 = vadd.f32 %v1529, %v1781
    %v1802 = vadd.f32 %v1530, %v1782
    %v1803 = vadd.f32 %v1531, %v1762
    %v1804 = vadd.f32 %v1532, %v1783
    %v1805 = vadd.f32 %v1533, %v1784
    %v1806 = vadd.f32 %v1534, %v1768
    %v1807 = vadd.f32 %v1535, %v1785
    %v1808 = vadd.f32 %v1536, %v1786
    %v1809 = vadd.f32 %v1537, %v1774
    %v1810 = vadd.f32 %v1538, %v1787
    %v1811 = vadd.f32 %v1539, %v1788
    %v1812 = vadd.f32 %v1540, %v1780
    %v1813 = vld [vmem:[#allocation2] sm:$0xfc]
    %v1814 = vld [vmem:[#allocation2 + $0x8] sm:$0xfc]
    %v1815 = vld [vmem:[#allocation2 + $0x30] sm:$0x3]
    %v1816 = vld [vmem:[#allocation2 + $0x38] sm:$0x3]
    %v1817 = vld [vmem:[#allocation2 + $0x48] sm:$0xfc]
    %v1818 = vld [vmem:[#allocation2 + $0x50] sm:$0xfc]
    %v1819 = vld [vmem:[#allocation2 + $0x78] sm:$0x3]
    %v1820 = vld [vmem:[#allocation2 + $0x80] sm:$0x3]
    %v1821 = vlaneseq
    %v1822 = vshrl.u32 %v1821, 7
    %v1823 = vsub.s32 6, %v1822
    %v1824 = vrot.slane %v346, %v1823
    %v1825 = vlaneseq
    %v1826 = vshrl.u32 %v1825, 7
    %v1827 = vsub.s32 6, %v1826
    %v1828 = vrot.slane %v347, %v1827
    %v1829 = vmul.f32 %v1813, %v1824
    %v1830 = vmul.f32 %v1814, %v1828
    %v1831 = vmul.f32 %v360, %v1824
    %v1832 = vmul.f32 %v361, %v1828
    %v1833 = vmul.f32 %v1815, %v1824
    %v1834 = vmul.f32 %v1816, %v1828
    %v1835 = vmul.f32 %v1817, %v1824
    %v1836 = vmul.f32 %v1818, %v1828
    %v1837 = vmul.f32 %v364, %v1824
    %v1838 = vmul.f32 %v365, %v1828
    %v1839 = vmul.f32 %v1819, %v1824
    %v1840 = vmul.f32 %v1820, %v1828
    %vm1853 = vcmask 1045504
    %v1854 = vrot.slane %v1829, 2
    %v1855 = vrot.slane %v1831, 2
    %v1856 = vsel %vm1853, %v1854, %v1855
    %v1857 = vrot.slane %v1830, 2
    %v1858 = vrot.slane %v1832, 2
    %v1859 = vsel %vm1853, %v1857, %v1858
    %v1860 = vrot.slane %v1833, 2
    %v1861 = vsel %vm1853, %v1855, %v1860
    %v1862 = vrot.slane %v1834, 2
    %v1863 = vsel %vm1853, %v1858, %v1862
    %v1864 = vrot.slane %v1835, 2
    %v1865 = vrot.slane %v1837, 2
    %v1866 = vsel %vm1853, %v1864, %v1865
    %v1867 = vrot.slane %v1836, 2
    %v1868 = vrot.slane %v1838, 2
    %v1869 = vsel %vm1853, %v1867, %v1868
    %v1870 = vrot.slane %v1839, 2
    %v1871 = vsel %vm1853, %v1865, %v1870
    %v1872 = vrot.slane %v1840, 2
    %v1873 = vsel %vm1853, %v1868, %v1872
    %v1882 = vadd.f32 %v1665, %v1856
    %v1883 = vadd.f32 %v1666, %v1859
    %v1884 = vadd.f32 %v1667, %v1861
    %v1885 = vadd.f32 %v1668, %v1863
    %v1886 = vadd.f32 %v1669, %v1866
    %v1887 = vadd.f32 %v1670, %v1869
    %v1888 = vadd.f32 %v1671, %v1871
    %v1889 = vadd.f32 %v1672, %v1873
    %v1890 = vld [vmem:[#allocation2 + $0x10] sm:$0xfc]
    %v1891 = vld [vmem:[#allocation2 + $0x40] sm:$0x3]
    %v1892 = vld [vmem:[#allocation2 + $0x58] sm:$0xfc]
    %v1893 = vld [vmem:[#allocation2 + $0x88] sm:$0x3]
    %v1894 = vlaneseq
    %v1895 = vshrl.u32 %v1894, 7
    %v1896 = vsub.s32 7, %v1895
    %v1897 = vrot.slane %v346, %v1896
    %v1898 = vlaneseq
    %v1899 = vshrl.u32 %v1898, 7
    %v1900 = vsub.s32 7, %v1899
    %v1901 = vrot.slane %v347, %v1900
    %1904 = vrot.lane.b32.xlu0 %v1897, 16
    %v1905 = vpop.permute.xlu0 %1904
    %1906 = vrot.lane.b32.xlu0 %v1901, 16
    %v1907 = vpop.permute.xlu0 %1906
    %v1908 = vsel %vm400, %v1905, %v1907
    %v1912 = vmul.f32 %v1813, %v1905
    %v1913 = vmul.f32 %v1814, %v1908
    %v1914 = vmul.f32 %v1890, %v1907
    %v1915 = vmul.f32 %v360, %v1905
    %v1916 = vmul.f32 %v361, %v1908
    %v1917 = vmul.f32 %v383, %v1907
    %v1918 = vmul.f32 %v1815, %v1905
    %v1919 = vmul.f32 %v1816, %v1908
    %v1920 = vmul.f32 %v1891, %v1907
    %v1921 = vmul.f32 %v1817, %v1905
    %v1922 = vmul.f32 %v1818, %v1908
    %v1923 = vmul.f32 %v1892, %v1907
    %v1924 = vmul.f32 %v364, %v1905
    %v1925 = vmul.f32 %v365, %v1908
    %v1926 = vmul.f32 %v385, %v1907
    %v1927 = vmul.f32 %v1819, %v1905
    %v1928 = vmul.f32 %v1820, %v1908
    %v1929 = vmul.f32 %v1893, %v1907
    %v1948 = vrot.slane %v1912, 2
    %v1949 = vrot.slane %v1915, 2
    %v1950 = vsel %vm1853, %v1948, %v1949
    %v1951 = vrot.slane %v1913, 2
    %v1952 = vrot.slane %v1916, 2
    %v1953 = vsel %vm1853, %v1951, %v1952
    %v1954 = vrot.slane %v1914, 2
    %v1955 = vrot.slane %v1917, 2
    %v1956 = vsel %vm1853, %v1954, %v1955
    %v1957 = vrot.slane %v1918, 2
    %v1958 = vsel %vm1853, %v1949, %v1957
    %v1959 = vrot.slane %v1919, 2
    %v1960 = vsel %vm1853, %v1952, %v1959
    %v1961 = vrot.slane %v1920, 2
    %v1962 = vsel %vm1853, %v1955, %v1961
    %v1963 = vrot.slane %v1921, 2
    %v1964 = vrot.slane %v1924, 2
    %v1965 = vsel %vm1853, %v1963, %v1964
    %v1966 = vrot.slane %v1922, 2
    %v1967 = vrot.slane %v1925, 2
    %v1968 = vsel %vm1853, %v1966, %v1967
    %v1969 = vrot.slane %v1923, 2
    %v1970 = vrot.slane %v1926, 2
    %v1971 = vsel %vm1853, %v1969, %v1970
    %v1972 = vrot.slane %v1927, 2
    %v1973 = vsel %vm1853, %v1964, %v1972
    %v1974 = vrot.slane %v1928, 2
    %v1975 = vsel %vm1853, %v1967, %v1974
    %v1976 = vrot.slane %v1929, 2
    %v1977 = vsel %vm1853, %v1970, %v1976
    %v1990 = vadd.f32 %v1801, %v1950
    %v1991 = vadd.f32 %v1802, %v1953
    %v1992 = vadd.f32 %v1803, %v1956
    %v1993 = vadd.f32 %v1804, %v1958
    %v1994 = vadd.f32 %v1805, %v1960
    %v1995 = vadd.f32 %v1806, %v1962
    %v1996 = vadd.f32 %v1807, %v1965
    %v1997 = vadd.f32 %v1808, %v1968
    %v1998 = vadd.f32 %v1809, %v1971
    %v1999 = vadd.f32 %v1810, %v1973
    %v2000 = vadd.f32 %v1811, %v1975
    %v2001 = vadd.f32 %v1812, %v1977
    %v2002 = vlaneseq
    %v2003 = vshrl.u32 %v2002, 7
    %v2004 = vsub.s32 0, %v2003
    %v2005 = vrot.slane %v348, %v2004
    %v2006 = vlaneseq
    %v2007 = vshrl.u32 %v2006, 7
    %v2008 = vsub.s32 0, %v2007
    %v2009 = vrot.slane %v349, %v2008
    %2012 = vrot.lane.b32.xlu0 %v2005, 32
    %v2013 = vpop.permute.xlu0 %2012
    %2014 = vrot.lane.b32.xlu0 %v2009, 32
    %v2015 = vpop.permute.xlu0 %2014
    %v2016 = vsel %vm431, %v2013, %v2015
    %v2020 = vmul.f32 %v1813, %v2013
    %v2021 = vmul.f32 %v1814, %v2016
    %v2022 = vmul.f32 %v1890, %v2015
    %v2023 = vmul.f32 %v360, %v2013
    %v2024 = vmul.f32 %v361, %v2016
    %v2025 = vmul.f32 %v383, %v2015
    %v2026 = vmul.f32 %v1815, %v2013
    %v2027 = vmul.f32 %v1816, %v2016
    %v2028 = vmul.f32 %v1891, %v2015
    %v2029 = vmul.f32 %v1817, %v2013
    %v2030 = vmul.f32 %v1818, %v2016
    %v2031 = vmul.f32 %v1892, %v2015
    %v2032 = vmul.f32 %v364, %v2013
    %v2033 = vmul.f32 %v365, %v2016
    %v2034 = vmul.f32 %v385, %v2015
    %v2035 = vmul.f32 %v1819, %v2013
    %v2036 = vmul.f32 %v1820, %v2016
    %v2037 = vmul.f32 %v1893, %v2015
    %v2056 = vrot.slane %v2020, 2
    %v2057 = vrot.slane %v2023, 2
    %v2058 = vsel %vm1853, %v2056, %v2057
    %v2059 = vrot.slane %v2021, 2
    %v2060 = vrot.slane %v2024, 2
    %v2061 = vsel %vm1853, %v2059, %v2060
    %v2062 = vrot.slane %v2022, 2
    %v2063 = vrot.slane %v2025, 2
    %v2064 = vsel %vm1853, %v2062, %v2063
    %v2065 = vrot.slane %v2026, 2
    %v2066 = vsel %vm1853, %v2057, %v2065
    %v2067 = vrot.slane %v2027, 2
    %v2068 = vsel %vm1853, %v2060, %v2067
    %v2069 = vrot.slane %v2028, 2
    %v2070 = vsel %vm1853, %v2063, %v2069
    %v2071 = vrot.slane %v2029, 2
    %v2072 = vrot.slane %v2032, 2
    %v2073 = vsel %vm1853, %v2071, %v2072
    %v2074 = vrot.slane %v2030, 2
    %v2075 = vrot.slane %v2033, 2
    %v2076 = vsel %vm1853, %v2074, %v2075
    %v2077 = vrot.slane %v2031, 2
    %v2078 = vrot.slane %v2034, 2
    %v2079 = vsel %vm1853, %v2077, %v2078
    %v2080 = vrot.slane %v2035, 2
    %v2081 = vsel %vm1853, %v2072, %v2080
    %v2082 = vrot.slane %v2036, 2
    %v2083 = vsel %vm1853, %v2075, %v2082
    %v2084 = vrot.slane %v2037, 2
    %v2085 = vsel %vm1853, %v2078, %v2084
    %2086 = vrot.lane.b32.xlu0 %v2058, 96
    %v2087 = vpop.permute.xlu0 %2086
    %2088 = vrot.lane.b32.xlu0 %v2061, 96
    %v2089 = vpop.permute.xlu0 %2088
    %2090 = vrot.lane.b32.xlu0 %v2064, 96
    %v2091 = vpop.permute.xlu0 %2090
    %2092 = vrot.lane.b32.xlu0 %v2066, 96
    %v2093 = vpop.permute.xlu0 %2092
    %2094 = vrot.lane.b32.xlu0 %v2068, 96
    %v2095 = vpop.permute.xlu0 %2094
    %2096 = vrot.lane.b32.xlu0 %v2070, 96
    %v2097 = vpop.permute.xlu0 %2096
    %2098 = vrot.lane.b32.xlu0 %v2073, 96
    %v2099 = vpop.permute.xlu0 %2098
    %2100 = vrot.lane.b32.xlu0 %v2076, 96
    %v2101 = vpop.permute.xlu0 %2100
    %2102 = vrot.lane.b32.xlu0 %v2079, 96
    %v2103 = vpop.permute.xlu0 %2102
    %2104 = vrot.lane.b32.xlu0 %v2081, 96
    %v2105 = vpop.permute.xlu0 %2104
    %2106 = vrot.lane.b32.xlu0 %v2083, 96
    %v2107 = vpop.permute.xlu0 %2106
    %2108 = vrot.lane.b32.xlu0 %v2085, 96
    %v2109 = vpop.permute.xlu0 %2108
    %v2110 = vsel %vm484, %v2087, %v2089
    %v2111 = vsel %vm484, %v2089, %v2091
    %v2112 = vsel %vm484, %v2093, %v2095
    %v2113 = vsel %vm484, %v2095, %v2097
    %v2114 = vsel %vm484, %v2099, %v2101
    %v2115 = vsel %vm484, %v2101, %v2103
    %v2116 = vsel %vm484, %v2105, %v2107
    %v2117 = vsel %vm484, %v2107, %v2109
    %v2126 = vadd.f32 %v1882, %v2110
    %v2127 = vadd.f32 %v1883, %v2111
    %v2128 = vadd.f32 %v1884, %v2112
    %v2129 = vadd.f32 %v1885, %v2113
    %v2130 = vadd.f32 %v1886, %v2114
    %v2131 = vadd.f32 %v1887, %v2115
    %v2132 = vadd.f32 %v1888, %v2116
    %v2133 = vadd.f32 %v1889, %v2117
    %v2134 = vlaneseq
    %v2135 = vshrl.u32 %v2134, 7
    %v2136 = vsub.s32 1, %v2135
    %v2137 = vrot.slane %v348, %v2136
    %v2138 = vlaneseq
    %v2139 = vshrl.u32 %v2138, 7
    %v2140 = vsub.s32 1, %v2139
    %v2141 = vrot.slane %v349, %v2140
    %2144 = vrot.lane.b32.xlu0 %v2137, 48
    %v2145 = vpop.permute.xlu0 %2144
    %2146 = vrot.lane.b32.xlu0 %v2141, 48
    %v2147 = vpop.permute.xlu0 %2146
    %v2148 = vsel %vm143, %v2145, %v2147
    %v2152 = vmul.f32 %v1813, %v2145
    %v2153 = vmul.f32 %v1814, %v2148
    %v2154 = vmul.f32 %v1890, %v2147
    %v2155 = vmul.f32 %v360, %v2145
    %v2156 = vmul.f32 %v361, %v2148
    %v2157 = vmul.f32 %v383, %v2147
    %v2158 = vmul.f32 %v1815, %v2145
    %v2159 = vmul.f32 %v1816, %v2148
    %v2160 = vmul.f32 %v1891, %v2147
    %v2161 = vmul.f32 %v1817, %v2145
    %v2162 = vmul.f32 %v1818, %v2148
    %v2163 = vmul.f32 %v1892, %v2147
    %v2164 = vmul.f32 %v364, %v2145
    %v2165 = vmul.f32 %v365, %v2148
    %v2166 = vmul.f32 %v385, %v2147
    %v2167 = vmul.f32 %v1819, %v2145
    %v2168 = vmul.f32 %v1820, %v2148
    %v2169 = vmul.f32 %v1893, %v2147
    %v2188 = vrot.slane %v2152, 2
    %v2189 = vrot.slane %v2155, 2
    %v2190 = vsel %vm1853, %v2188, %v2189
    %v2191 = vrot.slane %v2153, 2
    %v2192 = vrot.slane %v2156, 2
    %v2193 = vsel %vm1853, %v2191, %v2192
    %v2194 = vrot.slane %v2154, 2
    %v2195 = vrot.slane %v2157, 2
    %v2196 = vsel %vm1853, %v2194, %v2195
    %v2197 = vrot.slane %v2158, 2
    %v2198 = vsel %vm1853, %v2189, %v2197
    %v2199 = vrot.slane %v2159, 2
    %v2200 = vsel %vm1853, %v2192, %v2199
    %v2201 = vrot.slane %v2160, 2
    %v2202 = vsel %vm1853, %v2195, %v2201
    %v2203 = vrot.slane %v2161, 2
    %v2204 = vrot.slane %v2164, 2
    %v2205 = vsel %vm1853, %v2203, %v2204
    %v2206 = vrot.slane %v2162, 2
    %v2207 = vrot.slane %v2165, 2
    %v2208 = vsel %vm1853, %v2206, %v2207
    %v2209 = vrot.slane %v2163, 2
    %v2210 = vrot.slane %v2166, 2
    %v2211 = vsel %vm1853, %v2209, %v2210
    %v2212 = vrot.slane %v2167, 2
    %v2213 = vsel %vm1853, %v2204, %v2212
    %v2214 = vrot.slane %v2168, 2
    %v2215 = vsel %vm1853, %v2207, %v2214
    %v2216 = vrot.slane %v2169, 2
    %v2217 = vsel %vm1853, %v2210, %v2216
    %2218 = vrot.lane.b32.xlu0 %v2190, 96
    %v2219 = vpop.permute.xlu0 %2218
    %2220 = vrot.lane.b32.xlu0 %v2193, 96
    %v2221 = vpop.permute.xlu0 %2220
    %2222 = vrot.lane.b32.xlu0 %v2196, 96
    %v2223 = vpop.permute.xlu0 %2222
    %2224 = vrot.lane.b32.xlu0 %v2198, 96
    %v2225 = vpop.permute.xlu0 %2224
    %2226 = vrot.lane.b32.xlu0 %v2200, 96
    %v2227 = vpop.permute.xlu0 %2226
    %2228 = vrot.lane.b32.xlu0 %v2202, 96
    %v2229 = vpop.permute.xlu0 %2228
    %2230 = vrot.lane.b32.xlu0 %v2205, 96
    %v2231 = vpop.permute.xlu0 %2230
    %2232 = vrot.lane.b32.xlu0 %v2208, 96
    %v2233 = vpop.permute.xlu0 %2232
    %2234 = vrot.lane.b32.xlu0 %v2211, 96
    %v2235 = vpop.permute.xlu0 %2234
    %2236 = vrot.lane.b32.xlu0 %v2213, 96
    %v2237 = vpop.permute.xlu0 %2236
    %2238 = vrot.lane.b32.xlu0 %v2215, 96
    %v2239 = vpop.permute.xlu0 %2238
    %2240 = vrot.lane.b32.xlu0 %v2217, 96
    %v2241 = vpop.permute.xlu0 %2240
    %v2242 = vsel %vm484, %v2219, %v2221
    %v2243 = vsel %vm484, %v2221, %v2223
    %v2244 = vsel %vm484, %v2225, %v2227
    %v2245 = vsel %vm484, %v2227, %v2229
    %v2246 = vsel %vm484, %v2231, %v2233
    %v2247 = vsel %vm484, %v2233, %v2235
    %v2248 = vsel %vm484, %v2237, %v2239
    %v2249 = vsel %vm484, %v2239, %v2241
    %v2262 = vadd.f32 %v1990, %v2242
    %v2263 = vadd.f32 %v1991, %v2243
    %v2264 = vadd.f32 %v1992, %v2223
    %v2265 = vadd.f32 %v1993, %v2244
    %v2266 = vadd.f32 %v1994, %v2245
    %v2267 = vadd.f32 %v1995, %v2229
    %v2268 = vadd.f32 %v1996, %v2246
    %v2269 = vadd.f32 %v1997, %v2247
    %v2270 = vadd.f32 %v1998, %v2235
    %v2271 = vadd.f32 %v1999, %v2248
    %v2272 = vadd.f32 %v2000, %v2249
    %v2273 = vadd.f32 %v2001, %v2241
    %v2274 = vlaneseq
    %v2275 = vshrl.u32 %v2274, 7
    %v2276 = vsub.s32 2, %v2275
    %v2277 = vrot.slane %v348, %v2276
    %v2278 = vlaneseq
    %v2279 = vshrl.u32 %v2278, 7
    %v2280 = vsub.s32 2, %v2279
    %v2281 = vrot.slane %v349, %v2280
    %2284 = vrot.lane.b32.xlu0 %v2277, 64
    %v2285 = vpop.permute.xlu0 %2284
    %2286 = vrot.lane.b32.xlu0 %v2281, 64
    %v2287 = vpop.permute.xlu0 %2286
    %v2288 = vsel %vm621, %v2285, %v2287
    %v2292 = vmul.f32 %v1813, %v2285
    %v2293 = vmul.f32 %v1814, %v2288
    %v2294 = vmul.f32 %v1890, %v2287
    %v2295 = vmul.f32 %v360, %v2285
    %v2296 = vmul.f32 %v361, %v2288
    %v2297 = vmul.f32 %v383, %v2287
    %v2298 = vmul.f32 %v1815, %v2285
    %v2299 = vmul.f32 %v1816, %v2288
    %v2300 = vmul.f32 %v1891, %v2287
    %v2301 = vmul.f32 %v1817, %v2285
    %v2302 = vmul.f32 %v1818, %v2288
    %v2303 = vmul.f32 %v1892, %v2287
    %v2304 = vmul.f32 %v364, %v2285
    %v2305 = vmul.f32 %v365, %v2288
    %v2306 = vmul.f32 %v385, %v2287
    %v2307 = vmul.f32 %v1819, %v2285
    %v2308 = vmul.f32 %v1820, %v2288
    %v2309 = vmul.f32 %v1893, %v2287
    %v2328 = vrot.slane %v2292, 2
    %v2329 = vrot.slane %v2295, 2
    %v2330 = vsel %vm1853, %v2328, %v2329
    %v2331 = vrot.slane %v2293, 2
    %v2332 = vrot.slane %v2296, 2
    %v2333 = vsel %vm1853, %v2331, %v2332
    %v2334 = vrot.slane %v2294, 2
    %v2335 = vrot.slane %v2297, 2
    %v2336 = vsel %vm1853, %v2334, %v2335
    %v2337 = vrot.slane %v2298, 2
    %v2338 = vsel %vm1853, %v2329, %v2337
    %v2339 = vrot.slane %v2299, 2
    %v2340 = vsel %vm1853, %v2332, %v2339
    %v2341 = vrot.slane %v2300, 2
    %v2342 = vsel %vm1853, %v2335, %v2341
    %v2343 = vrot.slane %v2301, 2
    %v2344 = vrot.slane %v2304, 2
    %v2345 = vsel %vm1853, %v2343, %v2344
    %v2346 = vrot.slane %v2302, 2
    %v2347 = vrot.slane %v2305, 2
    %v2348 = vsel %vm1853, %v2346, %v2347
    %v2349 = vrot.slane %v2303, 2
    %v2350 = vrot.slane %v2306, 2
    %v2351 = vsel %vm1853, %v2349, %v2350
    %v2352 = vrot.slane %v2307, 2
    %v2353 = vsel %vm1853, %v2344, %v2352
    %v2354 = vrot.slane %v2308, 2
    %v2355 = vsel %vm1853, %v2347, %v2354
    %v2356 = vrot.slane %v2309, 2
    %v2357 = vsel %vm1853, %v2350, %v2356
    %2358 = vrot.lane.b32.xlu0 %v2330, 64
    %v2359 = vpop.permute.xlu0 %2358
    %2360 = vrot.lane.b32.xlu0 %v2333, 64
    %v2361 = vpop.permute.xlu0 %2360
    %2362 = vrot.lane.b32.xlu0 %v2336, 64
    %v2363 = vpop.permute.xlu0 %2362
    %2364 = vrot.lane.b32.xlu0 %v2338, 64
    %v2365 = vpop.permute.xlu0 %2364
    %2366 = vrot.lane.b32.xlu0 %v2340, 64
    %v2367 = vpop.permute.xlu0 %2366
    %2368 = vrot.lane.b32.xlu0 %v2342, 64
    %v2369 = vpop.permute.xlu0 %2368
    %2370 = vrot.lane.b32.xlu0 %v2345, 64
    %v2371 = vpop.permute.xlu0 %2370
    %2372 = vrot.lane.b32.xlu0 %v2348, 64
    %v2373 = vpop.permute.xlu0 %2372
    %2374 = vrot.lane.b32.xlu0 %v2351, 64
    %v2375 = vpop.permute.xlu0 %2374
    %2376 = vrot.lane.b32.xlu0 %v2353, 64
    %v2377 = vpop.permute.xlu0 %2376
    %2378 = vrot.lane.b32.xlu0 %v2355, 64
    %v2379 = vpop.permute.xlu0 %2378
    %2380 = vrot.lane.b32.xlu0 %v2357, 64
    %v2381 = vpop.permute.xlu0 %2380
    %v2382 = vsel %vm621, %v2359, %v2361
    %v2383 = vsel %vm621, %v2361, %v2363
    %v2384 = vsel %vm621, %v2365, %v2367
    %v2385 = vsel %vm621, %v2367, %v2369
    %v2386 = vsel %vm621, %v2371, %v2373
    %v2387 = vsel %vm621, %v2373, %v2375
    %v2388 = vsel %vm621, %v2377, %v2379
    %v2389 = vsel %vm621, %v2379, %v2381
    %v2398 = vadd.f32 %v2126, %v2382
    %v2399 = vadd.f32 %v2127, %v2383
    %v2400 = vadd.f32 %v2128, %v2384
    %v2401 = vadd.f32 %v2129, %v2385
    %v2402 = vadd.f32 %v2130, %v2386
    %v2403 = vadd.f32 %v2131, %v2387
    %v2404 = vadd.f32 %v2132, %v2388
    %v2405 = vadd.f32 %v2133, %v2389
    %v2406 = vlaneseq
    %v2407 = vshrl.u32 %v2406, 7
    %v2408 = vsub.s32 3, %v2407
    %v2409 = vrot.slane %v348, %v2408
    %v2410 = vlaneseq
    %v2411 = vshrl.u32 %v2410, 7
    %v2412 = vsub.s32 3, %v2411
    %v2413 = vrot.slane %v349, %v2412
    %2416 = vrot.lane.b32.xlu0 %v2409, 80
    %v2417 = vpop.permute.xlu0 %2416
    %2418 = vrot.lane.b32.xlu0 %v2413, 80
    %v2419 = vpop.permute.xlu0 %2418
    %v2420 = vsel %vm712, %v2417, %v2419
    %v2424 = vmul.f32 %v1813, %v2417
    %v2425 = vmul.f32 %v1814, %v2420
    %v2426 = vmul.f32 %v1890, %v2419
    %v2427 = vmul.f32 %v360, %v2417
    %v2428 = vmul.f32 %v361, %v2420
    %v2429 = vmul.f32 %v383, %v2419
    %v2430 = vmul.f32 %v1815, %v2417
    %v2431 = vmul.f32 %v1816, %v2420
    %v2432 = vmul.f32 %v1891, %v2419
    %v2433 = vmul.f32 %v1817, %v2417
    %v2434 = vmul.f32 %v1818, %v2420
    %v2435 = vmul.f32 %v1892, %v2419
    %v2436 = vmul.f32 %v364, %v2417
    %v2437 = vmul.f32 %v365, %v2420
    %v2438 = vmul.f32 %v385, %v2419
    %v2439 = vmul.f32 %v1819, %v2417
    %v2440 = vmul.f32 %v1820, %v2420
    %v2441 = vmul.f32 %v1893, %v2419
    %v2460 = vrot.slane %v2424, 2
    %v2461 = vrot.slane %v2427, 2
    %v2462 = vsel %vm1853, %v2460, %v2461
    %v2463 = vrot.slane %v2425, 2
    %v2464 = vrot.slane %v2428, 2
    %v2465 = vsel %vm1853, %v2463, %v2464
    %v2466 = vrot.slane %v2426, 2
    %v2467 = vrot.slane %v2429, 2
    %v2468 = vsel %vm1853, %v2466, %v2467
    %v2469 = vrot.slane %v2430, 2
    %v2470 = vsel %vm1853, %v2461, %v2469
    %v2471 = vrot.slane %v2431, 2
    %v2472 = vsel %vm1853, %v2464, %v2471
    %v2473 = vrot.slane %v2432, 2
    %v2474 = vsel %vm1853, %v2467, %v2473
    %v2475 = vrot.slane %v2433, 2
    %v2476 = vrot.slane %v2436, 2
    %v2477 = vsel %vm1853, %v2475, %v2476
    %v2478 = vrot.slane %v2434, 2
    %v2479 = vrot.slane %v2437, 2
    %v2480 = vsel %vm1853, %v2478, %v2479
    %v2481 = vrot.slane %v2435, 2
    %v2482 = vrot.slane %v2438, 2
    %v2483 = vsel %vm1853, %v2481, %v2482
    %v2484 = vrot.slane %v2439, 2
    %v2485 = vsel %vm1853, %v2476, %v2484
    %v2486 = vrot.slane %v2440, 2
    %v2487 = vsel %vm1853, %v2479, %v2486
    %v2488 = vrot.slane %v2441, 2
    %v2489 = vsel %vm1853, %v2482, %v2488
    %2490 = vrot.lane.b32.xlu0 %v2462, 64
    %v2491 = vpop.permute.xlu0 %2490
    %2492 = vrot.lane.b32.xlu0 %v2465, 64
    %v2493 = vpop.permute.xlu0 %2492
    %2494 = vrot.lane.b32.xlu0 %v2468, 64
    %v2495 = vpop.permute.xlu0 %2494
    %2496 = vrot.lane.b32.xlu0 %v2470, 64
    %v2497 = vpop.permute.xlu0 %2496
    %2498 = vrot.lane.b32.xlu0 %v2472, 64
    %v2499 = vpop.permute.xlu0 %2498
    %2500 = vrot.lane.b32.xlu0 %v2474, 64
    %v2501 = vpop.permute.xlu0 %2500
    %2502 = vrot.lane.b32.xlu0 %v2477, 64
    %v2503 = vpop.permute.xlu0 %2502
    %2504 = vrot.lane.b32.xlu0 %v2480, 64
    %v2505 = vpop.permute.xlu0 %2504
    %2506 = vrot.lane.b32.xlu0 %v2483, 64
    %v2507 = vpop.permute.xlu0 %2506
    %2508 = vrot.lane.b32.xlu0 %v2485, 64
    %v2509 = vpop.permute.xlu0 %2508
    %2510 = vrot.lane.b32.xlu0 %v2487, 64
    %v2511 = vpop.permute.xlu0 %2510
    %2512 = vrot.lane.b32.xlu0 %v2489, 64
    %v2513 = vpop.permute.xlu0 %2512
    %v2514 = vsel %vm621, %v2491, %v2493
    %v2515 = vsel %vm621, %v2493, %v2495
    %v2516 = vsel %vm621, %v2497, %v2499
    %v2517 = vsel %vm621, %v2499, %v2501
    %v2518 = vsel %vm621, %v2503, %v2505
    %v2519 = vsel %vm621, %v2505, %v2507
    %v2520 = vsel %vm621, %v2509, %v2511
    %v2521 = vsel %vm621, %v2511, %v2513
    %v2534 = vadd.f32 %v2262, %v2514
    %v2535 = vadd.f32 %v2263, %v2515
    %v2536 = vadd.f32 %v2264, %v2495
    %v2537 = vadd.f32 %v2265, %v2516
    %v2538 = vadd.f32 %v2266, %v2517
    %v2539 = vadd.f32 %v2267, %v2501
    %v2540 = vadd.f32 %v2268, %v2518
    %v2541 = vadd.f32 %v2269, %v2519
    %v2542 = vadd.f32 %v2270, %v2507
    %v2543 = vadd.f32 %v2271, %v2520
    %v2544 = vadd.f32 %v2272, %v2521
    %v2545 = vadd.f32 %v2273, %v2513
    %v2546 = vlaneseq
    %v2547 = vshrl.u32 %v2546, 7
    %v2548 = vsub.s32 4, %v2547
    %v2549 = vrot.slane %v348, %v2548
    %v2550 = vlaneseq
    %v2551 = vshrl.u32 %v2550, 7
    %v2552 = vsub.s32 4, %v2551
    %v2553 = vrot.slane %v349, %v2552
    %2556 = vrot.lane.b32.xlu0 %v2549, 96
    %v2557 = vpop.permute.xlu0 %2556
    %2558 = vrot.lane.b32.xlu0 %v2553, 96
    %v2559 = vpop.permute.xlu0 %2558
    %v2560 = vsel %vm484, %v2557, %v2559
    %v2564 = vmul.f32 %v1813, %v2557
    %v2565 = vmul.f32 %v1814, %v2560
    %v2566 = vmul.f32 %v1890, %v2559
    %v2567 = vmul.f32 %v360, %v2557
    %v2568 = vmul.f32 %v361, %v2560
    %v2569 = vmul.f32 %v383, %v2559
    %v2570 = vmul.f32 %v1815, %v2557
    %v2571 = vmul.f32 %v1816, %v2560
    %v2572 = vmul.f32 %v1891, %v2559
    %v2573 = vmul.f32 %v1817, %v2557
    %v2574 = vmul.f32 %v1818, %v2560
    %v2575 = vmul.f32 %v1892, %v2559
    %v2576 = vmul.f32 %v364, %v2557
    %v2577 = vmul.f32 %v365, %v2560
    %v2578 = vmul.f32 %v385, %v2559
    %v2579 = vmul.f32 %v1819, %v2557
    %v2580 = vmul.f32 %v1820, %v2560
    %v2581 = vmul.f32 %v1893, %v2559
    %v2600 = vrot.slane %v2564, 2
    %v2601 = vrot.slane %v2567, 2
    %v2602 = vsel %vm1853, %v2600, %v2601
    %v2603 = vrot.slane %v2565, 2
    %v2604 = vrot.slane %v2568, 2
    %v2605 = vsel %vm1853, %v2603, %v2604
    %v2606 = vrot.slane %v2566, 2
    %v2607 = vrot.slane %v2569, 2
    %v2608 = vsel %vm1853, %v2606, %v2607
    %v2609 = vrot.slane %v2570, 2
    %v2610 = vsel %vm1853, %v2601, %v2609
    %v2611 = vrot.slane %v2571, 2
    %v2612 = vsel %vm1853, %v2604, %v2611
    %v2613 = vrot.slane %v2572, 2
    %v2614 = vsel %vm1853, %v2607, %v2613
    %v2615 = vrot.slane %v2573, 2
    %v2616 = vrot.slane %v2576, 2
    %v2617 = vsel %vm1853, %v2615, %v2616
    %v2618 = vrot.slane %v2574, 2
    %v2619 = vrot.slane %v2577, 2
    %v2620 = vsel %vm1853, %v2618, %v2619
    %v2621 = vrot.slane %v2575, 2
    %v2622 = vrot.slane %v2578, 2
    %v2623 = vsel %vm1853, %v2621, %v2622
    %v2624 = vrot.slane %v2579, 2
    %v2625 = vsel %vm1853, %v2616, %v2624
    %v2626 = vrot.slane %v2580, 2
    %v2627 = vsel %vm1853, %v2619, %v2626
    %v2628 = vrot.slane %v2581, 2
    %v2629 = vsel %vm1853, %v2622, %v2628
    %2630 = vrot.lane.b32.xlu0 %v2602, 32
    %v2631 = vpop.permute.xlu0 %2630
    %2632 = vrot.lane.b32.xlu0 %v2605, 32
    %v2633 = vpop.permute.xlu0 %2632
    %2634 = vrot.lane.b32.xlu0 %v2608, 32
    %v2635 = vpop.permute.xlu0 %2634
    %2636 = vrot.lane.b32.xlu0 %v2610, 32
    %v2637 = vpop.permute.xlu0 %2636
    %2638 = vrot.lane.b32.xlu0 %v2612, 32
    %v2639 = vpop.permute.xlu0 %2638
    %2640 = vrot.lane.b32.xlu0 %v2614, 32
    %v2641 = vpop.permute.xlu0 %2640
    %2642 = vrot.lane.b32.xlu0 %v2617, 32
    %v2643 = vpop.permute.xlu0 %2642
    %2644 = vrot.lane.b32.xlu0 %v2620, 32
    %v2645 = vpop.permute.xlu0 %2644
    %2646 = vrot.lane.b32.xlu0 %v2623, 32
    %v2647 = vpop.permute.xlu0 %2646
    %2648 = vrot.lane.b32.xlu0 %v2625, 32
    %v2649 = vpop.permute.xlu0 %2648
    %2650 = vrot.lane.b32.xlu0 %v2627, 32
    %v2651 = vpop.permute.xlu0 %2650
    %2652 = vrot.lane.b32.xlu0 %v2629, 32
    %v2653 = vpop.permute.xlu0 %2652
    %v2654 = vsel %vm431, %v2631, %v2633
    %v2655 = vsel %vm431, %v2633, %v2635
    %v2656 = vsel %vm431, %v2637, %v2639
    %v2657 = vsel %vm431, %v2639, %v2641
    %v2658 = vsel %vm431, %v2643, %v2645
    %v2659 = vsel %vm431, %v2645, %v2647
    %v2660 = vsel %vm431, %v2649, %v2651
    %v2661 = vsel %vm431, %v2651, %v2653
    %v2670 = vadd.f32 %v2398, %v2654
    %v2671 = vadd.f32 %v2399, %v2655
    %v2672 = vadd.f32 %v2400, %v2656
    %v2673 = vadd.f32 %v2401, %v2657
    %v2674 = vadd.f32 %v2402, %v2658
    %v2675 = vadd.f32 %v2403, %v2659
    %v2676 = vadd.f32 %v2404, %v2660
    %v2677 = vadd.f32 %v2405, %v2661
    %v2678 = vld [vmem:[#allocation2] sm:$0xf8]
    %v2679 = vld [vmem:[#allocation2 + $0x8] sm:$0xf8]
    %v2680 = vld [vmem:[#allocation2 + $0x30] sm:$0x7]
    %v2681 = vld [vmem:[#allocation2 + $0x38] sm:$0x7]
    %v2682 = vld [vmem:[#allocation2 + $0x48] sm:$0xf8]
    %v2683 = vld [vmem:[#allocation2 + $0x50] sm:$0xf8]
    %v2684 = vld [vmem:[#allocation2 + $0x78] sm:$0x7]
    %v2685 = vld [vmem:[#allocation2 + $0x80] sm:$0x7]
    %v2686 = vlaneseq
    %v2687 = vshrl.u32 %v2686, 7
    %v2688 = vsub.s32 5, %v2687
    %v2689 = vrot.slane %v348, %v2688
    %v2690 = vlaneseq
    %v2691 = vshrl.u32 %v2690, 7
    %v2692 = vsub.s32 5, %v2691
    %v2693 = vrot.slane %v349, %v2692
    %v2694 = vmul.f32 %v2678, %v2689
    %v2695 = vmul.f32 %v2679, %v2693
    %v2696 = vmul.f32 %v360, %v2689
    %v2697 = vmul.f32 %v361, %v2693
    %v2698 = vmul.f32 %v2680, %v2689
    %v2699 = vmul.f32 %v2681, %v2693
    %v2700 = vmul.f32 %v2682, %v2689
    %v2701 = vmul.f32 %v2683, %v2693
    %v2702 = vmul.f32 %v364, %v2689
    %v2703 = vmul.f32 %v365, %v2693
    %v2704 = vmul.f32 %v2684, %v2689
    %v2705 = vmul.f32 %v2685, %v2693
    %vm2718 = vcmask 1044480
    %v2719 = vrot.slane %v2694, 3
    %v2720 = vrot.slane %v2696, 3
    %v2721 = vsel %vm2718, %v2719, %v2720
    %v2722 = vrot.slane %v2695, 3
    %v2723 = vrot.slane %v2697, 3
    %v2724 = vsel %vm2718, %v2722, %v2723
    %v2725 = vrot.slane %v2698, 3
    %v2726 = vsel %vm2718, %v2720, %v2725
    %v2727 = vrot.slane %v2699, 3
    %v2728 = vsel %vm2718, %v2723, %v2727
    %v2729 = vrot.slane %v2700, 3
    %v2730 = vrot.slane %v2702, 3
    %v2731 = vsel %vm2718, %v2729, %v2730
    %v2732 = vrot.slane %v2701, 3
    %v2733 = vrot.slane %v2703, 3
    %v2734 = vsel %vm2718, %v2732, %v2733
    %v2735 = vrot.slane %v2704, 3
    %v2736 = vsel %vm2718, %v2730, %v2735
    %v2737 = vrot.slane %v2705, 3
    %v2738 = vsel %vm2718, %v2733, %v2737
    %2739 = vrot.lane.b32.xlu0 %v2721, 16
    %v2740 = vpop.permute.xlu0 %2739
    %2741 = vrot.lane.b32.xlu0 %v2724, 16
    %v2742 = vpop.permute.xlu0 %2741
    %2743 = vrot.lane.b32.xlu0 %v2726, 16
    %v2744 = vpop.permute.xlu0 %2743
    %2745 = vrot.lane.b32.xlu0 %v2728, 16
    %v2746 = vpop.permute.xlu0 %2745
    %2747 = vrot.lane.b32.xlu0 %v2731, 16
    %v2748 = vpop.permute.xlu0 %2747
    %2749 = vrot.lane.b32.xlu0 %v2734, 16
    %v2750 = vpop.permute.xlu0 %2749
    %2751 = vrot.lane.b32.xlu0 %v2736, 16
    %v2752 = vpop.permute.xlu0 %2751
    %2753 = vrot.lane.b32.xlu0 %v2738, 16
    %v2754 = vpop.permute.xlu0 %2753
    %v2755 = vsel %vm400, %v2740, %v2742
    %v2756 = vsel %vm400, %v2744, %v2746
    %v2757 = vsel %vm400, %v2748, %v2750
    %v2758 = vsel %vm400, %v2752, %v2754
    %v2771 = vadd.f32 %v2534, %v2740
    %v2772 = vadd.f32 %v2535, %v2755
    %v2773 = vadd.f32 %v2536, %v2742
    %v2774 = vadd.f32 %v2537, %v2744
    %v2775 = vadd.f32 %v2538, %v2756
    %v2776 = vadd.f32 %v2539, %v2746
    %v2777 = vadd.f32 %v2540, %v2748
    %v2778 = vadd.f32 %v2541, %v2757
    %v2779 = vadd.f32 %v2542, %v2750
    %v2780 = vadd.f32 %v2543, %v2752
    %v2781 = vadd.f32 %v2544, %v2758
    %v2782 = vadd.f32 %v2545, %v2754
    %v2783 = vld [vmem:[#allocation2 + $0x10] sm:$0xf8]
    %v2784 = vld [vmem:[#allocation2 + $0x40] sm:$0x7]
    %v2785 = vld [vmem:[#allocation2 + $0x58] sm:$0xf8]
    %v2786 = vld [vmem:[#allocation2 + $0x88] sm:$0x7]
    %v2787 = vlaneseq
    %v2788 = vshrl.u32 %v2787, 7
    %v2789 = vsub.s32 6, %v2788
    %v2790 = vrot.slane %v348, %v2789
    %v2791 = vlaneseq
    %v2792 = vshrl.u32 %v2791, 7
    %v2793 = vsub.s32 6, %v2792
    %v2794 = vrot.slane %v349, %v2793
    %2797 = vrot.lane.b32.xlu0 %v2790, 16
    %v2798 = vpop.permute.xlu0 %2797
    %2799 = vrot.lane.b32.xlu0 %v2794, 16
    %v2800 = vpop.permute.xlu0 %2799
    %v2801 = vsel %vm400, %v2798, %v2800
    %v2805 = vmul.f32 %v2678, %v2798
    %v2806 = vmul.f32 %v2679, %v2801
    %v2807 = vmul.f32 %v2783, %v2800
    %v2808 = vmul.f32 %v360, %v2798
    %v2809 = vmul.f32 %v361, %v2801
    %v2810 = vmul.f32 %v383, %v2800
    %v2811 = vmul.f32 %v2680, %v2798
    %v2812 = vmul.f32 %v2681, %v2801
    %v2813 = vmul.f32 %v2784, %v2800
    %v2814 = vmul.f32 %v2682, %v2798
    %v2815 = vmul.f32 %v2683, %v2801
    %v2816 = vmul.f32 %v2785, %v2800
    %v2817 = vmul.f32 %v364, %v2798
    %v2818 = vmul.f32 %v365, %v2801
    %v2819 = vmul.f32 %v385, %v2800
    %v2820 = vmul.f32 %v2684, %v2798
    %v2821 = vmul.f32 %v2685, %v2801
    %v2822 = vmul.f32 %v2786, %v2800
    %v2841 = vrot.slane %v2805, 3
    %v2842 = vrot.slane %v2808, 3
    %v2843 = vsel %vm2718, %v2841, %v2842
    %v2844 = vrot.slane %v2806, 3
    %v2845 = vrot.slane %v2809, 3
    %v2846 = vsel %vm2718, %v2844, %v2845
    %v2847 = vrot.slane %v2807, 3
    %v2848 = vrot.slane %v2810, 3
    %v2849 = vsel %vm2718, %v2847, %v2848
    %v2850 = vrot.slane %v2811, 3
    %v2851 = vsel %vm2718, %v2842, %v2850
    %v2852 = vrot.slane %v2812, 3
    %v2853 = vsel %vm2718, %v2845, %v2852
    %v2854 = vrot.slane %v2813, 3
    %v2855 = vsel %vm2718, %v2848, %v2854
    %v2856 = vrot.slane %v2814, 3
    %v2857 = vrot.slane %v2817, 3
    %v2858 = vsel %vm2718, %v2856, %v2857
    %v2859 = vrot.slane %v2815, 3
    %v2860 = vrot.slane %v2818, 3
    %v2861 = vsel %vm2718, %v2859, %v2860
    %v2862 = vrot.slane %v2816, 3
    %v2863 = vrot.slane %v2819, 3
    %v2864 = vsel %vm2718, %v2862, %v2863
    %v2865 = vrot.slane %v2820, 3
    %v2866 = vsel %vm2718, %v2857, %v2865
    %v2867 = vrot.slane %v2821, 3
    %v2868 = vsel %vm2718, %v2860, %v2867
    %v2869 = vrot.slane %v2822, 3
    %v2870 = vsel %vm2718, %v2863, %v2869
    %2871 = vrot.lane.b32.xlu0 %v2843, 112
    %v2872 = vpop.permute.xlu0 %2871
    %2873 = vrot.lane.b32.xlu0 %v2846, 112
    %v2874 = vpop.permute.xlu0 %2873
    %2875 = vrot.lane.b32.xlu0 %v2849, 112
    %v2876 = vpop.permute.xlu0 %2875
    %2877 = vrot.lane.b32.xlu0 %v2851, 112
    %v2878 = vpop.permute.xlu0 %2877
    %2879 = vrot.lane.b32.xlu0 %v2853, 112
    %v2880 = vpop.permute.xlu0 %2879
    %2881 = vrot.lane.b32.xlu0 %v2855, 112
    %v2882 = vpop.permute.xlu0 %2881
    %2883 = vrot.lane.b32.xlu0 %v2858, 112
    %v2884 = vpop.permute.xlu0 %2883
    %2885 = vrot.lane.b32.xlu0 %v2861, 112
    %v2886 = vpop.permute.xlu0 %2885
    %2887 = vrot.lane.b32.xlu0 %v2864, 112
    %v2888 = vpop.permute.xlu0 %2887
    %2889 = vrot.lane.b32.xlu0 %v2866, 112
    %v2890 = vpop.permute.xlu0 %2889
    %2891 = vrot.lane.b32.xlu0 %v2868, 112
    %v2892 = vpop.permute.xlu0 %2891
    %2893 = vrot.lane.b32.xlu0 %v2870, 112
    %v2894 = vpop.permute.xlu0 %2893
    %v2895 = vsel %vm1104, %v2872, %v2874
    %v2896 = vsel %vm1104, %v2874, %v2876
    %v2897 = vsel %vm1104, %v2878, %v2880
    %v2898 = vsel %vm1104, %v2880, %v2882
    %v2899 = vsel %vm1104, %v2884, %v2886
    %v2900 = vsel %vm1104, %v2886, %v2888
    %v2901 = vsel %vm1104, %v2890, %v2892
    %v2902 = vsel %vm1104, %v2892, %v2894
    %v2911 = vadd.f32 %v2670, %v2895
    %v2912 = vadd.f32 %v2671, %v2896
    %v2913 = vadd.f32 %v2672, %v2897
    %v2914 = vadd.f32 %v2673, %v2898
    %v2915 = vadd.f32 %v2674, %v2899
    %v2916 = vadd.f32 %v2675, %v2900
    %v2917 = vadd.f32 %v2676, %v2901
    %v2918 = vadd.f32 %v2677, %v2902
    %v2919 = vlaneseq
    %v2920 = vshrl.u32 %v2919, 7
    %v2921 = vsub.s32 7, %v2920
    %v2922 = vrot.slane %v348, %v2921
    %v2923 = vlaneseq
    %v2924 = vshrl.u32 %v2923, 7
    %v2925 = vsub.s32 7, %v2924
    %v2926 = vrot.slane %v349, %v2925
    %2929 = vrot.lane.b32.xlu0 %v2922, 32
    %v2930 = vpop.permute.xlu0 %2929
    %2931 = vrot.lane.b32.xlu0 %v2926, 32
    %v2932 = vpop.permute.xlu0 %2931
    %v2933 = vsel %vm431, %v2930, %v2932
    %v2937 = vmul.f32 %v2678, %v2930
    %v2938 = vmul.f32 %v2679, %v2933
    %v2939 = vmul.f32 %v2783, %v2932
    %v2940 = vmul.f32 %v360, %v2930
    %v2941 = vmul.f32 %v361, %v2933
    %v2942 = vmul.f32 %v383, %v2932
    %v2943 = vmul.f32 %v2680, %v2930
    %v2944 = vmul.f32 %v2681, %v2933
    %v2945 = vmul.f32 %v2784, %v2932
    %v2946 = vmul.f32 %v2682, %v2930
    %v2947 = vmul.f32 %v2683, %v2933
    %v2948 = vmul.f32 %v2785, %v2932
    %v2949 = vmul.f32 %v364, %v2930
    %v2950 = vmul.f32 %v365, %v2933
    %v2951 = vmul.f32 %v385, %v2932
    %v2952 = vmul.f32 %v2684, %v2930
    %v2953 = vmul.f32 %v2685, %v2933
    %v2954 = vmul.f32 %v2786, %v2932
    %v2973 = vrot.slane %v2937, 3
    %v2974 = vrot.slane %v2940, 3
    %v2975 = vsel %vm2718, %v2973, %v2974
    %v2976 = vrot.slane %v2938, 3
    %v2977 = vrot.slane %v2941, 3
    %v2978 = vsel %vm2718, %v2976, %v2977
    %v2979 = vrot.slane %v2939, 3
    %v2980 = vrot.slane %v2942, 3
    %v2981 = vsel %vm2718, %v2979, %v2980
    %v2982 = vrot.slane %v2943, 3
    %v2983 = vsel %vm2718, %v2974, %v2982
    %v2984 = vrot.slane %v2944, 3
    %v2985 = vsel %vm2718, %v2977, %v2984
    %v2986 = vrot.slane %v2945, 3
    %v2987 = vsel %vm2718, %v2980, %v2986
    %v2988 = vrot.slane %v2946, 3
    %v2989 = vrot.slane %v2949, 3
    %v2990 = vsel %vm2718, %v2988, %v2989
    %v2991 = vrot.slane %v2947, 3
    %v2992 = vrot.slane %v2950, 3
    %v2993 = vsel %vm2718, %v2991, %v2992
    %v2994 = vrot.slane %v2948, 3
    %v2995 = vrot.slane %v2951, 3
    %v2996 = vsel %vm2718, %v2994, %v2995
    %v2997 = vrot.slane %v2952, 3
    %v2998 = vsel %vm2718, %v2989, %v2997
    %v2999 = vrot.slane %v2953, 3
    %v3000 = vsel %vm2718, %v2992, %v2999
    %v3001 = vrot.slane %v2954, 3
    %v3002 = vsel %vm2718, %v2995, %v3001
    %3003 = vrot.lane.b32.xlu0 %v2975, 112
    %v3004 = vpop.permute.xlu0 %3003
    %3005 = vrot.lane.b32.xlu0 %v2978, 112
    %v3006 = vpop.permute.xlu0 %3005
    %3007 = vrot.lane.b32.xlu0 %v2981, 112
    %v3008 = vpop.permute.xlu0 %3007
    %3009 = vrot.lane.b32.xlu0 %v2983, 112
    %v3010 = vpop.permute.xlu0 %3009
    %3011 = vrot.lane.b32.xlu0 %v2985, 112
    %v3012 = vpop.permute.xlu0 %3011
    %3013 = vrot.lane.b32.xlu0 %v2987, 112
    %v3014 = vpop.permute.xlu0 %3013
    %3015 = vrot.lane.b32.xlu0 %v2990, 112
    %v3016 = vpop.permute.xlu0 %3015
    %3017 = vrot.lane.b32.xlu0 %v2993, 112
    %v3018 = vpop.permute.xlu0 %3017
    %3019 = vrot.lane.b32.xlu0 %v2996, 112
    %v3020 = vpop.permute.xlu0 %3019
    %3021 = vrot.lane.b32.xlu0 %v2998, 112
    %v3022 = vpop.permute.xlu0 %3021
    %3023 = vrot.lane.b32.xlu0 %v3000, 112
    %v3024 = vpop.permute.xlu0 %3023
    %3025 = vrot.lane.b32.xlu0 %v3002, 112
    %v3026 = vpop.permute.xlu0 %3025
    %v3027 = vsel %vm1104, %v3004, %v3006
    %v3028 = vsel %vm1104, %v3006, %v3008
    %v3029 = vsel %vm1104, %v3010, %v3012
    %v3030 = vsel %vm1104, %v3012, %v3014
    %v3031 = vsel %vm1104, %v3016, %v3018
    %v3032 = vsel %vm1104, %v3018, %v3020
    %v3033 = vsel %vm1104, %v3022, %v3024
    %v3034 = vsel %vm1104, %v3024, %v3026
    %v3047 = vadd.f32 %v2771, %v3027
    %v3048 = vadd.f32 %v2772, %v3028
    %v3049 = vadd.f32 %v2773, %v3008
    %v3050 = vadd.f32 %v2774, %v3029
    %v3051 = vadd.f32 %v2775, %v3030
    %v3052 = vadd.f32 %v2776, %v3014
    %v3053 = vadd.f32 %v2777, %v3031
    %v3054 = vadd.f32 %v2778, %v3032
    %v3055 = vadd.f32 %v2779, %v3020
    %v3056 = vadd.f32 %v2780, %v3033
    %v3057 = vadd.f32 %v2781, %v3034
    %v3058 = vadd.f32 %v2782, %v3026
    %v3059 = vlaneseq
    %v3060 = vshrl.u32 %v3059, 7
    %v3061 = vsub.s32 0, %v3060
    %v3062 = vrot.slane %v350, %v3061
    %v3063 = vlaneseq
    %v3064 = vshrl.u32 %v3063, 7
    %v3065 = vsub.s32 0, %v3064
    %v3066 = vrot.slane %v351, %v3065
    %3069 = vrot.lane.b32.xlu0 %v3062, 48
    %v3070 = vpop.permute.xlu0 %3069
    %3071 = vrot.lane.b32.xlu0 %v3066, 48
    %v3072 = vpop.permute.xlu0 %3071
    %v3073 = vsel %vm143, %v3070, %v3072
    %v3077 = vmul.f32 %v2678, %v3070
    %v3078 = vmul.f32 %v2679, %v3073
    %v3079 = vmul.f32 %v2783, %v3072
    %v3080 = vmul.f32 %v360, %v3070
    %v3081 = vmul.f32 %v361, %v3073
    %v3082 = vmul.f32 %v383, %v3072
    %v3083 = vmul.f32 %v2680, %v3070
    %v3084 = vmul.f32 %v2681, %v3073
    %v3085 = vmul.f32 %v2784, %v3072
    %v3086 = vmul.f32 %v2682, %v3070
    %v3087 = vmul.f32 %v2683, %v3073
    %v3088 = vmul.f32 %v2785, %v3072
    %v3089 = vmul.f32 %v364, %v3070
    %v3090 = vmul.f32 %v365, %v3073
    %v3091 = vmul.f32 %v385, %v3072
    %v3092 = vmul.f32 %v2684, %v3070
    %v3093 = vmul.f32 %v2685, %v3073
    %v3094 = vmul.f32 %v2786, %v3072
    %v3113 = vrot.slane %v3077, 3
    %v3114 = vrot.slane %v3080, 3
    %v3115 = vsel %vm2718, %v3113, %v3114
    %v3116 = vrot.slane %v3078, 3
    %v3117 = vrot.slane %v3081, 3
    %v3118 = vsel %vm2718, %v3116, %v3117
    %v3119 = vrot.slane %v3079, 3
    %v3120 = vrot.slane %v3082, 3
    %v3121 = vsel %vm2718, %v3119, %v3120
    %v3122 = vrot.slane %v3083, 3
    %v3123 = vsel %vm2718, %v3114, %v3122
    %v3124 = vrot.slane %v3084, 3
    %v3125 = vsel %vm2718, %v3117, %v3124
    %v3126 = vrot.slane %v3085, 3
    %v3127 = vsel %vm2718, %v3120, %v3126
    %v3128 = vrot.slane %v3086, 3
    %v3129 = vrot.slane %v3089, 3
    %v3130 = vsel %vm2718, %v3128, %v3129
    %v3131 = vrot.slane %v3087, 3
    %v3132 = vrot.slane %v3090, 3
    %v3133 = vsel %vm2718, %v3131, %v3132
    %v3134 = vrot.slane %v3088, 3
    %v3135 = vrot.slane %v3091, 3
    %v3136 = vsel %vm2718, %v3134, %v3135
    %v3137 = vrot.slane %v3092, 3
    %v3138 = vsel %vm2718, %v3129, %v3137
    %v3139 = vrot.slane %v3093, 3
    %v3140 = vsel %vm2718, %v3132, %v3139
    %v3141 = vrot.slane %v3094, 3
    %v3142 = vsel %vm2718, %v3135, %v3141
    %3143 = vrot.lane.b32.xlu0 %v3115, 80
    %v3144 = vpop.permute.xlu0 %3143
    %3145 = vrot.lane.b32.xlu0 %v3118, 80
    %v3146 = vpop.permute.xlu0 %3145
    %3147 = vrot.lane.b32.xlu0 %v3121, 80
    %v3148 = vpop.permute.xlu0 %3147
    %3149 = vrot.lane.b32.xlu0 %v3123, 80
    %v3150 = vpop.permute.xlu0 %3149
    %3151 = vrot.lane.b32.xlu0 %v3125, 80
    %v3152 = vpop.permute.xlu0 %3151
    %3153 = vrot.lane.b32.xlu0 %v3127, 80
    %v3154 = vpop.permute.xlu0 %3153
    %3155 = vrot.lane.b32.xlu0 %v3130, 80
    %v3156 = vpop.permute.xlu0 %3155
    %3157 = vrot.lane.b32.xlu0 %v3133, 80
    %v3158 = vpop.permute.xlu0 %3157
    %3159 = vrot.lane.b32.xlu0 %v3136, 80
    %v3160 = vpop.permute.xlu0 %3159
    %3161 = vrot.lane.b32.xlu0 %v3138, 80
    %v3162 = vpop.permute.xlu0 %3161
    %3163 = vrot.lane.b32.xlu0 %v3140, 80
    %v3164 = vpop.permute.xlu0 %3163
    %3165 = vrot.lane.b32.xlu0 %v3142, 80
    %v3166 = vpop.permute.xlu0 %3165
    %v3167 = vsel %vm712, %v3144, %v3146
    %v3168 = vsel %vm712, %v3146, %v3148
    %v3169 = vsel %vm712, %v3150, %v3152
    %v3170 = vsel %vm712, %v3152, %v3154
    %v3171 = vsel %vm712, %v3156, %v3158
    %v3172 = vsel %vm712, %v3158, %v3160
    %v3173 = vsel %vm712, %v3162, %v3164
    %v3174 = vsel %vm712, %v3164, %v3166
    %v3183 = vadd.f32 %v2911, %v3167
    %v3184 = vadd.f32 %v2912, %v3168
    %v3185 = vadd.f32 %v2913, %v3169
    %v3186 = vadd.f32 %v2914, %v3170
    %v3187 = vadd.f32 %v2915, %v3171
    %v3188 = vadd.f32 %v2916, %v3172
    %v3189 = vadd.f32 %v2917, %v3173
    %v3190 = vadd.f32 %v2918, %v3174
    %v3191 = vlaneseq
    %v3192 = vshrl.u32 %v3191, 7
    %v3193 = vsub.s32 1, %v3192
    %v3194 = vrot.slane %v350, %v3193
    %v3195 = vlaneseq
    %v3196 = vshrl.u32 %v3195, 7
    %v3197 = vsub.s32 1, %v3196
    %v3198 = vrot.slane %v351, %v3197
    %3201 = vrot.lane.b32.xlu0 %v3194, 64
    %v3202 = vpop.permute.xlu0 %3201
    %3203 = vrot.lane.b32.xlu0 %v3198, 64
    %v3204 = vpop.permute.xlu0 %3203
    %v3205 = vsel %vm621, %v3202, %v3204
    %v3209 = vmul.f32 %v2678, %v3202
    %v3210 = vmul.f32 %v2679, %v3205
    %v3211 = vmul.f32 %v2783, %v3204
    %v3212 = vmul.f32 %v360, %v3202
    %v3213 = vmul.f32 %v361, %v3205
    %v3214 = vmul.f32 %v383, %v3204
    %v3215 = vmul.f32 %v2680, %v3202
    %v3216 = vmul.f32 %v2681, %v3205
    %v3217 = vmul.f32 %v2784, %v3204
    %v3218 = vmul.f32 %v2682, %v3202
    %v3219 = vmul.f32 %v2683, %v3205
    %v3220 = vmul.f32 %v2785, %v3204
    %v3221 = vmul.f32 %v364, %v3202
    %v3222 = vmul.f32 %v365, %v3205
    %v3223 = vmul.f32 %v385, %v3204
    %v3224 = vmul.f32 %v2684, %v3202
    %v3225 = vmul.f32 %v2685, %v3205
    %v3226 = vmul.f32 %v2786, %v3204
    %v3245 = vrot.slane %v3209, 3
    %v3246 = vrot.slane %v3212, 3
    %v3247 = vsel %vm2718, %v3245, %v3246
    %v3248 = vrot.slane %v3210, 3
    %v3249 = vrot.slane %v3213, 3
    %v3250 = vsel %vm2718, %v3248, %v3249
    %v3251 = vrot.slane %v3211, 3
    %v3252 = vrot.slane %v3214, 3
    %v3253 = vsel %vm2718, %v3251, %v3252
    %v3254 = vrot.slane %v3215, 3
    %v3255 = vsel %vm2718, %v3246, %v3254
    %v3256 = vrot.slane %v3216, 3
    %v3257 = vsel %vm2718, %v3249, %v3256
    %v3258 = vrot.slane %v3217, 3
    %v3259 = vsel %vm2718, %v3252, %v3258
    %v3260 = vrot.slane %v3218, 3
    %v3261 = vrot.slane %v3221, 3
    %v3262 = vsel %vm2718, %v3260, %v3261
    %v3263 = vrot.slane %v3219, 3
    %v3264 = vrot.slane %v3222, 3
    %v3265 = vsel %vm2718, %v3263, %v3264
    %v3266 = vrot.slane %v3220, 3
    %v3267 = vrot.slane %v3223, 3
    %v3268 = vsel %vm2718, %v3266, %v3267
    %v3269 = vrot.slane %v3224, 3
    %v3270 = vsel %vm2718, %v3261, %v3269
    %v3271 = vrot.slane %v3225, 3
    %v3272 = vsel %vm2718, %v3264, %v3271
    %v3273 = vrot.slane %v3226, 3
    %v3274 = vsel %vm2718, %v3267, %v3273
    %3275 = vrot.lane.b32.xlu0 %v3247, 80
    %v3276 = vpop.permute.xlu0 %3275
    %3277 = vrot.lane.b32.xlu0 %v3250, 80
    %v3278 = vpop.permute.xlu0 %3277
    %3279 = vrot.lane.b32.xlu0 %v3253, 80
    %v3280 = vpop.permute.xlu0 %3279
    %3281 = vrot.lane.b32.xlu0 %v3255, 80
    %v3282 = vpop.permute.xlu0 %3281
    %3283 = vrot.lane.b32.xlu0 %v3257, 80
    %v3284 = vpop.permute.xlu0 %3283
    %3285 = vrot.lane.b32.xlu0 %v3259, 80
    %v3286 = vpop.permute.xlu0 %3285
    %3287 = vrot.lane.b32.xlu0 %v3262, 80
    %v3288 = vpop.permute.xlu0 %3287
    %3289 = vrot.lane.b32.xlu0 %v3265, 80
    %v3290 = vpop.permute.xlu0 %3289
    %3291 = vrot.lane.b32.xlu0 %v3268, 80
    %v3292 = vpop.permute.xlu0 %3291
    %3293 = vrot.lane.b32.xlu0 %v3270, 80
    %v3294 = vpop.permute.xlu0 %3293
    %3295 = vrot.lane.b32.xlu0 %v3272, 80
    %v3296 = vpop.permute.xlu0 %3295
    %3297 = vrot.lane.b32.xlu0 %v3274, 80
    %v3298 = vpop.permute.xlu0 %3297
    %v3299 = vsel %vm712, %v3276, %v3278
    %v3300 = vsel %vm712, %v3278, %v3280
    %v3301 = vsel %vm712, %v3282, %v3284
    %v3302 = vsel %vm712, %v3284, %v3286
    %v3303 = vsel %vm712, %v3288, %v3290
    %v3304 = vsel %vm712, %v3290, %v3292
    %v3305 = vsel %vm712, %v3294, %v3296
    %v3306 = vsel %vm712, %v3296, %v3298
    %v3319 = vadd.f32 %v3047, %v3299
    %v3320 = vadd.f32 %v3048, %v3300
    %v3321 = vadd.f32 %v3049, %v3280
    %v3322 = vadd.f32 %v3050, %v3301
    %v3323 = vadd.f32 %v3051, %v3302
    %v3324 = vadd.f32 %v3052, %v3286
    %v3325 = vadd.f32 %v3053, %v3303
    %v3326 = vadd.f32 %v3054, %v3304
    %v3327 = vadd.f32 %v3055, %v3292
    %v3328 = vadd.f32 %v3056, %v3305
    %v3329 = vadd.f32 %v3057, %v3306
    %v3330 = vadd.f32 %v3058, %v3298
    %v3331 = vlaneseq
    %v3332 = vshrl.u32 %v3331, 7
    %v3333 = vsub.s32 2, %v3332
    %v3334 = vrot.slane %v350, %v3333
    %v3335 = vlaneseq
    %v3336 = vshrl.u32 %v3335, 7
    %v3337 = vsub.s32 2, %v3336
    %v3338 = vrot.slane %v351, %v3337
    %3341 = vrot.lane.b32.xlu0 %v3334, 80
    %v3342 = vpop.permute.xlu0 %3341
    %3343 = vrot.lane.b32.xlu0 %v3338, 80
    %v3344 = vpop.permute.xlu0 %3343
    %v3345 = vsel %vm712, %v3342, %v3344
    %v3349 = vmul.f32 %v2678, %v3342
    %v3350 = vmul.f32 %v2679, %v3345
    %v3351 = vmul.f32 %v2783, %v3344
    %v3352 = vmul.f32 %v360, %v3342
    %v3353 = vmul.f32 %v361, %v3345
    %v3354 = vmul.f32 %v383, %v3344
    %v3355 = vmul.f32 %v2680, %v3342
    %v3356 = vmul.f32 %v2681, %v3345
    %v3357 = vmul.f32 %v2784, %v3344
    %v3358 = vmul.f32 %v2682, %v3342
    %v3359 = vmul.f32 %v2683, %v3345
    %v3360 = vmul.f32 %v2785, %v3344
    %v3361 = vmul.f32 %v364, %v3342
    %v3362 = vmul.f32 %v365, %v3345
    %v3363 = vmul.f32 %v385, %v3344
    %v3364 = vmul.f32 %v2684, %v3342
    %v3365 = vmul.f32 %v2685, %v3345
    %v3366 = vmul.f32 %v2786, %v3344
    %v3385 = vrot.slane %v3349, 3
    %v3386 = vrot.slane %v3352, 3
    %v3387 = vsel %vm2718, %v3385, %v3386
    %v3388 = vrot.slane %v3350, 3
    %v3389 = vrot.slane %v3353, 3
    %v3390 = vsel %vm2718, %v3388, %v3389
    %v3391 = vrot.slane %v3351, 3
    %v3392 = vrot.slane %v3354, 3
    %v3393 = vsel %vm2718, %v3391, %v3392
    %v3394 = vrot.slane %v3355, 3
    %v3395 = vsel %vm2718, %v3386, %v3394
    %v3396 = vrot.slane %v3356, 3
    %v3397 = vsel %vm2718, %v3389, %v3396
    %v3398 = vrot.slane %v3357, 3
    %v3399 = vsel %vm2718, %v3392, %v3398
    %v3400 = vrot.slane %v3358, 3
    %v3401 = vrot.slane %v3361, 3
    %v3402 = vsel %vm2718, %v3400, %v3401
    %v3403 = vrot.slane %v3359, 3
    %v3404 = vrot.slane %v3362, 3
    %v3405 = vsel %vm2718, %v3403, %v3404
    %v3406 = vrot.slane %v3360, 3
    %v3407 = vrot.slane %v3363, 3
    %v3408 = vsel %vm2718, %v3406, %v3407
    %v3409 = vrot.slane %v3364, 3
    %v3410 = vsel %vm2718, %v3401, %v3409
    %v3411 = vrot.slane %v3365, 3
    %v3412 = vsel %vm2718, %v3404, %v3411
    %v3413 = vrot.slane %v3366, 3
    %v3414 = vsel %vm2718, %v3407, %v3413
    %3415 = vrot.lane.b32.xlu0 %v3387, 48
    %v3416 = vpop.permute.xlu0 %3415
    %3417 = vrot.lane.b32.xlu0 %v3390, 48
    %v3418 = vpop.permute.xlu0 %3417
    %3419 = vrot.lane.b32.xlu0 %v3393, 48
    %v3420 = vpop.permute.xlu0 %3419
    %3421 = vrot.lane.b32.xlu0 %v3395, 48
    %v3422 = vpop.permute.xlu0 %3421
    %3423 = vrot.lane.b32.xlu0 %v3397, 48
    %v3424 = vpop.permute.xlu0 %3423
    %3425 = vrot.lane.b32.xlu0 %v3399, 48
    %v3426 = vpop.permute.xlu0 %3425
    %3427 = vrot.lane.b32.xlu0 %v3402, 48
    %v3428 = vpop.permute.xlu0 %3427
    %3429 = vrot.lane.b32.xlu0 %v3405, 48
    %v3430 = vpop.permute.xlu0 %3429
    %3431 = vrot.lane.b32.xlu0 %v3408, 48
    %v3432 = vpop.permute.xlu0 %3431
    %3433 = vrot.lane.b32.xlu0 %v3410, 48
    %v3434 = vpop.permute.xlu0 %3433
    %3435 = vrot.lane.b32.xlu0 %v3412, 48
    %v3436 = vpop.permute.xlu0 %3435
    %3437 = vrot.lane.b32.xlu0 %v3414, 48
    %v3438 = vpop.permute.xlu0 %3437
    %v3439 = vsel %vm143, %v3416, %v3418
    %v3440 = vsel %vm143, %v3418, %v3420
    %v3441 = vsel %vm143, %v3422, %v3424
    %v3442 = vsel %vm143, %v3424, %v3426
    %v3443 = vsel %vm143, %v3428, %v3430
    %v3444 = vsel %vm143, %v3430, %v3432
    %v3445 = vsel %vm143, %v3434, %v3436
    %v3446 = vsel %vm143, %v3436, %v3438
    %v3455 = vadd.f32 %v3183, %v3439
    %v3456 = vadd.f32 %v3184, %v3440
    %v3457 = vadd.f32 %v3185, %v3441
    %v3458 = vadd.f32 %v3186, %v3442
    %v3459 = vadd.f32 %v3187, %v3443
    %v3460 = vadd.f32 %v3188, %v3444
    %v3461 = vadd.f32 %v3189, %v3445
    %v3462 = vadd.f32 %v3190, %v3446
    %v3463 = vlaneseq
    %v3464 = vshrl.u32 %v3463, 7
    %v3465 = vsub.s32 3, %v3464
    %v3466 = vrot.slane %v350, %v3465
    %v3467 = vlaneseq
    %v3468 = vshrl.u32 %v3467, 7
    %v3469 = vsub.s32 3, %v3468
    %v3470 = vrot.slane %v351, %v3469
    %3473 = vrot.lane.b32.xlu0 %v3466, 96
    %v3474 = vpop.permute.xlu0 %3473
    %3475 = vrot.lane.b32.xlu0 %v3470, 96
    %v3476 = vpop.permute.xlu0 %3475
    %v3477 = vsel %vm484, %v3474, %v3476
    %v3481 = vmul.f32 %v2678, %v3474
    %v3482 = vmul.f32 %v2679, %v3477
    %v3483 = vmul.f32 %v2783, %v3476
    %v3484 = vmul.f32 %v360, %v3474
    %v3485 = vmul.f32 %v361, %v3477
    %v3486 = vmul.f32 %v383, %v3476
    %v3487 = vmul.f32 %v2680, %v3474
    %v3488 = vmul.f32 %v2681, %v3477
    %v3489 = vmul.f32 %v2784, %v3476
    %v3490 = vmul.f32 %v2682, %v3474
    %v3491 = vmul.f32 %v2683, %v3477
    %v3492 = vmul.f32 %v2785, %v3476
    %v3493 = vmul.f32 %v364, %v3474
    %v3494 = vmul.f32 %v365, %v3477
    %v3495 = vmul.f32 %v385, %v3476
    %v3496 = vmul.f32 %v2684, %v3474
    %v3497 = vmul.f32 %v2685, %v3477
    %v3498 = vmul.f32 %v2786, %v3476
    %v3517 = vrot.slane %v3481, 3
    %v3518 = vrot.slane %v3484, 3
    %v3519 = vsel %vm2718, %v3517, %v3518
    %v3520 = vrot.slane %v3482, 3
    %v3521 = vrot.slane %v3485, 3
    %v3522 = vsel %vm2718, %v3520, %v3521
    %v3523 = vrot.slane %v3483, 3
    %v3524 = vrot.slane %v3486, 3
    %v3525 = vsel %vm2718, %v3523, %v3524
    %v3526 = vrot.slane %v3487, 3
    %v3527 = vsel %vm2718, %v3518, %v3526
    %v3528 = vrot.slane %v3488, 3
    %v3529 = vsel %vm2718, %v3521, %v3528
    %v3530 = vrot.slane %v3489, 3
    %v3531 = vsel %vm2718, %v3524, %v3530
    %v3532 = vrot.slane %v3490, 3
    %v3533 = vrot.slane %v3493, 3
    %v3534 = vsel %vm2718, %v3532, %v3533
    %v3535 = vrot.slane %v3491, 3
    %v3536 = vrot.slane %v3494, 3
    %v3537 = vsel %vm2718, %v3535, %v3536
    %v3538 = vrot.slane %v3492, 3
    %v3539 = vrot.slane %v3495, 3
    %v3540 = vsel %vm2718, %v3538, %v3539
    %v3541 = vrot.slane %v3496, 3
    %v3542 = vsel %vm2718, %v3533, %v3541
    %v3543 = vrot.slane %v3497, 3
    %v3544 = vsel %vm2718, %v3536, %v3543
    %v3545 = vrot.slane %v3498, 3
    %v3546 = vsel %vm2718, %v3539, %v3545
    %3547 = vrot.lane.b32.xlu0 %v3519, 48
    %v3548 = vpop.permute.xlu0 %3547
    %3549 = vrot.lane.b32.xlu0 %v3522, 48
    %v3550 = vpop.permute.xlu0 %3549
    %3551 = vrot.lane.b32.xlu0 %v3525, 48
    %v3552 = vpop.permute.xlu0 %3551
    %3553 = vrot.lane.b32.xlu0 %v3527, 48
    %v3554 = vpop.permute.xlu0 %3553
    %3555 = vrot.lane.b32.xlu0 %v3529, 48
    %v3556 = vpop.permute.xlu0 %3555
    %3557 = vrot.lane.b32.xlu0 %v3531, 48
    %v3558 = vpop.permute.xlu0 %3557
    %3559 = vrot.lane.b32.xlu0 %v3534, 48
    %v3560 = vpop.permute.xlu0 %3559
    %3561 = vrot.lane.b32.xlu0 %v3537, 48
    %v3562 = vpop.permute.xlu0 %3561
    %3563 = vrot.lane.b32.xlu0 %v3540, 48
    %v3564 = vpop.permute.xlu0 %3563
    %3565 = vrot.lane.b32.xlu0 %v3542, 48
    %v3566 = vpop.permute.xlu0 %3565
    %3567 = vrot.lane.b32.xlu0 %v3544, 48
    %v3568 = vpop.permute.xlu0 %3567
    %3569 = vrot.lane.b32.xlu0 %v3546, 48
    %v3570 = vpop.permute.xlu0 %3569
    %v3571 = vsel %vm143, %v3548, %v3550
    %v3572 = vsel %vm143, %v3550, %v3552
    %v3573 = vsel %vm143, %v3554, %v3556
    %v3574 = vsel %vm143, %v3556, %v3558
    %v3575 = vsel %vm143, %v3560, %v3562
    %v3576 = vsel %vm143, %v3562, %v3564
    %v3577 = vsel %vm143, %v3566, %v3568
    %v3578 = vsel %vm143, %v3568, %v3570
    %v3591 = vadd.f32 %v3319, %v3571
    %v3592 = vadd.f32 %v3320, %v3572
    %v3593 = vadd.f32 %v3321, %v3552
    %v3594 = vadd.f32 %v3322, %v3573
    %v3595 = vadd.f32 %v3323, %v3574
    %v3596 = vadd.f32 %v3324, %v3558
    %v3597 = vadd.f32 %v3325, %v3575
    %v3598 = vadd.f32 %v3326, %v3576
    %v3599 = vadd.f32 %v3327, %v3564
    %v3600 = vadd.f32 %v3328, %v3577
    %v3601 = vadd.f32 %v3329, %v3578
    %v3602 = vadd.f32 %v3330, %v3570
    %v3603 = vld [vmem:[#allocation2] sm:$0xf0]
    %v3604 = vld [vmem:[#allocation2 + $0x8] sm:$0xf0]
    %v3605 = vld [vmem:[#allocation2 + $0x30] sm:$0xf]
    %v3606 = vld [vmem:[#allocation2 + $0x38] sm:$0xf]
    %v3607 = vld [vmem:[#allocation2 + $0x48] sm:$0xf0]
    %v3608 = vld [vmem:[#allocation2 + $0x50] sm:$0xf0]
    %v3609 = vld [vmem:[#allocation2 + $0x78] sm:$0xf]
    %v3610 = vld [vmem:[#allocation2 + $0x80] sm:$0xf]
    %v3611 = vlaneseq
    %v3612 = vshrl.u32 %v3611, 7
    %v3613 = vsub.s32 4, %v3612
    %v3614 = vrot.slane %v350, %v3613
    %v3615 = vlaneseq
    %v3616 = vshrl.u32 %v3615, 7
    %v3617 = vsub.s32 4, %v3616
    %v3618 = vrot.slane %v351, %v3617
    %v3619 = vmul.f32 %v3603, %v3614
    %v3620 = vmul.f32 %v3604, %v3618
    %v3621 = vmul.f32 %v360, %v3614
    %v3622 = vmul.f32 %v361, %v3618
    %v3623 = vmul.f32 %v3605, %v3614
    %v3624 = vmul.f32 %v3606, %v3618
    %v3625 = vmul.f32 %v3607, %v3614
    %v3626 = vmul.f32 %v3608, %v3618
    %v3627 = vmul.f32 %v364, %v3614
    %v3628 = vmul.f32 %v365, %v3618
    %v3629 = vmul.f32 %v3609, %v3614
    %v3630 = vmul.f32 %v3610, %v3618
    %vm3643 = vcmask 1043456
    %v3644 = vrot.slane %v3619, 4
    %v3645 = vrot.slane %v3621, 4
    %v3646 = vsel %vm3643, %v3644, %v3645
    %v3647 = vrot.slane %v3620, 4
    %v3648 = vrot.slane %v3622, 4
    %v3649 = vsel %vm3643, %v3647, %v3648
    %v3650 = vrot.slane %v3623, 4
    %v3651 = vsel %vm3643, %v3645, %v3650
    %v3652 = vrot.slane %v3624, 4
    %v3653 = vsel %vm3643, %v3648, %v3652
    %v3654 = vrot.slane %v3625, 4
    %v3655 = vrot.slane %v3627, 4
    %v3656 = vsel %vm3643, %v3654, %v3655
    %v3657 = vrot.slane %v3626, 4
    %v3658 = vrot.slane %v3628, 4
    %v3659 = vsel %vm3643, %v3657, %v3658
    %v3660 = vrot.slane %v3629, 4
    %v3661 = vsel %vm3643, %v3655, %v3660
    %v3662 = vrot.slane %v3630, 4
    %v3663 = vsel %vm3643, %v3658, %v3662
    %v3672 = vadd.f32 %v3455, %v3646
    %v3673 = vadd.f32 %v3456, %v3649
    %v3674 = vadd.f32 %v3457, %v3651
    %v3675 = vadd.f32 %v3458, %v3653
    %v3676 = vadd.f32 %v3459, %v3656
    %v3677 = vadd.f32 %v3460, %v3659
    %v3678 = vadd.f32 %v3461, %v3661
    %v3679 = vadd.f32 %v3462, %v3663
    %v3680 = vld [vmem:[#allocation2 + $0x10] sm:$0xf0]
    %v3681 = vld [vmem:[#allocation2 + $0x40] sm:$0xf]
    %v3682 = vld [vmem:[#allocation2 + $0x58] sm:$0xf0]
    %v3683 = vld [vmem:[#allocation2 + $0x88] sm:$0xf]
    %v3684 = vlaneseq
    %v3685 = vshrl.u32 %v3684, 7
    %v3686 = vsub.s32 5, %v3685
    %v3687 = vrot.slane %v350, %v3686
    %v3688 = vlaneseq
    %v3689 = vshrl.u32 %v3688, 7
    %v3690 = vsub.s32 5, %v3689
    %v3691 = vrot.slane %v351, %v3690
    %3694 = vrot.lane.b32.xlu0 %v3687, 16
    %v3695 = vpop.permute.xlu0 %3694
    %3696 = vrot.lane.b32.xlu0 %v3691, 16
    %v3697 = vpop.permute.xlu0 %3696
    %v3698 = vsel %vm400, %v3695, %v3697
    %v3702 = vmul.f32 %v3603, %v3695
    %v3703 = vmul.f32 %v3604, %v3698
    %v3704 = vmul.f32 %v3680, %v3697
    %v3705 = vmul.f32 %v360, %v3695
    %v3706 = vmul.f32 %v361, %v3698
    %v3707 = vmul.f32 %v383, %v3697
    %v3708 = vmul.f32 %v3605, %v3695
    %v3709 = vmul.f32 %v3606, %v3698
    %v3710 = vmul.f32 %v3681, %v3697
    %v3711 = vmul.f32 %v3607, %v3695
    %v3712 = vmul.f32 %v3608, %v3698
    %v3713 = vmul.f32 %v3682, %v3697
    %v3714 = vmul.f32 %v364, %v3695
    %v3715 = vmul.f32 %v365, %v3698
    %v3716 = vmul.f32 %v385, %v3697
    %v3717 = vmul.f32 %v3609, %v3695
    %v3718 = vmul.f32 %v3610, %v3698
    %v3719 = vmul.f32 %v3683, %v3697
    %v3738 = vrot.slane %v3702, 4
    %v3739 = vrot.slane %v3705, 4
    %v3740 = vsel %vm3643, %v3738, %v3739
    %v3741 = vrot.slane %v3703, 4
    %v3742 = vrot.slane %v3706, 4
    %v3743 = vsel %vm3643, %v3741, %v3742
    %v3744 = vrot.slane %v3704, 4
    %v3745 = vrot.slane %v3707, 4
    %v3746 = vsel %vm3643, %v3744, %v3745
    %v3747 = vrot.slane %v3708, 4
    %v3748 = vsel %vm3643, %v3739, %v3747
    %v3749 = vrot.slane %v3709, 4
    %v3750 = vsel %vm3643, %v3742, %v3749
    %v3751 = vrot.slane %v3710, 4
    %v3752 = vsel %vm3643, %v3745, %v3751
    %v3753 = vrot.slane %v3711, 4
    %v3754 = vrot.slane %v3714, 4
    %v3755 = vsel %vm3643, %v3753, %v3754
    %v3756 = vrot.slane %v3712, 4
    %v3757 = vrot.slane %v3715, 4
    %v3758 = vsel %vm3643, %v3756, %v3757
    %v3759 = vrot.slane %v3713, 4
    %v3760 = vrot.slane %v3716, 4
    %v3761 = vsel %vm3643, %v3759, %v3760
    %v3762 = vrot.slane %v3717, 4
    %v3763 = vsel %vm3643, %v3754, %v3762
    %v3764 = vrot.slane %v3718, 4
    %v3765 = vsel %vm3643, %v3757, %v3764
    %v3766 = vrot.slane %v3719, 4
    %v3767 = vsel %vm3643, %v3760, %v3766
    %v3780 = vadd.f32 %v3591, %v3740
    %v3781 = vadd.f32 %v3592, %v3743
    %v3782 = vadd.f32 %v3593, %v3746
    %v3783 = vadd.f32 %v3594, %v3748
    %v3784 = vadd.f32 %v3595, %v3750
    %v3785 = vadd.f32 %v3596, %v3752
    %v3786 = vadd.f32 %v3597, %v3755
    %v3787 = vadd.f32 %v3598, %v3758
    %v3788 = vadd.f32 %v3599, %v3761
    %v3789 = vadd.f32 %v3600, %v3763
    %v3790 = vadd.f32 %v3601, %v3765
    %v3791 = vadd.f32 %v3602, %v3767
    %v3792 = vlaneseq
    %v3793 = vshrl.u32 %v3792, 7
    %v3794 = vsub.s32 6, %v3793
    %v3795 = vrot.slane %v350, %v3794
    %v3796 = vlaneseq
    %v3797 = vshrl.u32 %v3796, 7
    %v3798 = vsub.s32 6, %v3797
    %v3799 = vrot.slane %v351, %v3798
    %3802 = vrot.lane.b32.xlu0 %v3795, 32
    %v3803 = vpop.permute.xlu0 %3802
    %3804 = vrot.lane.b32.xlu0 %v3799, 32
    %v3805 = vpop.permute.xlu0 %3804
    %v3806 = vsel %vm431, %v3803, %v3805
    %v3810 = vmul.f32 %v3603, %v3803
    %v3811 = vmul.f32 %v3604, %v3806
    %v3812 = vmul.f32 %v3680, %v3805
    %v3813 = vmul.f32 %v360, %v3803
    %v3814 = vmul.f32 %v361, %v3806
    %v3815 = vmul.f32 %v383, %v3805
    %v3816 = vmul.f32 %v3605, %v3803
    %v3817 = vmul.f32 %v3606, %v3806
    %v3818 = vmul.f32 %v3681, %v3805
    %v3819 = vmul.f32 %v3607, %v3803
    %v3820 = vmul.f32 %v3608, %v3806
    %v3821 = vmul.f32 %v3682, %v3805
    %v3822 = vmul.f32 %v364, %v3803
    %v3823 = vmul.f32 %v365, %v3806
    %v3824 = vmul.f32 %v385, %v3805
    %v3825 = vmul.f32 %v3609, %v3803
    %v3826 = vmul.f32 %v3610, %v3806
    %v3827 = vmul.f32 %v3683, %v3805
    %v3846 = vrot.slane %v3810, 4
    %v3847 = vrot.slane %v3813, 4
    %v3848 = vsel %vm3643, %v3846, %v3847
    %v3849 = vrot.slane %v3811, 4
    %v3850 = vrot.slane %v3814, 4
    %v3851 = vsel %vm3643, %v3849, %v3850
    %v3852 = vrot.slane %v3812, 4
    %v3853 = vrot.slane %v3815, 4
    %v3854 = vsel %vm3643, %v3852, %v3853
    %v3855 = vrot.slane %v3816, 4
    %v3856 = vsel %vm3643, %v3847, %v3855
    %v3857 = vrot.slane %v3817, 4
    %v3858 = vsel %vm3643, %v3850, %v3857
    %v3859 = vrot.slane %v3818, 4
    %v3860 = vsel %vm3643, %v3853, %v3859
    %v3861 = vrot.slane %v3819, 4
    %v3862 = vrot.slane %v3822, 4
    %v3863 = vsel %vm3643, %v3861, %v3862
    %v3864 = vrot.slane %v3820, 4
    %v3865 = vrot.slane %v3823, 4
    %v3866 = vsel %vm3643, %v3864, %v3865
    %v3867 = vrot.slane %v3821, 4
    %v3868 = vrot.slane %v3824, 4
    %v3869 = vsel %vm3643, %v3867, %v3868
    %v3870 = vrot.slane %v3825, 4
    %v3871 = vsel %vm3643, %v3862, %v3870
    %v3872 = vrot.slane %v3826, 4
    %v3873 = vsel %vm3643, %v3865, %v3872
    %v3874 = vrot.slane %v3827, 4
    %v3875 = vsel %vm3643, %v3868, %v3874
    %3876 = vrot.lane.b32.xlu0 %v3848, 96
    %v3877 = vpop.permute.xlu0 %3876
    %3878 = vrot.lane.b32.xlu0 %v3851, 96
    %v3879 = vpop.permute.xlu0 %3878
    %3880 = vrot.lane.b32.xlu0 %v3854, 96
    %v3881 = vpop.permute.xlu0 %3880
    %3882 = vrot.lane.b32.xlu0 %v3856, 96
    %v3883 = vpop.permute.xlu0 %3882
    %3884 = vrot.lane.b32.xlu0 %v3858, 96
    %v3885 = vpop.permute.xlu0 %3884
    %3886 = vrot.lane.b32.xlu0 %v3860, 96
    %v3887 = vpop.permute.xlu0 %3886
    %3888 = vrot.lane.b32.xlu0 %v3863, 96
    %v3889 = vpop.permute.xlu0 %3888
    %3890 = vrot.lane.b32.xlu0 %v3866, 96
    %v3891 = vpop.permute.xlu0 %3890
    %3892 = vrot.lane.b32.xlu0 %v3869, 96
    %v3893 = vpop.permute.xlu0 %3892
    %3894 = vrot.lane.b32.xlu0 %v3871, 96
    %v3895 = vpop.permute.xlu0 %3894
    %3896 = vrot.lane.b32.xlu0 %v3873, 96
    %v3897 = vpop.permute.xlu0 %3896
    %3898 = vrot.lane.b32.xlu0 %v3875, 96
    %v3899 = vpop.permute.xlu0 %3898
    %v3900 = vsel %vm484, %v3877, %v3879
    %v3901 = vsel %vm484, %v3879, %v3881
    %v3902 = vsel %vm484, %v3883, %v3885
    %v3903 = vsel %vm484, %v3885, %v3887
    %v3904 = vsel %vm484, %v3889, %v3891
    %v3905 = vsel %vm484, %v3891, %v3893
    %v3906 = vsel %vm484, %v3895, %v3897
    %v3907 = vsel %vm484, %v3897, %v3899
    %v3916 = vadd.f32 %v3672, %v3900
    %v3917 = vadd.f32 %v3673, %v3901
    %v3918 = vadd.f32 %v3674, %v3902
    %v3919 = vadd.f32 %v3675, %v3903
    %v3920 = vadd.f32 %v3676, %v3904
    %v3921 = vadd.f32 %v3677, %v3905
    %v3922 = vadd.f32 %v3678, %v3906
    %v3923 = vadd.f32 %v3679, %v3907
    %v3924 = vlaneseq
    %v3925 = vshrl.u32 %v3924, 7
    %v3926 = vsub.s32 7, %v3925
    %v3927 = vrot.slane %v350, %v3926
    %v3928 = vlaneseq
    %v3929 = vshrl.u32 %v3928, 7
    %v3930 = vsub.s32 7, %v3929
    %v3931 = vrot.slane %v351, %v3930
    %3934 = vrot.lane.b32.xlu0 %v3927, 48
    %v3935 = vpop.permute.xlu0 %3934
    %3936 = vrot.lane.b32.xlu0 %v3931, 48
    %v3937 = vpop.permute.xlu0 %3936
    %v3938 = vsel %vm143, %v3935, %v3937
    %v3942 = vmul.f32 %v3603, %v3935
    %v3943 = vmul.f32 %v3604, %v3938
    %v3944 = vmul.f32 %v3680, %v3937
    %v3945 = vmul.f32 %v360, %v3935
    %v3946 = vmul.f32 %v361, %v3938
    %v3947 = vmul.f32 %v383, %v3937
    %v3948 = vmul.f32 %v3605, %v3935
    %v3949 = vmul.f32 %v3606, %v3938
    %v3950 = vmul.f32 %v3681, %v3937
    %v3951 = vmul.f32 %v3607, %v3935
    %v3952 = vmul.f32 %v3608, %v3938
    %v3953 = vmul.f32 %v3682, %v3937
    %v3954 = vmul.f32 %v364, %v3935
    %v3955 = vmul.f32 %v365, %v3938
    %v3956 = vmul.f32 %v385, %v3937
    %v3957 = vmul.f32 %v3609, %v3935
    %v3958 = vmul.f32 %v3610, %v3938
    %v3959 = vmul.f32 %v3683, %v3937
    %v3978 = vrot.slane %v3942, 4
    %v3979 = vrot.slane %v3945, 4
    %v3980 = vsel %vm3643, %v3978, %v3979
    %v3981 = vrot.slane %v3943, 4
    %v3982 = vrot.slane %v3946, 4
    %v3983 = vsel %vm3643, %v3981, %v3982
    %v3984 = vrot.slane %v3944, 4
    %v3985 = vrot.slane %v3947, 4
    %v3986 = vsel %vm3643, %v3984, %v3985
    %v3987 = vrot.slane %v3948, 4
    %v3988 = vsel %vm3643, %v3979, %v3987
    %v3989 = vrot.slane %v3949, 4
    %v3990 = vsel %vm3643, %v3982, %v3989
    %v3991 = vrot.slane %v3950, 4
    %v3992 = vsel %vm3643, %v3985, %v3991
    %v3993 = vrot.slane %v3951, 4
    %v3994 = vrot.slane %v3954, 4
    %v3995 = vsel %vm3643, %v3993, %v3994
    %v3996 = vrot.slane %v3952, 4
    %v3997 = vrot.slane %v3955, 4
    %v3998 = vsel %vm3643, %v3996, %v3997
    %v3999 = vrot.slane %v3953, 4
    %v4000 = vrot.slane %v3956, 4
    %v4001 = vsel %vm3643, %v3999, %v4000
    %v4002 = vrot.slane %v3957, 4
    %v4003 = vsel %vm3643, %v3994, %v4002
    %v4004 = vrot.slane %v3958, 4
    %v4005 = vsel %vm3643, %v3997, %v4004
    %v4006 = vrot.slane %v3959, 4
    %v4007 = vsel %vm3643, %v4000, %v4006
    %4008 = vrot.lane.b32.xlu0 %v3980, 96
    %v4009 = vpop.permute.xlu0 %4008
    %4010 = vrot.lane.b32.xlu0 %v3983, 96
    %v4011 = vpop.permute.xlu0 %4010
    %4012 = vrot.lane.b32.xlu0 %v3986, 96
    %v4013 = vpop.permute.xlu0 %4012
    %4014 = vrot.lane.b32.xlu0 %v3988, 96
    %v4015 = vpop.permute.xlu0 %4014
    %4016 = vrot.lane.b32.xlu0 %v3990, 96
    %v4017 = vpop.permute.xlu0 %4016
    %4018 = vrot.lane.b32.xlu0 %v3992, 96
    %v4019 = vpop.permute.xlu0 %4018
    %4020 = vrot.lane.b32.xlu0 %v3995, 96
    %v4021 = vpop.permute.xlu0 %4020
    %4022 = vrot.lane.b32.xlu0 %v3998, 96
    %v4023 = vpop.permute.xlu0 %4022
    %4024 = vrot.lane.b32.xlu0 %v4001, 96
    %v4025 = vpop.permute.xlu0 %4024
    %4026 = vrot.lane.b32.xlu0 %v4003, 96
    %v4027 = vpop.permute.xlu0 %4026
    %4028 = vrot.lane.b32.xlu0 %v4005, 96
    %v4029 = vpop.permute.xlu0 %4028
    %4030 = vrot.lane.b32.xlu0 %v4007, 96
    %v4031 = vpop.permute.xlu0 %4030
    %v4032 = vsel %vm484, %v4009, %v4011
    %v4033 = vsel %vm484, %v4011, %v4013
    %v4034 = vsel %vm484, %v4015, %v4017
    %v4035 = vsel %vm484, %v4017, %v4019
    %v4036 = vsel %vm484, %v4021, %v4023
    %v4037 = vsel %vm484, %v4023, %v4025
    %v4038 = vsel %vm484, %v4027, %v4029
    %v4039 = vsel %vm484, %v4029, %v4031
    %v4052 = vadd.f32 %v3780, %v4032
    %v4053 = vadd.f32 %v3781, %v4033
    %v4054 = vadd.f32 %v3782, %v4013
    %v4055 = vadd.f32 %v3783, %v4034
    %v4056 = vadd.f32 %v3784, %v4035
    %v4057 = vadd.f32 %v3785, %v4019
    %v4058 = vadd.f32 %v3786, %v4036
    %v4059 = vadd.f32 %v3787, %v4037
    %v4060 = vadd.f32 %v3788, %v4025
    %v4061 = vadd.f32 %v3789, %v4038
    %v4062 = vadd.f32 %v3790, %v4039
    %v4063 = vadd.f32 %v3791, %v4031
    %v4064 = vlaneseq
    %v4065 = vshrl.u32 %v4064, 7
    %v4066 = vsub.s32 0, %v4065
    %v4067 = vrot.slane %v352, %v4066
    %v4068 = vlaneseq
    %v4069 = vshrl.u32 %v4068, 7
    %v4070 = vsub.s32 0, %v4069
    %v4071 = vrot.slane %v353, %v4070
    %4074 = vrot.lane.b32.xlu0 %v4067, 64
    %v4075 = vpop.permute.xlu0 %4074
    %4076 = vrot.lane.b32.xlu0 %v4071, 64
    %v4077 = vpop.permute.xlu0 %4076
    %v4078 = vsel %vm621, %v4075, %v4077
    %v4082 = vmul.f32 %v3603, %v4075
    %v4083 = vmul.f32 %v3604, %v4078
    %v4084 = vmul.f32 %v3680, %v4077
    %v4085 = vmul.f32 %v360, %v4075
    %v4086 = vmul.f32 %v361, %v4078
    %v4087 = vmul.f32 %v383, %v4077
    %v4088 = vmul.f32 %v3605, %v4075
    %v4089 = vmul.f32 %v3606, %v4078
    %v4090 = vmul.f32 %v3681, %v4077
    %v4091 = vmul.f32 %v3607, %v4075
    %v4092 = vmul.f32 %v3608, %v4078
    %v4093 = vmul.f32 %v3682, %v4077
    %v4094 = vmul.f32 %v364, %v4075
    %v4095 = vmul.f32 %v365, %v4078
    %v4096 = vmul.f32 %v385, %v4077
    %v4097 = vmul.f32 %v3609, %v4075
    %v4098 = vmul.f32 %v3610, %v4078
    %v4099 = vmul.f32 %v3683, %v4077
    %v4118 = vrot.slane %v4082, 4
    %v4119 = vrot.slane %v4085, 4
    %v4120 = vsel %vm3643, %v4118, %v4119
    %v4121 = vrot.slane %v4083, 4
    %v4122 = vrot.slane %v4086, 4
    %v4123 = vsel %vm3643, %v4121, %v4122
    %v4124 = vrot.slane %v4084, 4
    %v4125 = vrot.slane %v4087, 4
    %v4126 = vsel %vm3643, %v4124, %v4125
    %v4127 = vrot.slane %v4088, 4
    %v4128 = vsel %vm3643, %v4119, %v4127
    %v4129 = vrot.slane %v4089, 4
    %v4130 = vsel %vm3643, %v4122, %v4129
    %v4131 = vrot.slane %v4090, 4
    %v4132 = vsel %vm3643, %v4125, %v4131
    %v4133 = vrot.slane %v4091, 4
    %v4134 = vrot.slane %v4094, 4
    %v4135 = vsel %vm3643, %v4133, %v4134
    %v4136 = vrot.slane %v4092, 4
    %v4137 = vrot.slane %v4095, 4
    %v4138 = vsel %vm3643, %v4136, %v4137
    %v4139 = vrot.slane %v4093, 4
    %v4140 = vrot.slane %v4096, 4
    %v4141 = vsel %vm3643, %v4139, %v4140
    %v4142 = vrot.slane %v4097, 4
    %v4143 = vsel %vm3643, %v4134, %v4142
    %v4144 = vrot.slane %v4098, 4
    %v4145 = vsel %vm3643, %v4137, %v4144
    %v4146 = vrot.slane %v4099, 4
    %v4147 = vsel %vm3643, %v4140, %v4146
    %4148 = vrot.lane.b32.xlu0 %v4120, 64
    %v4149 = vpop.permute.xlu0 %4148
    %4150 = vrot.lane.b32.xlu0 %v4123, 64
    %v4151 = vpop.permute.xlu0 %4150
    %4152 = vrot.lane.b32.xlu0 %v4126, 64
    %v4153 = vpop.permute.xlu0 %4152
    %4154 = vrot.lane.b32.xlu0 %v4128, 64
    %v4155 = vpop.permute.xlu0 %4154
    %4156 = vrot.lane.b32.xlu0 %v4130, 64
    %v4157 = vpop.permute.xlu0 %4156
    %4158 = vrot.lane.b32.xlu0 %v4132, 64
    %v4159 = vpop.permute.xlu0 %4158
    %4160 = vrot.lane.b32.xlu0 %v4135, 64
    %v4161 = vpop.permute.xlu0 %4160
    %4162 = vrot.lane.b32.xlu0 %v4138, 64
    %v4163 = vpop.permute.xlu0 %4162
    %4164 = vrot.lane.b32.xlu0 %v4141, 64
    %v4165 = vpop.permute.xlu0 %4164
    %4166 = vrot.lane.b32.xlu0 %v4143, 64
    %v4167 = vpop.permute.xlu0 %4166
    %4168 = vrot.lane.b32.xlu0 %v4145, 64
    %v4169 = vpop.permute.xlu0 %4168
    %4170 = vrot.lane.b32.xlu0 %v4147, 64
    %v4171 = vpop.permute.xlu0 %4170
    %v4172 = vsel %vm621, %v4149, %v4151
    %v4173 = vsel %vm621, %v4151, %v4153
    %v4174 = vsel %vm621, %v4155, %v4157
    %v4175 = vsel %vm621, %v4157, %v4159
    %v4176 = vsel %vm621, %v4161, %v4163
    %v4177 = vsel %vm621, %v4163, %v4165
    %v4178 = vsel %vm621, %v4167, %v4169
    %v4179 = vsel %vm621, %v4169, %v4171
    %v4188 = vadd.f32 %v3916, %v4172
    %v4189 = vadd.f32 %v3917, %v4173
    %v4190 = vadd.f32 %v3918, %v4174
    %v4191 = vadd.f32 %v3919, %v4175
    %v4192 = vadd.f32 %v3920, %v4176
    %v4193 = vadd.f32 %v3921, %v4177
    %v4194 = vadd.f32 %v3922, %v4178
    %v4195 = vadd.f32 %v3923, %v4179
    %v4196 = vlaneseq
    %v4197 = vshrl.u32 %v4196, 7
    %v4198 = vsub.s32 1, %v4197
    %v4199 = vrot.slane %v352, %v4198
    %v4200 = vlaneseq
    %v4201 = vshrl.u32 %v4200, 7
    %v4202 = vsub.s32 1, %v4201
    %v4203 = vrot.slane %v353, %v4202
    %4206 = vrot.lane.b32.xlu0 %v4199, 80
    %v4207 = vpop.permute.xlu0 %4206
    %4208 = vrot.lane.b32.xlu0 %v4203, 80
    %v4209 = vpop.permute.xlu0 %4208
    %v4210 = vsel %vm712, %v4207, %v4209
    %v4214 = vmul.f32 %v3603, %v4207
    %v4215 = vmul.f32 %v3604, %v4210
    %v4216 = vmul.f32 %v3680, %v4209
    %v4217 = vmul.f32 %v360, %v4207
    %v4218 = vmul.f32 %v361, %v4210
    %v4219 = vmul.f32 %v383, %v4209
    %v4220 = vmul.f32 %v3605, %v4207
    %v4221 = vmul.f32 %v3606, %v4210
    %v4222 = vmul.f32 %v3681, %v4209
    %v4223 = vmul.f32 %v3607, %v4207
    %v4224 = vmul.f32 %v3608, %v4210
    %v4225 = vmul.f32 %v3682, %v4209
    %v4226 = vmul.f32 %v364, %v4207
    %v4227 = vmul.f32 %v365, %v4210
    %v4228 = vmul.f32 %v385, %v4209
    %v4229 = vmul.f32 %v3609, %v4207
    %v4230 = vmul.f32 %v3610, %v4210
    %v4231 = vmul.f32 %v3683, %v4209
    %v4250 = vrot.slane %v4214, 4
    %v4251 = vrot.slane %v4217, 4
    %v4252 = vsel %vm3643, %v4250, %v4251
    %v4253 = vrot.slane %v4215, 4
    %v4254 = vrot.slane %v4218, 4
    %v4255 = vsel %vm3643, %v4253, %v4254
    %v4256 = vrot.slane %v4216, 4
    %v4257 = vrot.slane %v4219, 4
    %v4258 = vsel %vm3643, %v4256, %v4257
    %v4259 = vrot.slane %v4220, 4
    %v4260 = vsel %vm3643, %v4251, %v4259
    %v4261 = vrot.slane %v4221, 4
    %v4262 = vsel %vm3643, %v4254, %v4261
    %v4263 = vrot.slane %v4222, 4
    %v4264 = vsel %vm3643, %v4257, %v4263
    %v4265 = vrot.slane %v4223, 4
    %v4266 = vrot.slane %v4226, 4
    %v4267 = vsel %vm3643, %v4265, %v4266
    %v4268 = vrot.slane %v4224, 4
    %v4269 = vrot.slane %v4227, 4
    %v4270 = vsel %vm3643, %v4268, %v4269
    %v4271 = vrot.slane %v4225, 4
    %v4272 = vrot.slane %v4228, 4
    %v4273 = vsel %vm3643, %v4271, %v4272
    %v4274 = vrot.slane %v4229, 4
    %v4275 = vsel %vm3643, %v4266, %v4274
    %v4276 = vrot.slane %v4230, 4
    %v4277 = vsel %vm3643, %v4269, %v4276
    %v4278 = vrot.slane %v4231, 4
    %v4279 = vsel %vm3643, %v4272, %v4278
    %4280 = vrot.lane.b32.xlu0 %v4252, 64
    %v4281 = vpop.permute.xlu0 %4280
    %4282 = vrot.lane.b32.xlu0 %v4255, 64
    %v4283 = vpop.permute.xlu0 %4282
    %4284 = vrot.lane.b32.xlu0 %v4258, 64
    %v4285 = vpop.permute.xlu0 %4284
    %4286 = vrot.lane.b32.xlu0 %v4260, 64
    %v4287 = vpop.permute.xlu0 %4286
    %4288 = vrot.lane.b32.xlu0 %v4262, 64
    %v4289 = vpop.permute.xlu0 %4288
    %4290 = vrot.lane.b32.xlu0 %v4264, 64
    %v4291 = vpop.permute.xlu0 %4290
    %4292 = vrot.lane.b32.xlu0 %v4267, 64
    %v4293 = vpop.permute.xlu0 %4292
    %4294 = vrot.lane.b32.xlu0 %v4270, 64
    %v4295 = vpop.permute.xlu0 %4294
    %4296 = vrot.lane.b32.xlu0 %v4273, 64
    %v4297 = vpop.permute.xlu0 %4296
    %4298 = vrot.lane.b32.xlu0 %v4275, 64
    %v4299 = vpop.permute.xlu0 %4298
    %4300 = vrot.lane.b32.xlu0 %v4277, 64
    %v4301 = vpop.permute.xlu0 %4300
    %4302 = vrot.lane.b32.xlu0 %v4279, 64
    %v4303 = vpop.permute.xlu0 %4302
    %v4304 = vsel %vm621, %v4281, %v4283
    %v4305 = vsel %vm621, %v4283, %v4285
    %v4306 = vsel %vm621, %v4287, %v4289
    %v4307 = vsel %vm621, %v4289, %v4291
    %v4308 = vsel %vm621, %v4293, %v4295
    %v4309 = vsel %vm621, %v4295, %v4297
    %v4310 = vsel %vm621, %v4299, %v4301
    %v4311 = vsel %vm621, %v4301, %v4303
    %v4324 = vadd.f32 %v4052, %v4304
    %v4325 = vadd.f32 %v4053, %v4305
    %v4326 = vadd.f32 %v4054, %v4285
    %v4327 = vadd.f32 %v4055, %v4306
    %v4328 = vadd.f32 %v4056, %v4307
    %v4329 = vadd.f32 %v4057, %v4291
    %v4330 = vadd.f32 %v4058, %v4308
    %v4331 = vadd.f32 %v4059, %v4309
    %v4332 = vadd.f32 %v4060, %v4297
    %v4333 = vadd.f32 %v4061, %v4310
    %v4334 = vadd.f32 %v4062, %v4311
    %v4335 = vadd.f32 %v4063, %v4303
    %v4336 = vlaneseq
    %v4337 = vshrl.u32 %v4336, 7
    %v4338 = vsub.s32 2, %v4337
    %v4339 = vrot.slane %v352, %v4338
    %v4340 = vlaneseq
    %v4341 = vshrl.u32 %v4340, 7
    %v4342 = vsub.s32 2, %v4341
    %v4343 = vrot.slane %v353, %v4342
    %4346 = vrot.lane.b32.xlu0 %v4339, 96
    %v4347 = vpop.permute.xlu0 %4346
    %4348 = vrot.lane.b32.xlu0 %v4343, 96
    %v4349 = vpop.permute.xlu0 %4348
    %v4350 = vsel %vm484, %v4347, %v4349
    %v4354 = vmul.f32 %v3603, %v4347
    %v4355 = vmul.f32 %v3604, %v4350
    %v4356 = vmul.f32 %v3680, %v4349
    %v4357 = vmul.f32 %v360, %v4347
    %v4358 = vmul.f32 %v361, %v4350
    %v4359 = vmul.f32 %v383, %v4349
    %v4360 = vmul.f32 %v3605, %v4347
    %v4361 = vmul.f32 %v3606, %v4350
    %v4362 = vmul.f32 %v3681, %v4349
    %v4363 = vmul.f32 %v3607, %v4347
    %v4364 = vmul.f32 %v3608, %v4350
    %v4365 = vmul.f32 %v3682, %v4349
    %v4366 = vmul.f32 %v364, %v4347
    %v4367 = vmul.f32 %v365, %v4350
    %v4368 = vmul.f32 %v385, %v4349
    %v4369 = vmul.f32 %v3609, %v4347
    %v4370 = vmul.f32 %v3610, %v4350
    %v4371 = vmul.f32 %v3683, %v4349
    %v4390 = vrot.slane %v4354, 4
    %v4391 = vrot.slane %v4357, 4
    %v4392 = vsel %vm3643, %v4390, %v4391
    %v4393 = vrot.slane %v4355, 4
    %v4394 = vrot.slane %v4358, 4
    %v4395 = vsel %vm3643, %v4393, %v4394
    %v4396 = vrot.slane %v4356, 4
    %v4397 = vrot.slane %v4359, 4
    %v4398 = vsel %vm3643, %v4396, %v4397
    %v4399 = vrot.slane %v4360, 4
    %v4400 = vsel %vm3643, %v4391, %v4399
    %v4401 = vrot.slane %v4361, 4
    %v4402 = vsel %vm3643, %v4394, %v4401
    %v4403 = vrot.slane %v4362, 4
    %v4404 = vsel %vm3643, %v4397, %v4403
    %v4405 = vrot.slane %v4363, 4
    %v4406 = vrot.slane %v4366, 4
    %v4407 = vsel %vm3643, %v4405, %v4406
    %v4408 = vrot.slane %v4364, 4
    %v4409 = vrot.slane %v4367, 4
    %v4410 = vsel %vm3643, %v4408, %v4409
    %v4411 = vrot.slane %v4365, 4
    %v4412 = vrot.slane %v4368, 4
    %v4413 = vsel %vm3643, %v4411, %v4412
    %v4414 = vrot.slane %v4369, 4
    %v4415 = vsel %vm3643, %v4406, %v4414
    %v4416 = vrot.slane %v4370, 4
    %v4417 = vsel %vm3643, %v4409, %v4416
    %v4418 = vrot.slane %v4371, 4
    %v4419 = vsel %vm3643, %v4412, %v4418
    %4420 = vrot.lane.b32.xlu0 %v4392, 32
    %v4421 = vpop.permute.xlu0 %4420
    %4422 = vrot.lane.b32.xlu0 %v4395, 32
    %v4423 = vpop.permute.xlu0 %4422
    %4424 = vrot.lane.b32.xlu0 %v4398, 32
    %v4425 = vpop.permute.xlu0 %4424
    %4426 = vrot.lane.b32.xlu0 %v4400, 32
    %v4427 = vpop.permute.xlu0 %4426
    %4428 = vrot.lane.b32.xlu0 %v4402, 32
    %v4429 = vpop.permute.xlu0 %4428
    %4430 = vrot.lane.b32.xlu0 %v4404, 32
    %v4431 = vpop.permute.xlu0 %4430
    %4432 = vrot.lane.b32.xlu0 %v4407, 32
    %v4433 = vpop.permute.xlu0 %4432
    %4434 = vrot.lane.b32.xlu0 %v4410, 32
    %v4435 = vpop.permute.xlu0 %4434
    %4436 = vrot.lane.b32.xlu0 %v4413, 32
    %v4437 = vpop.permute.xlu0 %4436
    %4438 = vrot.lane.b32.xlu0 %v4415, 32
    %v4439 = vpop.permute.xlu0 %4438
    %4440 = vrot.lane.b32.xlu0 %v4417, 32
    %v4441 = vpop.permute.xlu0 %4440
    %4442 = vrot.lane.b32.xlu0 %v4419, 32
    %v4443 = vpop.permute.xlu0 %4442
    %v4444 = vsel %vm431, %v4421, %v4423
    %v4445 = vsel %vm431, %v4423, %v4425
    %v4446 = vsel %vm431, %v4427, %v4429
    %v4447 = vsel %vm431, %v4429, %v4431
    %v4448 = vsel %vm431, %v4433, %v4435
    %v4449 = vsel %vm431, %v4435, %v4437
    %v4450 = vsel %vm431, %v4439, %v4441
    %v4451 = vsel %vm431, %v4441, %v4443
    %v4460 = vadd.f32 %v4188, %v4444
    %v4461 = vadd.f32 %v4189, %v4445
    %v4462 = vadd.f32 %v4190, %v4446
    %v4463 = vadd.f32 %v4191, %v4447
    %v4464 = vadd.f32 %v4192, %v4448
    %v4465 = vadd.f32 %v4193, %v4449
    %v4466 = vadd.f32 %v4194, %v4450
    %v4467 = vadd.f32 %v4195, %v4451
    %v4468 = vld [vmem:[#allocation2] sm:$0xe0]
    %v4469 = vld [vmem:[#allocation2 + $0x8] sm:$0xe0]
    %v4470 = vld [vmem:[#allocation2 + $0x30] sm:$0x1f]
    %v4471 = vld [vmem:[#allocation2 + $0x38] sm:$0x1f]
    %v4472 = vld [vmem:[#allocation2 + $0x48] sm:$0xe0]
    %v4473 = vld [vmem:[#allocation2 + $0x50] sm:$0xe0]
    %v4474 = vld [vmem:[#allocation2 + $0x78] sm:$0x1f]
    %v4475 = vld [vmem:[#allocation2 + $0x80] sm:$0x1f]
    %v4476 = vlaneseq
    %v4477 = vshrl.u32 %v4476, 7
    %v4478 = vsub.s32 3, %v4477
    %v4479 = vrot.slane %v352, %v4478
    %v4480 = vlaneseq
    %v4481 = vshrl.u32 %v4480, 7
    %v4482 = vsub.s32 3, %v4481
    %v4483 = vrot.slane %v353, %v4482
    %v4484 = vmul.f32 %v4468, %v4479
    %v4485 = vmul.f32 %v4469, %v4483
    %v4486 = vmul.f32 %v360, %v4479
    %v4487 = vmul.f32 %v361, %v4483
    %v4488 = vmul.f32 %v4470, %v4479
    %v4489 = vmul.f32 %v4471, %v4483
    %v4490 = vmul.f32 %v4472, %v4479
    %v4491 = vmul.f32 %v4473, %v4483
    %v4492 = vmul.f32 %v364, %v4479
    %v4493 = vmul.f32 %v365, %v4483
    %v4494 = vmul.f32 %v4474, %v4479
    %v4495 = vmul.f32 %v4475, %v4483
    %v4508 = vrot.slane %v4484, 5
    %v4509 = vrot.slane %v4486, 5
    %v4510 = vsel %vm106, %v4508, %v4509
    %v4511 = vrot.slane %v4485, 5
    %v4512 = vrot.slane %v4487, 5
    %v4513 = vsel %vm106, %v4511, %v4512
    %v4514 = vrot.slane %v4488, 5
    %v4515 = vsel %vm106, %v4509, %v4514
    %v4516 = vrot.slane %v4489, 5
    %v4517 = vsel %vm106, %v4512, %v4516
    %v4518 = vrot.slane %v4490, 5
    %v4519 = vrot.slane %v4492, 5
    %v4520 = vsel %vm106, %v4518, %v4519
    %v4521 = vrot.slane %v4491, 5
    %v4522 = vrot.slane %v4493, 5
    %v4523 = vsel %vm106, %v4521, %v4522
    %v4524 = vrot.slane %v4494, 5
    %v4525 = vsel %vm106, %v4519, %v4524
    %v4526 = vrot.slane %v4495, 5
    %v4527 = vsel %vm106, %v4522, %v4526
    %4528 = vrot.lane.b32.xlu0 %v4510, 16
    %v4529 = vpop.permute.xlu0 %4528
    %4530 = vrot.lane.b32.xlu0 %v4513, 16
    %v4531 = vpop.permute.xlu0 %4530
    %4532 = vrot.lane.b32.xlu0 %v4515, 16
    %v4533 = vpop.permute.xlu0 %4532
    %4534 = vrot.lane.b32.xlu0 %v4517, 16
    %v4535 = vpop.permute.xlu0 %4534
    %4536 = vrot.lane.b32.xlu0 %v4520, 16
    %v4537 = vpop.permute.xlu0 %4536
    %4538 = vrot.lane.b32.xlu0 %v4523, 16
    %v4539 = vpop.permute.xlu0 %4538
    %4540 = vrot.lane.b32.xlu0 %v4525, 16
    %v4541 = vpop.permute.xlu0 %4540
    %4542 = vrot.lane.b32.xlu0 %v4527, 16
    %v4543 = vpop.permute.xlu0 %4542
    %v4544 = vsel %vm400, %v4529, %v4531
    %v4545 = vsel %vm400, %v4533, %v4535
    %v4546 = vsel %vm400, %v4537, %v4539
    %v4547 = vsel %vm400, %v4541, %v4543
    %v4560 = vadd.f32 %v4324, %v4529
    %v4561 = vadd.f32 %v4325, %v4544
    %v4562 = vadd.f32 %v4326, %v4531
    %v4563 = vadd.f32 %v4327, %v4533
    %v4564 = vadd.f32 %v4328, %v4545
    %v4565 = vadd.f32 %v4329, %v4535
    %v4566 = vadd.f32 %v4330, %v4537
    %v4567 = vadd.f32 %v4331, %v4546
    %v4568 = vadd.f32 %v4332, %v4539
    %v4569 = vadd.f32 %v4333, %v4541
    %v4570 = vadd.f32 %v4334, %v4547
    %v4571 = vadd.f32 %v4335, %v4543
    %v4572 = vld [vmem:[#allocation2 + $0x10] sm:$0xe0]
    %v4573 = vld [vmem:[#allocation2 + $0x40] sm:$0x1f]
    %v4574 = vld [vmem:[#allocation2 + $0x58] sm:$0xe0]
    %v4575 = vld [vmem:[#allocation2 + $0x88] sm:$0x1f]
    %v4576 = vlaneseq
    %v4577 = vshrl.u32 %v4576, 7
    %v4578 = vsub.s32 4, %v4577
    %v4579 = vrot.slane %v352, %v4578
    %v4580 = vlaneseq
    %v4581 = vshrl.u32 %v4580, 7
    %v4582 = vsub.s32 4, %v4581
    %v4583 = vrot.slane %v353, %v4582
    %4586 = vrot.lane.b32.xlu0 %v4579, 16
    %v4587 = vpop.permute.xlu0 %4586
    %4588 = vrot.lane.b32.xlu0 %v4583, 16
    %v4589 = vpop.permute.xlu0 %4588
    %v4590 = vsel %vm400, %v4587, %v4589
    %v4594 = vmul.f32 %v4468, %v4587
    %v4595 = vmul.f32 %v4469, %v4590
    %v4596 = vmul.f32 %v4572, %v4589
    %v4597 = vmul.f32 %v360, %v4587
    %v4598 = vmul.f32 %v361, %v4590
    %v4599 = vmul.f32 %v383, %v4589
    %v4600 = vmul.f32 %v4470, %v4587
    %v4601 = vmul.f32 %v4471, %v4590
    %v4602 = vmul.f32 %v4573, %v4589
    %v4603 = vmul.f32 %v4472, %v4587
    %v4604 = vmul.f32 %v4473, %v4590
    %v4605 = vmul.f32 %v4574, %v4589
    %v4606 = vmul.f32 %v364, %v4587
    %v4607 = vmul.f32 %v365, %v4590
    %v4608 = vmul.f32 %v385, %v4589
    %v4609 = vmul.f32 %v4474, %v4587
    %v4610 = vmul.f32 %v4475, %v4590
    %v4611 = vmul.f32 %v4575, %v4589
    %v4630 = vrot.slane %v4594, 5
    %v4631 = vrot.slane %v4597, 5
    %v4632 = vsel %vm106, %v4630, %v4631
    %v4633 = vrot.slane %v4595, 5
    %v4634 = vrot.slane %v4598, 5
    %v4635 = vsel %vm106, %v4633, %v4634
    %v4636 = vrot.slane %v4596, 5
    %v4637 = vrot.slane %v4599, 5
    %v4638 = vsel %vm106, %v4636, %v4637
    %v4639 = vrot.slane %v4600, 5
    %v4640 = vsel %vm106, %v4631, %v4639
    %v4641 = vrot.slane %v4601, 5
    %v4642 = vsel %vm106, %v4634, %v4641
    %v4643 = vrot.slane %v4602, 5
    %v4644 = vsel %vm106, %v4637, %v4643
    %v4645 = vrot.slane %v4603, 5
    %v4646 = vrot.slane %v4606, 5
    %v4647 = vsel %vm106, %v4645, %v4646
    %v4648 = vrot.slane %v4604, 5
    %v4649 = vrot.slane %v4607, 5
    %v4650 = vsel %vm106, %v4648, %v4649
    %v4651 = vrot.slane %v4605, 5
    %v4652 = vrot.slane %v4608, 5
    %v4653 = vsel %vm106, %v4651, %v4652
    %v4654 = vrot.slane %v4609, 5
    %v4655 = vsel %vm106, %v4646, %v4654
    %v4656 = vrot.slane %v4610, 5
    %v4657 = vsel %vm106, %v4649, %v4656
    %v4658 = vrot.slane %v4611, 5
    %v4659 = vsel %vm106, %v4652, %v4658
    %4660 = vrot.lane.b32.xlu0 %v4632, 112
    %v4661 = vpop.permute.xlu0 %4660
    %4662 = vrot.lane.b32.xlu0 %v4635, 112
    %v4663 = vpop.permute.xlu0 %4662
    %4664 = vrot.lane.b32.xlu0 %v4638, 112
    %v4665 = vpop.permute.xlu0 %4664
    %4666 = vrot.lane.b32.xlu0 %v4640, 112
    %v4667 = vpop.permute.xlu0 %4666
    %4668 = vrot.lane.b32.xlu0 %v4642, 112
    %v4669 = vpop.permute.xlu0 %4668
    %4670 = vrot.lane.b32.xlu0 %v4644, 112
    %v4671 = vpop.permute.xlu0 %4670
    %4672 = vrot.lane.b32.xlu0 %v4647, 112
    %v4673 = vpop.permute.xlu0 %4672
    %4674 = vrot.lane.b32.xlu0 %v4650, 112
    %v4675 = vpop.permute.xlu0 %4674
    %4676 = vrot.lane.b32.xlu0 %v4653, 112
    %v4677 = vpop.permute.xlu0 %4676
    %4678 = vrot.lane.b32.xlu0 %v4655, 112
    %v4679 = vpop.permute.xlu0 %4678
    %4680 = vrot.lane.b32.xlu0 %v4657, 112
    %v4681 = vpop.permute.xlu0 %4680
    %4682 = vrot.lane.b32.xlu0 %v4659, 112
    %v4683 = vpop.permute.xlu0 %4682
    %v4684 = vsel %vm1104, %v4661, %v4663
    %v4685 = vsel %vm1104, %v4663, %v4665
    %v4686 = vsel %vm1104, %v4667, %v4669
    %v4687 = vsel %vm1104, %v4669, %v4671
    %v4688 = vsel %vm1104, %v4673, %v4675
    %v4689 = vsel %vm1104, %v4675, %v4677
    %v4690 = vsel %vm1104, %v4679, %v4681
    %v4691 = vsel %vm1104, %v4681, %v4683
    %v4700 = vadd.f32 %v4460, %v4684
    %v4701 = vadd.f32 %v4461, %v4685
    %v4702 = vadd.f32 %v4462, %v4686
    %v4703 = vadd.f32 %v4463, %v4687
    %v4704 = vadd.f32 %v4464, %v4688
    %v4705 = vadd.f32 %v4465, %v4689
    %v4706 = vadd.f32 %v4466, %v4690
    %v4707 = vadd.f32 %v4467, %v4691
    %v4708 = vlaneseq
    %v4709 = vshrl.u32 %v4708, 7
    %v4710 = vsub.s32 5, %v4709
    %v4711 = vrot.slane %v352, %v4710
    %v4712 = vlaneseq
    %v4713 = vshrl.u32 %v4712, 7
    %v4714 = vsub.s32 5, %v4713
    %v4715 = vrot.slane %v353, %v4714
    %4718 = vrot.lane.b32.xlu0 %v4711, 32
    %v4719 = vpop.permute.xlu0 %4718
    %4720 = vrot.lane.b32.xlu0 %v4715, 32
    %v4721 = vpop.permute.xlu0 %4720
    %v4722 = vsel %vm431, %v4719, %v4721
    %v4726 = vmul.f32 %v4468, %v4719
    %v4727 = vmul.f32 %v4469, %v4722
    %v4728 = vmul.f32 %v4572, %v4721
    %v4729 = vmul.f32 %v360, %v4719
    %v4730 = vmul.f32 %v361, %v4722
    %v4731 = vmul.f32 %v383, %v4721
    %v4732 = vmul.f32 %v4470, %v4719
    %v4733 = vmul.f32 %v4471, %v4722
    %v4734 = vmul.f32 %v4573, %v4721
    %v4735 = vmul.f32 %v4472, %v4719
    %v4736 = vmul.f32 %v4473, %v4722
    %v4737 = vmul.f32 %v4574, %v4721
    %v4738 = vmul.f32 %v364, %v4719
    %v4739 = vmul.f32 %v365, %v4722
    %v4740 = vmul.f32 %v385, %v4721
    %v4741 = vmul.f32 %v4474, %v4719
    %v4742 = vmul.f32 %v4475, %v4722
    %v4743 = vmul.f32 %v4575, %v4721
    %v4762 = vrot.slane %v4726, 5
    %v4763 = vrot.slane %v4729, 5
    %v4764 = vsel %vm106, %v4762, %v4763
    %v4765 = vrot.slane %v4727, 5
    %v4766 = vrot.slane %v4730, 5
    %v4767 = vsel %vm106, %v4765, %v4766
    %v4768 = vrot.slane %v4728, 5
    %v4769 = vrot.slane %v4731, 5
    %v4770 = vsel %vm106, %v4768, %v4769
    %v4771 = vrot.slane %v4732, 5
    %v4772 = vsel %vm106, %v4763, %v4771
    %v4773 = vrot.slane %v4733, 5
    %v4774 = vsel %vm106, %v4766, %v4773
    %v4775 = vrot.slane %v4734, 5
    %v4776 = vsel %vm106, %v4769, %v4775
    %v4777 = vrot.slane %v4735, 5
    %v4778 = vrot.slane %v4738, 5
    %v4779 = vsel %vm106, %v4777, %v4778
    %v4780 = vrot.slane %v4736, 5
    %v4781 = vrot.slane %v4739, 5
    %v4782 = vsel %vm106, %v4780, %v4781
    %v4783 = vrot.slane %v4737, 5
    %v4784 = vrot.slane %v4740, 5
    %v4785 = vsel %vm106, %v4783, %v4784
    %v4786 = vrot.slane %v4741, 5
    %v4787 = vsel %vm106, %v4778, %v4786
    %v4788 = vrot.slane %v4742, 5
    %v4789 = vsel %vm106, %v4781, %v4788
    %v4790 = vrot.slane %v4743, 5
    %v4791 = vsel %vm106, %v4784, %v4790
    %4792 = vrot.lane.b32.xlu0 %v4764, 112
    %v4793 = vpop.permute.xlu0 %4792
    %4794 = vrot.lane.b32.xlu0 %v4767, 112
    %v4795 = vpop.permute.xlu0 %4794
    %4796 = vrot.lane.b32.xlu0 %v4770, 112
    %v4797 = vpop.permute.xlu0 %4796
    %4798 = vrot.lane.b32.xlu0 %v4772, 112
    %v4799 = vpop.permute.xlu0 %4798
    %4800 = vrot.lane.b32.xlu0 %v4774, 112
    %v4801 = vpop.permute.xlu0 %4800
    %4802 = vrot.lane.b32.xlu0 %v4776, 112
    %v4803 = vpop.permute.xlu0 %4802
    %4804 = vrot.lane.b32.xlu0 %v4779, 112
    %v4805 = vpop.permute.xlu0 %4804
    %4806 = vrot.lane.b32.xlu0 %v4782, 112
    %v4807 = vpop.permute.xlu0 %4806
    %4808 = vrot.lane.b32.xlu0 %v4785, 112
    %v4809 = vpop.permute.xlu0 %4808
    %4810 = vrot.lane.b32.xlu0 %v4787, 112
    %v4811 = vpop.permute.xlu0 %4810
    %4812 = vrot.lane.b32.xlu0 %v4789, 112
    %v4813 = vpop.permute.xlu0 %4812
    %4814 = vrot.lane.b32.xlu0 %v4791, 112
    %v4815 = vpop.permute.xlu0 %4814
    %v4816 = vsel %vm1104, %v4793, %v4795
    %v4817 = vsel %vm1104, %v4795, %v4797
    %v4818 = vsel %vm1104, %v4799, %v4801
    %v4819 = vsel %vm1104, %v4801, %v4803
    %v4820 = vsel %vm1104, %v4805, %v4807
    %v4821 = vsel %vm1104, %v4807, %v4809
    %v4822 = vsel %vm1104, %v4811, %v4813
    %v4823 = vsel %vm1104, %v4813, %v4815
    %v4836 = vadd.f32 %v4560, %v4816
    %v4837 = vadd.f32 %v4561, %v4817
    %v4838 = vadd.f32 %v4562, %v4797
    %v4839 = vadd.f32 %v4563, %v4818
    %v4840 = vadd.f32 %v4564, %v4819
    %v4841 = vadd.f32 %v4565, %v4803
    %v4842 = vadd.f32 %v4566, %v4820
    %v4843 = vadd.f32 %v4567, %v4821
    %v4844 = vadd.f32 %v4568, %v4809
    %v4845 = vadd.f32 %v4569, %v4822
    %v4846 = vadd.f32 %v4570, %v4823
    %v4847 = vadd.f32 %v4571, %v4815
    %v4848 = vlaneseq
    %v4849 = vshrl.u32 %v4848, 7
    %v4850 = vsub.s32 6, %v4849
    %v4851 = vrot.slane %v352, %v4850
    %v4852 = vlaneseq
    %v4853 = vshrl.u32 %v4852, 7
    %v4854 = vsub.s32 6, %v4853
    %v4855 = vrot.slane %v353, %v4854
    %4858 = vrot.lane.b32.xlu0 %v4851, 48
    %v4859 = vpop.permute.xlu0 %4858
    %4860 = vrot.lane.b32.xlu0 %v4855, 48
    %v4861 = vpop.permute.xlu0 %4860
    %v4862 = vsel %vm143, %v4859, %v4861
    %v4866 = vmul.f32 %v4468, %v4859
    %v4867 = vmul.f32 %v4469, %v4862
    %v4868 = vmul.f32 %v4572, %v4861
    %v4869 = vmul.f32 %v360, %v4859
    %v4870 = vmul.f32 %v361, %v4862
    %v4871 = vmul.f32 %v383, %v4861
    %v4872 = vmul.f32 %v4470, %v4859
    %v4873 = vmul.f32 %v4471, %v4862
    %v4874 = vmul.f32 %v4573, %v4861
    %v4875 = vmul.f32 %v4472, %v4859
    %v4876 = vmul.f32 %v4473, %v4862
    %v4877 = vmul.f32 %v4574, %v4861
    %v4878 = vmul.f32 %v364, %v4859
    %v4879 = vmul.f32 %v365, %v4862
    %v4880 = vmul.f32 %v385, %v4861
    %v4881 = vmul.f32 %v4474, %v4859
    %v4882 = vmul.f32 %v4475, %v4862
    %v4883 = vmul.f32 %v4575, %v4861
    %v4902 = vrot.slane %v4866, 5
    %v4903 = vrot.slane %v4869, 5
    %v4904 = vsel %vm106, %v4902, %v4903
    %v4905 = vrot.slane %v4867, 5
    %v4906 = vrot.slane %v4870, 5
    %v4907 = vsel %vm106, %v4905, %v4906
    %v4908 = vrot.slane %v4868, 5
    %v4909 = vrot.slane %v4871, 5
    %v4910 = vsel %vm106, %v4908, %v4909
    %v4911 = vrot.slane %v4872, 5
    %v4912 = vsel %vm106, %v4903, %v4911
    %v4913 = vrot.slane %v4873, 5
    %v4914 = vsel %vm106, %v4906, %v4913
    %v4915 = vrot.slane %v4874, 5
    %v4916 = vsel %vm106, %v4909, %v4915
    %v4917 = vrot.slane %v4875, 5
    %v4918 = vrot.slane %v4878, 5
    %v4919 = vsel %vm106, %v4917, %v4918
    %v4920 = vrot.slane %v4876, 5
    %v4921 = vrot.slane %v4879, 5
    %v4922 = vsel %vm106, %v4920, %v4921
    %v4923 = vrot.slane %v4877, 5
    %v4924 = vrot.slane %v4880, 5
    %v4925 = vsel %vm106, %v4923, %v4924
    %v4926 = vrot.slane %v4881, 5
    %v4927 = vsel %vm106, %v4918, %v4926
    %v4928 = vrot.slane %v4882, 5
    %v4929 = vsel %vm106, %v4921, %v4928
    %v4930 = vrot.slane %v4883, 5
    %v4931 = vsel %vm106, %v4924, %v4930
    %4932 = vrot.lane.b32.xlu0 %v4904, 80
    %v4933 = vpop.permute.xlu0 %4932
    %4934 = vrot.lane.b32.xlu0 %v4907, 80
    %v4935 = vpop.permute.xlu0 %4934
    %4936 = vrot.lane.b32.xlu0 %v4910, 80
    %v4937 = vpop.permute.xlu0 %4936
    %4938 = vrot.lane.b32.xlu0 %v4912, 80
    %v4939 = vpop.permute.xlu0 %4938
    %4940 = vrot.lane.b32.xlu0 %v4914, 80
    %v4941 = vpop.permute.xlu0 %4940
    %4942 = vrot.lane.b32.xlu0 %v4916, 80
    %v4943 = vpop.permute.xlu0 %4942
    %4944 = vrot.lane.b32.xlu0 %v4919, 80
    %v4945 = vpop.permute.xlu0 %4944
    %4946 = vrot.lane.b32.xlu0 %v4922, 80
    %v4947 = vpop.permute.xlu0 %4946
    %4948 = vrot.lane.b32.xlu0 %v4925, 80
    %v4949 = vpop.permute.xlu0 %4948
    %4950 = vrot.lane.b32.xlu0 %v4927, 80
    %v4951 = vpop.permute.xlu0 %4950
    %4952 = vrot.lane.b32.xlu0 %v4929, 80
    %v4953 = vpop.permute.xlu0 %4952
    %4954 = vrot.lane.b32.xlu0 %v4931, 80
    %v4955 = vpop.permute.xlu0 %4954
    %v4956 = vsel %vm712, %v4933, %v4935
    %v4957 = vsel %vm712, %v4935, %v4937
    %v4958 = vsel %vm712, %v4939, %v4941
    %v4959 = vsel %vm712, %v4941, %v4943
    %v4960 = vsel %vm712, %v4945, %v4947
    %v4961 = vsel %vm712, %v4947, %v4949
    %v4962 = vsel %vm712, %v4951, %v4953
    %v4963 = vsel %vm712, %v4953, %v4955
    %v4972 = vadd.f32 %v4700, %v4956
    %v4973 = vadd.f32 %v4701, %v4957
    %v4974 = vadd.f32 %v4702, %v4958
    %v4975 = vadd.f32 %v4703, %v4959
    %v4976 = vadd.f32 %v4704, %v4960
    %v4977 = vadd.f32 %v4705, %v4961
    %v4978 = vadd.f32 %v4706, %v4962
    %v4979 = vadd.f32 %v4707, %v4963
    %v4980 = vlaneseq
    %v4981 = vshrl.u32 %v4980, 7
    %v4982 = vsub.s32 7, %v4981
    %v4983 = vrot.slane %v352, %v4982
    %v4984 = vlaneseq
    %v4985 = vshrl.u32 %v4984, 7
    %v4986 = vsub.s32 7, %v4985
    %v4987 = vrot.slane %v353, %v4986
    %4990 = vrot.lane.b32.xlu0 %v4983, 64
    %v4991 = vpop.permute.xlu0 %4990
    %4992 = vrot.lane.b32.xlu0 %v4987, 64
    %v4993 = vpop.permute.xlu0 %4992
    %v4994 = vsel %vm621, %v4991, %v4993
    %v4998 = vmul.f32 %v4468, %v4991
    %v4999 = vmul.f32 %v4469, %v4994
    %v5000 = vmul.f32 %v4572, %v4993
    %v5001 = vmul.f32 %v360, %v4991
    %v5002 = vmul.f32 %v361, %v4994
    %v5003 = vmul.f32 %v383, %v4993
    %v5004 = vmul.f32 %v4470, %v4991
    %v5005 = vmul.f32 %v4471, %v4994
    %v5006 = vmul.f32 %v4573, %v4993
    %v5007 = vmul.f32 %v4472, %v4991
    %v5008 = vmul.f32 %v4473, %v4994
    %v5009 = vmul.f32 %v4574, %v4993
    %v5010 = vmul.f32 %v364, %v4991
    %v5011 = vmul.f32 %v365, %v4994
    %v5012 = vmul.f32 %v385, %v4993
    %v5013 = vmul.f32 %v4474, %v4991
    %v5014 = vmul.f32 %v4475, %v4994
    %v5015 = vmul.f32 %v4575, %v4993
    %v5034 = vrot.slane %v4998, 5
    %v5035 = vrot.slane %v5001, 5
    %v5036 = vsel %vm106, %v5034, %v5035
    %v5037 = vrot.slane %v4999, 5
    %v5038 = vrot.slane %v5002, 5
    %v5039 = vsel %vm106, %v5037, %v5038
    %v5040 = vrot.slane %v5000, 5
    %v5041 = vrot.slane %v5003, 5
    %v5042 = vsel %vm106, %v5040, %v5041
    %v5043 = vrot.slane %v5004, 5
    %v5044 = vsel %vm106, %v5035, %v5043
    %v5045 = vrot.slane %v5005, 5
    %v5046 = vsel %vm106, %v5038, %v5045
    %v5047 = vrot.slane %v5006, 5
    %v5048 = vsel %vm106, %v5041, %v5047
    %v5049 = vrot.slane %v5007, 5
    %v5050 = vrot.slane %v5010, 5
    %v5051 = vsel %vm106, %v5049, %v5050
    %v5052 = vrot.slane %v5008, 5
    %v5053 = vrot.slane %v5011, 5
    %v5054 = vsel %vm106, %v5052, %v5053
    %v5055 = vrot.slane %v5009, 5
    %v5056 = vrot.slane %v5012, 5
    %v5057 = vsel %vm106, %v5055, %v5056
    %v5058 = vrot.slane %v5013, 5
    %v5059 = vsel %vm106, %v5050, %v5058
    %v5060 = vrot.slane %v5014, 5
    %v5061 = vsel %vm106, %v5053, %v5060
    %v5062 = vrot.slane %v5015, 5
    %v5063 = vsel %vm106, %v5056, %v5062
    %5064 = vrot.lane.b32.xlu0 %v5036, 80
    %v5065 = vpop.permute.xlu0 %5064
    %5066 = vrot.lane.b32.xlu0 %v5039, 80
    %v5067 = vpop.permute.xlu0 %5066
    %5068 = vrot.lane.b32.xlu0 %v5042, 80
    %v5069 = vpop.permute.xlu0 %5068
    %5070 = vrot.lane.b32.xlu0 %v5044, 80
    %v5071 = vpop.permute.xlu0 %5070
    %5072 = vrot.lane.b32.xlu0 %v5046, 80
    %v5073 = vpop.permute.xlu0 %5072
    %5074 = vrot.lane.b32.xlu0 %v5048, 80
    %v5075 = vpop.permute.xlu0 %5074
    %5076 = vrot.lane.b32.xlu0 %v5051, 80
    %v5077 = vpop.permute.xlu0 %5076
    %5078 = vrot.lane.b32.xlu0 %v5054, 80
    %v5079 = vpop.permute.xlu0 %5078
    %5080 = vrot.lane.b32.xlu0 %v5057, 80
    %v5081 = vpop.permute.xlu0 %5080
    %5082 = vrot.lane.b32.xlu0 %v5059, 80
    %v5083 = vpop.permute.xlu0 %5082
    %5084 = vrot.lane.b32.xlu0 %v5061, 80
    %v5085 = vpop.permute.xlu0 %5084
    %5086 = vrot.lane.b32.xlu0 %v5063, 80
    %v5087 = vpop.permute.xlu0 %5086
    %v5088 = vsel %vm712, %v5065, %v5067
    %v5089 = vsel %vm712, %v5067, %v5069
    %v5090 = vsel %vm712, %v5071, %v5073
    %v5091 = vsel %vm712, %v5073, %v5075
    %v5092 = vsel %vm712, %v5077, %v5079
    %v5093 = vsel %vm712, %v5079, %v5081
    %v5094 = vsel %vm712, %v5083, %v5085
    %v5095 = vsel %vm712, %v5085, %v5087
    %v5108 = vadd.f32 %v4836, %v5088
    %v5109 = vadd.f32 %v4837, %v5089
    %v5110 = vadd.f32 %v4838, %v5069
    %v5111 = vadd.f32 %v4839, %v5090
    %v5112 = vadd.f32 %v4840, %v5091
    %v5113 = vadd.f32 %v4841, %v5075
    %v5114 = vadd.f32 %v4842, %v5092
    %v5115 = vadd.f32 %v4843, %v5093
    %v5116 = vadd.f32 %v4844, %v5081
    %v5117 = vadd.f32 %v4845, %v5094
    %v5118 = vadd.f32 %v4846, %v5095
    %v5119 = vadd.f32 %v4847, %v5087
    %v5120 = vlaneseq
    %v5121 = vshrl.u32 %v5120, 7
    %v5122 = vsub.s32 0, %v5121
    %v5123 = vrot.slane %v354, %v5122
    %v5124 = vlaneseq
    %v5125 = vshrl.u32 %v5124, 7
    %v5126 = vsub.s32 0, %v5125
    %v5127 = vrot.slane %v355, %v5126
    %5130 = vrot.lane.b32.xlu0 %v5123, 80
    %v5131 = vpop.permute.xlu0 %5130
    %5132 = vrot.lane.b32.xlu0 %v5127, 80
    %v5133 = vpop.permute.xlu0 %5132
    %v5134 = vsel %vm712, %v5131, %v5133
    %v5138 = vmul.f32 %v4468, %v5131
    %v5139 = vmul.f32 %v4469, %v5134
    %v5140 = vmul.f32 %v4572, %v5133
    %v5141 = vmul.f32 %v360, %v5131
    %v5142 = vmul.f32 %v361, %v5134
    %v5143 = vmul.f32 %v383, %v5133
    %v5144 = vmul.f32 %v4470, %v5131
    %v5145 = vmul.f32 %v4471, %v5134
    %v5146 = vmul.f32 %v4573, %v5133
    %v5147 = vmul.f32 %v4472, %v5131
    %v5148 = vmul.f32 %v4473, %v5134
    %v5149 = vmul.f32 %v4574, %v5133
    %v5150 = vmul.f32 %v364, %v5131
    %v5151 = vmul.f32 %v365, %v5134
    %v5152 = vmul.f32 %v385, %v5133
    %v5153 = vmul.f32 %v4474, %v5131
    %v5154 = vmul.f32 %v4475, %v5134
    %v5155 = vmul.f32 %v4575, %v5133
    %v5174 = vrot.slane %v5138, 5
    %v5175 = vrot.slane %v5141, 5
    %v5176 = vsel %vm106, %v5174, %v5175
    %v5177 = vrot.slane %v5139, 5
    %v5178 = vrot.slane %v5142, 5
    %v5179 = vsel %vm106, %v5177, %v5178
    %v5180 = vrot.slane %v5140, 5
    %v5181 = vrot.slane %v5143, 5
    %v5182 = vsel %vm106, %v5180, %v5181
    %v5183 = vrot.slane %v5144, 5
    %v5184 = vsel %vm106, %v5175, %v5183
    %v5185 = vrot.slane %v5145, 5
    %v5186 = vsel %vm106, %v5178, %v5185
    %v5187 = vrot.slane %v5146, 5
    %v5188 = vsel %vm106, %v5181, %v5187
    %v5189 = vrot.slane %v5147, 5
    %v5190 = vrot.slane %v5150, 5
    %v5191 = vsel %vm106, %v5189, %v5190
    %v5192 = vrot.slane %v5148, 5
    %v5193 = vrot.slane %v5151, 5
    %v5194 = vsel %vm106, %v5192, %v5193
    %v5195 = vrot.slane %v5149, 5
    %v5196 = vrot.slane %v5152, 5
    %v5197 = vsel %vm106, %v5195, %v5196
    %v5198 = vrot.slane %v5153, 5
    %v5199 = vsel %vm106, %v5190, %v5198
    %v5200 = vrot.slane %v5154, 5
    %v5201 = vsel %vm106, %v5193, %v5200
    %v5202 = vrot.slane %v5155, 5
    %v5203 = vsel %vm106, %v5196, %v5202
    %5204 = vrot.lane.b32.xlu0 %v5176, 48
    %v5205 = vpop.permute.xlu0 %5204
    %5206 = vrot.lane.b32.xlu0 %v5179, 48
    %v5207 = vpop.permute.xlu0 %5206
    %5208 = vrot.lane.b32.xlu0 %v5182, 48
    %v5209 = vpop.permute.xlu0 %5208
    %5210 = vrot.lane.b32.xlu0 %v5184, 48
    %v5211 = vpop.permute.xlu0 %5210
    %5212 = vrot.lane.b32.xlu0 %v5186, 48
    %v5213 = vpop.permute.xlu0 %5212
    %5214 = vrot.lane.b32.xlu0 %v5188, 48
    %v5215 = vpop.permute.xlu0 %5214
    %5216 = vrot.lane.b32.xlu0 %v5191, 48
    %v5217 = vpop.permute.xlu0 %5216
    %5218 = vrot.lane.b32.xlu0 %v5194, 48
    %v5219 = vpop.permute.xlu0 %5218
    %5220 = vrot.lane.b32.xlu0 %v5197, 48
    %v5221 = vpop.permute.xlu0 %5220
    %5222 = vrot.lane.b32.xlu0 %v5199, 48
    %v5223 = vpop.permute.xlu0 %5222
    %5224 = vrot.lane.b32.xlu0 %v5201, 48
    %v5225 = vpop.permute.xlu0 %5224
    %5226 = vrot.lane.b32.xlu0 %v5203, 48
    %v5227 = vpop.permute.xlu0 %5226
    %v5228 = vsel %vm143, %v5205, %v5207
    %v5229 = vsel %vm143, %v5207, %v5209
    %v5230 = vsel %vm143, %v5211, %v5213
    %v5231 = vsel %vm143, %v5213, %v5215
    %v5232 = vsel %vm143, %v5217, %v5219
    %v5233 = vsel %vm143, %v5219, %v5221
    %v5234 = vsel %vm143, %v5223, %v5225
    %v5235 = vsel %vm143, %v5225, %v5227
    %v5244 = vadd.f32 %v4972, %v5228
    %v5245 = vadd.f32 %v4973, %v5229
    %v5246 = vadd.f32 %v4974, %v5230
    %v5247 = vadd.f32 %v4975, %v5231
    %v5248 = vadd.f32 %v4976, %v5232
    %v5249 = vadd.f32 %v4977, %v5233
    %v5250 = vadd.f32 %v4978, %v5234
    %v5251 = vadd.f32 %v4979, %v5235
    %v5252 = vlaneseq
    %v5253 = vshrl.u32 %v5252, 7
    %v5254 = vsub.s32 1, %v5253
    %v5255 = vrot.slane %v354, %v5254
    %v5256 = vlaneseq
    %v5257 = vshrl.u32 %v5256, 7
    %v5258 = vsub.s32 1, %v5257
    %v5259 = vrot.slane %v355, %v5258
    %5262 = vrot.lane.b32.xlu0 %v5255, 96
    %v5263 = vpop.permute.xlu0 %5262
    %5264 = vrot.lane.b32.xlu0 %v5259, 96
    %v5265 = vpop.permute.xlu0 %5264
    %v5266 = vsel %vm484, %v5263, %v5265
    %v5270 = vmul.f32 %v4468, %v5263
    %v5271 = vmul.f32 %v4469, %v5266
    %v5272 = vmul.f32 %v4572, %v5265
    %v5273 = vmul.f32 %v360, %v5263
    %v5274 = vmul.f32 %v361, %v5266
    %v5275 = vmul.f32 %v383, %v5265
    %v5276 = vmul.f32 %v4470, %v5263
    %v5277 = vmul.f32 %v4471, %v5266
    %v5278 = vmul.f32 %v4573, %v5265
    %v5279 = vmul.f32 %v4472, %v5263
    %v5280 = vmul.f32 %v4473, %v5266
    %v5281 = vmul.f32 %v4574, %v5265
    %v5282 = vmul.f32 %v364, %v5263
    %v5283 = vmul.f32 %v365, %v5266
    %v5284 = vmul.f32 %v385, %v5265
    %v5285 = vmul.f32 %v4474, %v5263
    %v5286 = vmul.f32 %v4475, %v5266
    %v5287 = vmul.f32 %v4575, %v5265
    %v5306 = vrot.slane %v5270, 5
    %v5307 = vrot.slane %v5273, 5
    %v5308 = vsel %vm106, %v5306, %v5307
    %v5309 = vrot.slane %v5271, 5
    %v5310 = vrot.slane %v5274, 5
    %v5311 = vsel %vm106, %v5309, %v5310
    %v5312 = vrot.slane %v5272, 5
    %v5313 = vrot.slane %v5275, 5
    %v5314 = vsel %vm106, %v5312, %v5313
    %v5315 = vrot.slane %v5276, 5
    %v5316 = vsel %vm106, %v5307, %v5315
    %v5317 = vrot.slane %v5277, 5
    %v5318 = vsel %vm106, %v5310, %v5317
    %v5319 = vrot.slane %v5278, 5
    %v5320 = vsel %vm106, %v5313, %v5319
    %v5321 = vrot.slane %v5279, 5
    %v5322 = vrot.slane %v5282, 5
    %v5323 = vsel %vm106, %v5321, %v5322
    %v5324 = vrot.slane %v5280, 5
    %v5325 = vrot.slane %v5283, 5
    %v5326 = vsel %vm106, %v5324, %v5325
    %v5327 = vrot.slane %v5281, 5
    %v5328 = vrot.slane %v5284, 5
    %v5329 = vsel %vm106, %v5327, %v5328
    %v5330 = vrot.slane %v5285, 5
    %v5331 = vsel %vm106, %v5322, %v5330
    %v5332 = vrot.slane %v5286, 5
    %v5333 = vsel %vm106, %v5325, %v5332
    %v5334 = vrot.slane %v5287, 5
    %v5335 = vsel %vm106, %v5328, %v5334
    %5336 = vrot.lane.b32.xlu0 %v5308, 48
    %v5337 = vpop.permute.xlu0 %5336
    %5338 = vrot.lane.b32.xlu0 %v5311, 48
    %v5339 = vpop.permute.xlu0 %5338
    %5340 = vrot.lane.b32.xlu0 %v5314, 48
    %v5341 = vpop.permute.xlu0 %5340
    %5342 = vrot.lane.b32.xlu0 %v5316, 48
    %v5343 = vpop.permute.xlu0 %5342
    %5344 = vrot.lane.b32.xlu0 %v5318, 48
    %v5345 = vpop.permute.xlu0 %5344
    %5346 = vrot.lane.b32.xlu0 %v5320, 48
    %v5347 = vpop.permute.xlu0 %5346
    %5348 = vrot.lane.b32.xlu0 %v5323, 48
    %v5349 = vpop.permute.xlu0 %5348
    %5350 = vrot.lane.b32.xlu0 %v5326, 48
    %v5351 = vpop.permute.xlu0 %5350
    %5352 = vrot.lane.b32.xlu0 %v5329, 48
    %v5353 = vpop.permute.xlu0 %5352
    %5354 = vrot.lane.b32.xlu0 %v5331, 48
    %v5355 = vpop.permute.xlu0 %5354
    %5356 = vrot.lane.b32.xlu0 %v5333, 48
    %v5357 = vpop.permute.xlu0 %5356
    %5358 = vrot.lane.b32.xlu0 %v5335, 48
    %v5359 = vpop.permute.xlu0 %5358
    %v5360 = vsel %vm143, %v5337, %v5339
    %v5361 = vsel %vm143, %v5339, %v5341
    %v5362 = vsel %vm143, %v5343, %v5345
    %v5363 = vsel %vm143, %v5345, %v5347
    %v5364 = vsel %vm143, %v5349, %v5351
    %v5365 = vsel %vm143, %v5351, %v5353
    %v5366 = vsel %vm143, %v5355, %v5357
    %v5367 = vsel %vm143, %v5357, %v5359
    %v5380 = vadd.f32 %v5108, %v5360
    %v5381 = vadd.f32 %v5109, %v5361
    %v5382 = vadd.f32 %v5110, %v5341
    %v5383 = vadd.f32 %v5111, %v5362
    %v5384 = vadd.f32 %v5112, %v5363
    %v5385 = vadd.f32 %v5113, %v5347
    %v5386 = vadd.f32 %v5114, %v5364
    %v5387 = vadd.f32 %v5115, %v5365
    %v5388 = vadd.f32 %v5116, %v5353
    %v5389 = vadd.f32 %v5117, %v5366
    %v5390 = vadd.f32 %v5118, %v5367
    %v5391 = vadd.f32 %v5119, %v5359
    %v5392 = vld [vmem:[#allocation2] sm:$0xc0]
    %v5393 = vld [vmem:[#allocation2 + $0x8] sm:$0xc0]
    %v5394 = vld [vmem:[#allocation2 + $0x30] sm:$0x3f]
    %v5395 = vld [vmem:[#allocation2 + $0x38] sm:$0x3f]
    %v5396 = vld [vmem:[#allocation2 + $0x48] sm:$0xc0]
    %v5397 = vld [vmem:[#allocation2 + $0x50] sm:$0xc0]
    %v5398 = vld [vmem:[#allocation2 + $0x78] sm:$0x3f]
    %v5399 = vld [vmem:[#allocation2 + $0x80] sm:$0x3f]
    %v5400 = vlaneseq
    %v5401 = vshrl.u32 %v5400, 7
    %v5402 = vsub.s32 2, %v5401
    %v5403 = vrot.slane %v354, %v5402
    %v5404 = vlaneseq
    %v5405 = vshrl.u32 %v5404, 7
    %v5406 = vsub.s32 2, %v5405
    %v5407 = vrot.slane %v355, %v5406
    %v5408 = vmul.f32 %v5392, %v5403
    %v5409 = vmul.f32 %v5393, %v5407
    %v5410 = vmul.f32 %v360, %v5403
    %v5411 = vmul.f32 %v361, %v5407
    %v5412 = vmul.f32 %v5394, %v5403
    %v5413 = vmul.f32 %v5395, %v5407
    %v5414 = vmul.f32 %v5396, %v5403
    %v5415 = vmul.f32 %v5397, %v5407
    %v5416 = vmul.f32 %v364, %v5403
    %v5417 = vmul.f32 %v365, %v5407
    %v5418 = vmul.f32 %v5398, %v5403
    %v5419 = vmul.f32 %v5399, %v5407
    %vm5432 = vcmask 1041408
    %v5433 = vrot.slane %v5408, 6
    %v5434 = vrot.slane %v5410, 6
    %v5435 = vsel %vm5432, %v5433, %v5434
    %v5436 = vrot.slane %v5409, 6
    %v5437 = vrot.slane %v5411, 6
    %v5438 = vsel %vm5432, %v5436, %v5437
    %v5439 = vrot.slane %v5412, 6
    %v5440 = vsel %vm5432, %v5434, %v5439
    %v5441 = vrot.slane %v5413, 6
    %v5442 = vsel %vm5432, %v5437, %v5441
    %v5443 = vrot.slane %v5414, 6
    %v5444 = vrot.slane %v5416, 6
    %v5445 = vsel %vm5432, %v5443, %v5444
    %v5446 = vrot.slane %v5415, 6
    %v5447 = vrot.slane %v5417, 6
    %v5448 = vsel %vm5432, %v5446, %v5447
    %v5449 = vrot.slane %v5418, 6
    %v5450 = vsel %vm5432, %v5444, %v5449
    %v5451 = vrot.slane %v5419, 6
    %v5452 = vsel %vm5432, %v5447, %v5451
    %v5461 = vadd.f32 %v5244, %v5435
    %v5462 = vadd.f32 %v5245, %v5438
    %v5463 = vadd.f32 %v5246, %v5440
    %v5464 = vadd.f32 %v5247, %v5442
    %v5465 = vadd.f32 %v5248, %v5445
    %v5466 = vadd.f32 %v5249, %v5448
    %v5467 = vadd.f32 %v5250, %v5450
    %v5468 = vadd.f32 %v5251, %v5452
    %v5469 = vld [vmem:[#allocation2 + $0x10] sm:$0xc0]
    %v5470 = vld [vmem:[#allocation2 + $0x40] sm:$0x3f]
    %v5471 = vld [vmem:[#allocation2 + $0x58] sm:$0xc0]
    %v5472 = vld [vmem:[#allocation2 + $0x88] sm:$0x3f]
    %v5473 = vlaneseq
    %v5474 = vshrl.u32 %v5473, 7
    %v5475 = vsub.s32 3, %v5474
    %v5476 = vrot.slane %v354, %v5475
    %v5477 = vlaneseq
    %v5478 = vshrl.u32 %v5477, 7
    %v5479 = vsub.s32 3, %v5478
    %v5480 = vrot.slane %v355, %v5479
    %5483 = vrot.lane.b32.xlu0 %v5476, 16
    %v5484 = vpop.permute.xlu0 %5483
    %5485 = vrot.lane.b32.xlu0 %v5480, 16
    %v5486 = vpop.permute.xlu0 %5485
    %v5487 = vsel %vm400, %v5484, %v5486
    %v5491 = vmul.f32 %v5392, %v5484
    %v5492 = vmul.f32 %v5393, %v5487
    %v5493 = vmul.f32 %v5469, %v5486
    %v5494 = vmul.f32 %v360, %v5484
    %v5495 = vmul.f32 %v361, %v5487
    %v5496 = vmul.f32 %v383, %v5486
    %v5497 = vmul.f32 %v5394, %v5484
    %v5498 = vmul.f32 %v5395, %v5487
    %v5499 = vmul.f32 %v5470, %v5486
    %v5500 = vmul.f32 %v5396, %v5484
    %v5501 = vmul.f32 %v5397, %v5487
    %v5502 = vmul.f32 %v5471, %v5486
    %v5503 = vmul.f32 %v364, %v5484
    %v5504 = vmul.f32 %v365, %v5487
    %v5505 = vmul.f32 %v385, %v5486
    %v5506 = vmul.f32 %v5398, %v5484
    %v5507 = vmul.f32 %v5399, %v5487
    %v5508 = vmul.f32 %v5472, %v5486
    %v5527 = vrot.slane %v5491, 6
    %v5528 = vrot.slane %v5494, 6
    %v5529 = vsel %vm5432, %v5527, %v5528
    %v5530 = vrot.slane %v5492, 6
    %v5531 = vrot.slane %v5495, 6
    %v5532 = vsel %vm5432, %v5530, %v5531
    %v5533 = vrot.slane %v5493, 6
    %v5534 = vrot.slane %v5496, 6
    %v5535 = vsel %vm5432, %v5533, %v5534
    %v5536 = vrot.slane %v5497, 6
    %v5537 = vsel %vm5432, %v5528, %v5536
    %v5538 = vrot.slane %v5498, 6
    %v5539 = vsel %vm5432, %v5531, %v5538
    %v5540 = vrot.slane %v5499, 6
    %v5541 = vsel %vm5432, %v5534, %v5540
    %v5542 = vrot.slane %v5500, 6
    %v5543 = vrot.slane %v5503, 6
    %v5544 = vsel %vm5432, %v5542, %v5543
    %v5545 = vrot.slane %v5501, 6
    %v5546 = vrot.slane %v5504, 6
    %v5547 = vsel %vm5432, %v5545, %v5546
    %v5548 = vrot.slane %v5502, 6
    %v5549 = vrot.slane %v5505, 6
    %v5550 = vsel %vm5432, %v5548, %v5549
    %v5551 = vrot.slane %v5506, 6
    %v5552 = vsel %vm5432, %v5543, %v5551
    %v5553 = vrot.slane %v5507, 6
    %v5554 = vsel %vm5432, %v5546, %v5553
    %v5555 = vrot.slane %v5508, 6
    %v5556 = vsel %vm5432, %v5549, %v5555
    %v5569 = vadd.f32 %v5380, %v5529
    %v5570 = vadd.f32 %v5381, %v5532
    %v5571 = vadd.f32 %v5382, %v5535
    %v5572 = vadd.f32 %v5383, %v5537
    %v5573 = vadd.f32 %v5384, %v5539
    %v5574 = vadd.f32 %v5385, %v5541
    %v5575 = vadd.f32 %v5386, %v5544
    %v5576 = vadd.f32 %v5387, %v5547
    %v5577 = vadd.f32 %v5388, %v5550
    %v5578 = vadd.f32 %v5389, %v5552
    %v5579 = vadd.f32 %v5390, %v5554
    %v5580 = vadd.f32 %v5391, %v5556
    %v5581 = vlaneseq
    %v5582 = vshrl.u32 %v5581, 7
    %v5583 = vsub.s32 4, %v5582
    %v5584 = vrot.slane %v354, %v5583
    %v5585 = vlaneseq
    %v5586 = vshrl.u32 %v5585, 7
    %v5587 = vsub.s32 4, %v5586
    %v5588 = vrot.slane %v355, %v5587
    %5591 = vrot.lane.b32.xlu0 %v5584, 32
    %v5592 = vpop.permute.xlu0 %5591
    %5593 = vrot.lane.b32.xlu0 %v5588, 32
    %v5594 = vpop.permute.xlu0 %5593
    %v5595 = vsel %vm431, %v5592, %v5594
    %v5599 = vmul.f32 %v5392, %v5592
    %v5600 = vmul.f32 %v5393, %v5595
    %v5601 = vmul.f32 %v5469, %v5594
    %v5602 = vmul.f32 %v360, %v5592
    %v5603 = vmul.f32 %v361, %v5595
    %v5604 = vmul.f32 %v383, %v5594
    %v5605 = vmul.f32 %v5394, %v5592
    %v5606 = vmul.f32 %v5395, %v5595
    %v5607 = vmul.f32 %v5470, %v5594
    %v5608 = vmul.f32 %v5396, %v5592
    %v5609 = vmul.f32 %v5397, %v5595
    %v5610 = vmul.f32 %v5471, %v5594
    %v5611 = vmul.f32 %v364, %v5592
    %v5612 = vmul.f32 %v365, %v5595
    %v5613 = vmul.f32 %v385, %v5594
    %v5614 = vmul.f32 %v5398, %v5592
    %v5615 = vmul.f32 %v5399, %v5595
    %v5616 = vmul.f32 %v5472, %v5594
    %v5635 = vrot.slane %v5599, 6
    %v5636 = vrot.slane %v5602, 6
    %v5637 = vsel %vm5432, %v5635, %v5636
    %v5638 = vrot.slane %v5600, 6
    %v5639 = vrot.slane %v5603, 6
    %v5640 = vsel %vm5432, %v5638, %v5639
    %v5641 = vrot.slane %v5601, 6
    %v5642 = vrot.slane %v5604, 6
    %v5643 = vsel %vm5432, %v5641, %v5642
    %v5644 = vrot.slane %v5605, 6
    %v5645 = vsel %vm5432, %v5636, %v5644
    %v5646 = vrot.slane %v5606, 6
    %v5647 = vsel %vm5432, %v5639, %v5646
    %v5648 = vrot.slane %v5607, 6
    %v5649 = vsel %vm5432, %v5642, %v5648
    %v5650 = vrot.slane %v5608, 6
    %v5651 = vrot.slane %v5611, 6
    %v5652 = vsel %vm5432, %v5650, %v5651
    %v5653 = vrot.slane %v5609, 6
    %v5654 = vrot.slane %v5612, 6
    %v5655 = vsel %vm5432, %v5653, %v5654
    %v5656 = vrot.slane %v5610, 6
    %v5657 = vrot.slane %v5613, 6
    %v5658 = vsel %vm5432, %v5656, %v5657
    %v5659 = vrot.slane %v5614, 6
    %v5660 = vsel %vm5432, %v5651, %v5659
    %v5661 = vrot.slane %v5615, 6
    %v5662 = vsel %vm5432, %v5654, %v5661
    %v5663 = vrot.slane %v5616, 6
    %v5664 = vsel %vm5432, %v5657, %v5663
    %5665 = vrot.lane.b32.xlu0 %v5637, 96
    %v5666 = vpop.permute.xlu0 %5665
    %5667 = vrot.lane.b32.xlu0 %v5640, 96
    %v5668 = vpop.permute.xlu0 %5667
    %5669 = vrot.lane.b32.xlu0 %v5643, 96
    %v5670 = vpop.permute.xlu0 %5669
    %5671 = vrot.lane.b32.xlu0 %v5645, 96
    %v5672 = vpop.permute.xlu0 %5671
    %5673 = vrot.lane.b32.xlu0 %v5647, 96
    %v5674 = vpop.permute.xlu0 %5673
    %5675 = vrot.lane.b32.xlu0 %v5649, 96
    %v5676 = vpop.permute.xlu0 %5675
    %5677 = vrot.lane.b32.xlu0 %v5652, 96
    %v5678 = vpop.permute.xlu0 %5677
    %5679 = vrot.lane.b32.xlu0 %v5655, 96
    %v5680 = vpop.permute.xlu0 %5679
    %5681 = vrot.lane.b32.xlu0 %v5658, 96
    %v5682 = vpop.permute.xlu0 %5681
    %5683 = vrot.lane.b32.xlu0 %v5660, 96
    %v5684 = vpop.permute.xlu0 %5683
    %5685 = vrot.lane.b32.xlu0 %v5662, 96
    %v5686 = vpop.permute.xlu0 %5685
    %5687 = vrot.lane.b32.xlu0 %v5664, 96
    %v5688 = vpop.permute.xlu0 %5687
    %v5689 = vsel %vm484, %v5666, %v5668
    %v5690 = vsel %vm484, %v5668, %v5670
    %v5691 = vsel %vm484, %v5672, %v5674
    %v5692 = vsel %vm484, %v5674, %v5676
    %v5693 = vsel %vm484, %v5678, %v5680
    %v5694 = vsel %vm484, %v5680, %v5682
    %v5695 = vsel %vm484, %v5684, %v5686
    %v5696 = vsel %vm484, %v5686, %v5688
    %v5705 = vadd.f32 %v5461, %v5689
    %v5706 = vadd.f32 %v5462, %v5690
    %v5707 = vadd.f32 %v5463, %v5691
    %v5708 = vadd.f32 %v5464, %v5692
    %v5709 = vadd.f32 %v5465, %v5693
    %v5710 = vadd.f32 %v5466, %v5694
    %v5711 = vadd.f32 %v5467, %v5695
    %v5712 = vadd.f32 %v5468, %v5696
    %v5713 = vlaneseq
    %v5714 = vshrl.u32 %v5713, 7
    %v5715 = vsub.s32 5, %v5714
    %v5716 = vrot.slane %v354, %v5715
    %v5717 = vlaneseq
    %v5718 = vshrl.u32 %v5717, 7
    %v5719 = vsub.s32 5, %v5718
    %v5720 = vrot.slane %v355, %v5719
    %5723 = vrot.lane.b32.xlu0 %v5716, 48
    %v5724 = vpop.permute.xlu0 %5723
    %5725 = vrot.lane.b32.xlu0 %v5720, 48
    %v5726 = vpop.permute.xlu0 %5725
    %v5727 = vsel %vm143, %v5724, %v5726
    %v5731 = vmul.f32 %v5392, %v5724
    %v5732 = vmul.f32 %v5393, %v5727
    %v5733 = vmul.f32 %v5469, %v5726
    %v5734 = vmul.f32 %v360, %v5724
    %v5735 = vmul.f32 %v361, %v5727
    %v5736 = vmul.f32 %v383, %v5726
    %v5737 = vmul.f32 %v5394, %v5724
    %v5738 = vmul.f32 %v5395, %v5727
    %v5739 = vmul.f32 %v5470, %v5726
    %v5740 = vmul.f32 %v5396, %v5724
    %v5741 = vmul.f32 %v5397, %v5727
    %v5742 = vmul.f32 %v5471, %v5726
    %v5743 = vmul.f32 %v364, %v5724
    %v5744 = vmul.f32 %v365, %v5727
    %v5745 = vmul.f32 %v385, %v5726
    %v5746 = vmul.f32 %v5398, %v5724
    %v5747 = vmul.f32 %v5399, %v5727
    %v5748 = vmul.f32 %v5472, %v5726
    %v5767 = vrot.slane %v5731, 6
    %v5768 = vrot.slane %v5734, 6
    %v5769 = vsel %vm5432, %v5767, %v5768
    %v5770 = vrot.slane %v5732, 6
    %v5771 = vrot.slane %v5735, 6
    %v5772 = vsel %vm5432, %v5770, %v5771
    %v5773 = vrot.slane %v5733, 6
    %v5774 = vrot.slane %v5736, 6
    %v5775 = vsel %vm5432, %v5773, %v5774
    %v5776 = vrot.slane %v5737, 6
    %v5777 = vsel %vm5432, %v5768, %v5776
    %v5778 = vrot.slane %v5738, 6
    %v5779 = vsel %vm5432, %v5771, %v5778
    %v5780 = vrot.slane %v5739, 6
    %v5781 = vsel %vm5432, %v5774, %v5780
    %v5782 = vrot.slane %v5740, 6
    %v5783 = vrot.slane %v5743, 6
    %v5784 = vsel %vm5432, %v5782, %v5783
    %v5785 = vrot.slane %v5741, 6
    %v5786 = vrot.slane %v5744, 6
    %v5787 = vsel %vm5432, %v5785, %v5786
    %v5788 = vrot.slane %v5742, 6
    %v5789 = vrot.slane %v5745, 6
    %v5790 = vsel %vm5432, %v5788, %v5789
    %v5791 = vrot.slane %v5746, 6
    %v5792 = vsel %vm5432, %v5783, %v5791
    %v5793 = vrot.slane %v5747, 6
    %v5794 = vsel %vm5432, %v5786, %v5793
    %v5795 = vrot.slane %v5748, 6
    %v5796 = vsel %vm5432, %v5789, %v5795
    %5797 = vrot.lane.b32.xlu0 %v5769, 96
    %v5798 = vpop.permute.xlu0 %5797
    %5799 = vrot.lane.b32.xlu0 %v5772, 96
    %v5800 = vpop.permute.xlu0 %5799
    %5801 = vrot.lane.b32.xlu0 %v5775, 96
    %v5802 = vpop.permute.xlu0 %5801
    %5803 = vrot.lane.b32.xlu0 %v5777, 96
    %v5804 = vpop.permute.xlu0 %5803
    %5805 = vrot.lane.b32.xlu0 %v5779, 96
    %v5806 = vpop.permute.xlu0 %5805
    %5807 = vrot.lane.b32.xlu0 %v5781, 96
    %v5808 = vpop.permute.xlu0 %5807
    %5809 = vrot.lane.b32.xlu0 %v5784, 96
    %v5810 = vpop.permute.xlu0 %5809
    %5811 = vrot.lane.b32.xlu0 %v5787, 96
    %v5812 = vpop.permute.xlu0 %5811
    %5813 = vrot.lane.b32.xlu0 %v5790, 96
    %v5814 = vpop.permute.xlu0 %5813
    %5815 = vrot.lane.b32.xlu0 %v5792, 96
    %v5816 = vpop.permute.xlu0 %5815
    %5817 = vrot.lane.b32.xlu0 %v5794, 96
    %v5818 = vpop.permute.xlu0 %5817
    %5819 = vrot.lane.b32.xlu0 %v5796, 96
    %v5820 = vpop.permute.xlu0 %5819
    %v5821 = vsel %vm484, %v5798, %v5800
    %v5822 = vsel %vm484, %v5800, %v5802
    %v5823 = vsel %vm484, %v5804, %v5806
    %v5824 = vsel %vm484, %v5806, %v5808
    %v5825 = vsel %vm484, %v5810, %v5812
    %v5826 = vsel %vm484, %v5812, %v5814
    %v5827 = vsel %vm484, %v5816, %v5818
    %v5828 = vsel %vm484, %v5818, %v5820
    %v5841 = vadd.f32 %v5569, %v5821
    %v5842 = vadd.f32 %v5570, %v5822
    %v5843 = vadd.f32 %v5571, %v5802
    %v5844 = vadd.f32 %v5572, %v5823
    %v5845 = vadd.f32 %v5573, %v5824
    %v5846 = vadd.f32 %v5574, %v5808
    %v5847 = vadd.f32 %v5575, %v5825
    %v5848 = vadd.f32 %v5576, %v5826
    %v5849 = vadd.f32 %v5577, %v5814
    %v5850 = vadd.f32 %v5578, %v5827
    %v5851 = vadd.f32 %v5579, %v5828
    %v5852 = vadd.f32 %v5580, %v5820
    %v5853 = vlaneseq
    %v5854 = vshrl.u32 %v5853, 7
    %v5855 = vsub.s32 6, %v5854
    %v5856 = vrot.slane %v354, %v5855
    %v5857 = vlaneseq
    %v5858 = vshrl.u32 %v5857, 7
    %v5859 = vsub.s32 6, %v5858
    %v5860 = vrot.slane %v355, %v5859
    %5863 = vrot.lane.b32.xlu0 %v5856, 64
    %v5864 = vpop.permute.xlu0 %5863
    %5865 = vrot.lane.b32.xlu0 %v5860, 64
    %v5866 = vpop.permute.xlu0 %5865
    %v5867 = vsel %vm621, %v5864, %v5866
    %v5871 = vmul.f32 %v5392, %v5864
    %v5872 = vmul.f32 %v5393, %v5867
    %v5873 = vmul.f32 %v5469, %v5866
    %v5874 = vmul.f32 %v360, %v5864
    %v5875 = vmul.f32 %v361, %v5867
    %v5876 = vmul.f32 %v383, %v5866
    %v5877 = vmul.f32 %v5394, %v5864
    %v5878 = vmul.f32 %v5395, %v5867
    %v5879 = vmul.f32 %v5470, %v5866
    %v5880 = vmul.f32 %v5396, %v5864
    %v5881 = vmul.f32 %v5397, %v5867
    %v5882 = vmul.f32 %v5471, %v5866
    %v5883 = vmul.f32 %v364, %v5864
    %v5884 = vmul.f32 %v365, %v5867
    %v5885 = vmul.f32 %v385, %v5866
    %v5886 = vmul.f32 %v5398, %v5864
    %v5887 = vmul.f32 %v5399, %v5867
    %v5888 = vmul.f32 %v5472, %v5866
    %v5907 = vrot.slane %v5871, 6
    %v5908 = vrot.slane %v5874, 6
    %v5909 = vsel %vm5432, %v5907, %v5908
    %v5910 = vrot.slane %v5872, 6
    %v5911 = vrot.slane %v5875, 6
    %v5912 = vsel %vm5432, %v5910, %v5911
    %v5913 = vrot.slane %v5873, 6
    %v5914 = vrot.slane %v5876, 6
    %v5915 = vsel %vm5432, %v5913, %v5914
    %v5916 = vrot.slane %v5877, 6
    %v5917 = vsel %vm5432, %v5908, %v5916
    %v5918 = vrot.slane %v5878, 6
    %v5919 = vsel %vm5432, %v5911, %v5918
    %v5920 = vrot.slane %v5879, 6
    %v5921 = vsel %vm5432, %v5914, %v5920
    %v5922 = vrot.slane %v5880, 6
    %v5923 = vrot.slane %v5883, 6
    %v5924 = vsel %vm5432, %v5922, %v5923
    %v5925 = vrot.slane %v5881, 6
    %v5926 = vrot.slane %v5884, 6
    %v5927 = vsel %vm5432, %v5925, %v5926
    %v5928 = vrot.slane %v5882, 6
    %v5929 = vrot.slane %v5885, 6
    %v5930 = vsel %vm5432, %v5928, %v5929
    %v5931 = vrot.slane %v5886, 6
    %v5932 = vsel %vm5432, %v5923, %v5931
    %v5933 = vrot.slane %v5887, 6
    %v5934 = vsel %vm5432, %v5926, %v5933
    %v5935 = vrot.slane %v5888, 6
    %v5936 = vsel %vm5432, %v5929, %v5935
    %5937 = vrot.lane.b32.xlu0 %v5909, 64
    %v5938 = vpop.permute.xlu0 %5937
    %5939 = vrot.lane.b32.xlu0 %v5912, 64
    %v5940 = vpop.permute.xlu0 %5939
    %5941 = vrot.lane.b32.xlu0 %v5915, 64
    %v5942 = vpop.permute.xlu0 %5941
    %5943 = vrot.lane.b32.xlu0 %v5917, 64
    %v5944 = vpop.permute.xlu0 %5943
    %5945 = vrot.lane.b32.xlu0 %v5919, 64
    %v5946 = vpop.permute.xlu0 %5945
    %5947 = vrot.lane.b32.xlu0 %v5921, 64
    %v5948 = vpop.permute.xlu0 %5947
    %5949 = vrot.lane.b32.xlu0 %v5924, 64
    %v5950 = vpop.permute.xlu0 %5949
    %5951 = vrot.lane.b32.xlu0 %v5927, 64
    %v5952 = vpop.permute.xlu0 %5951
    %5953 = vrot.lane.b32.xlu0 %v5930, 64
    %v5954 = vpop.permute.xlu0 %5953
    %5955 = vrot.lane.b32.xlu0 %v5932, 64
    %v5956 = vpop.permute.xlu0 %5955
    %5957 = vrot.lane.b32.xlu0 %v5934, 64
    %v5958 = vpop.permute.xlu0 %5957
    %5959 = vrot.lane.b32.xlu0 %v5936, 64
    %v5960 = vpop.permute.xlu0 %5959
    %v5961 = vsel %vm621, %v5938, %v5940
    %v5962 = vsel %vm621, %v5940, %v5942
    %v5963 = vsel %vm621, %v5944, %v5946
    %v5964 = vsel %vm621, %v5946, %v5948
    %v5965 = vsel %vm621, %v5950, %v5952
    %v5966 = vsel %vm621, %v5952, %v5954
    %v5967 = vsel %vm621, %v5956, %v5958
    %v5968 = vsel %vm621, %v5958, %v5960
    %v5977 = vadd.f32 %v5705, %v5961
    %v5978 = vadd.f32 %v5706, %v5962
    %v5979 = vadd.f32 %v5707, %v5963
    %v5980 = vadd.f32 %v5708, %v5964
    %v5981 = vadd.f32 %v5709, %v5965
    %v5982 = vadd.f32 %v5710, %v5966
    %v5983 = vadd.f32 %v5711, %v5967
    %v5984 = vadd.f32 %v5712, %v5968
    %v5985 = vlaneseq
    %v5986 = vshrl.u32 %v5985, 7
    %v5987 = vsub.s32 7, %v5986
    %v5988 = vrot.slane %v354, %v5987
    %v5989 = vlaneseq
    %v5990 = vshrl.u32 %v5989, 7
    %v5991 = vsub.s32 7, %v5990
    %v5992 = vrot.slane %v355, %v5991
    %5995 = vrot.lane.b32.xlu0 %v5988, 80
    %v5996 = vpop.permute.xlu0 %5995
    %5997 = vrot.lane.b32.xlu0 %v5992, 80
    %v5998 = vpop.permute.xlu0 %5997
    %v5999 = vsel %vm712, %v5996, %v5998
    %v6003 = vmul.f32 %v5392, %v5996
    %v6004 = vmul.f32 %v5393, %v5999
    %v6005 = vmul.f32 %v5469, %v5998
    %v6006 = vmul.f32 %v360, %v5996
    %v6007 = vmul.f32 %v361, %v5999
    %v6008 = vmul.f32 %v383, %v5998
    %v6009 = vmul.f32 %v5394, %v5996
    %v6010 = vmul.f32 %v5395, %v5999
    %v6011 = vmul.f32 %v5470, %v5998
    %v6012 = vmul.f32 %v5396, %v5996
    %v6013 = vmul.f32 %v5397, %v5999
    %v6014 = vmul.f32 %v5471, %v5998
    %v6015 = vmul.f32 %v364, %v5996
    %v6016 = vmul.f32 %v365, %v5999
    %v6017 = vmul.f32 %v385, %v5998
    %v6018 = vmul.f32 %v5398, %v5996
    %v6019 = vmul.f32 %v5399, %v5999
    %v6020 = vmul.f32 %v5472, %v5998
    %v6039 = vrot.slane %v6003, 6
    %v6040 = vrot.slane %v6006, 6
    %v6041 = vsel %vm5432, %v6039, %v6040
    %v6042 = vrot.slane %v6004, 6
    %v6043 = vrot.slane %v6007, 6
    %v6044 = vsel %vm5432, %v6042, %v6043
    %v6045 = vrot.slane %v6005, 6
    %v6046 = vrot.slane %v6008, 6
    %v6047 = vsel %vm5432, %v6045, %v6046
    %v6048 = vrot.slane %v6009, 6
    %v6049 = vsel %vm5432, %v6040, %v6048
    %v6050 = vrot.slane %v6010, 6
    %v6051 = vsel %vm5432, %v6043, %v6050
    %v6052 = vrot.slane %v6011, 6
    %v6053 = vsel %vm5432, %v6046, %v6052
    %v6054 = vrot.slane %v6012, 6
    %v6055 = vrot.slane %v6015, 6
    %v6056 = vsel %vm5432, %v6054, %v6055
    %v6057 = vrot.slane %v6013, 6
    %v6058 = vrot.slane %v6016, 6
    %v6059 = vsel %vm5432, %v6057, %v6058
    %v6060 = vrot.slane %v6014, 6
    %v6061 = vrot.slane %v6017, 6
    %v6062 = vsel %vm5432, %v6060, %v6061
    %v6063 = vrot.slane %v6018, 6
    %v6064 = vsel %vm5432, %v6055, %v6063
    %v6065 = vrot.slane %v6019, 6
    %v6066 = vsel %vm5432, %v6058, %v6065
    %v6067 = vrot.slane %v6020, 6
    %v6068 = vsel %vm5432, %v6061, %v6067
    %6069 = vrot.lane.b32.xlu0 %v6041, 64
    %v6070 = vpop.permute.xlu0 %6069
    %6071 = vrot.lane.b32.xlu0 %v6044, 64
    %v6072 = vpop.permute.xlu0 %6071
    %6073 = vrot.lane.b32.xlu0 %v6047, 64
    %v6074 = vpop.permute.xlu0 %6073
    %6075 = vrot.lane.b32.xlu0 %v6049, 64
    %v6076 = vpop.permute.xlu0 %6075
    %6077 = vrot.lane.b32.xlu0 %v6051, 64
    %v6078 = vpop.permute.xlu0 %6077
    %6079 = vrot.lane.b32.xlu0 %v6053, 64
    %v6080 = vpop.permute.xlu0 %6079
    %6081 = vrot.lane.b32.xlu0 %v6056, 64
    %v6082 = vpop.permute.xlu0 %6081
    %6083 = vrot.lane.b32.xlu0 %v6059, 64
    %v6084 = vpop.permute.xlu0 %6083
    %6085 = vrot.lane.b32.xlu0 %v6062, 64
    %v6086 = vpop.permute.xlu0 %6085
    %6087 = vrot.lane.b32.xlu0 %v6064, 64
    %v6088 = vpop.permute.xlu0 %6087
    %6089 = vrot.lane.b32.xlu0 %v6066, 64
    %v6090 = vpop.permute.xlu0 %6089
    %6091 = vrot.lane.b32.xlu0 %v6068, 64
    %v6092 = vpop.permute.xlu0 %6091
    %v6093 = vsel %vm621, %v6070, %v6072
    %v6094 = vsel %vm621, %v6072, %v6074
    %v6095 = vsel %vm621, %v6076, %v6078
    %v6096 = vsel %vm621, %v6078, %v6080
    %v6097 = vsel %vm621, %v6082, %v6084
    %v6098 = vsel %vm621, %v6084, %v6086
    %v6099 = vsel %vm621, %v6088, %v6090
    %v6100 = vsel %vm621, %v6090, %v6092
    %v6113 = vadd.f32 %v5841, %v6093
    %v6114 = vadd.f32 %v5842, %v6094
    %v6115 = vadd.f32 %v5843, %v6074
    %v6116 = vadd.f32 %v5844, %v6095
    %v6117 = vadd.f32 %v5845, %v6096
    %v6118 = vadd.f32 %v5846, %v6080
    %v6119 = vadd.f32 %v5847, %v6097
    %v6120 = vadd.f32 %v5848, %v6098
    %v6121 = vadd.f32 %v5849, %v6086
    %v6122 = vadd.f32 %v5850, %v6099
    %v6123 = vadd.f32 %v5851, %v6100
    %v6124 = vadd.f32 %v5852, %v6092
    %v6125 = vlaneseq
    %v6126 = vshrl.u32 %v6125, 7
    %v6127 = vsub.s32 0, %v6126
    %v6128 = vrot.slane %v356, %v6127
    %v6129 = vlaneseq
    %v6130 = vshrl.u32 %v6129, 7
    %v6131 = vsub.s32 0, %v6130
    %v6132 = vrot.slane %v357, %v6131
    %6135 = vrot.lane.b32.xlu0 %v6128, 96
    %v6136 = vpop.permute.xlu0 %6135
    %6137 = vrot.lane.b32.xlu0 %v6132, 96
    %v6138 = vpop.permute.xlu0 %6137
    %v6139 = vsel %vm484, %v6136, %v6138
    %v6143 = vmul.f32 %v5392, %v6136
    %v6144 = vmul.f32 %v5393, %v6139
    %v6145 = vmul.f32 %v5469, %v6138
    %v6146 = vmul.f32 %v360, %v6136
    %v6147 = vmul.f32 %v361, %v6139
    %v6148 = vmul.f32 %v383, %v6138
    %v6149 = vmul.f32 %v5394, %v6136
    %v6150 = vmul.f32 %v5395, %v6139
    %v6151 = vmul.f32 %v5470, %v6138
    %v6152 = vmul.f32 %v5396, %v6136
    %v6153 = vmul.f32 %v5397, %v6139
    %v6154 = vmul.f32 %v5471, %v6138
    %v6155 = vmul.f32 %v364, %v6136
    %v6156 = vmul.f32 %v365, %v6139
    %v6157 = vmul.f32 %v385, %v6138
    %v6158 = vmul.f32 %v5398, %v6136
    %v6159 = vmul.f32 %v5399, %v6139
    %v6160 = vmul.f32 %v5472, %v6138
    %v6179 = vrot.slane %v6143, 6
    %v6180 = vrot.slane %v6146, 6
    %v6181 = vsel %vm5432, %v6179, %v6180
    %v6182 = vrot.slane %v6144, 6
    %v6183 = vrot.slane %v6147, 6
    %v6184 = vsel %vm5432, %v6182, %v6183
    %v6185 = vrot.slane %v6145, 6
    %v6186 = vrot.slane %v6148, 6
    %v6187 = vsel %vm5432, %v6185, %v6186
    %v6188 = vrot.slane %v6149, 6
    %v6189 = vsel %vm5432, %v6180, %v6188
    %v6190 = vrot.slane %v6150, 6
    %v6191 = vsel %vm5432, %v6183, %v6190
    %v6192 = vrot.slane %v6151, 6
    %v6193 = vsel %vm5432, %v6186, %v6192
    %v6194 = vrot.slane %v6152, 6
    %v6195 = vrot.slane %v6155, 6
    %v6196 = vsel %vm5432, %v6194, %v6195
    %v6197 = vrot.slane %v6153, 6
    %v6198 = vrot.slane %v6156, 6
    %v6199 = vsel %vm5432, %v6197, %v6198
    %v6200 = vrot.slane %v6154, 6
    %v6201 = vrot.slane %v6157, 6
    %v6202 = vsel %vm5432, %v6200, %v6201
    %v6203 = vrot.slane %v6158, 6
    %v6204 = vsel %vm5432, %v6195, %v6203
    %v6205 = vrot.slane %v6159, 6
    %v6206 = vsel %vm5432, %v6198, %v6205
    %v6207 = vrot.slane %v6160, 6
    %v6208 = vsel %vm5432, %v6201, %v6207
    %6209 = vrot.lane.b32.xlu0 %v6181, 32
    %v6210 = vpop.permute.xlu0 %6209
    %6211 = vrot.lane.b32.xlu0 %v6184, 32
    %v6212 = vpop.permute.xlu0 %6211
    %6213 = vrot.lane.b32.xlu0 %v6187, 32
    %v6214 = vpop.permute.xlu0 %6213
    %6215 = vrot.lane.b32.xlu0 %v6189, 32
    %v6216 = vpop.permute.xlu0 %6215
    %6217 = vrot.lane.b32.xlu0 %v6191, 32
    %v6218 = vpop.permute.xlu0 %6217
    %6219 = vrot.lane.b32.xlu0 %v6193, 32
    %v6220 = vpop.permute.xlu0 %6219
    %6221 = vrot.lane.b32.xlu0 %v6196, 32
    %v6222 = vpop.permute.xlu0 %6221
    %6223 = vrot.lane.b32.xlu0 %v6199, 32
    %v6224 = vpop.permute.xlu0 %6223
    %6225 = vrot.lane.b32.xlu0 %v6202, 32
    %v6226 = vpop.permute.xlu0 %6225
    %6227 = vrot.lane.b32.xlu0 %v6204, 32
    %v6228 = vpop.permute.xlu0 %6227
    %6229 = vrot.lane.b32.xlu0 %v6206, 32
    %v6230 = vpop.permute.xlu0 %6229
    %6231 = vrot.lane.b32.xlu0 %v6208, 32
    %v6232 = vpop.permute.xlu0 %6231
    %v6233 = vsel %vm431, %v6210, %v6212
    %v6234 = vsel %vm431, %v6212, %v6214
    %v6235 = vsel %vm431, %v6216, %v6218
    %v6236 = vsel %vm431, %v6218, %v6220
    %v6237 = vsel %vm431, %v6222, %v6224
    %v6238 = vsel %vm431, %v6224, %v6226
    %v6239 = vsel %vm431, %v6228, %v6230
    %v6240 = vsel %vm431, %v6230, %v6232
    %v6249 = vadd.f32 %v5977, %v6233
    %v6250 = vadd.f32 %v5978, %v6234
    %v6251 = vadd.f32 %v5979, %v6235
    %v6252 = vadd.f32 %v5980, %v6236
    %v6253 = vadd.f32 %v5981, %v6237
    %v6254 = vadd.f32 %v5982, %v6238
    %v6255 = vadd.f32 %v5983, %v6239
    %v6256 = vadd.f32 %v5984, %v6240
    %6269 = vrot.lane.b32.xlu0 %v6113, 112
    %v6270 = vpop.permute.xlu0 %6269
    %6271 = vrot.lane.b32.xlu0 %v6114, 112
    %v6272 = vpop.permute.xlu0 %6271
    %6273 = vrot.lane.b32.xlu0 %v6115, 112
    %v6274 = vpop.permute.xlu0 %6273
    %6275 = vrot.lane.b32.xlu0 %v6116, 112
    %v6276 = vpop.permute.xlu0 %6275
    %6277 = vrot.lane.b32.xlu0 %v6117, 112
    %v6278 = vpop.permute.xlu0 %6277
    %6279 = vrot.lane.b32.xlu0 %v6118, 112
    %v6280 = vpop.permute.xlu0 %6279
    %6281 = vrot.lane.b32.xlu0 %v6119, 112
    %v6282 = vpop.permute.xlu0 %6281
    %6283 = vrot.lane.b32.xlu0 %v6120, 112
    %v6284 = vpop.permute.xlu0 %6283
    %6285 = vrot.lane.b32.xlu0 %v6121, 112
    %v6286 = vpop.permute.xlu0 %6285
    %6287 = vrot.lane.b32.xlu0 %v6122, 112
    %v6288 = vpop.permute.xlu0 %6287
    %6289 = vrot.lane.b32.xlu0 %v6123, 112
    %v6290 = vpop.permute.xlu0 %6289
    %6291 = vrot.lane.b32.xlu0 %v6124, 112
    %v6292 = vpop.permute.xlu0 %6291
    %v6293 = vsel %vm1104, %v6270, %v6272
    %v6294 = vsel %vm1104, %v6272, %v6274
    %v6295 = vsel %vm1104, %v6276, %v6278
    %v6296 = vsel %vm1104, %v6278, %v6280
    %v6297 = vsel %vm1104, %v6282, %v6284
    %v6298 = vsel %vm1104, %v6284, %v6286
    %v6299 = vsel %vm1104, %v6288, %v6290
    %v6300 = vsel %vm1104, %v6290, %v6292
    %v6309 = vadd.f32 %v6249, %v6293
    %v6310 = vadd.f32 %v6250, %v6294
    %v6311 = vadd.f32 %v6251, %v6295
    %v6312 = vadd.f32 %v6252, %v6296
    %v6313 = vadd.f32 %v6253, %v6297
    %v6314 = vadd.f32 %v6254, %v6298
    %v6315 = vadd.f32 %v6255, %v6299
    %v6316 = vadd.f32 %v6256, %v6300
    %v6317 = vld [vmem:[%s3] sm:$0xff]
    %v6318 = vld [vmem:[%s3 + $0x8] sm:$0xff]
    %v6319 = vld [vmem:[%s3 + $0x10] sm:$0xff]
    %v6320 = vld [vmem:[%s3 + $0x18] sm:$0xff]
    %v6321 = vld [vmem:[%s3 + $0x20] sm:$0xff]
    %v6322 = vld [vmem:[%s3 + $0x28] sm:$0xff]
    %v6323 = vld [vmem:[%s3 + $0x30] sm:$0xff]
    %v6324 = vld [vmem:[%s3 + $0x38] sm:$0xff]
    %v6325 = vld [vmem:[%s3 + $0x40] sm:$0xff]
    %v6326 = vld [vmem:[%s3 + $0x48] sm:$0xff]
    %v6327 = vld [vmem:[%s3 + $0x50] sm:$0xff]
    %v6328 = vld [vmem:[%s3 + $0x58] sm:$0xff]
    %v6329 = vld [vmem:[%s3 + $0x60] sm:$0xff]
    %v6330 = vld [vmem:[%s3 + $0x68] sm:$0xff]
    %v6331 = vld [vmem:[%s3 + $0x70] sm:$0xff]
    %v6332 = vld [vmem:[%s3 + $0x78] sm:$0xff]
    %v6333 = vld [vmem:[%s3 + $0x80] sm:$0xff]
    %v6334 = vld [vmem:[%s3 + $0x88] sm:$0xff]
    %v6335 = vld [vmem:[%s3 + $0x90] sm:$0xff]
    %v6336 = vld [vmem:[%s3 + $0x98] sm:$0xff]
    %v6337 = vld [vmem:[%s3 + $0xa0] sm:$0xff]
    %v6338 = vld [vmem:[%s3 + $0xa8] sm:$0xff]
    %v6339 = vld [vmem:[%s3 + $0xb0] sm:$0xff]
    %v6340 = vld [vmem:[%s3 + $0xb8] sm:$0xff]
    %v6341 = vld [vmem:[%s3 + $0xc0] sm:$0xff]
    %v6342 = vld [vmem:[%s3 + $0xc8] sm:$0xff]
    %v6343 = vld [vmem:[%s3 + $0xd0] sm:$0xff]
    %v6344 = vld [vmem:[%s3 + $0xd8] sm:$0xff]
    %v6345 = vld [vmem:[%s3 + $0xe0] sm:$0xff]
    %v6346 = vld [vmem:[%s3 + $0xe8] sm:$0xff]
    %v6347 = vld [vmem:[%s3 + $0xf0] sm:$0xff]
    %v6348 = vld [vmem:[%s3 + $0xf8] sm:$0xff]
    %v6349 = vld [vmem:[%s3 + $0x100] sm:$0xff]
    %v6350 = vld [vmem:[%s3 + $0x108] sm:$0xff]
    %v6351 = vld [vmem:[%s3 + $0x110] sm:$0xff]
    %v6352 = vld [vmem:[%s3 + $0x118] sm:$0xff]
    %v6353 = vld [vmem:[%s3 + $0x120] sm:$0xff]
    %v6354 = vld [vmem:[%s3 + $0x128] sm:$0xff]
    %v6355 = vld [vmem:[%s3 + $0x130] sm:$0xff]
    %v6356 = vld [vmem:[%s3 + $0x138] sm:$0xff]
    %v6357 = vld [vmem:[%s3 + $0x140] sm:$0xff]
    %v6358 = vld [vmem:[%s3 + $0x148] sm:$0xff]
    %v6359 = vld [vmem:[%s3 + $0x150] sm:$0xff]
    %v6360 = vld [vmem:[%s3 + $0x158] sm:$0xff]
    %v6361 = vld [vmem:[%s3 + $0x160] sm:$0xff]
    %v6362 = vld [vmem:[%s3 + $0x168] sm:$0xff]
    %v6363 = vld [vmem:[%s3 + $0x170] sm:$0xff]
    %v6364 = vld [vmem:[%s3 + $0x178] sm:$0xff]
    %v6365 = vld [vmem:[%s3 + $0x180] sm:$0xff]
    %v6366 = vld [vmem:[%s3 + $0x188] sm:$0xff]
    %v6367 = vld [vmem:[%s3 + $0x190] sm:$0xff]
    %v6368 = vld [vmem:[%s3 + $0x198] sm:$0xff]
    %v6369 = vld [vmem:[%s3 + $0x1a0] sm:$0xff]
    %v6370 = vld [vmem:[%s3 + $0x1a8] sm:$0xff]
    %v6371 = vld [vmem:[%s3 + $0x1b0] sm:$0xff]
    %v6372 = vld [vmem:[%s3 + $0x1b8] sm:$0xff]
    %v6373 = vld [vmem:[%s3 + $0x1c0] sm:$0xff]
    %v6374 = vld [vmem:[%s3 + $0x1c8] sm:$0xff]
    %v6375 = vld [vmem:[%s3 + $0x1d0] sm:$0xff]
    %v6376 = vld [vmem:[%s3 + $0x1d8] sm:$0xff]
    %v6377 = vld [vmem:[%s3 + $0x1e0] sm:$0xff]
    %v6378 = vld [vmem:[%s3 + $0x1e8] sm:$0xff]
    %v6379 = vld [vmem:[%s3 + $0x1f0] sm:$0xff]
    %v6380 = vld [vmem:[%s3 + $0x1f8] sm:$0xff]
    %6381 = vmatprep.subr.mxu0 %v6318
    %6382 = vmatpush1.msra.mxu0 %v6317
    %6383 = vmatprep.subr.mxu0 %v6320
    %6384 = vmatpush1.msra.mxu0 %v6319
    %6385 = vmatprep.subr.mxu0 %v6322
    %6386 = vmatpush1.msra.mxu0 %v6321
    %6387 = vmatprep.subr.mxu0 %v6324
    %6388 = vmatpush1.msra.mxu0 %v6323
    %6389 = vmatprep.subr.mxu0 %v6326
    %6390 = vmatpush1.msra.mxu0 %v6325
    %6391 = vmatprep.subr.mxu0 %v6328
    %6392 = vmatpush1.msra.mxu0 %v6327
    %6393 = vmatprep.subr.mxu0 %v6330
    %6394 = vmatpush1.msra.mxu0 %v6329
    %6395 = vmatprep.subr.mxu0 %v6332
    %6396 = vmatpush1.msra.mxu0 %v6331
    %6397 = vmatprep.subr.mxu0 %v6334
    %6398 = vmatpush1.msra.mxu0 %v6333
    %6399 = vmatprep.subr.mxu0 %v6336
    %6400 = vmatpush1.msra.mxu0 %v6335
    %6401 = vmatprep.subr.mxu0 %v6338
    %6402 = vmatpush1.msra.mxu0 %v6337
    %6403 = vmatprep.subr.mxu0 %v6340
    %6404 = vmatpush1.msra.mxu0 %v6339
    %6405 = vmatprep.subr.mxu0 %v6342
    %6406 = vmatpush1.msra.mxu0 %v6341
    %6407 = vmatprep.subr.mxu0 %v6344
    %6408 = vmatpush1.msra.mxu0 %v6343
    %6409 = vmatprep.subr.mxu0 %v6346
    %6410 = vmatpush1.msra.mxu0 %v6345
    %6411 = vmatprep.subr.mxu0 %v6348
    %6412 = vmatpush1.msra.mxu0 %v6347
    %6413 = vmatprep.subr.mxu0 %v6350
    %6414 = vmatpush1.msra.mxu0 %v6349
    %6415 = vmatprep.subr.mxu0 %v6352
    %6416 = vmatpush1.msra.mxu0 %v6351
    %6417 = vmatprep.subr.mxu0 %v6354
    %6418 = vmatpush1.msra.mxu0 %v6353
    %6419 = vmatprep.subr.mxu0 %v6356
    %6420 = vmatpush1.msra.mxu0 %v6355
    %6421 = vmatprep.subr.mxu0 %v6358
    %6422 = vmatpush1.msra.mxu0 %v6357
    %6423 = vmatprep.subr.mxu0 %v6360
    %6424 = vmatpush1.msra.mxu0 %v6359
    %6425 = vmatprep.subr.mxu0 %v6362
    %6426 = vmatpush1.msra.mxu0 %v6361
    %6427 = vmatprep.subr.mxu0 %v6364
    %6428 = vmatpush1.msra.mxu0 %v6363
    %6429 = vmatprep.subr.mxu0 %v6366
    %6430 = vmatpush1.msra.mxu0 %v6365
    %6431 = vmatprep.subr.mxu0 %v6368
    %6432 = vmatpush1.msra.mxu0 %v6367
    %6433 = vmatprep.subr.mxu0 %v6370
    %6434 = vmatpush1.msra.mxu0 %v6369
    %6435 = vmatprep.subr.mxu0 %v6372
    %6436 = vmatpush1.msra.mxu0 %v6371
    %6437 = vmatprep.subr.mxu0 %v6374
    %6438 = vmatpush1.msra.mxu0 %v6373
    %6439 = vmatprep.subr.mxu0 %v6376
    %6440 = vmatpush1.msra.mxu0 %v6375
    %6441 = vmatprep.subr.mxu0 %v6378
    %6442 = vmatpush1.msra.mxu0 %v6377
    %6443 = vmatprep.subr.mxu0 %v6380
    %6444 = vmatpush1.msra.mxu0 %v6379
    %6445 = vmatprep.mubr.f32.mxu0 %v6310
    %6446 = vmatmul.mubr.f32.gmra.mrb[0].mxu0 %v6309
    %v6447 = vpop.f32.mrb[0].mxu0
    %v6448 = vadd.f32 0.0, %v6447
    %v6449 = vpop.f32.mrb[0].mxu0
    %v6450 = vadd.f32 0.0, %v6449
    %6451 = vmatprep.mubr.f32.mxu0 %v6312
    %6452 = vmatmul.mubr.f32.gmra.mrb[0].mxu0 %v6311
    %v6453 = vpop.f32.mrb[0].mxu0
    %v6454 = vadd.f32 0.0, %v6453
    %v6455 = vpop.f32.mrb[0].mxu0
    %v6456 = vadd.f32 0.0, %v6455
    %6457 = vmatprep.mubr.f32.mxu0 %v6314
    %6458 = vmatmul.mubr.f32.gmra.mrb[0].mxu0 %v6313
    %v6459 = vpop.f32.mrb[0].mxu0
    %v6460 = vadd.f32 0.0, %v6459
    %v6461 = vpop.f32.mrb[0].mxu0
    %v6462 = vadd.f32 0.0, %v6461
    %6463 = vmatprep.mubr.f32.mxu0 %v6316
    %6464 = vmatmul.mubr.f32.gmra.mrb[0].mxu0 %v6315
    %v6465 = vpop.f32.mrb[0].mxu0
    %v6466 = vadd.f32 0.0, %v6465
    %v6467 = vpop.f32.mrb[0].mxu0
    %v6468 = vadd.f32 0.0, %v6467
    %6469 = vdwg.mxu0
    %v6470 = vxor.u32 %v6448, 2147483648
    %v6471 = vxor.u32 %v6450, 2147483648
    %v6472 = vxor.u32 %v6454, 2147483648
    %v6473 = vxor.u32 %v6456, 2147483648
    %v6474 = vxor.u32 %v6460, 2147483648
    %v6475 = vxor.u32 %v6462, 2147483648
    %v6476 = vxor.u32 %v6466, 2147483648
    %v6477 = vxor.u32 %v6468, 2147483648
    %v6478 = vmul.f32 %v6470, 1.442695
    %v6479 = vpow.pop %v6478
    %v6480 = vmul.f32 %v6471, 1.442695
    %v6481 = vpow.pop %v6480
    %v6482 = vmul.f32 %v6472, 1.442695
    %v6483 = vpow.pop %v6482
    %v6484 = vmul.f32 %v6473, 1.442695
    %v6485 = vpow.pop %v6484
    %v6486 = vmul.f32 %v6474, 1.442695
    %v6487 = vpow.pop %v6486
    %v6488 = vmul.f32 %v6475, 1.442695
    %v6489 = vpow.pop %v6488
    %v6490 = vmul.f32 %v6476, 1.442695
    %v6491 = vpow.pop %v6490
    %v6492 = vmul.f32 %v6477, 1.442695
    %v6493 = vpow.pop %v6492
    %v6494 = vadd.f32 %v6479, 1.0
    %v6495 = vadd.f32 %v6481, 1.0
    %v6496 = vadd.f32 %v6483, 1.0
    %v6497 = vadd.f32 %v6485, 1.0
    %v6498 = vadd.f32 %v6487, 1.0
    %v6499 = vadd.f32 %v6489, 1.0
    %v6500 = vadd.f32 %v6491, 1.0
    %v6501 = vadd.f32 %v6493, 1.0
    %v6502 = vrcp.pop %v6494
    %v6503 = vmul.f32 1.0, %v6502
    %v6504 = vrcp.pop %v6495
    %v6505 = vmul.f32 1.0, %v6504
    %v6506 = vrcp.pop %v6496
    %v6507 = vmul.f32 1.0, %v6506
    %v6508 = vrcp.pop %v6497
    %v6509 = vmul.f32 1.0, %v6508
    %v6510 = vrcp.pop %v6498
    %v6511 = vmul.f32 1.0, %v6510
    %v6512 = vrcp.pop %v6499
    %v6513 = vmul.f32 1.0, %v6512
    %v6514 = vrcp.pop %v6500
    %v6515 = vmul.f32 1.0, %v6514
    %v6516 = vrcp.pop %v6501
    %v6517 = vmul.f32 1.0, %v6516
    %v6518 = vmul.f32 %v6503, %v322
    %v6519 = vmul.f32 %v6505, %v324
    %v6520 = vmul.f32 %v6507, %v328
    %v6521 = vmul.f32 %v6509, %v330
    %v6522 = vmul.f32 %v6511, %v334
    %v6523 = vmul.f32 %v6513, %v336
    %v6524 = vmul.f32 %v6515, %v340
    %v6525 = vmul.f32 %v6517, %v342
    %v6526 = vld [vmem:[%s5] sm:$0x3]
    %v6528 = vlaneseq
    %v6529 = vshrl.u32 %v6528, 7
    %v6530 = vsub.s32 0, %v6529
    %v6531 = vrot.slane %v6526, %v6530
    %v6532 = vlaneseq
    %v6533 = vshrl.u32 %v6532, 7
    %v6534 = vsub.s32 1, %v6533
    %v6535 = vrot.slane %v6526, %v6534
    %v6538 = vadd.f32 %v6518, %v6531
    %v6539 = vadd.f32 %v6519, %v6535
    %v6540 = vadd.f32 %v6520, %v6531
    %v6541 = vadd.f32 %v6521, %v6535
    %v6542 = vadd.f32 %v6522, %v6531
    %v6543 = vadd.f32 %v6523, %v6535
    %v6544 = vadd.f32 %v6524, %v6531
    %v6545 = vadd.f32 %v6525, %v6535
    %vm6554 = vcmask 1040384
    %v6555 = vrot.slane %v6538, 7
    %v6556 = vrot.slane %v6539, 7
    %v6557 = vrot.slane %v6540, 7
    %v6558 = vsel %vm6554, %v6555, %v6557
    %v6559 = vrot.slane %v6541, 7
    %v6560 = vsel %vm6554, %v6556, %v6559
    %v6561 = vrot.slane %v6542, 7
    %v6562 = vrot.slane %v6543, 7
    %v6563 = vrot.slane %v6544, 7
    %v6564 = vsel %vm6554, %v6561, %v6563
    %v6565 = vrot.slane %v6545, 7
    %v6566 = vsel %vm6554, %v6562, %v6565
    %6567 = vrot.lane.b32.xlu0 %v6555, 16
    %v6568 = vpop.permute.xlu0 %6567
    %6569 = vrot.lane.b32.xlu0 %v6556, 16
    %v6570 = vpop.permute.xlu0 %6569
    %6571 = vrot.lane.b32.xlu0 %v6558, 16
    %v6572 = vpop.permute.xlu0 %6571
    %6573 = vrot.lane.b32.xlu0 %v6560, 16
    %v6574 = vpop.permute.xlu0 %6573
    %6575 = vrot.lane.b32.xlu0 %v6557, 16
    %v6576 = vpop.permute.xlu0 %6575
    %6577 = vrot.lane.b32.xlu0 %v6559, 16
    %v6578 = vpop.permute.xlu0 %6577
    %6579 = vrot.lane.b32.xlu0 %v6561, 16
    %v6580 = vpop.permute.xlu0 %6579
    %6581 = vrot.lane.b32.xlu0 %v6562, 16
    %v6582 = vpop.permute.xlu0 %6581
    %6583 = vrot.lane.b32.xlu0 %v6564, 16
    %v6584 = vpop.permute.xlu0 %6583
    %6585 = vrot.lane.b32.xlu0 %v6566, 16
    %v6586 = vpop.permute.xlu0 %6585
    %6587 = vrot.lane.b32.xlu0 %v6563, 16
    %v6588 = vpop.permute.xlu0 %6587
    %6589 = vrot.lane.b32.xlu0 %v6565, 16
    %v6590 = vpop.permute.xlu0 %6589
    %v6591 = vsel %vm400, %v6568, %v6570
    %v6592 = vsel %vm400, %v6572, %v6574
    %v6593 = vsel %vm400, %v6576, %v6578
    %v6594 = vsel %vm400, %v6580, %v6582
    %v6595 = vsel %vm400, %v6584, %v6586
    %v6596 = vsel %vm400, %v6588, %v6590
    %vm6615 = vcmask 1047681
    %6616 = vst.msk [vmem:[#allocation3] sm:$0xfe] %vm6615, %v6568
    %6617 = vst [vmem:[#allocation3 + $0x8] sm:$0xfe] %v6591
    %vm6618 = vcmask 130049
    %6619 = vst.msk [vmem:[#allocation3 + $0x10] sm:$0xfe] %vm6618, %v6570
    %vm6620 = vcmask 1047680
    %6621 = vst.msk [vmem:[#allocation3 + $0x18] sm:$0xff] %vm6620, %v6572
    %6622 = vst [vmem:[#allocation3 + $0x20] sm:$0xff] %v6592
    %6623 = vst.msk [vmem:[#allocation3 + $0x28] sm:$0xff] %vm400, %v6574
    %vm6624 = vcmask 1040512
    %6625 = vst.msk [vmem:[#allocation3 + $0x30] sm:$0x1] %vm6624, %v6576
    %6626 = vst [vmem:[#allocation3 + $0x38] sm:$0x1] %v6593
    %vm6627 = vcmask 122880
    %6628 = vst.msk [vmem:[#allocation3 + $0x40] sm:$0x1] %vm6627, %v6578
    %6629 = vst.msk [vmem:[#allocation3 + $0x48] sm:$0xfe] %vm6615, %v6580
    %6630 = vst [vmem:[#allocation3 + $0x50] sm:$0xfe] %v6594
    %6631 = vst.msk [vmem:[#allocation3 + $0x58] sm:$0xfe] %vm6618, %v6582
    %6632 = vst.msk [vmem:[#allocation3 + $0x60] sm:$0xff] %vm6620, %v6584
    %6633 = vst [vmem:[#allocation3 + $0x68] sm:$0xff] %v6595
    %6634 = vst.msk [vmem:[#allocation3 + $0x70] sm:$0xff] %vm400, %v6586
    %6635 = vst.msk [vmem:[#allocation3 + $0x78] sm:$0x1] %vm6624, %v6588
    %6636 = vst [vmem:[#allocation3 + $0x80] sm:$0x1] %v6596
    %6637 = vst.msk [vmem:[#allocation3 + $0x88] sm:$0x1] %vm6627, %v6590
    %v6638 = vld [vmem:[#allocation3] sm:$0xff]
    %v6639 = vld [vmem:[#allocation3 + $0x8] sm:$0xff]
    %v6640 = vld [vmem:[#allocation3 + $0x10] sm:$0xff]
    %v6641 = vld [vmem:[#allocation3 + $0x18] sm:$0xff]
    %v6642 = vld [vmem:[#allocation3 + $0x20] sm:$0xff]
    %v6643 = vld [vmem:[#allocation3 + $0x28] sm:$0xff]
    %v6644 = vld [vmem:[#allocation3 + $0x48] sm:$0xff]
    %v6645 = vld [vmem:[#allocation3 + $0x50] sm:$0xff]
    %v6646 = vld [vmem:[#allocation3 + $0x58] sm:$0xff]
    %v6647 = vld [vmem:[#allocation3 + $0x60] sm:$0xff]
    %v6648 = vld [vmem:[#allocation3 + $0x68] sm:$0xff]
    %v6649 = vld [vmem:[#allocation3 + $0x70] sm:$0xff]
    %v6650 = vld [vmem:[%s6] sm:$0xff]
    %v6651 = vld [vmem:[%s6 + $0x8] sm:$0xff]
    %v6652 = vld [vmem:[%s6 + $0x10] sm:$0xff]
    %v6653 = vld [vmem:[%s6 + $0x18] sm:$0xff]
    %v6654 = vld [vmem:[%s6 + $0x20] sm:$0xff]
    %v6655 = vld [vmem:[%s6 + $0x28] sm:$0xff]
    %v6656 = vld [vmem:[%s6 + $0x30] sm:$0xff]
    %v6657 = vld [vmem:[%s6 + $0x38] sm:$0xff]
    %v6658 = vld [vmem:[%s6 + $0x40] sm:$0xff]
    %v6659 = vld [vmem:[%s6 + $0x48] sm:$0xff]
    %v6660 = vld [vmem:[%s6 + $0x50] sm:$0xff]
    %v6661 = vld [vmem:[%s6 + $0x58] sm:$0xff]
    %v6662 = vld [vmem:[%s6 + $0x60] sm:$0xff]
    %v6663 = vld [vmem:[%s6 + $0x68] sm:$0xff]
    %v6664 = vld [vmem:[%s6 + $0x70] sm:$0xff]
    %v6665 = vld [vmem:[%s6 + $0x78] sm:$0xff]
    %v6666 = vld [vmem:[%s6 + $0x80] sm:$0xff]
    %v6667 = vld [vmem:[%s6 + $0x88] sm:$0xff]
    %v6668 = vld [vmem:[%s6 + $0x90] sm:$0xff]
    %v6669 = vld [vmem:[%s6 + $0x98] sm:$0xff]
    %v6670 = vld [vmem:[%s6 + $0xa0] sm:$0xff]
    %v6671 = vld [vmem:[%s6 + $0xa8] sm:$0xff]
    %v6672 = vld [vmem:[%s6 + $0xb0] sm:$0xff]
    %v6673 = vld [vmem:[%s6 + $0xb8] sm:$0xff]
    %v6674 = vld [vmem:[%s6 + $0xc0] sm:$0xff]
    %v6675 = vld [vmem:[%s6 + $0xc8] sm:$0xff]
    %v6676 = vld [vmem:[%s6 + $0xd0] sm:$0xff]
    %v6677 = vld [vmem:[%s6 + $0xd8] sm:$0xff]
    %v6678 = vld [vmem:[%s6 + $0xe0] sm:$0xff]
    %v6679 = vld [vmem:[%s6 + $0xe8] sm:$0xff]
    %v6680 = vld [vmem:[%s6 + $0xf0] sm:$0xff]
    %v6681 = vld [vmem:[%s6 + $0xf8] sm:$0xff]
    %v6682 = vld [vmem:[%s6 + $0x100] sm:$0xff]
    %v6683 = vld [vmem:[%s6 + $0x108] sm:$0xff]
    %v6684 = vld [vmem:[%s6 + $0x110] sm:$0xff]
    %v6685 = vld [vmem:[%s6 + $0x118] sm:$0xff]
    %v6686 = vld [vmem:[#allocation3] sm:$0xfe]
    %v6687 = vld [vmem:[#allocation3 + $0x8] sm:$0xfe]
    %v6688 = vld [vmem:[#allocation3 + $0x10] sm:$0xfe]
    %v6689 = vld [vmem:[#allocation3 + $0x30] sm:$0x1]
    %v6690 = vld [vmem:[#allocation3 + $0x38] sm:$0x1]
    %v6691 = vld [vmem:[#allocation3 + $0x40] sm:$0x1]
    %v6692 = vld [vmem:[#allocation3 + $0x48] sm:$0xfe]
    %v6693 = vld [vmem:[#allocation3 + $0x50] sm:$0xfe]
    %v6694 = vld [vmem:[#allocation3 + $0x58] sm:$0xfe]
    %v6695 = vld [vmem:[#allocation3 + $0x78] sm:$0x1]
    %v6696 = vld [vmem:[#allocation3 + $0x80] sm:$0x1]
    %v6697 = vld [vmem:[#allocation3 + $0x88] sm:$0x1]
    %v6716 = vrot.slane %v6686, 1
    %v6717 = vrot.slane %v6641, 1
    %v6718 = vsel %vm927, %v6716, %v6717
    %v6719 = vrot.slane %v6687, 1
    %v6720 = vrot.slane %v6642, 1
    %v6721 = vsel %vm927, %v6719, %v6720
    %v6722 = vrot.slane %v6688, 1
    %v6723 = vrot.slane %v6643, 1
    %v6724 = vsel %vm927, %v6722, %v6723
    %v6725 = vrot.slane %v6689, 1
    %v6726 = vsel %vm927, %v6717, %v6725
    %v6727 = vrot.slane %v6690, 1
    %v6728 = vsel %vm927, %v6720, %v6727
    %v6729 = vrot.slane %v6691, 1
    %v6730 = vsel %vm927, %v6723, %v6729
    %v6731 = vrot.slane %v6692, 1
    %v6732 = vrot.slane %v6647, 1
    %v6733 = vsel %vm927, %v6731, %v6732
    %v6734 = vrot.slane %v6693, 1
    %v6735 = vrot.slane %v6648, 1
    %v6736 = vsel %vm927, %v6734, %v6735
    %v6737 = vrot.slane %v6694, 1
    %v6738 = vrot.slane %v6649, 1
    %v6739 = vsel %vm927, %v6737, %v6738
    %v6740 = vrot.slane %v6695, 1
    %v6741 = vsel %vm927, %v6732, %v6740
    %v6742 = vrot.slane %v6696, 1
    %v6743 = vsel %vm927, %v6735, %v6742
    %v6744 = vrot.slane %v6697, 1
    %v6745 = vsel %vm927, %v6738, %v6744
    %s6754 = scalar_lea.vmem %s6, 288
    %v6755 = vld [vmem:[%s6754] sm:$0xff]
    %v6756 = vld [vmem:[%s6754 + $0x8] sm:$0xff]
    %v6757 = vld [vmem:[%s6754 + $0x10] sm:$0xff]
    %v6758 = vld [vmem:[%s6754 + $0x18] sm:$0xff]
    %v6759 = vld [vmem:[%s6754 + $0x20] sm:$0xff]
    %v6760 = vld [vmem:[%s6754 + $0x28] sm:$0xff]
    %v6761 = vld [vmem:[%s6754 + $0x30] sm:$0xff]
    %v6762 = vld [vmem:[%s6754 + $0x38] sm:$0xff]
    %v6763 = vld [vmem:[%s6754 + $0x40] sm:$0xff]
    %v6764 = vld [vmem:[%s6754 + $0x48] sm:$0xff]
    %v6765 = vld [vmem:[%s6754 + $0x50] sm:$0xff]
    %v6766 = vld [vmem:[%s6754 + $0x58] sm:$0xff]
    %v6767 = vld [vmem:[%s6754 + $0x60] sm:$0xff]
    %v6768 = vld [vmem:[%s6754 + $0x68] sm:$0xff]
    %v6769 = vld [vmem:[%s6754 + $0x70] sm:$0xff]
    %v6770 = vld [vmem:[%s6754 + $0x78] sm:$0xff]
    %v6771 = vld [vmem:[%s6754 + $0x80] sm:$0xff]
    %v6772 = vld [vmem:[%s6754 + $0x88] sm:$0xff]
    %v6773 = vld [vmem:[%s6754 + $0x90] sm:$0xff]
    %v6774 = vld [vmem:[%s6754 + $0x98] sm:$0xff]
    %v6775 = vld [vmem:[%s6754 + $0xa0] sm:$0xff]
    %v6776 = vld [vmem:[%s6754 + $0xa8] sm:$0xff]
    %v6777 = vld [vmem:[%s6754 + $0xb0] sm:$0xff]
    %v6778 = vld [vmem:[%s6754 + $0xb8] sm:$0xff]
    %v6779 = vld [vmem:[%s6754 + $0xc0] sm:$0xff]
    %v6780 = vld [vmem:[%s6754 + $0xc8] sm:$0xff]
    %v6781 = vld [vmem:[%s6754 + $0xd0] sm:$0xff]
    %v6782 = vld [vmem:[%s6754 + $0xd8] sm:$0xff]
    %v6783 = vld [vmem:[%s6754 + $0xe0] sm:$0xff]
    %v6784 = vld [vmem:[%s6754 + $0xe8] sm:$0xff]
    %v6785 = vld [vmem:[%s6754 + $0xf0] sm:$0xff]
    %v6786 = vld [vmem:[%s6754 + $0xf8] sm:$0xff]
    %v6787 = vld [vmem:[%s6754 + $0x100] sm:$0xff]
    %v6788 = vld [vmem:[%s6754 + $0x108] sm:$0xff]
    %v6789 = vld [vmem:[%s6754 + $0x110] sm:$0xff]
    %v6790 = vld [vmem:[%s6754 + $0x118] sm:$0xff]
    %v6791 = vsel %vm431, %v6724, 0
    %v6793 = vsel %vm431, %v6730, 0
    %v6795 = vsel %vm431, %v6739, 0
    %v6797 = vsel %vm431, %v6745, 0
    %6799 = vmatprep.subr.mxu0 0.0
    %6800 = vmatpush1.msra.mxu0 %v6755
    %6801 = vmatprep.subr.mxu0 0.0
    %6802 = vmatpush1.msra.mxu0 %v6756
    %6803 = vmatprep.subr.mxu0 0.0
    %6804 = vmatpush1.msra.mxu0 %v6757
    %6805 = vmatprep.subr.mxu0 0.0
    %6806 = vmatpush1.msra.mxu0 %v6758
    %6807 = vmatprep.subr.mxu0 0.0
    %6808 = vmatpush1.msra.mxu0 %v6759
    %6809 = vmatprep.subr.mxu0 0.0
    %6810 = vmatpush1.msra.mxu0 %v6760
    %6811 = vmatprep.subr.mxu0 0.0
    %6812 = vmatpush1.msra.mxu0 %v6761
    %6813 = vmatprep.subr.mxu0 0.0
    %6814 = vmatpush1.msra.mxu0 %v6762
    %6815 = vmatprep.subr.mxu0 0.0
    %6816 = vmatpush1.msra.mxu0 %v6763
    %6817 = vmatprep.subr.mxu0 0.0
    %6818 = vmatpush1.msra.mxu0 %v6764
    %6819 = vmatprep.subr.mxu0 0.0
    %6820 = vmatpush1.msra.mxu0 %v6765
    %6821 = vmatprep.subr.mxu0 0.0
    %6822 = vmatpush1.msra.mxu0 %v6766
    %6823 = vmatprep.subr.mxu0 0.0
    %6824 = vmatpush1.msra.mxu0 %v6767
    %6825 = vmatprep.subr.mxu0 0.0
    %6826 = vmatpush1.msra.mxu0 %v6768
    %6827 = vmatprep.subr.mxu0 0.0
    %6828 = vmatpush1.msra.mxu0 %v6769
    %6829 = vmatprep.subr.mxu0 0.0
    %6830 = vmatpush1.msra.mxu0 %v6770
    %6831 = vmatprep.subr.mxu0 0.0
    %6832 = vmatpush1.msra.mxu0 %v6771
    %6833 = vmatprep.subr.mxu0 0.0
    %6834 = vmatpush1.msra.mxu0 %v6772
    %6835 = vmatprep.subr.mxu0 0.0
    %6836 = vmatpush1.msra.mxu0 %v6773
    %6837 = vmatprep.subr.mxu0 0.0
    %6838 = vmatpush1.msra.mxu0 %v6774
    %6839 = vmatprep.subr.mxu0 0.0
    %6840 = vmatpush1.msra.mxu0 %v6775
    %6841 = vmatprep.subr.mxu0 0.0
    %6842 = vmatpush1.msra.mxu0 %v6776
    %6843 = vmatprep.subr.mxu0 0.0
    %6844 = vmatpush1.msra.mxu0 %v6777
    %6845 = vmatprep.subr.mxu0 0.0
    %6846 = vmatpush1.msra.mxu0 %v6778
    %6847 = vmatprep.subr.mxu0 0.0
    %6848 = vmatpush1.msra.mxu0 %v6779
    %6849 = vmatprep.subr.mxu0 0.0
    %6850 = vmatpush1.msra.mxu0 %v6780
    %6851 = vmatprep.subr.mxu0 0.0
    %6852 = vmatpush1.msra.mxu0 %v6781
    %6853 = vmatprep.subr.mxu0 0.0
    %6854 = vmatpush1.msra.mxu0 %v6782
    %6855 = vmatprep.subr.mxu0 0.0
    %6856 = vmatpush1.msra.mxu0 %v6783
    %6857 = vmatprep.subr.mxu0 0.0
    %6858 = vmatpush1.msra.mxu0 %v6784
    %6859 = vmatprep.subr.mxu0 0.0
    %6860 = vmatpush1.msra.mxu0 %v6785
    %6861 = vmatprep.subr.mxu0 0.0
    %6862 = vmatpush1.msra.mxu0 %v6786
    %6863 = vmatprep.mubr.f32.mxu0 %v6721
    %6864 = vmatmul.mubr.f32.gmra.mrb[0].mxu0 %v6718
    %v6865 = vpop.f32.mrb[0].mxu0
    %v6866 = vadd.f32 0.0, %v6865
    %v6867 = vpop.f32.mrb[0].mxu0
    %6868 = vmatprep.mubr.f32.mxu0 %v6728
    %6869 = vmatmul.mubr.f32.gmra.mrb[0].mxu0 %v6726
    %v6870 = vpop.f32.mrb[0].mxu0
    %v6871 = vadd.f32 0.0, %v6870
    %v6872 = vpop.f32.mrb[0].mxu0
    %6873 = vmatprep.mubr.f32.mxu0 %v6736
    %6874 = vmatmul.mubr.f32.gmra.mrb[0].mxu0 %v6733
    %v6875 = vpop.f32.mrb[0].mxu0
    %v6876 = vadd.f32 0.0, %v6875
    %v6877 = vpop.f32.mrb[0].mxu0
    %6878 = vmatprep.mubr.f32.mxu0 %v6743
    %6879 = vmatmul.mubr.f32.gmra.mrb[0].mxu0 %v6741
    %v6880 = vpop.f32.mrb[0].mxu0
    %v6881 = vadd.f32 0.0, %v6880
    %v6882 = vpop.f32.mrb[0].mxu0
    %6883 = vdwg.mxu0
    %6884 = vmatprep.subr.mxu0 0.0
    %6885 = vmatpush1.msra.mxu0 %v6787
    %6886 = vmatprep.subr.mxu0 0.0
    %6887 = vmatpush1.msra.mxu0 %v6788
    %6888 = vmatprep.subr.mxu0 0.0
    %6889 = vmatpush1.msra.mxu0 %v6789
    %6890 = vmatprep.subr.mxu0 0.0
    %6891 = vmatpush1.msra.mxu0 %v6790
    %6892 = vmatprep.subr.mxu0 0.0
    %6893 = vmatpush1.msra.mxu0 0.0
    %6894 = vmatprep.subr.mxu0 0.0
    %6895 = vmatpush1.msra.mxu0 0.0
    %6896 = vmatprep.subr.mxu0 0.0
    %6897 = vmatpush1.msra.mxu0 0.0
    %6898 = vmatprep.subr.mxu0 0.0
    %6899 = vmatpush1.msra.mxu0 0.0
    %6900 = vmatprep.subr.mxu0 0.0
    %6901 = vmatpush1.msra.mxu0 0.0
    %6902 = vmatprep.subr.mxu0 0.0
    %6903 = vmatpush1.msra.mxu0 0.0
    %6904 = vmatprep.subr.mxu0 0.0
    %6905 = vmatpush1.msra.mxu0 0.0
    %6906 = vmatprep.subr.mxu0 0.0
    %6907 = vmatpush1.msra.mxu0 0.0
    %6908 = vmatprep.subr.mxu0 0.0
    %6909 = vmatpush1.msra.mxu0 0.0
    %6910 = vmatprep.subr.mxu0 0.0
    %6911 = vmatpush1.msra.mxu0 0.0
    %6912 = vmatprep.subr.mxu0 0.0
    %6913 = vmatpush1.msra.mxu0 0.0
    %6914 = vmatprep.subr.mxu0 0.0
    %6915 = vmatpush1.msra.mxu0 0.0
    %6916 = vmatprep.subr.mxu0 0.0
    %6917 = vmatpush1.msra.mxu0 0.0
    %6918 = vmatprep.subr.mxu0 0.0
    %6919 = vmatpush1.msra.mxu0 0.0
    %6920 = vmatprep.subr.mxu0 0.0
    %6921 = vmatpush1.msra.mxu0 0.0
    %6922 = vmatprep.subr.mxu0 0.0
    %6923 = vmatpush1.msra.mxu0 0.0
    %6924 = vmatprep.subr.mxu0 0.0
    %6925 = vmatpush1.msra.mxu0 0.0
    %6926 = vmatprep.subr.mxu0 0.0
    %6927 = vmatpush1.msra.mxu0 0.0
    %6928 = vmatprep.subr.mxu0 0.0
    %6929 = vmatpush1.msra.mxu0 0.0
    %6930 = vmatprep.subr.mxu0 0.0
    %6931 = vmatpush1.msra.mxu0 0.0
    %6932 = vmatprep.subr.mxu0 0.0
    %6933 = vmatpush1.msra.mxu0 0.0
    %6934 = vmatprep.subr.mxu0 0.0
    %6935 = vmatpush1.msra.mxu0 0.0
    %6936 = vmatprep.subr.mxu0 0.0
    %6937 = vmatpush1.msra.mxu0 0.0
    %6938 = vmatprep.subr.mxu0 0.0
    %6939 = vmatpush1.msra.mxu0 0.0
    %6940 = vmatprep.subr.mxu0 0.0
    %6941 = vmatpush1.msra.mxu0 0.0
    %6942 = vmatprep.subr.mxu0 0.0
    %6943 = vmatpush1.msra.mxu0 0.0
    %6944 = vmatprep.subr.mxu0 0.0
    %6945 = vmatpush1.msra.mxu0 0.0
    %6946 = vmatprep.subr.mxu0 0.0
    %6947 = vmatpush1.msra.mxu0 0.0
    %6948 = vmatprep.mubr.f32.mxu0 0.0
    %6949 = vmatmul.mubr.f32.gmra.mrb[0].mxu0 %v6791
    %v6950 = vpop.f32.mrb[0].mxu0
    %v6951 = vadd.f32 %v6866, %v6950
    %v6952 = vpop.f32.mrb[0].mxu0
    %6953 = vmatprep.mubr.f32.mxu0 0.0
    %6954 = vmatmul.mubr.f32.gmra.mrb[0].mxu0 %v6793
    %v6955 = vpop.f32.mrb[0].mxu0
    %v6956 = vadd.f32 %v6871, %v6955
    %v6957 = vpop.f32.mrb[0].mxu0
    %6958 = vmatprep.mubr.f32.mxu0 0.0
    %6959 = vmatmul.mubr.f32.gmra.mrb[0].mxu0 %v6795
    %v6960 = vpop.f32.mrb[0].mxu0
    %v6961 = vadd.f32 %v6876, %v6960
    %v6962 = vpop.f32.mrb[0].mxu0
    %6963 = vmatprep.mubr.f32.mxu0 0.0
    %6964 = vmatmul.mubr.f32.gmra.mrb[0].mxu0 %v6797
    %v6965 = vpop.f32.mrb[0].mxu0
    %v6966 = vadd.f32 %v6881, %v6965
    %v6967 = vpop.f32.mrb[0].mxu0
    %6968 = vdwg.mxu0
    %v6970 = vsel %vm431, %v6640, 0
    %v6972 = vsel %vm431, %v6643, 0
    %v6975 = vsel %vm431, %v6646, 0
    %v6977 = vsel %vm431, %v6649, 0
    %6979 = vmatprep.subr.mxu0 0.0
    %6980 = vmatpush1.msra.mxu0 %v6650
    %6981 = vmatprep.subr.mxu0 0.0
    %6982 = vmatpush1.msra.mxu0 %v6651
    %6983 = vmatprep.subr.mxu0 0.0
    %6984 = vmatpush1.msra.mxu0 %v6652
    %6985 = vmatprep.subr.mxu0 0.0
    %6986 = vmatpush1.msra.mxu0 %v6653
    %6987 = vmatprep.subr.mxu0 0.0
    %6988 = vmatpush1.msra.mxu0 %v6654
    %6989 = vmatprep.subr.mxu0 0.0
    %6990 = vmatpush1.msra.mxu0 %v6655
    %6991 = vmatprep.subr.mxu0 0.0
    %6992 = vmatpush1.msra.mxu0 %v6656
    %6993 = vmatprep.subr.mxu0 0.0
    %6994 = vmatpush1.msra.mxu0 %v6657
    %6995 = vmatprep.subr.mxu0 0.0
    %6996 = vmatpush1.msra.mxu0 %v6658
    %6997 = vmatprep.subr.mxu0 0.0
    %6998 = vmatpush1.msra.mxu0 %v6659
    %6999 = vmatprep.subr.mxu0 0.0
    %7000 = vmatpush1.msra.mxu0 %v6660
    %7001 = vmatprep.subr.mxu0 0.0
    %7002 = vmatpush1.msra.mxu0 %v6661
    %7003 = vmatprep.subr.mxu0 0.0
    %7004 = vmatpush1.msra.mxu0 %v6662
    %7005 = vmatprep.subr.mxu0 0.0
    %7006 = vmatpush1.msra.mxu0 %v6663
    %7007 = vmatprep.subr.mxu0 0.0
    %7008 = vmatpush1.msra.mxu0 %v6664
    %7009 = vmatprep.subr.mxu0 0.0
    %7010 = vmatpush1.msra.mxu0 %v6665
    %7011 = vmatprep.subr.mxu0 0.0
    %7012 = vmatpush1.msra.mxu0 %v6666
    %7013 = vmatprep.subr.mxu0 0.0
    %7014 = vmatpush1.msra.mxu0 %v6667
    %7015 = vmatprep.subr.mxu0 0.0
    %7016 = vmatpush1.msra.mxu0 %v6668
    %7017 = vmatprep.subr.mxu0 0.0
    %7018 = vmatpush1.msra.mxu0 %v6669
    %7019 = vmatprep.subr.mxu0 0.0
    %7020 = vmatpush1.msra.mxu0 %v6670
    %7021 = vmatprep.subr.mxu0 0.0
    %7022 = vmatpush1.msra.mxu0 %v6671
    %7023 = vmatprep.subr.mxu0 0.0
    %7024 = vmatpush1.msra.mxu0 %v6672
    %7025 = vmatprep.subr.mxu0 0.0
    %7026 = vmatpush1.msra.mxu0 %v6673
    %7027 = vmatprep.subr.mxu0 0.0
    %7028 = vmatpush1.msra.mxu0 %v6674
    %7029 = vmatprep.subr.mxu0 0.0
    %7030 = vmatpush1.msra.mxu0 %v6675
    %7031 = vmatprep.subr.mxu0 0.0
    %7032 = vmatpush1.msra.mxu0 %v6676
    %7033 = vmatprep.subr.mxu0 0.0
    %7034 = vmatpush1.msra.mxu0 %v6677
    %7035 = vmatprep.subr.mxu0 0.0
    %7036 = vmatpush1.msra.mxu0 %v6678
    %7037 = vmatprep.subr.mxu0 0.0
    %7038 = vmatpush1.msra.mxu0 %v6679
    %7039 = vmatprep.subr.mxu0 0.0
    %7040 = vmatpush1.msra.mxu0 %v6680
    %7041 = vmatprep.subr.mxu0 0.0
    %7042 = vmatpush1.msra.mxu0 %v6681
    %7043 = vmatprep.mubr.f32.mxu0 %v6639
    %7044 = vmatmul.mubr.f32.gmra.mrb[0].mxu0 %v6638
    %v7045 = vpop.f32.mrb[0].mxu0
    %v7046 = vadd.f32 %v6951, %v7045
    %v7047 = vpop.f32.mrb[0].mxu0
    %7048 = vmatprep.mubr.f32.mxu0 %v6642
    %7049 = vmatmul.mubr.f32.gmra.mrb[0].mxu0 %v6641
    %v7050 = vpop.f32.mrb[0].mxu0
    %v7051 = vadd.f32 %v6956, %v7050
    %v7052 = vpop.f32.mrb[0].mxu0
    %7053 = vmatprep.mubr.f32.mxu0 %v6645
    %7054 = vmatmul.mubr.f32.gmra.mrb[0].mxu0 %v6644
    %v7055 = vpop.f32.mrb[0].mxu0
    %v7056 = vadd.f32 %v6961, %v7055
    %v7057 = vpop.f32.mrb[0].mxu0
    %7058 = vmatprep.mubr.f32.mxu0 %v6648
    %7059 = vmatmul.mubr.f32.gmra.mrb[0].mxu0 %v6647
    %v7060 = vpop.f32.mrb[0].mxu0
    %v7061 = vadd.f32 %v6966, %v7060
    %v7062 = vpop.f32.mrb[0].mxu0
    %7063 = vdwg.mxu0
    %7064 = vmatprep.subr.mxu0 0.0
    %7065 = vmatpush1.msra.mxu0 %v6682
    %7066 = vmatprep.subr.mxu0 0.0
    %7067 = vmatpush1.msra.mxu0 %v6683
    %7068 = vmatprep.subr.mxu0 0.0
    %7069 = vmatpush1.msra.mxu0 %v6684
    %7070 = vmatprep.subr.mxu0 0.0
    %7071 = vmatpush1.msra.mxu0 %v6685
    %7072 = vmatprep.subr.mxu0 0.0
    %7073 = vmatpush1.msra.mxu0 0.0
    %7074 = vmatprep.subr.mxu0 0.0
    %7075 = vmatpush1.msra.mxu0 0.0
    %7076 = vmatprep.subr.mxu0 0.0
    %7077 = vmatpush1.msra.mxu0 0.0
    %7078 = vmatprep.subr.mxu0 0.0
    %7079 = vmatpush1.msra.mxu0 0.0
    %7080 = vmatprep.subr.mxu0 0.0
    %7081 = vmatpush1.msra.mxu0 0.0
    %7082 = vmatprep.subr.mxu0 0.0
    %7083 = vmatpush1.msra.mxu0 0.0
    %7084 = vmatprep.subr.mxu0 0.0
    %7085 = vmatpush1.msra.mxu0 0.0
    %7086 = vmatprep.subr.mxu0 0.0
    %7087 = vmatpush1.msra.mxu0 0.0
    %7088 = vmatprep.subr.mxu0 0.0
    %7089 = vmatpush1.msra.mxu0 0.0
    %7090 = vmatprep.subr.mxu0 0.0
    %7091 = vmatpush1.msra.mxu0 0.0
    %7092 = vmatprep.subr.mxu0 0.0
    %7093 = vmatpush1.msra.mxu0 0.0
    %7094 = vmatprep.subr.mxu0 0.0
    %7095 = vmatpush1.msra.mxu0 0.0
    %7096 = vmatprep.subr.mxu0 0.0
    %7097 = vmatpush1.msra.mxu0 0.0
    %7098 = vmatprep.subr.mxu0 0.0
    %7099 = vmatpush1.msra.mxu0 0.0
    %7100 = vmatprep.subr.mxu0 0.0
    %7101 = vmatpush1.msra.mxu0 0.0
    %7102 = vmatprep.subr.mxu0 0.0
    %7103 = vmatpush1.msra.mxu0 0.0
    %7104 = vmatprep.subr.mxu0 0.0
    %7105 = vmatpush1.msra.mxu0 0.0
    %7106 = vmatprep.subr.mxu0 0.0
    %7107 = vmatpush1.msra.mxu0 0.0
    %7108 = vmatprep.subr.mxu0 0.0
    %7109 = vmatpush1.msra.mxu0 0.0
    %7110 = vmatprep.subr.mxu0 0.0
    %7111 = vmatpush1.msra.mxu0 0.0
    %7112 = vmatprep.subr.mxu0 0.0
    %7113 = vmatpush1.msra.mxu0 0.0
    %7114 = vmatprep.subr.mxu0 0.0
    %7115 = vmatpush1.msra.mxu0 0.0
    %7116 = vmatprep.subr.mxu0 0.0
    %7117 = vmatpush1.msra.mxu0 0.0
    %7118 = vmatprep.subr.mxu0 0.0
    %7119 = vmatpush1.msra.mxu0 0.0
    %7120 = vmatprep.subr.mxu0 0.0
    %7121 = vmatpush1.msra.mxu0 0.0
    %7122 = vmatprep.subr.mxu0 0.0
    %7123 = vmatpush1.msra.mxu0 0.0
    %7124 = vmatprep.subr.mxu0 0.0
    %7125 = vmatpush1.msra.mxu0 0.0
    %7126 = vmatprep.subr.mxu0 0.0
    %7127 = vmatpush1.msra.mxu0 0.0
    %7128 = vmatprep.mubr.f32.mxu0 0.0
    %7129 = vmatmul.mubr.f32.gmra.mrb[0].mxu0 %v6970
    %v7130 = vpop.f32.mrb[0].mxu0
    %v7131 = vadd.f32 %v7046, %v7130
    %v7132 = vpop.f32.mrb[0].mxu0
    %7133 = vmatprep.mubr.f32.mxu0 0.0
    %7134 = vmatmul.mubr.f32.gmra.mrb[0].mxu0 %v6972
    %v7135 = vpop.f32.mrb[0].mxu0
    %v7136 = vadd.f32 %v7051, %v7135
    %v7137 = vpop.f32.mrb[0].mxu0
    %7138 = vmatprep.mubr.f32.mxu0 0.0
    %7139 = vmatmul.mubr.f32.gmra.mrb[0].mxu0 %v6975
    %v7140 = vpop.f32.mrb[0].mxu0
    %v7141 = vadd.f32 %v7056, %v7140
    %v7142 = vpop.f32.mrb[0].mxu0
    %7143 = vmatprep.mubr.f32.mxu0 0.0
    %7144 = vmatmul.mubr.f32.gmra.mrb[0].mxu0 %v6977
    %v7145 = vpop.f32.mrb[0].mxu0
    %v7146 = vadd.f32 %v7061, %v7145
    %v7147 = vpop.f32.mrb[0].mxu0
    %7148 = vdwg.mxu0
    %v7149 = vld [vmem:[#allocation3] sm:$0xfc]
    %v7150 = vld [vmem:[#allocation3 + $0x8] sm:$0xfc]
    %v7151 = vld [vmem:[#allocation3 + $0x10] sm:$0xfc]
    %v7152 = vld [vmem:[#allocation3 + $0x30] sm:$0x3]
    %v7153 = vld [vmem:[#allocation3 + $0x38] sm:$0x3]
    %v7154 = vld [vmem:[#allocation3 + $0x40] sm:$0x3]
    %v7155 = vld [vmem:[#allocation3 + $0x48] sm:$0xfc]
    %v7156 = vld [vmem:[#allocation3 + $0x50] sm:$0xfc]
    %v7157 = vld [vmem:[#allocation3 + $0x58] sm:$0xfc]
    %v7158 = vld [vmem:[#allocation3 + $0x78] sm:$0x3]
    %v7159 = vld [vmem:[#allocation3 + $0x80] sm:$0x3]
    %v7160 = vld [vmem:[#allocation3 + $0x88] sm:$0x3]
    %v7173 = vrot.slane %v7149, 2
    %v7174 = vrot.slane %v6641, 2
    %v7175 = vsel %vm1853, %v7173, %v7174
    %v7176 = vrot.slane %v7150, 2
    %v7177 = vrot.slane %v6642, 2
    %v7178 = vsel %vm1853, %v7176, %v7177
    %v7179 = vrot.slane %v7151, 2
    %v7180 = vrot.slane %v6643, 2
    %v7181 = vsel %vm1853, %v7179, %v7180
    %v7182 = vrot.slane %v7152, 2
    %v7183 = vsel %vm1853, %v7174, %v7182
    %v7184 = vrot.slane %v7153, 2
    %v7185 = vsel %vm1853, %v7177, %v7184
    %v7186 = vrot.slane %v7154, 2
    %v7187 = vsel %vm1853, %v7180, %v7186
    %v7188 = vrot.slane %v7155, 2
    %v7189 = vrot.slane %v6647, 2
    %v7190 = vsel %vm1853, %v7188, %v7189
    %v7191 = vrot.slane %v7156, 2
    %v7192 = vrot.slane %v6648, 2
    %v7193 = vsel %vm1853, %v7191, %v7192
    %v7194 = vrot.slane %v7157, 2
    %v7195 = vrot.slane %v6649, 2
    %v7196 = vsel %vm1853, %v7194, %v7195
    %v7197 = vrot.slane %v7158, 2
    %v7198 = vsel %vm1853, %v7189, %v7197
    %v7199 = vrot.slane %v7159, 2
    %v7200 = vsel %vm1853, %v7192, %v7199
    %v7201 = vrot.slane %v7160, 2
    %v7202 = vsel %vm1853, %v7195, %v7201
    %s7211 = scalar_lea.vmem %s6, 576
    %v7212 = vld [vmem:[%s7211] sm:$0xff]
    %v7213 = vld [vmem:[%s7211 + $0x8] sm:$0xff]
    %v7214 = vld [vmem:[%s7211 + $0x10] sm:$0xff]
    %v7215 = vld [vmem:[%s7211 + $0x18] sm:$0xff]
    %v7216 = vld [vmem:[%s7211 + $0x20] sm:$0xff]
    %v7217 = vld [vmem:[%s7211 + $0x28] sm:$0xff]
    %v7218 = vld [vmem:[%s7211 + $0x30] sm:$0xff]
    %v7219 = vld [vmem:[%s7211 + $0x38] sm:$0xff]
    %v7220 = vld [vmem:[%s7211 + $0x40] sm:$0xff]
    %v7221 = vld [vmem:[%s7211 + $0x48] sm:$0xff]
    %v7222 = vld [vmem:[%s7211 + $0x50] sm:$0xff]
    %v7223 = vld [vmem:[%s7211 + $0x58] sm:$0xff]
    %v7224 = vld [vmem:[%s7211 + $0x60] sm:$0xff]
    %v7225 = vld [vmem:[%s7211 + $0x68] sm:$0xff]
    %v7226 = vld [vmem:[%s7211 + $0x70] sm:$0xff]
    %v7227 = vld [vmem:[%s7211 + $0x78] sm:$0xff]
    %v7228 = vld [vmem:[%s7211 + $0x80] sm:$0xff]
    %v7229 = vld [vmem:[%s7211 + $0x88] sm:$0xff]
    %v7230 = vld [vmem:[%s7211 + $0x90] sm:$0xff]
    %v7231 = vld [vmem:[%s7211 + $0x98] sm:$0xff]
    %v7232 = vld [vmem:[%s7211 + $0xa0] sm:$0xff]
    %v7233 = vld [vmem:[%s7211 + $0xa8] sm:$0xff]
    %v7234 = vld [vmem:[%s7211 + $0xb0] sm:$0xff]
    %v7235 = vld [vmem:[%s7211 + $0xb8] sm:$0xff]
    %v7236 = vld [vmem:[%s7211 + $0xc0] sm:$0xff]
    %v7237 = vld [vmem:[%s7211 + $0xc8] sm:$0xff]
    %v7238 = vld [vmem:[%s7211 + $0xd0] sm:$0xff]
    %v7239 = vld [vmem:[%s7211 + $0xd8] sm:$0xff]
    %v7240 = vld [vmem:[%s7211 + $0xe0] sm:$0xff]
    %v7241 = vld [vmem:[%s7211 + $0xe8] sm:$0xff]
    %v7242 = vld [vmem:[%s7211 + $0xf0] sm:$0xff]
    %v7243 = vld [vmem:[%s7211 + $0xf8] sm:$0xff]
    %v7244 = vld [vmem:[%s7211 + $0x100] sm:$0xff]
    %v7245 = vld [vmem:[%s7211 + $0x108] sm:$0xff]
    %v7246 = vld [vmem:[%s7211 + $0x110] sm:$0xff]
    %v7247 = vld [vmem:[%s7211 + $0x118] sm:$0xff]
    %v7248 = vsel %vm431, %v7181, 0
    %v7250 = vsel %vm431, %v7187, 0
    %v7252 = vsel %vm431, %v7196, 0
    %v7254 = vsel %vm431, %v7202, 0
    %7256 = vmatprep.subr.mxu0 0.0
    %7257 = vmatpush1.msra.mxu0 %v7212
    %7258 = vmatprep.subr.mxu0 0.0
    %7259 = vmatpush1.msra.mxu0 %v7213
    %7260 = vmatprep.subr.mxu0 0.0
    %7261 = vmatpush1.msra.mxu0 %v7214
    %7262 = vmatprep.subr.mxu0 0.0
    %7263 = vmatpush1.msra.mxu0 %v7215
    %7264 = vmatprep.subr.mxu0 0.0
    %7265 = vmatpush1.msra.mxu0 %v7216
    %7266 = vmatprep.subr.mxu0 0.0
    %7267 = vmatpush1.msra.mxu0 %v7217
    %7268 = vmatprep.subr.mxu0 0.0
    %7269 = vmatpush1.msra.mxu0 %v7218
    %7270 = vmatprep.subr.mxu0 0.0
    %7271 = vmatpush1.msra.mxu0 %v7219
    %7272 = vmatprep.subr.mxu0 0.0
    %7273 = vmatpush1.msra.mxu0 %v7220
    %7274 = vmatprep.subr.mxu0 0.0
    %7275 = vmatpush1.msra.mxu0 %v7221
    %7276 = vmatprep.subr.mxu0 0.0
    %7277 = vmatpush1.msra.mxu0 %v7222
    %7278 = vmatprep.subr.mxu0 0.0
    %7279 = vmatpush1.msra.mxu0 %v7223
    %7280 = vmatprep.subr.mxu0 0.0
    %7281 = vmatpush1.msra.mxu0 %v7224
    %7282 = vmatprep.subr.mxu0 0.0
    %7283 = vmatpush1.msra.mxu0 %v7225
    %7284 = vmatprep.subr.mxu0 0.0
    %7285 = vmatpush1.msra.mxu0 %v7226
    %7286 = vmatprep.subr.mxu0 0.0
    %7287 = vmatpush1.msra.mxu0 %v7227
    %7288 = vmatprep.subr.mxu0 0.0
    %7289 = vmatpush1.msra.mxu0 %v7228
    %7290 = vmatprep.subr.mxu0 0.0
    %7291 = vmatpush1.msra.mxu0 %v7229
    %7292 = vmatprep.subr.mxu0 0.0
    %7293 = vmatpush1.msra.mxu0 %v7230
    %7294 = vmatprep.subr.mxu0 0.0
    %7295 = vmatpush1.msra.mxu0 %v7231
    %7296 = vmatprep.subr.mxu0 0.0
    %7297 = vmatpush1.msra.mxu0 %v7232
    %7298 = vmatprep.subr.mxu0 0.0
    %7299 = vmatpush1.msra.mxu0 %v7233
    %7300 = vmatprep.subr.mxu0 0.0
    %7301 = vmatpush1.msra.mxu0 %v7234
    %7302 = vmatprep.subr.mxu0 0.0
    %7303 = vmatpush1.msra.mxu0 %v7235
    %7304 = vmatprep.subr.mxu0 0.0
    %7305 = vmatpush1.msra.mxu0 %v7236
    %7306 = vmatprep.subr.mxu0 0.0
    %7307 = vmatpush1.msra.mxu0 %v7237
    %7308 = vmatprep.subr.mxu0 0.0
    %7309 = vmatpush1.msra.mxu0 %v7238
    %7310 = vmatprep.subr.mxu0 0.0
    %7311 = vmatpush1.msra.mxu0 %v7239
    %7312 = vmatprep.subr.mxu0 0.0
    %7313 = vmatpush1.msra.mxu0 %v7240
    %7314 = vmatprep.subr.mxu0 0.0
    %7315 = vmatpush1.msra.mxu0 %v7241
    %7316 = vmatprep.subr.mxu0 0.0
    %7317 = vmatpush1.msra.mxu0 %v7242
    %7318 = vmatprep.subr.mxu0 0.0
    %7319 = vmatpush1.msra.mxu0 %v7243
    %7320 = vmatprep.mubr.f32.mxu0 %v7178
    %7321 = vmatmul.mubr.f32.gmra.mrb[0].mxu0 %v7175
    %v7322 = vpop.f32.mrb[0].mxu0
    %v7323 = vadd.f32 0.0, %v7322
    %v7324 = vpop.f32.mrb[0].mxu0
    %7325 = vmatprep.mubr.f32.mxu0 %v7185
    %7326 = vmatmul.mubr.f32.gmra.mrb[0].mxu0 %v7183
    %v7327 = vpop.f32.mrb[0].mxu0
    %v7328 = vadd.f32 0.0, %v7327
    %v7329 = vpop.f32.mrb[0].mxu0
    %7330 = vmatprep.mubr.f32.mxu0 %v7193
    %7331 = vmatmul.mubr.f32.gmra.mrb[0].mxu0 %v7190
    %v7332 = vpop.f32.mrb[0].mxu0
    %v7333 = vadd.f32 0.0, %v7332
    %v7334 = vpop.f32.mrb[0].mxu0
    %7335 = vmatprep.mubr.f32.mxu0 %v7200
    %7336 = vmatmul.mubr.f32.gmra.mrb[0].mxu0 %v7198
    %v7337 = vpop.f32.mrb[0].mxu0
    %v7338 = vadd.f32 0.0, %v7337
    %v7339 = vpop.f32.mrb[0].mxu0
    %7340 = vdwg.mxu0
    %7341 = vmatprep.subr.mxu0 0.0
    %7342 = vmatpush1.msra.mxu0 %v7244
    %7343 = vmatprep.subr.mxu0 0.0
    %7344 = vmatpush1.msra.mxu0 %v7245
    %7345 = vmatprep.subr.mxu0 0.0
    %7346 = vmatpush1.msra.mxu0 %v7246
    %7347 = vmatprep.subr.mxu0 0.0
    %7348 = vmatpush1.msra.mxu0 %v7247
    %7349 = vmatprep.subr.mxu0 0.0
    %7350 = vmatpush1.msra.mxu0 0.0
    %7351 = vmatprep.subr.mxu0 0.0
    %7352 = vmatpush1.msra.mxu0 0.0
    %7353 = vmatprep.subr.mxu0 0.0
    %7354 = vmatpush1.msra.mxu0 0.0
    %7355 = vmatprep.subr.mxu0 0.0
    %7356 = vmatpush1.msra.mxu0 0.0
    %7357 = vmatprep.subr.mxu0 0.0
    %7358 = vmatpush1.msra.mxu0 0.0
    %7359 = vmatprep.subr.mxu0 0.0
    %7360 = vmatpush1.msra.mxu0 0.0
    %7361 = vmatprep.subr.mxu0 0.0
    %7362 = vmatpush1.msra.mxu0 0.0
    %7363 = vmatprep.subr.mxu0 0.0
    %7364 = vmatpush1.msra.mxu0 0.0
    %7365 = vmatprep.subr.mxu0 0.0
    %7366 = vmatpush1.msra.mxu0 0.0
    %7367 = vmatprep.subr.mxu0 0.0
    %7368 = vmatpush1.msra.mxu0 0.0
    %7369 = vmatprep.subr.mxu0 0.0
    %7370 = vmatpush1.msra.mxu0 0.0
    %7371 = vmatprep.subr.mxu0 0.0
    %7372 = vmatpush1.msra.mxu0 0.0
    %7373 = vmatprep.subr.mxu0 0.0
    %7374 = vmatpush1.msra.mxu0 0.0
    %7375 = vmatprep.subr.mxu0 0.0
    %7376 = vmatpush1.msra.mxu0 0.0
    %7377 = vmatprep.subr.mxu0 0.0
    %7378 = vmatpush1.msra.mxu0 0.0
    %7379 = vmatprep.subr.mxu0 0.0
    %7380 = vmatpush1.msra.mxu0 0.0
    %7381 = vmatprep.subr.mxu0 0.0
    %7382 = vmatpush1.msra.mxu0 0.0
    %7383 = vmatprep.subr.mxu0 0.0
    %7384 = vmatpush1.msra.mxu0 0.0
    %7385 = vmatprep.subr.mxu0 0.0
    %7386 = vmatpush1.msra.mxu0 0.0
    %7387 = vmatprep.subr.mxu0 0.0
    %7388 = vmatpush1.msra.mxu0 0.0
    %7389 = vmatprep.subr.mxu0 0.0
    %7390 = vmatpush1.msra.mxu0 0.0
    %7391 = vmatprep.subr.mxu0 0.0
    %7392 = vmatpush1.msra.mxu0 0.0
    %7393 = vmatprep.subr.mxu0 0.0
    %7394 = vmatpush1.msra.mxu0 0.0
    %7395 = vmatprep.subr.mxu0 0.0
    %7396 = vmatpush1.msra.mxu0 0.0
    %7397 = vmatprep.subr.mxu0 0.0
    %7398 = vmatpush1.msra.mxu0 0.0
    %7399 = vmatprep.subr.mxu0 0.0
    %7400 = vmatpush1.msra.mxu0 0.0
    %7401 = vmatprep.subr.mxu0 0.0
    %7402 = vmatpush1.msra.mxu0 0.0
    %7403 = vmatprep.subr.mxu0 0.0
    %7404 = vmatpush1.msra.mxu0 0.0
    %7405 = vmatprep.mubr.f32.mxu0 0.0
    %7406 = vmatmul.mubr.f32.gmra.mrb[0].mxu0 %v7248
    %v7407 = vpop.f32.mrb[0].mxu0
    %v7408 = vadd.f32 %v7323, %v7407
    %v7409 = vpop.f32.mrb[0].mxu0
    %7410 = vmatprep.mubr.f32.mxu0 0.0
    %7411 = vmatmul.mubr.f32.gmra.mrb[0].mxu0 %v7250
    %v7412 = vpop.f32.mrb[0].mxu0
    %v7413 = vadd.f32 %v7328, %v7412
    %v7414 = vpop.f32.mrb[0].mxu0
    %7415 = vmatprep.mubr.f32.mxu0 0.0
    %7416 = vmatmul.mubr.f32.gmra.mrb[0].mxu0 %v7252
    %v7417 = vpop.f32.mrb[0].mxu0
    %v7418 = vadd.f32 %v7333, %v7417
    %v7419 = vpop.f32.mrb[0].mxu0
    %7420 = vmatprep.mubr.f32.mxu0 0.0
    %7421 = vmatmul.mubr.f32.gmra.mrb[0].mxu0 %v7254
    %v7422 = vpop.f32.mrb[0].mxu0
    %v7423 = vadd.f32 %v7338, %v7422
    %v7424 = vpop.f32.mrb[0].mxu0
    %7425 = vdwg.mxu0
    %v7426 = vadd.f32 %v7131, %v7408
    %v7427 = vadd.f32 %v7136, %v7413
    %v7428 = vadd.f32 %v7141, %v7418
    %v7429 = vadd.f32 %v7146, %v7423
    %v7430 = vld [vmem:[%s7] sm:$0x1]
    %v7432 = vlaneseq
    %v7433 = vshrl.u32 %v7432, 7
    %v7434 = vsub.s32 0, %v7433
    %v7435 = vrot.slane %v7430, %v7434
    %v7437 = vadd.f32 %v7426, %v7435
    %v7438 = vadd.f32 %v7427, %v7435
    %v7439 = vadd.f32 %v7428, %v7435
    %v7440 = vadd.f32 %v7429, %v7435
    %7441 = vst.msk [vmem:[#allocation4] sm:$0xff] %vm712, %v7437
    %7442 = vst.msk [vmem:[#allocation4 + $0x8] sm:$0xff] %vm712, %v7438
    %7443 = vst.msk [vmem:[#allocation4 + $0x10] sm:$0xff] %vm712, %v7439
    %7444 = vst.msk [vmem:[#allocation4 + $0x18] sm:$0xff] %vm712, %v7440
    // Predicated region
    $region38: #{tpu_custom_call.1} parent=1 // pred_check
      _
    $region39: #{tpu_custom_call.1} parent=1 // pred_check_branch
      %7446 = sbr.rel (0) target = $region41
    $region40: #{tpu_custom_call.1} parent=1 // pred_region
      %s7448 = ssub.s32 512, 512
      %7449 = vsyncadd [#allocation5], %s7448
      %s7450 = sshll.u32 [#allocation4], 4
      %s7451 = int_to_ptr.vmem [resolvable:$true] %s7450
      %7456 = dma.vmem_to_hbm [thread:$0]  %s7451, 512, %s8, [#allocation5], 128, 128, 8
    $region41: #{tpu_custom_call.1} parent=1 // pred_fallthru
      _
    // Predicated region
    $region42: #{tpu_custom_call.1} parent=1 // pred_check
      _
    $region43: #{tpu_custom_call.1} parent=1 // pred_check_branch
      %7458 = sbr.rel (0) target = $region45
    $region44: #{tpu_custom_call.1} parent=1 // pred_region
      %7459 = dma.done [#allocation5], 512
    $region45: #{tpu_custom_call.1} parent=1 // pred_fallthru
      _
    %7460 = vsyncpa [#allocation5], 1

</llo_original>
